<compile_context>
chip_gen: v7x
topology: tpu7x:2x2x1
jax: 0.10.0
libtpu: 0.0.40
codegen_flags: <defaults>
</compile_context>

<pallas_src>
import functools

import jax
import jax.numpy as jnp
from jax.experimental import pallas as pl
from jax.experimental.pallas import tpu as pltpu


def fused_dae_kernel(x_ref, w1_ref, b1_ref, w2_ref, b2_ref, w3_ref, b3_ref,
                     w4_ref, b4_ref, o_ref, pad0, pad1, pad2, pad3,
                     *, B, H, W):
    """One grid step = B images, all four conv layers fused, VMEM-resident.

    x_ref   : (B, H, W*C0)  bf16, (W,C) merged on the lane axis
    wK_ref  : (3, W*Cin, W*Cout) bf16 banded (Toeplitz) weights, one per ky
    bK_ref  : (1, W*Cout) f32 bias tiled across W
    o_ref   : (B, H, W*C0) f32 output (NHWC-merged; wrapper -> NCHW)
    padK    : (B, H+2, W*C) bf16 scratch, height-padded activations
    """

    def store_padded(pad_ref, act):
        # act: (B*H, W*C) -> interior rows; 1-row top/bottom borders zeroed.
        wc = pad_ref.shape[-1]
        zrow = jnp.zeros((B, 1, wc), pad_ref.dtype)
        pad_ref[:, 0:1, :] = zrow
        pad_ref[:, H + 1:H + 2, :] = zrow
        pad_ref[:, 1:H + 1, :] = act.reshape(B, H, wc).astype(pad_ref.dtype)

    def conv3x3(pad_ref, w_ref, b_ref):
        # 3 accumulating MXU matmuls: (B*H, W*Cin) @ (W*Cin, W*Cout).
        # The banded weight already handles kx taps and x-direction padding.
        wc_in = pad_ref.shape[-1]
        acc = jnp.dot(pad_ref[:, 0:H, :].reshape(B * H, wc_in), w_ref[0],
                      preferred_element_type=jnp.float32)
        acc = acc + jnp.dot(pad_ref[:, 1:H + 1, :].reshape(B * H, wc_in),
                            w_ref[1], preferred_element_type=jnp.float32)
        acc = acc + jnp.dot(pad_ref[:, 2:H + 2, :].reshape(B * H, wc_in),
                            w_ref[2], preferred_element_type=jnp.float32)
        return acc + b_ref[...]                      # f32 epilogue

    store_padded(pad0, x_ref[...])                   # input (already bf16)

    h = jnp.maximum(conv3x3(pad0, w1_ref, b1_ref), 0.0)   # enc conv1 + ReLU
    store_padded(pad1, h)
    h = jnp.maximum(conv3x3(pad1, w2_ref, b2_ref), 0.0)   # enc conv2 + ReLU
    store_padded(pad2, h)
    h = jnp.maximum(conv3x3(pad2, w3_ref, b3_ref), 0.0)   # dec conv1 + ReLU
    store_padded(pad3, h)
    out = jax.nn.sigmoid(conv3x3(pad3, w4_ref, b4_ref))    # dec conv2 + Sigmoid
    o_ref[...] = out.reshape(B, H, o_ref.shape[-1]).astype(o_ref.dtype)


def _banded_conv_weights(w_hwio, width, dtype):
    """(3,3,Cin,Cout) HWIO -> (3, W*Cin, W*Cout) banded matrices (one per ky).

    band[ky, xi*Cin+ci, xo*Cout+co] = w[ky, xi-xo+1, ci, co] if |xi-xo|<=1,
    else 0.  Out-of-range taps are simply absent, which realizes the SAME
    padding in the x direction, so the kernel only needs height padding.
    """
    _, _, cin, cout = w_hwio.shape
    xi = jnp.arange(width)[:, None]                    # input column
    xo = jnp.arange(width)[None, :]                    # output column
    kx = xi - xo + 1                                   # tap index in [0, 2]
    valid = (kx >= 0) & (kx <= 2)
    band = w_hwio[:, jnp.clip(kx, 0, 2)]               # (3, W, W, Cin, Cout)
    band = jnp.where(valid[None, :, :, None, None], band, 0.0)
    band = jnp.transpose(band, (0, 1, 3, 2, 4))        # (ky, xi, Cin, xo, Cout)
    return band.reshape(3, width * cin, width * cout).astype(dtype)


def _tiled_bias(b, width):
    return jnp.tile(b, width).reshape(1, width * b.shape[0]).astype(jnp.float32)


def denoising_autoencoder_forward_impl(x_nchw, params, *, b_tile=None):
    """Forward pass matching DenoisingAutoencoder.forward. Input/output NCHW."""
    N, C0, H, W = x_nchw.shape
    C1 = params["w1"].shape[-1]      # channel // 2
    C2 = params["w2"].shape[-1]      # latent_dim

    if b_tile is None:
        # >= 2 grid steps when N >= 2 (both v7x TensorCores loaded),
        # <= 8 images per step (VMEM headroom on all generations).
        b_tile = max(1, min(8, pl.cdiv(N, 2)))
    grid_n = pl.cdiv(N, b_tile)

    # NCHW -> (N, H, W*C0): (W, C) merged on the lane axis; bf16 MXU feed.
    x = jnp.transpose(x_nchw, (0, 2, 3, 1)).reshape(N, H, W * C0)
    x = x.astype(jnp.bfloat16)

    # trace-time weight prep (banded bf16 matrices + W-tiled f32 biases)
    w1 = _banded_conv_weights(params["w1"], W, jnp.bfloat16)
    w2 = _banded_conv_weights(params["w2"], W, jnp.bfloat16)
    w3 = _banded_conv_weights(params["w3"], W, jnp.bfloat16)
    w4 = _banded_conv_weights(params["w4"], W, jnp.bfloat16)
    b1 = _tiled_bias(params["b1"], W)
    b2 = _tiled_bias(params["b2"], W)
    b3 = _tiled_bias(params["b3"], W)
    b4 = _tiled_bias(params["b4"], W)

    Hp = H + 2
    kernel = functools.partial(fused_dae_kernel, B=b_tile, H=H, W=W)

    def const_spec(*shape):
        zeros = (0,) * len(shape)
        return pl.BlockSpec(shape, lambda n: zeros)    # resident across steps

    out = pl.pallas_call(
        kernel,
        out_shape=jax.ShapeDtypeStruct((N, H, W * C0), jnp.float32),
        grid=(grid_n,),
        in_specs=[
            pl.BlockSpec((b_tile, H, W * C0), lambda n: (n, 0, 0)),
            const_spec(3, W * C0, W * C1), const_spec(1, W * C1),
            const_spec(3, W * C1, W * C2), const_spec(1, W * C2),
            const_spec(3, W * C2, W * C1), const_spec(1, W * C1),
            const_spec(3, W * C1, W * C0), const_spec(1, W * C0),
        ],
        out_specs=pl.BlockSpec((b_tile, H, W * C0), lambda n: (n, 0, 0)),
        scratch_shapes=[
            pltpu.VMEM((b_tile, Hp, W * C0), jnp.bfloat16),
            pltpu.VMEM((b_tile, Hp, W * C1), jnp.bfloat16),
            pltpu.VMEM((b_tile, Hp, W * C2), jnp.bfloat16),
            pltpu.VMEM((b_tile, Hp, W * C1), jnp.bfloat16),
        ],
        compiler_params=pltpu.CompilerParams(
            dimension_semantics=("parallel",)),
    )(x, w1, b1, w2, b2, w3, b3, w4, b4)

    # (N, H, W*C0) -> (N, H, W, C0) is free; tiny XLA transpose back to NCHW.
    return jnp.transpose(out.reshape(N, H, W, C0), (0, 3, 1, 2))


denoising_autoencoder_forward = jax.jit(denoising_autoencoder_forward_impl,
                                        static_argnames=("b_tile",))


def init_conv_params(key, cin, cout):
    """Mirror PyTorch Conv2d default init (uniform +/- 1/sqrt(fan_in))."""
    kw, kb = jax.random.split(key)
    fan_in = cin * 3 * 3
    bound = 1.0 / jnp.sqrt(jnp.float32(fan_in))
    w = jax.random.uniform(kw, (3, 3, cin, cout), jnp.float32, -bound, bound)  # HWIO
    b = jax.random.uniform(kb, (cout,), jnp.float32, -bound, bound)
    return w, b


def init_autoencoder_params(key, channel, latent_dim):
    keys = jax.random.split(key, 4)
    c2 = channel // 2
    w1, b1 = init_conv_params(keys[0], channel, c2)       # encoder conv1
    w2, b2 = init_conv_params(keys[1], c2, latent_dim)    # encoder conv2
    w3, b3 = init_conv_params(keys[2], latent_dim, c2)    # decoder conv1
    w4, b4 = init_conv_params(keys[3], c2, channel)       # decoder conv2
    return dict(w1=w1, b1=b1, w2=w2, b2=b2, w3=w3, b3=b3, w4=w4, b4=b4)


def _reference_forward(x_nchw, params):
    """Pure-JAX reference (lax.conv) for correctness checking."""
    x = jnp.transpose(x_nchw, (0, 2, 3, 1))

    def conv(x, w, b):
        y = jax.lax.conv_general_dilated(
            x, w, window_strides=(1, 1), padding="SAME",
            dimension_numbers=("NHWC", "HWIO", "NHWC"))
        return y + b

    x = jax.nn.relu(conv(x, params["w1"], params["b1"]))
    x = jax.nn.relu(conv(x, params["w2"], params["b2"]))
    x = jax.nn.relu(conv(x, params["w3"], params["b3"]))
    x = jax.nn.sigmoid(conv(x, params["w4"], params["b4"]))
    return jnp.transpose(x, (0, 3, 1, 2))


if __name__ == "__main__":
    # Small, forward-consistent shapes: batch=8, channel=32, latent_dim=8, spatial=16
    batch, channel, latent_dim, spatial = 8, 32, 8, 16

    key = jax.random.PRNGKey(0)
    kx, kp = jax.random.split(key)

    x = jax.random.normal(kx, (batch, channel, spatial, spatial), jnp.float32)
    params = init_autoencoder_params(kp, channel, latent_dim)

    out = denoising_autoencoder_forward(x, params)
    out = jax.block_until_ready(out)

    assert out.shape == (batch, channel, spatial, spatial), out.shape
    assert out.dtype == jnp.float32
    assert bool(jnp.all(jnp.isfinite(out)))
    # sigmoid output range sanity
    assert bool(jnp.all(out >= 0.0)) and bool(jnp.all(out <= 1.0))

    # correctness vs. pure-JAX conv reference (bf16 MXU operands -> loose tol)
    ref = jax.block_until_ready(_reference_forward(x, params))
    max_err = float(jnp.max(jnp.abs(out - ref)))
    assert max_err < 4e-2, f"max abs error vs reference: {max_err}"

    print("KERNEL_OK")
</pallas_src>

<mosaic_0001>
module attributes {stable_mosaic.version = 11 : i64} {
  func.func @fused_dae_kernel(%arg0: i32, %arg1: memref<4x16x512xbf16, #tpu.memory_space<vmem>>, %arg2: memref<3x512x256xbf16, #tpu.memory_space<vmem>>, %arg3: memref<1x256xf32, #tpu.memory_space<vmem>>, %arg4: memref<3x256x128xbf16, #tpu.memory_space<vmem>>, %arg5: memref<1x128xf32, #tpu.memory_space<vmem>>, %arg6: memref<3x128x256xbf16, #tpu.memory_space<vmem>>, %arg7: memref<1x256xf32, #tpu.memory_space<vmem>>, %arg8: memref<3x256x512xbf16, #tpu.memory_space<vmem>>, %arg9: memref<1x512xf32, #tpu.memory_space<vmem>>, %arg10: memref<4x16x512xf32, #tpu.memory_space<vmem>>, %arg11: memref<4x18x512xbf16, #tpu.memory_space<vmem>>, %arg12: memref<4x18x256xbf16, #tpu.memory_space<vmem>>, %arg13: memref<4x18x128xbf16, #tpu.memory_space<vmem>>, %arg14: memref<4x18x256xbf16, #tpu.memory_space<vmem>>) attributes {dimension_semantics = [#tpu.dimension_semantics<parallel>], iteration_bounds = array<i64: 2>, scalar_prefetch = 0 : i64, scratch_operands = 4 : i64, tpu.core_type = #tpu.core_type<tc>, window_params = [{transform_indices = @transform_0, window_bounds = array<i64: 4, 16, 512>}, {pipeline_mode = #tpu.pipeline_mode<synchronous>, transform_indices = @transform_1, window_bounds = array<i64: 3, 512, 256>}, {pipeline_mode = #tpu.pipeline_mode<synchronous>, transform_indices = @transform_2, window_bounds = array<i64: 1, 256>}, {pipeline_mode = #tpu.pipeline_mode<synchronous>, transform_indices = @transform_3, window_bounds = array<i64: 3, 256, 128>}, {pipeline_mode = #tpu.pipeline_mode<synchronous>, transform_indices = @transform_4, window_bounds = array<i64: 1, 128>}, {pipeline_mode = #tpu.pipeline_mode<synchronous>, transform_indices = @transform_5, window_bounds = array<i64: 3, 128, 256>}, {pipeline_mode = #tpu.pipeline_mode<synchronous>, transform_indices = @transform_6, window_bounds = array<i64: 1, 256>}, {pipeline_mode = #tpu.pipeline_mode<synchronous>, transform_indices = @transform_7, window_bounds = array<i64: 3, 256, 512>}, {pipeline_mode = #tpu.pipeline_mode<synchronous>, transform_indices = @transform_8, window_bounds = array<i64: 1, 512>}, {transform_indices = @transform_9, window_bounds = array<i64: 4, 16, 512>}]} {
    %c0 = arith.constant 0 : index
    %c0_0 = arith.constant 0 : index
    %c0_1 = arith.constant 0 : index
    %0 = vector.load %arg1[%c0, %c0_0, %c0_1] : memref<4x16x512xbf16, #tpu.memory_space<vmem>>, vector<4x16x512xbf16>
    %cst = arith.constant 0.000000e+00 : bf16
    %1 = vector.broadcast %cst : bf16 to vector<4x1x512xbf16>
    %c0_2 = arith.constant 0 : index
    %c0_3 = arith.constant 0 : index
    %c0_4 = arith.constant 0 : index
    %2 = vector.load %arg11[%c0_2, %c0_3, %c0_4] : memref<4x18x512xbf16, #tpu.memory_space<vmem>>, vector<4x1x512xbf16>
    tpu.vector_store %arg11[%c0_2, %c0_3, %c0_4], %1 {strides = array<i32>} : memref<4x18x512xbf16, #tpu.memory_space<vmem>>, vector<4x1x512xbf16>,
    %c0_5 = arith.constant 0 : index
    %c17 = arith.constant 17 : index
    %c0_6 = arith.constant 0 : index
    %3 = vector.load %arg11[%c0_5, %c17, %c0_6] : memref<4x18x512xbf16, #tpu.memory_space<vmem>>, vector<4x1x512xbf16>
    tpu.vector_store %arg11[%c0_5, %c17, %c0_6], %1 {strides = array<i32>} : memref<4x18x512xbf16, #tpu.memory_space<vmem>>, vector<4x1x512xbf16>,
    %c0_7 = arith.constant 0 : index
    %c1 = arith.constant 1 : index
    %c0_8 = arith.constant 0 : index
    %4 = vector.load %arg11[%c0_7, %c1, %c0_8] : memref<4x18x512xbf16, #tpu.memory_space<vmem>>, vector<4x16x512xbf16>
    tpu.vector_store %arg11[%c0_7, %c1, %c0_8], %0 {strides = array<i32>} : memref<4x18x512xbf16, #tpu.memory_space<vmem>>, vector<4x16x512xbf16>,
    %c0_9 = arith.constant 0 : index
    %c0_10 = arith.constant 0 : index
    %c0_11 = arith.constant 0 : index
    %5 = vector.load %arg11[%c0_9, %c0_10, %c0_11] : memref<4x18x512xbf16, #tpu.memory_space<vmem>>, vector<4x16x512xbf16>
    %6 = vector.shape_cast %5 : vector<4x16x512xbf16> to vector<64x512xbf16>
    %c0_12 = arith.constant 0 : index
    %c0_13 = arith.constant 0 : index
    %c0_14 = arith.constant 0 : index
    %7 = vector.load %arg2[%c0_12, %c0_13, %c0_14] : memref<3x512x256xbf16, #tpu.memory_space<vmem>>, vector<1x512x256xbf16>
    %8 = vector.shape_cast %7 : vector<1x512x256xbf16> to vector<512x256xbf16>
    %cst_15 = arith.constant dense<0.000000e+00> : vector<64x256xf32>
    %9 = tpu.matmul %6, %8, %cst_15 {dimension_numbers = #tpu.dot_dimension_numbers<[1], [0], [0], [1], [0, 0, 1, 1], [], []>} : vector<64x512xbf16>, vector<512x256xbf16>, vector<64x256xf32> -> vector<64x256xf32>
    %c0_16 = arith.constant 0 : index
    %c1_17 = arith.constant 1 : index
    %c0_18 = arith.constant 0 : index
    %10 = vector.load %arg11[%c0_16, %c1_17, %c0_18] : memref<4x18x512xbf16, #tpu.memory_space<vmem>>, vector<4x16x512xbf16>
    %11 = vector.shape_cast %10 : vector<4x16x512xbf16> to vector<64x512xbf16>
    %c1_19 = arith.constant 1 : index
    %c0_20 = arith.constant 0 : index
    %c0_21 = arith.constant 0 : index
    %12 = vector.load %arg2[%c1_19, %c0_20, %c0_21] : memref<3x512x256xbf16, #tpu.memory_space<vmem>>, vector<1x512x256xbf16>
    %13 = vector.shape_cast %12 : vector<1x512x256xbf16> to vector<512x256xbf16>
    %cst_22 = arith.constant dense<0.000000e+00> : vector<64x256xf32>
    %14 = tpu.matmul %11, %13, %cst_22 {dimension_numbers = #tpu.dot_dimension_numbers<[1], [0], [0], [1], [0, 0, 1, 1], [], []>} : vector<64x512xbf16>, vector<512x256xbf16>, vector<64x256xf32> -> vector<64x256xf32>
    %15 = arith.addf %9, %14 : vector<64x256xf32>
    %c0_23 = arith.constant 0 : index
    %c2 = arith.constant 2 : index
    %c0_24 = arith.constant 0 : index
    %16 = vector.load %arg11[%c0_23, %c2, %c0_24] : memref<4x18x512xbf16, #tpu.memory_space<vmem>>, vector<4x16x512xbf16>
    %17 = vector.shape_cast %16 : vector<4x16x512xbf16> to vector<64x512xbf16>
    %c2_25 = arith.constant 2 : index
    %c0_26 = arith.constant 0 : index
    %c0_27 = arith.constant 0 : index
    %18 = vector.load %arg2[%c2_25, %c0_26, %c0_27] : memref<3x512x256xbf16, #tpu.memory_space<vmem>>, vector<1x512x256xbf16>
    %19 = vector.shape_cast %18 : vector<1x512x256xbf16> to vector<512x256xbf16>
    %cst_28 = arith.constant dense<0.000000e+00> : vector<64x256xf32>
    %20 = tpu.matmul %17, %19, %cst_28 {dimension_numbers = #tpu.dot_dimension_numbers<[1], [0], [0], [1], [0, 0, 1, 1], [], []>} : vector<64x512xbf16>, vector<512x256xbf16>, vector<64x256xf32> -> vector<64x256xf32>
    %21 = arith.addf %15, %20 : vector<64x256xf32>
    %c0_29 = arith.constant 0 : index
    %c0_30 = arith.constant 0 : index
    %22 = vector.load %arg3[%c0_29, %c0_30] : memref<1x256xf32, #tpu.memory_space<vmem>>, vector<1x256xf32>
    %23 = vector.broadcast %22 : vector<1x256xf32> to vector<64x256xf32>
    %24 = arith.addf %21, %23 : vector<64x256xf32>
    %cst_31 = arith.constant 0.000000e+00 : f32
    %25 = vector.broadcast %cst_31 : f32 to vector<64x256xf32>
    %26 = arith.maximumf %24, %25 : vector<64x256xf32>
    %cst_32 = arith.constant 0.000000e+00 : bf16
    %27 = vector.broadcast %cst_32 : bf16 to vector<4x1x256xbf16>
    %c0_33 = arith.constant 0 : index
    %c0_34 = arith.constant 0 : index
    %c0_35 = arith.constant 0 : index
    %28 = vector.load %arg12[%c0_33, %c0_34, %c0_35] : memref<4x18x256xbf16, #tpu.memory_space<vmem>>, vector<4x1x256xbf16>
    tpu.vector_store %arg12[%c0_33, %c0_34, %c0_35], %27 {strides = array<i32>} : memref<4x18x256xbf16, #tpu.memory_space<vmem>>, vector<4x1x256xbf16>,
    %c0_36 = arith.constant 0 : index
    %c17_37 = arith.constant 17 : index
    %c0_38 = arith.constant 0 : index
    %29 = vector.load %arg12[%c0_36, %c17_37, %c0_38] : memref<4x18x256xbf16, #tpu.memory_space<vmem>>, vector<4x1x256xbf16>
    tpu.vector_store %arg12[%c0_36, %c17_37, %c0_38], %27 {strides = array<i32>} : memref<4x18x256xbf16, #tpu.memory_space<vmem>>, vector<4x1x256xbf16>,
    %30 = vector.shape_cast %26 : vector<64x256xf32> to vector<4x16x256xf32>
    %31 = arith.truncf %30 : vector<4x16x256xf32> to vector<4x16x256xbf16>
    %c0_39 = arith.constant 0 : index
    %c1_40 = arith.constant 1 : index
    %c0_41 = arith.constant 0 : index
    %32 = vector.load %arg12[%c0_39, %c1_40, %c0_41] : memref<4x18x256xbf16, #tpu.memory_space<vmem>>, vector<4x16x256xbf16>
    tpu.vector_store %arg12[%c0_39, %c1_40, %c0_41], %31 {strides = array<i32>} : memref<4x18x256xbf16, #tpu.memory_space<vmem>>, vector<4x16x256xbf16>,
    %c0_42 = arith.constant 0 : index
    %c0_43 = arith.constant 0 : index
    %c0_44 = arith.constant 0 : index
    %33 = vector.load %arg12[%c0_42, %c0_43, %c0_44] : memref<4x18x256xbf16, #tpu.memory_space<vmem>>, vector<4x16x256xbf16>
    %34 = vector.shape_cast %33 : vector<4x16x256xbf16> to vector<64x256xbf16>
    %c0_45 = arith.constant 0 : index
    %c0_46 = arith.constant 0 : index
    %c0_47 = arith.constant 0 : index
    %35 = vector.load %arg4[%c0_45, %c0_46, %c0_47] : memref<3x256x128xbf16, #tpu.memory_space<vmem>>, vector<1x256x128xbf16>
    %36 = vector.shape_cast %35 : vector<1x256x128xbf16> to vector<256x128xbf16>
    %cst_48 = arith.constant dense<0.000000e+00> : vector<64x128xf32>
    %37 = tpu.matmul %34, %36, %cst_48 {dimension_numbers = #tpu.dot_dimension_numbers<[1], [0], [0], [1], [0, 0, 1, 1], [], []>} : vector<64x256xbf16>, vector<256x128xbf16>, vector<64x128xf32> -> vector<64x128xf32>
    %c0_49 = arith.constant 0 : index
    %c1_50 = arith.constant 1 : index
    %c0_51 = arith.constant 0 : index
    %38 = vector.load %arg12[%c0_49, %c1_50, %c0_51] : memref<4x18x256xbf16, #tpu.memory_space<vmem>>, vector<4x16x256xbf16>
    %39 = vector.shape_cast %38 : vector<4x16x256xbf16> to vector<64x256xbf16>
    %c1_52 = arith.constant 1 : index
    %c0_53 = arith.constant 0 : index
    %c0_54 = arith.constant 0 : index
    %40 = vector.load %arg4[%c1_52, %c0_53, %c0_54] : memref<3x256x128xbf16, #tpu.memory_space<vmem>>, vector<1x256x128xbf16>
    %41 = vector.shape_cast %40 : vector<1x256x128xbf16> to vector<256x128xbf16>
    %cst_55 = arith.constant dense<0.000000e+00> : vector<64x128xf32>
    %42 = tpu.matmul %39, %41, %cst_55 {dimension_numbers = #tpu.dot_dimension_numbers<[1], [0], [0], [1], [0, 0, 1, 1], [], []>} : vector<64x256xbf16>, vector<256x128xbf16>, vector<64x128xf32> -> vector<64x128xf32>
    %43 = arith.addf %37, %42 : vector<64x128xf32>
    %c0_56 = arith.constant 0 : index
    %c2_57 = arith.constant 2 : index
    %c0_58 = arith.constant 0 : index
    %44 = vector.load %arg12[%c0_56, %c2_57, %c0_58] : memref<4x18x256xbf16, #tpu.memory_space<vmem>>, vector<4x16x256xbf16>
    %45 = vector.shape_cast %44 : vector<4x16x256xbf16> to vector<64x256xbf16>
    %c2_59 = arith.constant 2 : index
    %c0_60 = arith.constant 0 : index
    %c0_61 = arith.constant 0 : index
    %46 = vector.load %arg4[%c2_59, %c0_60, %c0_61] : memref<3x256x128xbf16, #tpu.memory_space<vmem>>, vector<1x256x128xbf16>
    %47 = vector.shape_cast %46 : vector<1x256x128xbf16> to vector<256x128xbf16>
    %cst_62 = arith.constant dense<0.000000e+00> : vector<64x128xf32>
    %48 = tpu.matmul %45, %47, %cst_62 {dimension_numbers = #tpu.dot_dimension_numbers<[1], [0], [0], [1], [0, 0, 1, 1], [], []>} : vector<64x256xbf16>, vector<256x128xbf16>, vector<64x128xf32> -> vector<64x128xf32>
    %49 = arith.addf %43, %48 : vector<64x128xf32>
    %c0_63 = arith.constant 0 : index
    %c0_64 = arith.constant 0 : index
    %50 = vector.load %arg5[%c0_63, %c0_64] : memref<1x128xf32, #tpu.memory_space<vmem>>, vector<1x128xf32>
    %51 = vector.broadcast %50 : vector<1x128xf32> to vector<64x128xf32>
    %52 = arith.addf %49, %51 : vector<64x128xf32>
    %cst_65 = arith.constant 0.000000e+00 : f32
    %53 = vector.broadcast %cst_65 : f32 to vector<64x128xf32>
    %54 = arith.maximumf %52, %53 : vector<64x128xf32>
    %cst_66 = arith.constant 0.000000e+00 : bf16
    %55 = vector.broadcast %cst_66 : bf16 to vector<4x1x128xbf16>
    %c0_67 = arith.constant 0 : index
    %c0_68 = arith.constant 0 : index
    %c0_69 = arith.constant 0 : index
    %56 = vector.load %arg13[%c0_67, %c0_68, %c0_69] : memref<4x18x128xbf16, #tpu.memory_space<vmem>>, vector<4x1x128xbf16>
    tpu.vector_store %arg13[%c0_67, %c0_68, %c0_69], %55 {strides = array<i32>} : memref<4x18x128xbf16, #tpu.memory_space<vmem>>, vector<4x1x128xbf16>,
    %c0_70 = arith.constant 0 : index
    %c17_71 = arith.constant 17 : index
    %c0_72 = arith.constant 0 : index
    %57 = vector.load %arg13[%c0_70, %c17_71, %c0_72] : memref<4x18x128xbf16, #tpu.memory_space<vmem>>, vector<4x1x128xbf16>
    tpu.vector_store %arg13[%c0_70, %c17_71, %c0_72], %55 {strides = array<i32>} : memref<4x18x128xbf16, #tpu.memory_space<vmem>>, vector<4x1x128xbf16>,
    %58 = vector.shape_cast %54 : vector<64x128xf32> to vector<4x16x128xf32>
    %59 = arith.truncf %58 : vector<4x16x128xf32> to vector<4x16x128xbf16>
    %c0_73 = arith.constant 0 : index
    %c1_74 = arith.constant 1 : index
    %c0_75 = arith.constant 0 : index
    %60 = vector.load %arg13[%c0_73, %c1_74, %c0_75] : memref<4x18x128xbf16, #tpu.memory_space<vmem>>, vector<4x16x128xbf16>
    tpu.vector_store %arg13[%c0_73, %c1_74, %c0_75], %59 {strides = array<i32>} : memref<4x18x128xbf16, #tpu.memory_space<vmem>>, vector<4x16x128xbf16>,
    %c0_76 = arith.constant 0 : index
    %c0_77 = arith.constant 0 : index
    %c0_78 = arith.constant 0 : index
    %61 = vector.load %arg13[%c0_76, %c0_77, %c0_78] : memref<4x18x128xbf16, #tpu.memory_space<vmem>>, vector<4x16x128xbf16>
    %62 = vector.shape_cast %61 : vector<4x16x128xbf16> to vector<64x128xbf16>
    %c0_79 = arith.constant 0 : index
    %c0_80 = arith.constant 0 : index
    %c0_81 = arith.constant 0 : index
    %63 = vector.load %arg6[%c0_79, %c0_80, %c0_81] : memref<3x128x256xbf16, #tpu.memory_space<vmem>>, vector<1x128x256xbf16>
    %64 = vector.shape_cast %63 : vector<1x128x256xbf16> to vector<128x256xbf16>
    %cst_82 = arith.constant dense<0.000000e+00> : vector<64x256xf32>
    %65 = tpu.matmul %62, %64, %cst_82 {dimension_numbers = #tpu.dot_dimension_numbers<[1], [0], [0], [1], [0, 0, 1, 1], [], []>} : vector<64x128xbf16>, vector<128x256xbf16>, vector<64x256xf32> -> vector<64x256xf32>
    %c0_83 = arith.constant 0 : index
    %c1_84 = arith.constant 1 : index
    %c0_85 = arith.constant 0 : index
    %66 = vector.load %arg13[%c0_83, %c1_84, %c0_85] : memref<4x18x128xbf16, #tpu.memory_space<vmem>>, vector<4x16x128xbf16>
    %67 = vector.shape_cast %66 : vector<4x16x128xbf16> to vector<64x128xbf16>
    %c1_86 = arith.constant 1 : index
    %c0_87 = arith.constant 0 : index
    %c0_88 = arith.constant 0 : index
    %68 = vector.load %arg6[%c1_86, %c0_87, %c0_88] : memref<3x128x256xbf16, #tpu.memory_space<vmem>>, vector<1x128x256xbf16>
    %69 = vector.shape_cast %68 : vector<1x128x256xbf16> to vector<128x256xbf16>
    %cst_89 = arith.constant dense<0.000000e+00> : vector<64x256xf32>
    %70 = tpu.matmul %67, %69, %cst_89 {dimension_numbers = #tpu.dot_dimension_numbers<[1], [0], [0], [1], [0, 0, 1, 1], [], []>} : vector<64x128xbf16>, vector<128x256xbf16>, vector<64x256xf32> -> vector<64x256xf32>
    %71 = arith.addf %65, %70 : vector<64x256xf32>
    %c0_90 = arith.constant 0 : index
    %c2_91 = arith.constant 2 : index
    %c0_92 = arith.constant 0 : index
    %72 = vector.load %arg13[%c0_90, %c2_91, %c0_92] : memref<4x18x128xbf16, #tpu.memory_space<vmem>>, vector<4x16x128xbf16>
    %73 = vector.shape_cast %72 : vector<4x16x128xbf16> to vector<64x128xbf16>
    %c2_93 = arith.constant 2 : index
    %c0_94 = arith.constant 0 : index
    %c0_95 = arith.constant 0 : index
    %74 = vector.load %arg6[%c2_93, %c0_94, %c0_95] : memref<3x128x256xbf16, #tpu.memory_space<vmem>>, vector<1x128x256xbf16>
    %75 = vector.shape_cast %74 : vector<1x128x256xbf16> to vector<128x256xbf16>
    %cst_96 = arith.constant dense<0.000000e+00> : vector<64x256xf32>
    %76 = tpu.matmul %73, %75, %cst_96 {dimension_numbers = #tpu.dot_dimension_numbers<[1], [0], [0], [1], [0, 0, 1, 1], [], []>} : vector<64x128xbf16>, vector<128x256xbf16>, vector<64x256xf32> -> vector<64x256xf32>
    %77 = arith.addf %71, %76 : vector<64x256xf32>
    %c0_97 = arith.constant 0 : index
    %c0_98 = arith.constant 0 : index
    %78 = vector.load %arg7[%c0_97, %c0_98] : memref<1x256xf32, #tpu.memory_space<vmem>>, vector<1x256xf32>
    %79 = vector.broadcast %78 : vector<1x256xf32> to vector<64x256xf32>
    %80 = arith.addf %77, %79 : vector<64x256xf32>
    %cst_99 = arith.constant 0.000000e+00 : f32
    %81 = vector.broadcast %cst_99 : f32 to vector<64x256xf32>
    %82 = arith.maximumf %80, %81 : vector<64x256xf32>
    %cst_100 = arith.constant 0.000000e+00 : bf16
    %83 = vector.broadcast %cst_100 : bf16 to vector<4x1x256xbf16>
    %c0_101 = arith.constant 0 : index
    %c0_102 = arith.constant 0 : index
    %c0_103 = arith.constant 0 : index
    %84 = vector.load %arg14[%c0_101, %c0_102, %c0_103] : memref<4x18x256xbf16, #tpu.memory_space<vmem>>, vector<4x1x256xbf16>
    tpu.vector_store %arg14[%c0_101, %c0_102, %c0_103], %83 {strides = array<i32>} : memref<4x18x256xbf16, #tpu.memory_space<vmem>>, vector<4x1x256xbf16>,
    %c0_104 = arith.constant 0 : index
    %c17_105 = arith.constant 17 : index
    %c0_106 = arith.constant 0 : index
    %85 = vector.load %arg14[%c0_104, %c17_105, %c0_106] : memref<4x18x256xbf16, #tpu.memory_space<vmem>>, vector<4x1x256xbf16>
    tpu.vector_store %arg14[%c0_104, %c17_105, %c0_106], %83 {strides = array<i32>} : memref<4x18x256xbf16, #tpu.memory_space<vmem>>, vector<4x1x256xbf16>,
    %86 = vector.shape_cast %82 : vector<64x256xf32> to vector<4x16x256xf32>
    %87 = arith.truncf %86 : vector<4x16x256xf32> to vector<4x16x256xbf16>
    %c0_107 = arith.constant 0 : index
    %c1_108 = arith.constant 1 : index
    %c0_109 = arith.constant 0 : index
    %88 = vector.load %arg14[%c0_107, %c1_108, %c0_109] : memref<4x18x256xbf16, #tpu.memory_space<vmem>>, vector<4x16x256xbf16>
    tpu.vector_store %arg14[%c0_107, %c1_108, %c0_109], %87 {strides = array<i32>} : memref<4x18x256xbf16, #tpu.memory_space<vmem>>, vector<4x16x256xbf16>,
    %c0_110 = arith.constant 0 : index
    %c0_111 = arith.constant 0 : index
    %c0_112 = arith.constant 0 : index
    %89 = vector.load %arg14[%c0_110, %c0_111, %c0_112] : memref<4x18x256xbf16, #tpu.memory_space<vmem>>, vector<4x16x256xbf16>
    %90 = vector.shape_cast %89 : vector<4x16x256xbf16> to vector<64x256xbf16>
    %c0_113 = arith.constant 0 : index
    %c0_114 = arith.constant 0 : index
    %c0_115 = arith.constant 0 : index
    %91 = vector.load %arg8[%c0_113, %c0_114, %c0_115] : memref<3x256x512xbf16, #tpu.memory_space<vmem>>, vector<1x256x512xbf16>
    %92 = vector.shape_cast %91 : vector<1x256x512xbf16> to vector<256x512xbf16>
    %cst_116 = arith.constant dense<0.000000e+00> : vector<64x512xf32>
    %93 = tpu.matmul %90, %92, %cst_116 {dimension_numbers = #tpu.dot_dimension_numbers<[1], [0], [0], [1], [0, 0, 1, 1], [], []>} : vector<64x256xbf16>, vector<256x512xbf16>, vector<64x512xf32> -> vector<64x512xf32>
    %c0_117 = arith.constant 0 : index
    %c1_118 = arith.constant 1 : index
    %c0_119 = arith.constant 0 : index
    %94 = vector.load %arg14[%c0_117, %c1_118, %c0_119] : memref<4x18x256xbf16, #tpu.memory_space<vmem>>, vector<4x16x256xbf16>
    %95 = vector.shape_cast %94 : vector<4x16x256xbf16> to vector<64x256xbf16>
    %c1_120 = arith.constant 1 : index
    %c0_121 = arith.constant 0 : index
    %c0_122 = arith.constant 0 : index
    %96 = vector.load %arg8[%c1_120, %c0_121, %c0_122] : memref<3x256x512xbf16, #tpu.memory_space<vmem>>, vector<1x256x512xbf16>
    %97 = vector.shape_cast %96 : vector<1x256x512xbf16> to vector<256x512xbf16>
    %cst_123 = arith.constant dense<0.000000e+00> : vector<64x512xf32>
    %98 = tpu.matmul %95, %97, %cst_123 {dimension_numbers = #tpu.dot_dimension_numbers<[1], [0], [0], [1], [0, 0, 1, 1], [], []>} : vector<64x256xbf16>, vector<256x512xbf16>, vector<64x512xf32> -> vector<64x512xf32>
    %99 = arith.addf %93, %98 : vector<64x512xf32>
    %c0_124 = arith.constant 0 : index
    %c2_125 = arith.constant 2 : index
    %c0_126 = arith.constant 0 : index
    %100 = vector.load %arg14[%c0_124, %c2_125, %c0_126] : memref<4x18x256xbf16, #tpu.memory_space<vmem>>, vector<4x16x256xbf16>
    %101 = vector.shape_cast %100 : vector<4x16x256xbf16> to vector<64x256xbf16>
    %c2_127 = arith.constant 2 : index
    %c0_128 = arith.constant 0 : index
    %c0_129 = arith.constant 0 : index
    %102 = vector.load %arg8[%c2_127, %c0_128, %c0_129] : memref<3x256x512xbf16, #tpu.memory_space<vmem>>, vector<1x256x512xbf16>
    %103 = vector.shape_cast %102 : vector<1x256x512xbf16> to vector<256x512xbf16>
    %cst_130 = arith.constant dense<0.000000e+00> : vector<64x512xf32>
    %104 = tpu.matmul %101, %103, %cst_130 {dimension_numbers = #tpu.dot_dimension_numbers<[1], [0], [0], [1], [0, 0, 1, 1], [], []>} : vector<64x256xbf16>, vector<256x512xbf16>, vector<64x512xf32> -> vector<64x512xf32>
    %105 = arith.addf %99, %104 : vector<64x512xf32>
    %c0_131 = arith.constant 0 : index
    %c0_132 = arith.constant 0 : index
    %106 = vector.load %arg9[%c0_131, %c0_132] : memref<1x512xf32, #tpu.memory_space<vmem>>, vector<1x512xf32>
    %107 = vector.broadcast %106 : vector<1x512xf32> to vector<64x512xf32>
    %108 = arith.addf %105, %107 : vector<64x512xf32>
    %109 = arith.negf %108 : vector<64x512xf32>
    %110 = math.exp %109 : vector<64x512xf32>
    %cst_133 = arith.constant 1.000000e+00 : f32
    %111 = vector.broadcast %cst_133 : f32 to vector<64x512xf32>
    %112 = arith.addf %111, %110 : vector<64x512xf32>
    %113 = arith.divf %111, %112 : vector<64x512xf32>
    %114 = vector.shape_cast %113 : vector<64x512xf32> to vector<4x16x512xf32>
    %c0_134 = arith.constant 0 : index
    %c0_135 = arith.constant 0 : index
    %c0_136 = arith.constant 0 : index
    %115 = vector.load %arg10[%c0_134, %c0_135, %c0_136] : memref<4x16x512xf32, #tpu.memory_space<vmem>>, vector<4x16x512xf32>
    tpu.vector_store %arg10[%c0_134, %c0_135, %c0_136], %114 {strides = array<i32>} : memref<4x16x512xf32, #tpu.memory_space<vmem>>, vector<4x16x512xf32>,
    return
  }
  func.func @transform_0(%arg0: i32) -> (i32, i32, i32) {
    %c0_i32 = arith.constant 0 : i32
    %c0_i32_0 = arith.constant 0 : i32
    %c0_i32_1 = arith.constant 0 : i32
    return %arg0, %c0_i32, %c0_i32_0 : i32, i32, i32
  }
  func.func @transform_1(%arg0: i32) -> (i32, i32, i32) {
    %c0_i32 = arith.constant 0 : i32
    %c0_i32_0 = arith.constant 0 : i32
    %c0_i32_1 = arith.constant 0 : i32
    %c0_i32_2 = arith.constant 0 : i32
    return %c0_i32, %c0_i32_0, %c0_i32_1 : i32, i32, i32
  }
  func.func @transform_2(%arg0: i32) -> (i32, i32) {
    %c0_i32 = arith.constant 0 : i32
    %c0_i32_0 = arith.constant 0 : i32
    %c0_i32_1 = arith.constant 0 : i32
    return %c0_i32, %c0_i32_0 : i32, i32
  }
  func.func @transform_3(%arg0: i32) -> (i32, i32, i32) {
    %c0_i32 = arith.constant 0 : i32
    %c0_i32_0 = arith.constant 0 : i32
    %c0_i32_1 = arith.constant 0 : i32
    %c0_i32_2 = arith.constant 0 : i32
    return %c0_i32, %c0_i32_0, %c0_i32_1 : i32, i32, i32
  }
  func.func @transform_4(%arg0: i32) -> (i32, i32) {
    %c0_i32 = arith.constant 0 : i32
    %c0_i32_0 = arith.constant 0 : i32
    %c0_i32_1 = arith.constant 0 : i32
    return %c0_i32, %c0_i32_0 : i32, i32
  }
  func.func @transform_5(%arg0: i32) -> (i32, i32, i32) {
    %c0_i32 = arith.constant 0 : i32
    %c0_i32_0 = arith.constant 0 : i32
    %c0_i32_1 = arith.constant 0 : i32
    %c0_i32_2 = arith.constant 0 : i32
    return %c0_i32, %c0_i32_0, %c0_i32_1 : i32, i32, i32
  }
  func.func @transform_6(%arg0: i32) -> (i32, i32) {
    %c0_i32 = arith.constant 0 : i32
    %c0_i32_0 = arith.constant 0 : i32
    %c0_i32_1 = arith.constant 0 : i32
    return %c0_i32, %c0_i32_0 : i32, i32
  }
  func.func @transform_7(%arg0: i32) -> (i32, i32, i32) {
    %c0_i32 = arith.constant 0 : i32
    %c0_i32_0 = arith.constant 0 : i32
    %c0_i32_1 = arith.constant 0 : i32
    %c0_i32_2 = arith.constant 0 : i32
    return %c0_i32, %c0_i32_0, %c0_i32_1 : i32, i32, i32
  }
  func.func @transform_8(%arg0: i32) -> (i32, i32) {
    %c0_i32 = arith.constant 0 : i32
    %c0_i32_0 = arith.constant 0 : i32
    %c0_i32_1 = arith.constant 0 : i32
    return %c0_i32, %c0_i32_0 : i32, i32
  }
  func.func @transform_9(%arg0: i32) -> (i32, i32, i32) {
    %c0_i32 = arith.constant 0 : i32
    %c0_i32_0 = arith.constant 0 : i32
    %c0_i32_1 = arith.constant 0 : i32
    return %arg0, %c0_i32, %c0_i32_0 : i32, i32, i32
  }
}

</mosaic_0001>

<llo_original>
// kernel: tile.38
$region0: #{tile.38}
  #allocation0 [shape = 's32[1]{0}', space=sflag, size = 0x4, scoped, tag = 'scoped memory for tile.38']
  %s0 = inlined_call_operand.vmem [shape: f32[32], index: 0, kind: input, shape index: {}]
  %s1 = inlined_call_operand.vmem [shape: f32[16,32], index: 1, kind: output, shape index: {}]
  // Predicated region
  $region2: #{tile.38} parent=0 // pred_check
    _
  $region3: #{tile.38} parent=0 // pred_check_branch
    %3 = sbr.rel (0) target = $region5
  $region4: #{tile.38} parent=0 // pred_region
    _
  $region5: #{tile.38} parent=0 // pred_fallthru
    _
  %v4 = vld [vmem:[%s0] ss:$0 sm:$0xff]
  %5 = vst [vmem:[%s1] sm:$0xff] %v4
  %s6 = scalar_lea.vmem %s1, 8
  %7 = vst [vmem:[%s6] sm:$0xff] %v4

// kernel: tile.39
$region0: #{tile.39}
  %s0 = inlined_call_operand.vmem [shape: f32[16,32], index: 0, kind: input, shape index: {}]
  %s1 = inlined_call_operand.vmem [shape: f32[1,512], index: 1, kind: output, shape index: {}]
  $region1: #{tile.39} parent=0
    #allocation0 [shape = 'u8[16384]{0}', space=vmem, size = 0x4000, scoped, tag = 'scoped mem for output reshape']
    %v2 = vld [vmem:[%s0] ss:$4 sm:$0xf]
    %vm3 = vcmask 261120
    %4 = vst.msk [vmem:[#allocation0] ss:$8 sm:$0xf] %vm3, %v2
    %s5 = scalar_lea.vmem %s0, 3
    %v6 = vld [vmem:[%s5] ss:$4 sm:$0xf]
    %7 = vrot.lane.b32.xlu0 %v6, 96
    %v8 = vpop.permute.xlu0 %7
    %vm9 = vcmask 1048320
    %10 = vst.msk [vmem:[#allocation0] ss:$8 sm:$0xf] %vm9, %v8
    %s11 = scalar_lea.vmem %s0, 2
    %v12 = vld [vmem:[%s11] ss:$4 sm:$0xf]
    %13 = vrot.lane.b32.xlu0 %v12, 64
    %v14 = vpop.permute.xlu0 %13
    %vm15 = vcmask 785920
    %16 = vst.msk [vmem:[#allocation0] ss:$8 sm:$0xf] %vm15, %v14
    %s17 = scalar_lea.vmem %s0, 1
    %v18 = vld [vmem:[%s17] ss:$4 sm:$0xf]
    %19 = vrot.lane.b32.xlu0 %v18, 32
    %v20 = vpop.permute.xlu0 %19
    %vm21 = vcmask 523520
    %22 = vst.msk [vmem:[#allocation0] ss:$8 sm:$0xf] %vm21, %v20
    %s24 = sshllo.u32 0, 1
    %v26 = vld [vmem:[#allocation0] sm:%s24]
    %s27 = sshllo.u32 0, 1
    %28 = vst [vmem:[%s1] sm:%s27] %v26
    %s29 = scalar_lea.vmem [#allocation0], 8
    %v30 = vld [vmem:[%s29] sm:%s24]
    %s31 = sshllo.u32 0, 1
    %s32 = scalar_lea.vmem %s1, 1
    %33 = vst [vmem:[%s32] sm:%s31] %v30
    %s34 = scalar_lea.vmem [#allocation0], 16
    %v35 = vld [vmem:[%s34] sm:%s24]
    %s36 = sshllo.u32 0, 1
    %s37 = smul.addr 1, 2
    %s38 = scalar_lea.vmem %s1, %s37
    %39 = vst [vmem:[%s38] sm:%s36] %v35
    %s40 = scalar_lea.vmem [#allocation0], 24
    %v41 = vld [vmem:[%s40] sm:%s24]
    %s42 = sshllo.u32 0, 1
    %s43 = smul.addr 1, 3
    %s44 = scalar_lea.vmem %s1, %s43
    %45 = vst [vmem:[%s44] sm:%s42] %v41

// kernel: tile.23
$region0: #{tile.23}
  #allocation0 [shape = 's32[1]{0}', space=sflag, size = 0x4, scoped, tag = 'scoped memory for tile.23']
  %s0 = inlined_call_operand.vmem [shape: f32[16], index: 0, kind: input, shape index: {}]
  %s1 = inlined_call_operand.vmem [shape: f32[16,16], index: 1, kind: output, shape index: {}]
  // Predicated region
  $region2: #{tile.23} parent=0 // pred_check
    _
  $region3: #{tile.23} parent=0 // pred_check_branch
    %3 = sbr.rel (0) target = $region5
  $region4: #{tile.23} parent=0 // pred_region
    _
  $region5: #{tile.23} parent=0 // pred_fallthru
    _
  %v4 = vld [vmem:[%s0] ss:$0 sm:$0xff]
  %5 = vst [vmem:[%s1] sm:$0xff] %v4
  %s6 = scalar_lea.vmem %s1, 8
  %7 = vst [vmem:[%s6] sm:$0xff] %v4

// kernel: tile.24
$region0: #{tile.24}
  %s0 = inlined_call_operand.vmem [shape: f32[16,16], index: 0, kind: input, shape index: {}]
  %s1 = inlined_call_operand.vmem [shape: f32[1,256], index: 1, kind: output, shape index: {}]
  $region1: #{tile.24} parent=0
    #allocation0 [shape = 'u8[8192]{0}', space=vmem, size = 0x2000, scoped, tag = 'scoped mem for output reshape']
    %s2 = smov 3
    %v3 = vld [vmem:[%s0] ss:$8 sm:%s2]
    %vm4 = vcmask 130048
    %5 = vst.msk [vmem:[#allocation0] ss:$8 sm:$0x3] %vm4, %v3
    %s6 = scalar_lea.vmem %s0, 7
    %s7 = smov 3
    %v8 = vld [vmem:[%s6] ss:$8 sm:%s7]
    %9 = vrot.lane.b32.xlu0 %v8, 112
    %v10 = vpop.permute.xlu0 %9
    %vm11 = vcmask 1048448
    %12 = vst.msk [vmem:[#allocation0] ss:$8 sm:$0x3] %vm11, %v10
    %s13 = scalar_lea.vmem %s0, 6
    %s14 = smov 3
    %v15 = vld [vmem:[%s13] ss:$8 sm:%s14]
    %16 = vrot.lane.b32.xlu0 %v15, 96
    %v17 = vpop.permute.xlu0 %16
    %vm18 = vcmask 917248
    %19 = vst.msk [vmem:[#allocation0] ss:$8 sm:$0x3] %vm18, %v17
    %s20 = scalar_lea.vmem %s0, 5
    %s21 = smov 3
    %v22 = vld [vmem:[%s20] ss:$8 sm:%s21]
    %23 = vrot.lane.b32.xlu0 %v22, 80
    %v24 = vpop.permute.xlu0 %23
    %vm25 = vcmask 786048
    %26 = vst.msk [vmem:[#allocation0] ss:$8 sm:$0x3] %vm25, %v24
    %s27 = scalar_lea.vmem %s0, 4
    %s28 = smov 3
    %v29 = vld [vmem:[%s27] ss:$8 sm:%s28]
    %30 = vrot.lane.b32.xlu0 %v29, 64
    %v31 = vpop.permute.xlu0 %30
    %vm32 = vcmask 654848
    %33 = vst.msk [vmem:[#allocation0] ss:$8 sm:$0x3] %vm32, %v31
    %s34 = scalar_lea.vmem %s0, 3
    %s35 = smov 3
    %v36 = vld [vmem:[%s34] ss:$8 sm:%s35]
    %37 = vrot.lane.b32.xlu0 %v36, 48
    %v38 = vpop.permute.xlu0 %37
    %vm39 = vcmask 523648
    %40 = vst.msk [vmem:[#allocation0] ss:$8 sm:$0x3] %vm39, %v38
    %s41 = scalar_lea.vmem %s0, 2
    %s42 = smov 3
    %v43 = vld [vmem:[%s41] ss:$8 sm:%s42]
    %44 = vrot.lane.b32.xlu0 %v43, 32
    %v45 = vpop.permute.xlu0 %44
    %vm46 = vcmask 392448
    %47 = vst.msk [vmem:[#allocation0] ss:$8 sm:$0x3] %vm46, %v45
    %s48 = scalar_lea.vmem %s0, 1
    %s49 = smov 3
    %v50 = vld [vmem:[%s48] ss:$8 sm:%s49]
    %51 = vrot.lane.b32.xlu0 %v50, 16
    %v52 = vpop.permute.xlu0 %51
    %vm53 = vcmask 261248
    %54 = vst.msk [vmem:[#allocation0] ss:$8 sm:$0x3] %vm53, %v52
    %s56 = sshllo.u32 0, 1
    %v58 = vld [vmem:[#allocation0] sm:%s56]
    %s59 = sshllo.u32 0, 1
    %60 = vst [vmem:[%s1] sm:%s59] %v58
    %s61 = scalar_lea.vmem [#allocation0], 8
    %v62 = vld [vmem:[%s61] sm:%s56]
    %s63 = sshllo.u32 0, 1
    %s64 = scalar_lea.vmem %s1, 1
    %65 = vst [vmem:[%s64] sm:%s63] %v62

// kernel: tile.28
$region0: #{tile.28}
  #allocation0 [shape = 's32[1]{0}', space=sflag, size = 0x4, scoped, tag = 'scoped memory for tile.28']
  %s0 = inlined_call_operand.vmem [shape: f32[8], index: 0, kind: input, shape index: {}]
  %s1 = inlined_call_operand.vmem [shape: f32[16,8], index: 1, kind: output, shape index: {}]
  // Predicated region
  $region2: #{tile.28} parent=0 // pred_check
    _
  $region3: #{tile.28} parent=0 // pred_check_branch
    %3 = sbr.rel (0) target = $region5
  $region4: #{tile.28} parent=0 // pred_region
    _
  $region5: #{tile.28} parent=0 // pred_fallthru
    _
  %v4 = vld [vmem:[%s0] ss:$0 sm:$0xff]
  %5 = vst [vmem:[%s1] sm:$0xff] %v4
  %s6 = scalar_lea.vmem %s1, 8
  %7 = vst [vmem:[%s6] sm:$0xff] %v4

// kernel: tile.29
$region0: #{tile.29}
  %s0 = inlined_call_operand.vmem [shape: f32[16,8], index: 0, kind: input, shape index: {}]
  %s1 = inlined_call_operand.vmem [shape: f32[1,128], index: 1, kind: output, shape index: {}]
  $region1: #{tile.29} parent=0
    #allocation0 [shape = 'u8[4096]{0}', space=vmem, size = 0x1000, scoped, tag = 'scoped mem for output reshape']
    %v2 = vld [vmem:[%s0] sm:$0x1]
    %vm3 = vcmask 64512
    %4 = vst.msk [vmem:[#allocation0] sm:$0x1] %vm3, %v2
    %s5 = scalar_lea.vmem %s0, 15
    %v6 = vld [vmem:[%s5] sm:$0x1]
    %7 = vrot.lane.b32.xlu0 %v6, 120
    %v8 = vpop.permute.xlu0 %7
    %vm9 = vcmask 1048512
    %10 = vst.msk [vmem:[#allocation0] sm:$0x1] %vm9, %v8
    %s11 = scalar_lea.vmem %s0, 14
    %v12 = vld [vmem:[%s11] sm:$0x1]
    %13 = vrot.lane.b32.xlu0 %v12, 112
    %v14 = vpop.permute.xlu0 %13
    %vm15 = vcmask 982912
    %16 = vst.msk [vmem:[#allocation0] sm:$0x1] %vm15, %v14
    %s17 = scalar_lea.vmem %s0, 13
    %v18 = vld [vmem:[%s17] sm:$0x1]
    %19 = vrot.lane.b32.xlu0 %v18, 104
    %v20 = vpop.permute.xlu0 %19
    %vm21 = vcmask 917312
    %22 = vst.msk [vmem:[#allocation0] sm:$0x1] %vm21, %v20
    %s23 = scalar_lea.vmem %s0, 12
    %v24 = vld [vmem:[%s23] sm:$0x1]
    %25 = vrot.lane.b32.xlu0 %v24, 96
    %v26 = vpop.permute.xlu0 %25
    %vm27 = vcmask 851712
    %28 = vst.msk [vmem:[#allocation0] sm:$0x1] %vm27, %v26
    %s29 = scalar_lea.vmem %s0, 11
    %v30 = vld [vmem:[%s29] sm:$0x1]
    %31 = vrot.lane.b32.xlu0 %v30, 88
    %v32 = vpop.permute.xlu0 %31
    %vm33 = vcmask 786112
    %34 = vst.msk [vmem:[#allocation0] sm:$0x1] %vm33, %v32
    %s35 = scalar_lea.vmem %s0, 10
    %v36 = vld [vmem:[%s35] sm:$0x1]
    %37 = vrot.lane.b32.xlu0 %v36, 80
    %v38 = vpop.permute.xlu0 %37
    %vm39 = vcmask 720512
    %40 = vst.msk [vmem:[#allocation0] sm:$0x1] %vm39, %v38
    %s41 = scalar_lea.vmem %s0, 9
    %v42 = vld [vmem:[%s41] sm:$0x1]
    %43 = vrot.lane.b32.xlu0 %v42, 72
    %v44 = vpop.permute.xlu0 %43
    %vm45 = vcmask 654912
    %46 = vst.msk [vmem:[#allocation0] sm:$0x1] %vm45, %v44
    %s47 = scalar_lea.vmem %s0, 8
    %v48 = vld [vmem:[%s47] sm:$0x1]
    %49 = vrot.lane.b32.xlu0 %v48, 64
    %v50 = vpop.permute.xlu0 %49
    %vm51 = vcmask 589312
    %52 = vst.msk [vmem:[#allocation0] sm:$0x1] %vm51, %v50
    %s53 = scalar_lea.vmem %s0, 7
    %v54 = vld [vmem:[%s53] sm:$0x1]
    %55 = vrot.lane.b32.xlu0 %v54, 56
    %v56 = vpop.permute.xlu0 %55
    %vm57 = vcmask 523712
    %58 = vst.msk [vmem:[#allocation0] sm:$0x1] %vm57, %v56
    %s59 = scalar_lea.vmem %s0, 6
    %v60 = vld [vmem:[%s59] sm:$0x1]
    %61 = vrot.lane.b32.xlu0 %v60, 48
    %v62 = vpop.permute.xlu0 %61
    %vm63 = vcmask 458112
    %64 = vst.msk [vmem:[#allocation0] sm:$0x1] %vm63, %v62
    %s65 = scalar_lea.vmem %s0, 5
    %v66 = vld [vmem:[%s65] sm:$0x1]
    %67 = vrot.lane.b32.xlu0 %v66, 40
    %v68 = vpop.permute.xlu0 %67
    %vm69 = vcmask 392512
    %70 = vst.msk [vmem:[#allocation0] sm:$0x1] %vm69, %v68
    %s71 = scalar_lea.vmem %s0, 4
    %v72 = vld [vmem:[%s71] sm:$0x1]
    %73 = vrot.lane.b32.xlu0 %v72, 32
    %v74 = vpop.permute.xlu0 %73
    %vm75 = vcmask 326912
    %76 = vst.msk [vmem:[#allocation0] sm:$0x1] %vm75, %v74
    %s77 = scalar_lea.vmem %s0, 3
    %v78 = vld [vmem:[%s77] sm:$0x1]
    %79 = vrot.lane.b32.xlu0 %v78, 24
    %v80 = vpop.permute.xlu0 %79
    %vm81 = vcmask 261312
    %82 = vst.msk [vmem:[#allocation0] sm:$0x1] %vm81, %v80
    %s83 = scalar_lea.vmem %s0, 2
    %v84 = vld [vmem:[%s83] sm:$0x1]
    %85 = vrot.lane.b32.xlu0 %v84, 16
    %v86 = vpop.permute.xlu0 %85
    %vm87 = vcmask 195712
    %88 = vst.msk [vmem:[#allocation0] sm:$0x1] %vm87, %v86
    %s89 = scalar_lea.vmem %s0, 1
    %v90 = vld [vmem:[%s89] sm:$0x1]
    %91 = vrot.lane.b32.xlu0 %v90, 8
    %v92 = vpop.permute.xlu0 %91
    %vm93 = vcmask 130112
    %94 = vst.msk [vmem:[#allocation0] sm:$0x1] %vm93, %v92
    %s96 = sshllo.u32 0, 1
    %v98 = vld [vmem:[#allocation0] sm:%s96]
    %s99 = sshllo.u32 0, 1
    %100 = vst [vmem:[%s1] sm:%s99] %v98

// kernel: denoising_autoencoder_forward_impl.1
$region0: #{denoising_autoencoder_forward_impl.1}
  #allocation0 [shape = 'u32[]', space=smem, size = 0x4, offset = 0x4, fixed_abs, tag = 'smem constant byte address 0x4 - core index']
  #allocation1 [shape = 'u32[144,128]{1,0:T(1,128)}', space=vmem, size = 0x12000, scoped, tag = 'internal scratch']
  #allocation2 [shape = 'bf16[4,18,512]{2,1,0:T(8,128)(2,1)}', space=vmem, size = 0x18000, scoped, tag = 'scratch operand']
  #allocation3 [shape = 'bf16[4,18,256]{2,1,0:T(8,128)(2,1)}', space=vmem, size = 0xc000, scoped, tag = 'scratch operand']
  #allocation4 [shape = 'bf16[4,18,128]{2,1,0:T(8,128)(2,1)}', space=vmem, size = 0x6000, scoped, tag = 'scratch operand']
  #allocation5 [shape = 'bf16[4,18,256]{2,1,0:T(8,128)(2,1)}', space=vmem, size = 0xc000, scoped, tag = 'scratch operand']
  %s0 = inlined_call_operand.vmem [shape: bf16[8,16,512], index: 0, kind: input, shape index: {}]
  %s1 = inlined_call_operand.vmem [shape: bf16[3,512,256], index: 1, kind: input, shape index: {}]
  %s2 = inlined_call_operand.vmem [shape: f32[1,256], index: 2, kind: input, shape index: {}]
  %s3 = inlined_call_operand.vmem [shape: bf16[3,256,128], index: 3, kind: input, shape index: {}]
  %s4 = inlined_call_operand.vmem [shape: f32[1,128], index: 4, kind: input, shape index: {}]
  %s5 = inlined_call_operand.vmem [shape: bf16[3,128,256], index: 5, kind: input, shape index: {}]
  %s6 = inlined_call_operand.vmem [shape: f32[1,256], index: 6, kind: input, shape index: {}]
  %s7 = inlined_call_operand.vmem [shape: bf16[3,256,512], index: 7, kind: input, shape index: {}]
  %s8 = inlined_call_operand.vmem [shape: f32[1,512], index: 8, kind: input, shape index: {}]
  %s9 = inlined_call_operand.vmem [shape: f32[8,16,512], index: 9, kind: output, shape index: {}]
  %s10 = sld [smem:[#allocation0]]
  $region69: #{denoising_autoencoder_forward_impl.1} parent=0
    _
  %s12 = ssub.s32 1, %s10
  %s13 = scalar_select 0, %s12, %s10
  loop: start=0, step=1, limit=4
  $region2: #{denoising_autoencoder_forward_impl.1} parent=0 // loop_pre_header
    _
  $region3: #{denoising_autoencoder_forward_impl.1} parent=0 // loop_header
    %s15 = sphi 0, %s19
    %p16 = scmp.ge.s32.totalorder %s15, 4
    %s25 = sphi 0, %s27
    %s28 = sphi 0, %s25
    %s29 = sphi 0, %s28
    %s45 = sphi 0, %s29
    %s49 = sphi 0, %s49
    %s51 = sphi 0, %s49
    %s52 = sphi 0, %s51
    %s66 = sphi 0, %s52
    %s70 = sphi 0, %s70
    %s72 = sphi 0, %s70
    %s73 = sphi 0, %s72
    %s87 = sphi 0, %s73
    %s91 = sphi 0, %s91
    %s93 = sphi 0, %s91
    %s94 = sphi 0, %s93
    %s108 = sphi 0, %s94
    %s112 = sphi 0, %s112
    %s114 = sphi 0, %s112
    %s115 = sphi 0, %s114
    %s129 = sphi 0, %s115
    %s133 = sphi 0, %s133
    %s135 = sphi 0, %s133
    %s136 = sphi 0, %s135
    %s150 = sphi 0, %s136
    %s154 = sphi 0, %s154
    %s156 = sphi 0, %s154
    %s157 = sphi 0, %s156
    %s171 = sphi 0, %s157
    %s175 = sphi 0, %s175
    %s177 = sphi 0, %s175
    %s178 = sphi 0, %s177
    %s192 = sphi 0, %s178
    %s196 = sphi 0, %s196
    %s198 = sphi 0, %s196
    %s199 = sphi 0, %s198
    %s213 = sphi 0, %s199
    %s219 = sphi 0, %s221
    %s222 = sphi 0, %s219
    %s223 = sphi 0, %s222
    %s239 = sphi 0, %s223
  $region4: #{denoising_autoencoder_forward_impl.1} parent=0 // loop_header_branch
    %18 = sbr.rel (%p16) target = $region8
  $region5: #{denoising_autoencoder_forward_impl.1} parent=0 // loop_body
    %s20 = ssub.s32 %s15, 1
    %s21 = ssub.s32 %s15, 2
    %s22 = sadd.s32 %s15, 1
    %s23 = ssub.s32 %s15, %s22
    %p24 = scmp.eq.s32.totalorder %s23, 0
    %s26 = sadd.s32 %s25, 1
    %s27 = scalar_select %p24, %s25, %s26
    %p30 = pneg %p24
    %p31 = scmp.eq.s32.totalorder %s15, 1
    %p32 = por %p30, %p31
    %p33 = scmp.ne.s32.totalorder %s25, %s28
    %p34 = scmp.eq.s32.totalorder %s15, 0
    %p35 = por %p33, %p34
    %p36 = scmp.ne.s32.totalorder %s25, %s28
    %p37 = scmp.eq.s32.totalorder %s20, 1
    %p38 = por %p36, %p37
    %p39 = scmp.ne.s32.totalorder %s28, %s29
    %p40 = scmp.eq.s32.totalorder %s20, 0
    %p41 = por %p39, %p40
    %p42 = scmp.ne.s32.totalorder %s28, %s29
    %p43 = scmp.eq.s32.totalorder %s21, 1
    %p44 = por %p42, %p43
    %p46 = scmp.ne.s32.totalorder %s29, %s45
    %p47 = scmp.eq.s32.totalorder %s21, 0
    %p48 = por %p46, %p47
    %s50 = sadd.s32 %s49, 1
    %p53 = scmp.eq.s32.totalorder %s15, 1
    %p54 = scmp.ne.s32.totalorder %s49, %s51
    %p55 = scmp.eq.s32.totalorder %s15, 0
    %p56 = por %p54, %p55
    %p57 = scmp.ne.s32.totalorder %s49, %s51
    %p58 = scmp.eq.s32.totalorder %s20, 1
    %p59 = por %p57, %p58
    %p60 = scmp.ne.s32.totalorder %s51, %s52
    %p61 = scmp.eq.s32.totalorder %s20, 0
    %p62 = por %p60, %p61
    %p63 = scmp.ne.s32.totalorder %s51, %s52
    %p64 = scmp.eq.s32.totalorder %s21, 1
    %p65 = por %p63, %p64
    %p67 = scmp.ne.s32.totalorder %s52, %s66
    %p68 = scmp.eq.s32.totalorder %s21, 0
    %p69 = por %p67, %p68
    %s71 = sadd.s32 %s70, 1
    %p74 = scmp.eq.s32.totalorder %s15, 1
    %p75 = scmp.ne.s32.totalorder %s70, %s72
    %p76 = scmp.eq.s32.totalorder %s15, 0
    %p77 = por %p75, %p76
    %p78 = scmp.ne.s32.totalorder %s70, %s72
    %p79 = scmp.eq.s32.totalorder %s20, 1
    %p80 = por %p78, %p79
    %p81 = scmp.ne.s32.totalorder %s72, %s73
    %p82 = scmp.eq.s32.totalorder %s20, 0
    %p83 = por %p81, %p82
    %p84 = scmp.ne.s32.totalorder %s72, %s73
    %p85 = scmp.eq.s32.totalorder %s21, 1
    %p86 = por %p84, %p85
    %p88 = scmp.ne.s32.totalorder %s73, %s87
    %p89 = scmp.eq.s32.totalorder %s21, 0
    %p90 = por %p88, %p89
    %s92 = sadd.s32 %s91, 1
    %p95 = scmp.eq.s32.totalorder %s15, 1
    %p96 = scmp.ne.s32.totalorder %s91, %s93
    %p97 = scmp.eq.s32.totalorder %s15, 0
    %p98 = por %p96, %p97
    %p99 = scmp.ne.s32.totalorder %s91, %s93
    %p100 = scmp.eq.s32.totalorder %s20, 1
    %p101 = por %p99, %p100
    %p102 = scmp.ne.s32.totalorder %s93, %s94
    %p103 = scmp.eq.s32.totalorder %s20, 0
    %p104 = por %p102, %p103
    %p105 = scmp.ne.s32.totalorder %s93, %s94
    %p106 = scmp.eq.s32.totalorder %s21, 1
    %p107 = por %p105, %p106
    %p109 = scmp.ne.s32.totalorder %s94, %s108
    %p110 = scmp.eq.s32.totalorder %s21, 0
    %p111 = por %p109, %p110
    %s113 = sadd.s32 %s112, 1
    %p116 = scmp.eq.s32.totalorder %s15, 1
    %p117 = scmp.ne.s32.totalorder %s112, %s114
    %p118 = scmp.eq.s32.totalorder %s15, 0
    %p119 = por %p117, %p118
    %p120 = scmp.ne.s32.totalorder %s112, %s114
    %p121 = scmp.eq.s32.totalorder %s20, 1
    %p122 = por %p120, %p121
    %p123 = scmp.ne.s32.totalorder %s114, %s115
    %p124 = scmp.eq.s32.totalorder %s20, 0
    %p125 = por %p123, %p124
    %p126 = scmp.ne.s32.totalorder %s114, %s115
    %p127 = scmp.eq.s32.totalorder %s21, 1
    %p128 = por %p126, %p127
    %p130 = scmp.ne.s32.totalorder %s115, %s129
    %p131 = scmp.eq.s32.totalorder %s21, 0
    %p132 = por %p130, %p131
    %s134 = sadd.s32 %s133, 1
    %p137 = scmp.eq.s32.totalorder %s15, 1
    %p138 = scmp.ne.s32.totalorder %s133, %s135
    %p139 = scmp.eq.s32.totalorder %s15, 0
    %p140 = por %p138, %p139
    %p141 = scmp.ne.s32.totalorder %s133, %s135
    %p142 = scmp.eq.s32.totalorder %s20, 1
    %p143 = por %p141, %p142
    %p144 = scmp.ne.s32.totalorder %s135, %s136
    %p145 = scmp.eq.s32.totalorder %s20, 0
    %p146 = por %p144, %p145
    %p147 = scmp.ne.s32.totalorder %s135, %s136
    %p148 = scmp.eq.s32.totalorder %s21, 1
    %p149 = por %p147, %p148
    %p151 = scmp.ne.s32.totalorder %s136, %s150
    %p152 = scmp.eq.s32.totalorder %s21, 0
    %p153 = por %p151, %p152
    %s155 = sadd.s32 %s154, 1
    %p158 = scmp.eq.s32.totalorder %s15, 1
    %p159 = scmp.ne.s32.totalorder %s154, %s156
    %p160 = scmp.eq.s32.totalorder %s15, 0
    %p161 = por %p159, %p160
    %p162 = scmp.ne.s32.totalorder %s154, %s156
    %p163 = scmp.eq.s32.totalorder %s20, 1
    %p164 = por %p162, %p163
    %p165 = scmp.ne.s32.totalorder %s156, %s157
    %p166 = scmp.eq.s32.totalorder %s20, 0
    %p167 = por %p165, %p166
    %p168 = scmp.ne.s32.totalorder %s156, %s157
    %p169 = scmp.eq.s32.totalorder %s21, 1
    %p170 = por %p168, %p169
    %p172 = scmp.ne.s32.totalorder %s157, %s171
    %p173 = scmp.eq.s32.totalorder %s21, 0
    %p174 = por %p172, %p173
    %s176 = sadd.s32 %s175, 1
    %p179 = scmp.eq.s32.totalorder %s15, 1
    %p180 = scmp.ne.s32.totalorder %s175, %s177
    %p181 = scmp.eq.s32.totalorder %s15, 0
    %p182 = por %p180, %p181
    %p183 = scmp.ne.s32.totalorder %s175, %s177
    %p184 = scmp.eq.s32.totalorder %s20, 1
    %p185 = por %p183, %p184
    %p186 = scmp.ne.s32.totalorder %s177, %s178
    %p187 = scmp.eq.s32.totalorder %s20, 0
    %p188 = por %p186, %p187
    %p189 = scmp.ne.s32.totalorder %s177, %s178
    %p190 = scmp.eq.s32.totalorder %s21, 1
    %p191 = por %p189, %p190
    %p193 = scmp.ne.s32.totalorder %s178, %s192
    %p194 = scmp.eq.s32.totalorder %s21, 0
    %p195 = por %p193, %p194
    %s197 = sadd.s32 %s196, 1
    %p200 = scmp.eq.s32.totalorder %s15, 1
    %p201 = scmp.ne.s32.totalorder %s196, %s198
    %p202 = scmp.eq.s32.totalorder %s15, 0
    %p203 = por %p201, %p202
    %p204 = scmp.ne.s32.totalorder %s196, %s198
    %p205 = scmp.eq.s32.totalorder %s20, 1
    %p206 = por %p204, %p205
    %p207 = scmp.ne.s32.totalorder %s198, %s199
    %p208 = scmp.eq.s32.totalorder %s20, 0
    %p209 = por %p207, %p208
    %p210 = scmp.ne.s32.totalorder %s198, %s199
    %p211 = scmp.eq.s32.totalorder %s21, 1
    %p212 = por %p210, %p211
    %p214 = scmp.ne.s32.totalorder %s199, %s213
    %p215 = scmp.eq.s32.totalorder %s21, 0
    %p216 = por %p214, %p215
    %s217 = ssub.s32 %s15, %s22
    %p218 = scmp.eq.s32.totalorder %s217, 0
    %s220 = sadd.s32 %s219, 1
    %s221 = scalar_select %p218, %s219, %s220
    %p224 = pneg %p218
    %p225 = scmp.eq.s32.totalorder %s15, 1
    %p226 = por %p224, %p225
    %p227 = scmp.ne.s32.totalorder %s219, %s222
    %p228 = scmp.eq.s32.totalorder %s15, 0
    %p229 = por %p227, %p228
    %p230 = scmp.ne.s32.totalorder %s219, %s222
    %p231 = scmp.eq.s32.totalorder %s20, 1
    %p232 = por %p230, %p231
    %p233 = scmp.ne.s32.totalorder %s222, %s223
    %p234 = scmp.eq.s32.totalorder %s20, 0
    %p235 = por %p233, %p234
    %p236 = scmp.ne.s32.totalorder %s222, %s223
    %p237 = scmp.eq.s32.totalorder %s21, 1
    %p238 = por %p236, %p237
    %p240 = scmp.ne.s32.totalorder %s223, %s239
    %p241 = scmp.eq.s32.totalorder %s21, 0
    %p242 = por %p240, %p241
    %p243 = scmp.le.s32.totalorder 1, %s15
    %p244 = scmp.lt.s32.totalorder %s15, 3
    %p245 = pnand %p243, %p244
    %p246 = pneg %p245
    // Predicated region
    $region9: #{denoising_autoencoder_forward_impl.1} parent=5 // pred_check
      _
    $region10: #{denoising_autoencoder_forward_impl.1} parent=5 // pred_check_branch
      %248 = sbr.rel (%p245) target = $region12
    $region11: #{denoising_autoencoder_forward_impl.1} parent=5 // pred_region
      %s249 = ssub.s32 %s15, 1
      // Predicated region
      $region13: #{denoising_autoencoder_forward_impl.1} parent=11 // pred_check
        %p250 = pneg %p62
      $region14: #{denoising_autoencoder_forward_impl.1} parent=11 // pred_check_branch
        %252 = sbr.rel (%p250) target = $region16
      $region15: #{denoising_autoencoder_forward_impl.1} parent=11 // pred_region
        _
      $region16: #{denoising_autoencoder_forward_impl.1} parent=11 // pred_fallthru
        _
      // Predicated region
      $region17: #{denoising_autoencoder_forward_impl.1} parent=11 // pred_check
        %p253 = pneg %p83
      $region18: #{denoising_autoencoder_forward_impl.1} parent=11 // pred_check_branch
        %255 = sbr.rel (%p253) target = $region20
      $region19: #{denoising_autoencoder_forward_impl.1} parent=11 // pred_region
        _
      $region20: #{denoising_autoencoder_forward_impl.1} parent=11 // pred_fallthru
        _
      // Predicated region
      $region21: #{denoising_autoencoder_forward_impl.1} parent=11 // pred_check
        %p256 = pneg %p104
      $region22: #{denoising_autoencoder_forward_impl.1} parent=11 // pred_check_branch
        %258 = sbr.rel (%p256) target = $region24
      $region23: #{denoising_autoencoder_forward_impl.1} parent=11 // pred_region
        _
      $region24: #{denoising_autoencoder_forward_impl.1} parent=11 // pred_fallthru
        _
      // Predicated region
      $region25: #{denoising_autoencoder_forward_impl.1} parent=11 // pred_check
        %p259 = pneg %p125
      $region26: #{denoising_autoencoder_forward_impl.1} parent=11 // pred_check_branch
        %261 = sbr.rel (%p259) target = $region28
      $region27: #{denoising_autoencoder_forward_impl.1} parent=11 // pred_region
        _
      $region28: #{denoising_autoencoder_forward_impl.1} parent=11 // pred_fallthru
        _
      // Predicated region
      $region29: #{denoising_autoencoder_forward_impl.1} parent=11 // pred_check
        %p262 = pneg %p146
      $region30: #{denoising_autoencoder_forward_impl.1} parent=11 // pred_check_branch
        %264 = sbr.rel (%p262) target = $region32
      $region31: #{denoising_autoencoder_forward_impl.1} parent=11 // pred_region
        _
      $region32: #{denoising_autoencoder_forward_impl.1} parent=11 // pred_fallthru
        _
      // Predicated region
      $region33: #{denoising_autoencoder_forward_impl.1} parent=11 // pred_check
        %p265 = pneg %p167
      $region34: #{denoising_autoencoder_forward_impl.1} parent=11 // pred_check_branch
        %267 = sbr.rel (%p265) target = $region36
      $region35: #{denoising_autoencoder_forward_impl.1} parent=11 // pred_region
        _
      $region36: #{denoising_autoencoder_forward_impl.1} parent=11 // pred_fallthru
        _
      // Predicated region
      $region37: #{denoising_autoencoder_forward_impl.1} parent=11 // pred_check
        %p268 = pneg %p188
      $region38: #{denoising_autoencoder_forward_impl.1} parent=11 // pred_check_branch
        %270 = sbr.rel (%p268) target = $region40
      $region39: #{denoising_autoencoder_forward_impl.1} parent=11 // pred_region
        _
      $region40: #{denoising_autoencoder_forward_impl.1} parent=11 // pred_fallthru
        _
      // Predicated region
      $region41: #{denoising_autoencoder_forward_impl.1} parent=11 // pred_check
        %p271 = pneg %p209
      $region42: #{denoising_autoencoder_forward_impl.1} parent=11 // pred_check_branch
        %273 = sbr.rel (%p271) target = $region44
      $region43: #{denoising_autoencoder_forward_impl.1} parent=11 // pred_region
        _
      $region44: #{denoising_autoencoder_forward_impl.1} parent=11 // pred_fallthru
        _
    $region12: #{denoising_autoencoder_forward_impl.1} parent=5 // pred_fallthru
      _
    %p274 = scmp.lt.s32.totalorder %s15, 2
    // Predicated region
    $region45: #{denoising_autoencoder_forward_impl.1} parent=5 // pred_check
      %p275 = pneg %p274
    $region46: #{denoising_autoencoder_forward_impl.1} parent=5 // pred_check_branch
      %277 = sbr.rel (%p275) target = $region48
    $region47: #{denoising_autoencoder_forward_impl.1} parent=5 // pred_region
      // Predicated region
      $region49: #{denoising_autoencoder_forward_impl.1} parent=47 // pred_check
        %p278 = pneg %p35
      $region50: #{denoising_autoencoder_forward_impl.1} parent=47 // pred_check_branch
        %280 = sbr.rel (%p278) target = $region52
      $region51: #{denoising_autoencoder_forward_impl.1} parent=47 // pred_region
        %s281 = smul.u32 4, %s15
        %p282 = scmp.lt.s32.totalorder %s281, 7
        %s283 = scalar_select %p282, %s281, 7
        %s284 = smul.addr %s283, 8
        %s285 = smul.addr %s284, 4
        %s286 = scalar_lea.vmem %s0, %s285
        %s287 = smul.u32 4, %s15
      $region52: #{denoising_autoencoder_forward_impl.1} parent=47 // pred_fallthru
        _
    $region48: #{denoising_autoencoder_forward_impl.1} parent=5 // pred_fallthru
      _
    %p288 = scmp.le.s32.totalorder 1, %s15
    %p289 = scmp.lt.s32.totalorder %s15, 3
    %p290 = pnand %p288, %p289
    %p291 = pneg %p290
    // Predicated region
    $region53: #{denoising_autoencoder_forward_impl.1} parent=5 // pred_check
      _
    $region54: #{denoising_autoencoder_forward_impl.1} parent=5 // pred_check_branch
      %293 = sbr.rel (%p290) target = $region56
    $region55: #{denoising_autoencoder_forward_impl.1} parent=5 // pred_region
      %s294 = ssub.s32 %s15, 1
      %s295 = smul.u32 4, %s20
      %p296 = scmp.lt.s32.totalorder %s295, 7
      %s297 = scalar_select %p296, %s295, 7
      %s298 = smul.addr %s297, 8
      %s299 = smul.addr %s298, 4
      %s300 = scalar_lea.vmem %s0, %s299
      %p301 = pneg %p41
      %p302 = pneg %p38
      %p303 = pneg %p62
      %p304 = pneg %p59
      %p305 = pneg %p83
      %p306 = pneg %p80
      %p307 = pneg %p104
      %p308 = pneg %p101
      %p309 = pneg %p125
      %p310 = pneg %p122
      %p311 = pneg %p146
      %p312 = pneg %p143
      %p313 = pneg %p167
      %p314 = pneg %p164
      %p315 = pneg %p188
      %p316 = pneg %p185
      %p317 = pneg %p209
      %p318 = pneg %p206
      %p319 = pneg %p235
      %p320 = pneg %p232
      %s321 = smul.u32 4, %s20
      %p322 = scmp.lt.s32.totalorder %s321, 7
      %s323 = scalar_select %p322, %s321, 7
      %s324 = smul.addr %s323, 8
      %s325 = smul.addr %s324, 8
      %s326 = scalar_lea.vmem %s9, %s325
      %s327 = smul.u32 4, %s20
      %p328 = scmp.lt.s32.totalorder %s327, 7
      %s329 = scalar_select %p328, %s327, 7
      %s330 = smul.addr %s329, 8
      %s331 = smul.addr %s330, 4
      %s332 = scalar_lea.vmem %s0, %s331
      %s333 = smul.u32 4, %s20
      %s334 = smul.u32 4, %s20
      %p335 = scmp.lt.s32.totalorder %s334, 7
      %s336 = scalar_select %p335, %s334, 7
      %s337 = smul.addr %s336, 8
      %s338 = smul.addr %s337, 8
      %s339 = scalar_lea.vmem %s9, %s338
      %s340 = smul.u32 4, %s20
      %v342 = vld [vmem:[%s332] sm:$0xff]
      %v343 = vld [vmem:[%s332 + $0x8] sm:$0xff]
      %v344 = vld [vmem:[%s332 + $0x10] sm:$0xff]
      %v345 = vld [vmem:[%s332 + $0x18] sm:$0xff]
      %v346 = vld [vmem:[%s332 + $0x20] sm:$0xff]
      %v347 = vld [vmem:[%s332 + $0x28] sm:$0xff]
      %v348 = vld [vmem:[%s332 + $0x30] sm:$0xff]
      %v349 = vld [vmem:[%s332 + $0x38] sm:$0xff]
      %v350 = vld [vmem:[%s332 + $0x40] sm:$0xff]
      %v351 = vld [vmem:[%s332 + $0x48] sm:$0xff]
      %v352 = vld [vmem:[%s332 + $0x50] sm:$0xff]
      %v353 = vld [vmem:[%s332 + $0x58] sm:$0xff]
      %v354 = vld [vmem:[%s332 + $0x60] sm:$0xff]
      %v355 = vld [vmem:[%s332 + $0x68] sm:$0xff]
      %v356 = vld [vmem:[%s332 + $0x70] sm:$0xff]
      %v357 = vld [vmem:[%s332 + $0x78] sm:$0xff]
      %vm358 = vcmask 1040384
      %vm359 = vsmask.f32 256
      %vm360 = vmand %vm358, %vm359
      %vm361 = vcmask 1044484
      %vm362 = vsmask.f32 4352
      %vm363 = vmand %vm361, %vm362
      %vm364 = vmor %vm363, %vm360
      %v365 = vld [vmem:[#allocation2] sm:$0x11]
      %v366 = vsel %vm364, 0, %v365
      %367 = vst [vmem:[#allocation2] sm:$0x11] %v366
      %v368 = vld [vmem:[#allocation2 + $0x8] sm:$0x11]
      %v369 = vsel %vm364, 0, %v368
      %370 = vst [vmem:[#allocation2 + $0x8] sm:$0x11] %v369
      %v371 = vld [vmem:[#allocation2 + $0x30] sm:$0x11]
      %v372 = vsel %vm364, 0, %v371
      %373 = vst [vmem:[#allocation2 + $0x30] sm:$0x11] %v372
      %v374 = vld [vmem:[#allocation2 + $0x38] sm:$0x11]
      %v375 = vsel %vm364, 0, %v374
      %376 = vst [vmem:[#allocation2 + $0x38] sm:$0x11] %v375
      %v377 = vld [vmem:[#allocation2 + $0x60] sm:$0x11]
      %v378 = vsel %vm364, 0, %v377
      %379 = vst [vmem:[#allocation2 + $0x60] sm:$0x11] %v378
      %v380 = vld [vmem:[#allocation2 + $0x68] sm:$0x11]
      %v381 = vsel %vm364, 0, %v380
      %382 = vst [vmem:[#allocation2 + $0x68] sm:$0x11] %v381
      %v383 = vld [vmem:[#allocation2 + $0x90] sm:$0x11]
      %v384 = vsel %vm364, 0, %v383
      %385 = vst [vmem:[#allocation2 + $0x90] sm:$0x11] %v384
      %v386 = vld [vmem:[#allocation2 + $0x98] sm:$0x11]
      %v387 = vsel %vm364, 0, %v386
      %388 = vst [vmem:[#allocation2 + $0x98] sm:$0x11] %v387
      %vm389 = vsmask.f32 7938
      %vm390 = vmand %vm358, %vm389
      %vm391 = vsmask.f32 7954
      %vm392 = vmand %vm361, %vm391
      %vm393 = vmor %vm392, %vm390
      %v394 = vld [vmem:[#allocation2 + $0x20] sm:$0x11]
      %v395 = vsel %vm393, 0, %v394
      %396 = vst [vmem:[#allocation2 + $0x20] sm:$0x11] %v395
      %v397 = vld [vmem:[#allocation2 + $0x28] sm:$0x11]
      %v398 = vsel %vm393, 0, %v397
      %399 = vst [vmem:[#allocation2 + $0x28] sm:$0x11] %v398
      %v400 = vld [vmem:[#allocation2 + $0x50] sm:$0x11]
      %v401 = vsel %vm393, 0, %v400
      %402 = vst [vmem:[#allocation2 + $0x50] sm:$0x11] %v401
      %v403 = vld [vmem:[#allocation2 + $0x58] sm:$0x11]
      %v404 = vsel %vm393, 0, %v403
      %405 = vst [vmem:[#allocation2 + $0x58] sm:$0x11] %v404
      %v406 = vld [vmem:[#allocation2 + $0x80] sm:$0x11]
      %v407 = vsel %vm393, 0, %v406
      %408 = vst [vmem:[#allocation2 + $0x80] sm:$0x11] %v407
      %v409 = vld [vmem:[#allocation2 + $0x88] sm:$0x11]
      %v410 = vsel %vm393, 0, %v409
      %411 = vst [vmem:[#allocation2 + $0x88] sm:$0x11] %v410
      %v412 = vld [vmem:[#allocation2 + $0xb0] sm:$0x11]
      %v413 = vsel %vm393, 0, %v412
      %414 = vst [vmem:[#allocation2 + $0xb0] sm:$0x11] %v413
      %v415 = vld [vmem:[#allocation2 + $0xb8] sm:$0x11]
      %v416 = vsel %vm393, 0, %v415
      %417 = vst [vmem:[#allocation2 + $0xb8] sm:$0x11] %v416
      %vm418 = vsmask.f32 4368
      %vm419 = vmor %vm359, %vm418
      %v421 = vshrl.u32 %v342, 16
      %v423 = vrot.slane %v421, 7
      %v424 = vshll.u32 %v342, 16
      %v426 = vor.u32 %v423, %v424
      %v428 = vshrl.u32 %v343, 16
      %v430 = vrot.slane %v428, 7
      %v431 = vshll.u32 %v343, 16
      %v433 = vor.u32 %v430, %v431
      %v434 = vrot.slane %v423, 4
      %v436 = vshrl.u32 %v344, 16
      %v438 = vrot.slane %v436, 7
      %v439 = vshll.u32 %v344, 16
      %v441 = vor.u32 %v438, %v439
      %v442 = vsel %vm419, %v434, %v441
      %v443 = vrot.slane %v430, 4
      %v445 = vshrl.u32 %v345, 16
      %v447 = vrot.slane %v445, 7
      %v448 = vshll.u32 %v345, 16
      %v450 = vor.u32 %v447, %v448
      %v451 = vsel %vm419, %v443, %v450
      %v452 = vrot.slane %v438, 4
      %v453 = vrot.slane %v447, 4
      %v455 = vshrl.u32 %v346, 16
      %v457 = vrot.slane %v455, 7
      %v458 = vshll.u32 %v346, 16
      %v460 = vor.u32 %v457, %v458
      %v462 = vshrl.u32 %v347, 16
      %v464 = vrot.slane %v462, 7
      %v465 = vshll.u32 %v347, 16
      %v467 = vor.u32 %v464, %v465
      %v468 = vrot.slane %v457, 4
      %v470 = vshrl.u32 %v348, 16
      %v472 = vrot.slane %v470, 7
      %v473 = vshll.u32 %v348, 16
      %v475 = vor.u32 %v472, %v473
      %v476 = vsel %vm419, %v468, %v475
      %v477 = vrot.slane %v464, 4
      %v479 = vshrl.u32 %v349, 16
      %v481 = vrot.slane %v479, 7
      %v482 = vshll.u32 %v349, 16
      %v484 = vor.u32 %v481, %v482
      %v485 = vsel %vm419, %v477, %v484
      %v486 = vrot.slane %v472, 4
      %v487 = vrot.slane %v481, 4
      %v489 = vshrl.u32 %v350, 16
      %v491 = vrot.slane %v489, 7
      %v492 = vshll.u32 %v350, 16
      %v494 = vor.u32 %v491, %v492
      %v496 = vshrl.u32 %v351, 16
      %v498 = vrot.slane %v496, 7
      %v499 = vshll.u32 %v351, 16
      %v501 = vor.u32 %v498, %v499
      %v502 = vrot.slane %v491, 4
      %v504 = vshrl.u32 %v352, 16
      %v506 = vrot.slane %v504, 7
      %v507 = vshll.u32 %v352, 16
      %v509 = vor.u32 %v506, %v507
      %v510 = vsel %vm419, %v502, %v509
      %v511 = vrot.slane %v498, 4
      %v513 = vshrl.u32 %v353, 16
      %v515 = vrot.slane %v513, 7
      %v516 = vshll.u32 %v353, 16
      %v518 = vor.u32 %v515, %v516
      %v519 = vsel %vm419, %v511, %v518
      %v520 = vrot.slane %v506, 4
      %v521 = vrot.slane %v515, 4
      %v523 = vshrl.u32 %v354, 16
      %v525 = vrot.slane %v523, 7
      %v526 = vshll.u32 %v354, 16
      %v528 = vor.u32 %v525, %v526
      %v530 = vshrl.u32 %v355, 16
      %v532 = vrot.slane %v530, 7
      %v533 = vshll.u32 %v355, 16
      %v535 = vor.u32 %v532, %v533
      %v536 = vrot.slane %v525, 4
      %v538 = vshrl.u32 %v356, 16
      %v540 = vrot.slane %v538, 7
      %v541 = vshll.u32 %v356, 16
      %v543 = vor.u32 %v540, %v541
      %v544 = vsel %vm419, %v536, %v543
      %v545 = vrot.slane %v532, 4
      %v547 = vshrl.u32 %v357, 16
      %v549 = vrot.slane %v547, 7
      %v550 = vshll.u32 %v357, 16
      %v552 = vor.u32 %v549, %v550
      %v553 = vsel %vm419, %v545, %v552
      %v554 = vrot.slane %v540, 4
      %v555 = vrot.slane %v549, 4
      %vm580 = vcmask 1043456
      %vm581 = vmand %vm580, %vm389
      %vm582 = vcmask 1047556
      %vm583 = vmand %vm582, %vm391
      %vm584 = vmor %vm583, %vm581
      %v585 = vld [vmem:[#allocation2] sm:$0xff]
      %v586 = vsel %vm584, %v426, %v585
      %587 = vst [vmem:[#allocation2] sm:$0xff] %v586
      %v588 = vld [vmem:[#allocation2 + $0x8] sm:$0xff]
      %v589 = vsel %vm584, %v433, %v588
      %590 = vst [vmem:[#allocation2 + $0x8] sm:$0xff] %v589
      %591 = vst [vmem:[#allocation2 + $0x10] sm:$0xff] %v442
      %592 = vst [vmem:[#allocation2 + $0x18] sm:$0xff] %v451
      %v593 = vld [vmem:[#allocation2 + $0x20] sm:$0x11]
      %v594 = vsel %vm364, %v452, %v593
      %595 = vst [vmem:[#allocation2 + $0x20] sm:$0x11] %v594
      %v596 = vld [vmem:[#allocation2 + $0x28] sm:$0x11]
      %v597 = vsel %vm364, %v453, %v596
      %598 = vst [vmem:[#allocation2 + $0x28] sm:$0x11] %v597
      %v599 = vld [vmem:[#allocation2 + $0x30] sm:$0xff]
      %v600 = vsel %vm584, %v460, %v599
      %601 = vst [vmem:[#allocation2 + $0x30] sm:$0xff] %v600
      %v602 = vld [vmem:[#allocation2 + $0x38] sm:$0xff]
      %v603 = vsel %vm584, %v467, %v602
      %604 = vst [vmem:[#allocation2 + $0x38] sm:$0xff] %v603
      %605 = vst [vmem:[#allocation2 + $0x40] sm:$0xff] %v476
      %606 = vst [vmem:[#allocation2 + $0x48] sm:$0xff] %v485
      %v607 = vld [vmem:[#allocation2 + $0x50] sm:$0x11]
      %v608 = vsel %vm364, %v486, %v607
      %609 = vst [vmem:[#allocation2 + $0x50] sm:$0x11] %v608
      %v610 = vld [vmem:[#allocation2 + $0x58] sm:$0x11]
      %v611 = vsel %vm364, %v487, %v610
      %612 = vst [vmem:[#allocation2 + $0x58] sm:$0x11] %v611
      %v613 = vld [vmem:[#allocation2 + $0x60] sm:$0xff]
      %v614 = vsel %vm584, %v494, %v613
      %615 = vst [vmem:[#allocation2 + $0x60] sm:$0xff] %v614
      %v616 = vld [vmem:[#allocation2 + $0x68] sm:$0xff]
      %v617 = vsel %vm584, %v501, %v616
      %618 = vst [vmem:[#allocation2 + $0x68] sm:$0xff] %v617
      %619 = vst [vmem:[#allocation2 + $0x70] sm:$0xff] %v510
      %620 = vst [vmem:[#allocation2 + $0x78] sm:$0xff] %v519
      %v621 = vld [vmem:[#allocation2 + $0x80] sm:$0x11]
      %v622 = vsel %vm364, %v520, %v621
      %623 = vst [vmem:[#allocation2 + $0x80] sm:$0x11] %v622
      %v624 = vld [vmem:[#allocation2 + $0x88] sm:$0x11]
      %v625 = vsel %vm364, %v521, %v624
      %626 = vst [vmem:[#allocation2 + $0x88] sm:$0x11] %v625
      %v627 = vld [vmem:[#allocation2 + $0x90] sm:$0xff]
      %v628 = vsel %vm584, %v528, %v627
      %629 = vst [vmem:[#allocation2 + $0x90] sm:$0xff] %v628
      %v630 = vld [vmem:[#allocation2 + $0x98] sm:$0xff]
      %v631 = vsel %vm584, %v535, %v630
      %632 = vst [vmem:[#allocation2 + $0x98] sm:$0xff] %v631
      %633 = vst [vmem:[#allocation2 + $0xa0] sm:$0xff] %v544
      %634 = vst [vmem:[#allocation2 + $0xa8] sm:$0xff] %v553
      %v635 = vld [vmem:[#allocation2 + $0xb0] sm:$0x11]
      %v636 = vsel %vm364, %v554, %v635
      %637 = vst [vmem:[#allocation2 + $0xb0] sm:$0x11] %v636
      %v638 = vld [vmem:[#allocation2 + $0xb8] sm:$0x11]
      %v639 = vsel %vm364, %v555, %v638
      %640 = vst [vmem:[#allocation2 + $0xb8] sm:$0x11] %v639
      %v641 = vld [vmem:[#allocation2] sm:$0xff]
      %v642 = vld [vmem:[#allocation2 + $0x8] sm:$0xff]
      %v643 = vld [vmem:[#allocation2 + $0x10] sm:$0xff]
      %v644 = vld [vmem:[#allocation2 + $0x18] sm:$0xff]
      %v645 = vld [vmem:[#allocation2 + $0x30] sm:$0xff]
      %v646 = vld [vmem:[#allocation2 + $0x38] sm:$0xff]
      %v647 = vld [vmem:[#allocation2 + $0x40] sm:$0xff]
      %v648 = vld [vmem:[#allocation2 + $0x48] sm:$0xff]
      %v649 = vld [vmem:[#allocation2 + $0x60] sm:$0xff]
      %v650 = vld [vmem:[#allocation2 + $0x68] sm:$0xff]
      %v651 = vld [vmem:[#allocation2 + $0x70] sm:$0xff]
      %v652 = vld [vmem:[#allocation2 + $0x78] sm:$0xff]
      %v653 = vld [vmem:[#allocation2 + $0x90] sm:$0xff]
      %v654 = vld [vmem:[#allocation2 + $0x98] sm:$0xff]
      %v655 = vld [vmem:[#allocation2 + $0xa0] sm:$0xff]
      %v656 = vld [vmem:[#allocation2 + $0xa8] sm:$0xff]
      %v657 = vld [vmem:[%s1] sm:$0xff]
      %v658 = vld [vmem:[%s1 + $0x8] sm:$0xff]
      %v659 = vld [vmem:[%s1 + $0x10] sm:$0xff]
      %v660 = vld [vmem:[%s1 + $0x18] sm:$0xff]
      %v661 = vld [vmem:[%s1 + $0x20] sm:$0xff]
      %v662 = vld [vmem:[%s1 + $0x28] sm:$0xff]
      %v663 = vld [vmem:[%s1 + $0x30] sm:$0xff]
      %v664 = vld [vmem:[%s1 + $0x38] sm:$0xff]
      %v665 = vld [vmem:[%s1 + $0x40] sm:$0xff]
      %v666 = vld [vmem:[%s1 + $0x48] sm:$0xff]
      %v667 = vld [vmem:[%s1 + $0x50] sm:$0xff]
      %v668 = vld [vmem:[%s1 + $0x58] sm:$0xff]
      %v669 = vld [vmem:[%s1 + $0x60] sm:$0xff]
      %v670 = vld [vmem:[%s1 + $0x68] sm:$0xff]
      %v671 = vld [vmem:[%s1 + $0x70] sm:$0xff]
      %v672 = vld [vmem:[%s1 + $0x78] sm:$0xff]
      %v673 = vld [vmem:[%s1 + $0x80] sm:$0xff]
      %v674 = vld [vmem:[%s1 + $0x88] sm:$0xff]
      %v675 = vld [vmem:[%s1 + $0x90] sm:$0xff]
      %v676 = vld [vmem:[%s1 + $0x98] sm:$0xff]
      %v677 = vld [vmem:[%s1 + $0xa0] sm:$0xff]
      %v678 = vld [vmem:[%s1 + $0xa8] sm:$0xff]
      %v679 = vld [vmem:[%s1 + $0xb0] sm:$0xff]
      %v680 = vld [vmem:[%s1 + $0xb8] sm:$0xff]
      %v681 = vld [vmem:[%s1 + $0xc0] sm:$0xff]
      %v682 = vld [vmem:[%s1 + $0xc8] sm:$0xff]
      %v683 = vld [vmem:[%s1 + $0xd0] sm:$0xff]
      %v684 = vld [vmem:[%s1 + $0xd8] sm:$0xff]
      %v685 = vld [vmem:[%s1 + $0xe0] sm:$0xff]
      %v686 = vld [vmem:[%s1 + $0xe8] sm:$0xff]
      %v687 = vld [vmem:[%s1 + $0xf0] sm:$0xff]
      %v688 = vld [vmem:[%s1 + $0xf8] sm:$0xff]
      %v689 = vld [vmem:[%s1 + $0x100] sm:$0xff]
      %v690 = vld [vmem:[%s1 + $0x108] sm:$0xff]
      %v691 = vld [vmem:[%s1 + $0x110] sm:$0xff]
      %v692 = vld [vmem:[%s1 + $0x118] sm:$0xff]
      %v693 = vld [vmem:[%s1 + $0x120] sm:$0xff]
      %v694 = vld [vmem:[%s1 + $0x128] sm:$0xff]
      %v695 = vld [vmem:[%s1 + $0x130] sm:$0xff]
      %v696 = vld [vmem:[%s1 + $0x138] sm:$0xff]
      %v697 = vld [vmem:[%s1 + $0x140] sm:$0xff]
      %v698 = vld [vmem:[%s1 + $0x148] sm:$0xff]
      %v699 = vld [vmem:[%s1 + $0x150] sm:$0xff]
      %v700 = vld [vmem:[%s1 + $0x158] sm:$0xff]
      %v701 = vld [vmem:[%s1 + $0x160] sm:$0xff]
      %v702 = vld [vmem:[%s1 + $0x168] sm:$0xff]
      %v703 = vld [vmem:[%s1 + $0x170] sm:$0xff]
      %v704 = vld [vmem:[%s1 + $0x178] sm:$0xff]
      %v705 = vld [vmem:[%s1 + $0x180] sm:$0xff]
      %v706 = vld [vmem:[%s1 + $0x188] sm:$0xff]
      %v707 = vld [vmem:[%s1 + $0x190] sm:$0xff]
      %v708 = vld [vmem:[%s1 + $0x198] sm:$0xff]
      %v709 = vld [vmem:[%s1 + $0x1a0] sm:$0xff]
      %v710 = vld [vmem:[%s1 + $0x1a8] sm:$0xff]
      %v711 = vld [vmem:[%s1 + $0x1b0] sm:$0xff]
      %v712 = vld [vmem:[%s1 + $0x1b8] sm:$0xff]
      %v713 = vld [vmem:[%s1 + $0x1c0] sm:$0xff]
      %v714 = vld [vmem:[%s1 + $0x1c8] sm:$0xff]
      %v715 = vld [vmem:[%s1 + $0x1d0] sm:$0xff]
      %v716 = vld [vmem:[%s1 + $0x1d8] sm:$0xff]
      %v717 = vld [vmem:[%s1 + $0x1e0] sm:$0xff]
      %v718 = vld [vmem:[%s1 + $0x1e8] sm:$0xff]
      %v719 = vld [vmem:[%s1 + $0x1f0] sm:$0xff]
      %v720 = vld [vmem:[%s1 + $0x1f8] sm:$0xff]
      %v721 = vld [vmem:[#allocation2 + $0x20] sm:$0x11]
      %v722 = vld [vmem:[#allocation2 + $0x28] sm:$0x11]
      %v723 = vld [vmem:[#allocation2 + $0x50] sm:$0x11]
      %v724 = vld [vmem:[#allocation2 + $0x58] sm:$0x11]
      %v725 = vld [vmem:[#allocation2 + $0x80] sm:$0x11]
      %v726 = vld [vmem:[#allocation2 + $0x88] sm:$0x11]
      %v727 = vld [vmem:[#allocation2 + $0xb0] sm:$0x11]
      %v728 = vld [vmem:[#allocation2 + $0xb8] sm:$0x11]
      %vm729 = vsmask.f32 3328
      %vm730 = vsmask.f32 7440
      %vm731 = vmor %vm729, %vm730
      %v733 = vshrl.u32 %v641, 16
      %v735 = vrot.slane %v733, 4
      %v736 = vshll.u32 %v641, 16
      %v738 = vrot.slane %v736, 5
      %v739 = vor.u32 %v735, %v738
      %v740 = vrot.slane %v739, 4
      %v742 = vshll.u32 %v643, 16
      %v744 = vrot.slane %v742, 5
      %v745 = vsel %vm731, %v740, %v744
      %v747 = vshrl.u32 %v642, 16
      %v749 = vrot.slane %v747, 4
      %v750 = vshll.u32 %v642, 16
      %v752 = vrot.slane %v750, 5
      %v753 = vor.u32 %v749, %v752
      %v754 = vrot.slane %v753, 4
      %v756 = vshll.u32 %v644, 16
      %v758 = vrot.slane %v756, 5
      %v759 = vsel %vm731, %v754, %v758
      %v760 = vshrl.u32 %v643, 16
      %v762 = vrot.slane %v760, 4
      %v763 = vor.u32 %v762, %v744
      %v764 = vrot.slane %v763, 4
      %v766 = vshll.u32 %v721, 16
      %v768 = vrot.slane %v766, 5
      %v769 = vsel %vm731, %v764, %v768
      %v770 = vshrl.u32 %v644, 16
      %v772 = vrot.slane %v770, 4
      %v773 = vor.u32 %v772, %v758
      %v774 = vrot.slane %v773, 4
      %v776 = vshll.u32 %v722, 16
      %v778 = vrot.slane %v776, 5
      %v779 = vsel %vm731, %v774, %v778
      %v781 = vshrl.u32 %v645, 16
      %v783 = vrot.slane %v781, 4
      %v784 = vshll.u32 %v645, 16
      %v786 = vrot.slane %v784, 5
      %v787 = vor.u32 %v783, %v786
      %v788 = vrot.slane %v787, 4
      %v790 = vshll.u32 %v647, 16
      %v792 = vrot.slane %v790, 5
      %v793 = vsel %vm731, %v788, %v792
      %v795 = vshrl.u32 %v646, 16
      %v797 = vrot.slane %v795, 4
      %v798 = vshll.u32 %v646, 16
      %v800 = vrot.slane %v798, 5
      %v801 = vor.u32 %v797, %v800
      %v802 = vrot.slane %v801, 4
      %v804 = vshll.u32 %v648, 16
      %v806 = vrot.slane %v804, 5
      %v807 = vsel %vm731, %v802, %v806
      %v808 = vshrl.u32 %v647, 16
      %v810 = vrot.slane %v808, 4
      %v811 = vor.u32 %v810, %v792
      %v812 = vrot.slane %v811, 4
      %v814 = vshll.u32 %v723, 16
      %v816 = vrot.slane %v814, 5
      %v817 = vsel %vm731, %v812, %v816
      %v818 = vshrl.u32 %v648, 16
      %v820 = vrot.slane %v818, 4
      %v821 = vor.u32 %v820, %v806
      %v822 = vrot.slane %v821, 4
      %v824 = vshll.u32 %v724, 16
      %v826 = vrot.slane %v824, 5
      %v827 = vsel %vm731, %v822, %v826
      %v829 = vshrl.u32 %v649, 16
      %v831 = vrot.slane %v829, 4
      %v832 = vshll.u32 %v649, 16
      %v834 = vrot.slane %v832, 5
      %v835 = vor.u32 %v831, %v834
      %v836 = vrot.slane %v835, 4
      %v838 = vshll.u32 %v651, 16
      %v840 = vrot.slane %v838, 5
      %v841 = vsel %vm731, %v836, %v840
      %v843 = vshrl.u32 %v650, 16
      %v845 = vrot.slane %v843, 4
      %v846 = vshll.u32 %v650, 16
      %v848 = vrot.slane %v846, 5
      %v849 = vor.u32 %v845, %v848
      %v850 = vrot.slane %v849, 4
      %v852 = vshll.u32 %v652, 16
      %v854 = vrot.slane %v852, 5
      %v855 = vsel %vm731, %v850, %v854
      %v856 = vshrl.u32 %v651, 16
      %v858 = vrot.slane %v856, 4
      %v859 = vor.u32 %v858, %v840
      %v860 = vrot.slane %v859, 4
      %v862 = vshll.u32 %v725, 16
      %v864 = vrot.slane %v862, 5
      %v865 = vsel %vm731, %v860, %v864
      %v866 = vshrl.u32 %v652, 16
      %v868 = vrot.slane %v866, 4
      %v869 = vor.u32 %v868, %v854
      %v870 = vrot.slane %v869, 4
      %v872 = vshll.u32 %v726, 16
      %v874 = vrot.slane %v872, 5
      %v875 = vsel %vm731, %v870, %v874
      %v877 = vshrl.u32 %v653, 16
      %v879 = vrot.slane %v877, 4
      %v880 = vshll.u32 %v653, 16
      %v882 = vrot.slane %v880, 5
      %v883 = vor.u32 %v879, %v882
      %v884 = vrot.slane %v883, 4
      %v886 = vshll.u32 %v655, 16
      %v888 = vrot.slane %v886, 5
      %v889 = vsel %vm731, %v884, %v888
      %v891 = vshrl.u32 %v654, 16
      %v893 = vrot.slane %v891, 4
      %v894 = vshll.u32 %v654, 16
      %v896 = vrot.slane %v894, 5
      %v897 = vor.u32 %v893, %v896
      %v898 = vrot.slane %v897, 4
      %v900 = vshll.u32 %v656, 16
      %v902 = vrot.slane %v900, 5
      %v903 = vsel %vm731, %v898, %v902
      %v904 = vshrl.u32 %v655, 16
      %v906 = vrot.slane %v904, 4
      %v907 = vor.u32 %v906, %v888
      %v908 = vrot.slane %v907, 4
      %v910 = vshll.u32 %v727, 16
      %v912 = vrot.slane %v910, 5
      %v913 = vsel %vm731, %v908, %v912
      %v914 = vshrl.u32 %v656, 16
      %v916 = vrot.slane %v914, 4
      %v917 = vor.u32 %v916, %v902
      %v918 = vrot.slane %v917, 4
      %v920 = vshll.u32 %v728, 16
      %v922 = vrot.slane %v920, 5
      %v923 = vsel %vm731, %v918, %v922
      %s924 = scalar_lea.vmem %s1, 512
      %v925 = vld [vmem:[%s924] sm:$0xff]
      %v926 = vld [vmem:[%s924 + $0x8] sm:$0xff]
      %v927 = vld [vmem:[%s924 + $0x10] sm:$0xff]
      %v928 = vld [vmem:[%s924 + $0x18] sm:$0xff]
      %v929 = vld [vmem:[%s924 + $0x20] sm:$0xff]
      %v930 = vld [vmem:[%s924 + $0x28] sm:$0xff]
      %v931 = vld [vmem:[%s924 + $0x30] sm:$0xff]
      %v932 = vld [vmem:[%s924 + $0x38] sm:$0xff]
      %v933 = vld [vmem:[%s924 + $0x40] sm:$0xff]
      %v934 = vld [vmem:[%s924 + $0x48] sm:$0xff]
      %v935 = vld [vmem:[%s924 + $0x50] sm:$0xff]
      %v936 = vld [vmem:[%s924 + $0x58] sm:$0xff]
      %v937 = vld [vmem:[%s924 + $0x60] sm:$0xff]
      %v938 = vld [vmem:[%s924 + $0x68] sm:$0xff]
      %v939 = vld [vmem:[%s924 + $0x70] sm:$0xff]
      %v940 = vld [vmem:[%s924 + $0x78] sm:$0xff]
      %v941 = vld [vmem:[%s924 + $0x80] sm:$0xff]
      %v942 = vld [vmem:[%s924 + $0x88] sm:$0xff]
      %v943 = vld [vmem:[%s924 + $0x90] sm:$0xff]
      %v944 = vld [vmem:[%s924 + $0x98] sm:$0xff]
      %v945 = vld [vmem:[%s924 + $0xa0] sm:$0xff]
      %v946 = vld [vmem:[%s924 + $0xa8] sm:$0xff]
      %v947 = vld [vmem:[%s924 + $0xb0] sm:$0xff]
      %v948 = vld [vmem:[%s924 + $0xb8] sm:$0xff]
      %v949 = vld [vmem:[%s924 + $0xc0] sm:$0xff]
      %v950 = vld [vmem:[%s924 + $0xc8] sm:$0xff]
      %v951 = vld [vmem:[%s924 + $0xd0] sm:$0xff]
      %v952 = vld [vmem:[%s924 + $0xd8] sm:$0xff]
      %v953 = vld [vmem:[%s924 + $0xe0] sm:$0xff]
      %v954 = vld [vmem:[%s924 + $0xe8] sm:$0xff]
      %v955 = vld [vmem:[%s924 + $0xf0] sm:$0xff]
      %v956 = vld [vmem:[%s924 + $0xf8] sm:$0xff]
      %v957 = vld [vmem:[%s924 + $0x100] sm:$0xff]
      %v958 = vld [vmem:[%s924 + $0x108] sm:$0xff]
      %v959 = vld [vmem:[%s924 + $0x110] sm:$0xff]
      %v960 = vld [vmem:[%s924 + $0x118] sm:$0xff]
      %v961 = vld [vmem:[%s924 + $0x120] sm:$0xff]
      %v962 = vld [vmem:[%s924 + $0x128] sm:$0xff]
      %v963 = vld [vmem:[%s924 + $0x130] sm:$0xff]
      %v964 = vld [vmem:[%s924 + $0x138] sm:$0xff]
      %v965 = vld [vmem:[%s924 + $0x140] sm:$0xff]
      %v966 = vld [vmem:[%s924 + $0x148] sm:$0xff]
      %v967 = vld [vmem:[%s924 + $0x150] sm:$0xff]
      %v968 = vld [vmem:[%s924 + $0x158] sm:$0xff]
      %v969 = vld [vmem:[%s924 + $0x160] sm:$0xff]
      %v970 = vld [vmem:[%s924 + $0x168] sm:$0xff]
      %v971 = vld [vmem:[%s924 + $0x170] sm:$0xff]
      %v972 = vld [vmem:[%s924 + $0x178] sm:$0xff]
      %v973 = vld [vmem:[%s924 + $0x180] sm:$0xff]
      %v974 = vld [vmem:[%s924 + $0x188] sm:$0xff]
      %v975 = vld [vmem:[%s924 + $0x190] sm:$0xff]
      %v976 = vld [vmem:[%s924 + $0x198] sm:$0xff]
      %v977 = vld [vmem:[%s924 + $0x1a0] sm:$0xff]
      %v978 = vld [vmem:[%s924 + $0x1a8] sm:$0xff]
      %v979 = vld [vmem:[%s924 + $0x1b0] sm:$0xff]
      %v980 = vld [vmem:[%s924 + $0x1b8] sm:$0xff]
      %v981 = vld [vmem:[%s924 + $0x1c0] sm:$0xff]
      %v982 = vld [vmem:[%s924 + $0x1c8] sm:$0xff]
      %v983 = vld [vmem:[%s924 + $0x1d0] sm:$0xff]
      %v984 = vld [vmem:[%s924 + $0x1d8] sm:$0xff]
      %v985 = vld [vmem:[%s924 + $0x1e0] sm:$0xff]
      %v986 = vld [vmem:[%s924 + $0x1e8] sm:$0xff]
      %v987 = vld [vmem:[%s924 + $0x1f0] sm:$0xff]
      %v988 = vld [vmem:[%s924 + $0x1f8] sm:$0xff]
      %v989 = vunpack.c.l.b16 %v745
      %v990 = vunpack.c.h.b16 %v745
      %v991 = vunpack.c.l.b16 %v759
      %v992 = vunpack.c.h.b16 %v759
      %v993 = vunpack.c.l.b16 %v769
      %v994 = vunpack.c.h.b16 %v769
      %v995 = vunpack.c.l.b16 %v779
      %v996 = vunpack.c.h.b16 %v779
      %v997 = vunpack.c.l.b16 %v793
      %v998 = vunpack.c.h.b16 %v793
      %v999 = vunpack.c.l.b16 %v807
      %v1000 = vunpack.c.h.b16 %v807
      %v1001 = vunpack.c.l.b16 %v817
      %v1002 = vunpack.c.h.b16 %v817
      %v1003 = vunpack.c.l.b16 %v827
      %v1004 = vunpack.c.h.b16 %v827
      %v1005 = vunpack.c.l.b16 %v841
      %v1006 = vunpack.c.h.b16 %v841
      %v1007 = vunpack.c.l.b16 %v855
      %v1008 = vunpack.c.h.b16 %v855
      %v1009 = vunpack.c.l.b16 %v865
      %v1010 = vunpack.c.h.b16 %v865
      %v1011 = vunpack.c.l.b16 %v875
      %v1012 = vunpack.c.h.b16 %v875
      %v1013 = vunpack.c.l.b16 %v889
      %v1014 = vunpack.c.h.b16 %v889
      %v1015 = vunpack.c.l.b16 %v903
      %v1016 = vunpack.c.h.b16 %v903
      %v1017 = vunpack.c.l.b16 %v913
      %v1018 = vunpack.c.h.b16 %v913
      %v1019 = vunpack.c.l.b16 %v923
      %v1020 = vunpack.c.h.b16 %v923
      %v1021 = vpack.c.b16 %v993, %v989
      %v1022 = vpack.c.b16 %v994, %v990
      %v1023 = vpack.c.b16 %v995, %v991
      %v1024 = vpack.c.b16 %v996, %v992
      %v1025 = vpack.c.b16 %v1001, %v997
      %v1026 = vpack.c.b16 %v1002, %v998
      %v1027 = vpack.c.b16 %v1003, %v999
      %v1028 = vpack.c.b16 %v1004, %v1000
      %v1029 = vpack.c.b16 %v1009, %v1005
      %v1030 = vpack.c.b16 %v1010, %v1006
      %v1031 = vpack.c.b16 %v1011, %v1007
      %v1032 = vpack.c.b16 %v1012, %v1008
      %v1033 = vpack.c.b16 %v1017, %v1013
      %v1034 = vpack.c.b16 %v1018, %v1014
      %v1035 = vpack.c.b16 %v1019, %v1015
      %v1036 = vpack.c.b16 %v1020, %v1016
      %v1117 = vunpack.c.l.b16 %v925
      %v1118 = vunpack.c.h.b16 %v925
      %v1119 = vunpack.c.l.b16 %v926
      %v1120 = vunpack.c.h.b16 %v926
      %v1121 = vunpack.c.l.b16 %v927
      %v1122 = vunpack.c.h.b16 %v927
      %v1123 = vunpack.c.l.b16 %v928
      %v1124 = vunpack.c.h.b16 %v928
      %v1125 = vunpack.c.l.b16 %v929
      %v1126 = vunpack.c.h.b16 %v929
      %v1127 = vunpack.c.l.b16 %v930
      %v1128 = vunpack.c.h.b16 %v930
      %v1129 = vunpack.c.l.b16 %v931
      %v1130 = vunpack.c.h.b16 %v931
      %v1131 = vunpack.c.l.b16 %v932
      %v1132 = vunpack.c.h.b16 %v932
      %v1133 = vunpack.c.l.b16 %v933
      %v1134 = vunpack.c.h.b16 %v933
      %v1135 = vunpack.c.l.b16 %v934
      %v1136 = vunpack.c.h.b16 %v934
      %v1137 = vunpack.c.l.b16 %v935
      %v1138 = vunpack.c.h.b16 %v935
      %v1139 = vunpack.c.l.b16 %v936
      %v1140 = vunpack.c.h.b16 %v936
      %v1141 = vunpack.c.l.b16 %v937
      %v1142 = vunpack.c.h.b16 %v937
      %v1143 = vunpack.c.l.b16 %v938
      %v1144 = vunpack.c.h.b16 %v938
      %v1145 = vunpack.c.l.b16 %v939
      %v1146 = vunpack.c.h.b16 %v939
      %v1147 = vunpack.c.l.b16 %v940
      %v1148 = vunpack.c.h.b16 %v940
      %v1149 = vunpack.c.l.b16 %v941
      %v1150 = vunpack.c.h.b16 %v941
      %v1151 = vunpack.c.l.b16 %v942
      %v1152 = vunpack.c.h.b16 %v942
      %v1153 = vunpack.c.l.b16 %v943
      %v1154 = vunpack.c.h.b16 %v943
      %v1155 = vunpack.c.l.b16 %v944
      %v1156 = vunpack.c.h.b16 %v944
      %v1157 = vunpack.c.l.b16 %v945
      %v1158 = vunpack.c.h.b16 %v945
      %v1159 = vunpack.c.l.b16 %v946
      %v1160 = vunpack.c.h.b16 %v946
      %v1161 = vunpack.c.l.b16 %v947
      %v1162 = vunpack.c.h.b16 %v947
      %v1163 = vunpack.c.l.b16 %v948
      %v1164 = vunpack.c.h.b16 %v948
      %v1165 = vunpack.c.l.b16 %v949
      %v1166 = vunpack.c.h.b16 %v949
      %v1167 = vunpack.c.l.b16 %v950
      %v1168 = vunpack.c.h.b16 %v950
      %v1169 = vunpack.c.l.b16 %v951
      %v1170 = vunpack.c.h.b16 %v951
      %v1171 = vunpack.c.l.b16 %v952
      %v1172 = vunpack.c.h.b16 %v952
      %v1173 = vunpack.c.l.b16 %v953
      %v1174 = vunpack.c.h.b16 %v953
      %v1175 = vunpack.c.l.b16 %v954
      %v1176 = vunpack.c.h.b16 %v954
      %v1177 = vunpack.c.l.b16 %v955
      %v1178 = vunpack.c.h.b16 %v955
      %v1179 = vunpack.c.l.b16 %v956
      %v1180 = vunpack.c.h.b16 %v956
      %v1181 = vunpack.c.l.b16 %v957
      %v1182 = vunpack.c.h.b16 %v957
      %v1183 = vunpack.c.l.b16 %v958
      %v1184 = vunpack.c.h.b16 %v958
      %v1185 = vunpack.c.l.b16 %v959
      %v1186 = vunpack.c.h.b16 %v959
      %v1187 = vunpack.c.l.b16 %v960
      %v1188 = vunpack.c.h.b16 %v960
      %v1189 = vunpack.c.l.b16 %v961
      %v1190 = vunpack.c.h.b16 %v961
      %v1191 = vunpack.c.l.b16 %v962
      %v1192 = vunpack.c.h.b16 %v962
      %v1193 = vunpack.c.l.b16 %v963
      %v1194 = vunpack.c.h.b16 %v963
      %v1195 = vunpack.c.l.b16 %v964
      %v1196 = vunpack.c.h.b16 %v964
      %v1197 = vunpack.c.l.b16 %v965
      %v1198 = vunpack.c.h.b16 %v965
      %v1199 = vunpack.c.l.b16 %v966
      %v1200 = vunpack.c.h.b16 %v966
      %v1201 = vunpack.c.l.b16 %v967
      %v1202 = vunpack.c.h.b16 %v967
      %v1203 = vunpack.c.l.b16 %v968
      %v1204 = vunpack.c.h.b16 %v968
      %v1205 = vunpack.c.l.b16 %v969
      %v1206 = vunpack.c.h.b16 %v969
      %v1207 = vunpack.c.l.b16 %v970
      %v1208 = vunpack.c.h.b16 %v970
      %v1209 = vunpack.c.l.b16 %v971
      %v1210 = vunpack.c.h.b16 %v971
      %v1211 = vunpack.c.l.b16 %v972
      %v1212 = vunpack.c.h.b16 %v972
      %v1213 = vunpack.c.l.b16 %v973
      %v1214 = vunpack.c.h.b16 %v973
      %v1215 = vunpack.c.l.b16 %v974
      %v1216 = vunpack.c.h.b16 %v974
      %v1217 = vunpack.c.l.b16 %v975
      %v1218 = vunpack.c.h.b16 %v975
      %v1219 = vunpack.c.l.b16 %v976
      %v1220 = vunpack.c.h.b16 %v976
      %v1221 = vunpack.c.l.b16 %v977
      %v1222 = vunpack.c.h.b16 %v977
      %v1223 = vunpack.c.l.b16 %v978
      %v1224 = vunpack.c.h.b16 %v978
      %v1225 = vunpack.c.l.b16 %v979
      %v1226 = vunpack.c.h.b16 %v979
      %v1227 = vunpack.c.l.b16 %v980
      %v1228 = vunpack.c.h.b16 %v980
      %v1229 = vunpack.c.l.b16 %v981
      %v1230 = vunpack.c.h.b16 %v981
      %v1231 = vunpack.c.l.b16 %v982
      %v1232 = vunpack.c.h.b16 %v982
      %v1233 = vunpack.c.l.b16 %v983
      %v1234 = vunpack.c.h.b16 %v983
      %v1235 = vunpack.c.l.b16 %v984
      %v1236 = vunpack.c.h.b16 %v984
      %v1237 = vunpack.c.l.b16 %v985
      %v1238 = vunpack.c.h.b16 %v985
      %v1239 = vunpack.c.l.b16 %v986
      %v1240 = vunpack.c.h.b16 %v986
      %v1241 = vunpack.c.l.b16 %v987
      %v1242 = vunpack.c.h.b16 %v987
      %v1243 = vunpack.c.l.b16 %v988
      %v1244 = vunpack.c.h.b16 %v988
      %v1245 = vpack.c.b16 %v1119, %v1117
      %v1246 = vpack.c.b16 %v1120, %v1118
      %v1247 = vpack.c.b16 %v1123, %v1121
      %v1248 = vpack.c.b16 %v1124, %v1122
      %v1249 = vpack.c.b16 %v1127, %v1125
      %v1250 = vpack.c.b16 %v1128, %v1126
      %v1251 = vpack.c.b16 %v1131, %v1129
      %v1252 = vpack.c.b16 %v1132, %v1130
      %v1253 = vpack.c.b16 %v1135, %v1133
      %v1254 = vpack.c.b16 %v1136, %v1134
      %v1255 = vpack.c.b16 %v1139, %v1137
      %v1256 = vpack.c.b16 %v1140, %v1138
      %v1257 = vpack.c.b16 %v1143, %v1141
      %v1258 = vpack.c.b16 %v1144, %v1142
      %v1259 = vpack.c.b16 %v1147, %v1145
      %v1260 = vpack.c.b16 %v1148, %v1146
      %v1261 = vpack.c.b16 %v1151, %v1149
      %v1262 = vpack.c.b16 %v1152, %v1150
      %v1263 = vpack.c.b16 %v1155, %v1153
      %v1264 = vpack.c.b16 %v1156, %v1154
      %v1265 = vpack.c.b16 %v1159, %v1157
      %v1266 = vpack.c.b16 %v1160, %v1158
      %v1267 = vpack.c.b16 %v1163, %v1161
      %v1268 = vpack.c.b16 %v1164, %v1162
      %v1269 = vpack.c.b16 %v1167, %v1165
      %v1270 = vpack.c.b16 %v1168, %v1166
      %v1271 = vpack.c.b16 %v1171, %v1169
      %v1272 = vpack.c.b16 %v1172, %v1170
      %v1273 = vpack.c.b16 %v1175, %v1173
      %v1274 = vpack.c.b16 %v1176, %v1174
      %v1275 = vpack.c.b16 %v1179, %v1177
      %v1276 = vpack.c.b16 %v1180, %v1178
      %v1277 = vpack.c.b16 %v1183, %v1181
      %v1278 = vpack.c.b16 %v1184, %v1182
      %v1279 = vpack.c.b16 %v1187, %v1185
      %v1280 = vpack.c.b16 %v1188, %v1186
      %v1281 = vpack.c.b16 %v1191, %v1189
      %v1282 = vpack.c.b16 %v1192, %v1190
      %v1283 = vpack.c.b16 %v1195, %v1193
      %v1284 = vpack.c.b16 %v1196, %v1194
      %v1285 = vpack.c.b16 %v1199, %v1197
      %v1286 = vpack.c.b16 %v1200, %v1198
      %v1287 = vpack.c.b16 %v1203, %v1201
      %v1288 = vpack.c.b16 %v1204, %v1202
      %v1289 = vpack.c.b16 %v1207, %v1205
      %v1290 = vpack.c.b16 %v1208, %v1206
      %v1291 = vpack.c.b16 %v1211, %v1209
      %v1292 = vpack.c.b16 %v1212, %v1210
      %v1293 = vpack.c.b16 %v1215, %v1213
      %v1294 = vpack.c.b16 %v1216, %v1214
      %v1295 = vpack.c.b16 %v1219, %v1217
      %v1296 = vpack.c.b16 %v1220, %v1218
      %v1297 = vpack.c.b16 %v1223, %v1221
      %v1298 = vpack.c.b16 %v1224, %v1222
      %v1299 = vpack.c.b16 %v1227, %v1225
      %v1300 = vpack.c.b16 %v1228, %v1226
      %v1301 = vpack.c.b16 %v1231, %v1229
      %v1302 = vpack.c.b16 %v1232, %v1230
      %v1303 = vpack.c.b16 %v1235, %v1233
      %v1304 = vpack.c.b16 %v1236, %v1234
      %v1305 = vpack.c.b16 %v1239, %v1237
      %v1306 = vpack.c.b16 %v1240, %v1238
      %v1307 = vpack.c.b16 %v1243, %v1241
      %v1308 = vpack.c.b16 %v1244, %v1242
      %1373 = vmatprep.subr.bf16.mxu0 %v1246
      %1374 = vmatpush1.bf16.msra.mxu0 %v1245
      %1375 = vmatprep.subr.bf16.mxu0 %v1248
      %1376 = vmatpush1.bf16.msra.mxu0 %v1247
      %1377 = vmatprep.subr.bf16.mxu0 %v1250
      %1378 = vmatpush1.bf16.msra.mxu0 %v1249
      %1379 = vmatprep.subr.bf16.mxu0 %v1252
      %1380 = vmatpush1.bf16.msra.mxu0 %v1251
      %1381 = vmatprep.subr.bf16.mxu0 %v1254
      %1382 = vmatpush1.bf16.msra.mxu0 %v1253
      %1383 = vmatprep.subr.bf16.mxu0 %v1256
      %1384 = vmatpush1.bf16.msra.mxu0 %v1255
      %1385 = vmatprep.subr.bf16.mxu0 %v1258
      %1386 = vmatpush1.bf16.msra.mxu0 %v1257
      %1387 = vmatprep.subr.bf16.mxu0 %v1260
      %1388 = vmatpush1.bf16.msra.mxu0 %v1259
      %1389 = vmatprep.subr.bf16.mxu0 %v1262
      %1390 = vmatpush1.bf16.msra.mxu0 %v1261
      %1391 = vmatprep.subr.bf16.mxu0 %v1264
      %1392 = vmatpush1.bf16.msra.mxu0 %v1263
      %1393 = vmatprep.subr.bf16.mxu0 %v1266
      %1394 = vmatpush1.bf16.msra.mxu0 %v1265
      %1395 = vmatprep.subr.bf16.mxu0 %v1268
      %1396 = vmatpush1.bf16.msra.mxu0 %v1267
      %1397 = vmatprep.subr.bf16.mxu0 %v1270
      %1398 = vmatpush1.bf16.msra.mxu0 %v1269
      %1399 = vmatprep.subr.bf16.mxu0 %v1272
      %1400 = vmatpush1.bf16.msra.mxu0 %v1271
      %1401 = vmatprep.subr.bf16.mxu0 %v1274
      %1402 = vmatpush1.bf16.msra.mxu0 %v1273
      %1403 = vmatprep.subr.bf16.mxu0 %v1276
      %1404 = vmatpush1.bf16.msra.mxu0 %v1275
      %1405 = vmatprep.mubr.bf16.mxu0 %v1022
      %1406 = vmatmul.mubr.bf16.gmra.mrb[0].mxu0 %v1021
      %v1407 = vpop.f32.mrb[0].mxu0
      %v1408 = vadd.f32 0.0, %v1407
      %v1409 = vpop.f32.mrb[0].mxu0
      %v1410 = vadd.f32 0.0, %v1409
      %v1411 = vpop.f32.mrb[0].mxu0
      %v1412 = vadd.f32 0.0, %v1411
      %v1413 = vpop.f32.mrb[0].mxu0
      %v1414 = vadd.f32 0.0, %v1413
      %1415 = vmatprep.mubr.bf16.mxu0 %v1026
      %1416 = vmatmul.mubr.bf16.gmra.mrb[0].mxu0 %v1025
      %v1417 = vpop.f32.mrb[0].mxu0
      %v1418 = vadd.f32 0.0, %v1417
      %v1419 = vpop.f32.mrb[0].mxu0
      %v1420 = vadd.f32 0.0, %v1419
      %v1421 = vpop.f32.mrb[0].mxu0
      %v1422 = vadd.f32 0.0, %v1421
      %v1423 = vpop.f32.mrb[0].mxu0
      %v1424 = vadd.f32 0.0, %v1423
      %1425 = vmatprep.mubr.bf16.mxu0 %v1030
      %1426 = vmatmul.mubr.bf16.gmra.mrb[0].mxu0 %v1029
      %v1427 = vpop.f32.mrb[0].mxu0
      %v1428 = vadd.f32 0.0, %v1427
      %v1429 = vpop.f32.mrb[0].mxu0
      %v1430 = vadd.f32 0.0, %v1429
      %v1431 = vpop.f32.mrb[0].mxu0
      %v1432 = vadd.f32 0.0, %v1431
      %v1433 = vpop.f32.mrb[0].mxu0
      %v1434 = vadd.f32 0.0, %v1433
      %1435 = vmatprep.mubr.bf16.mxu0 %v1034
      %1436 = vmatmul.mubr.bf16.gmra.mrb[0].mxu0 %v1033
      %v1437 = vpop.f32.mrb[0].mxu0
      %v1438 = vadd.f32 0.0, %v1437
      %v1439 = vpop.f32.mrb[0].mxu0
      %v1440 = vadd.f32 0.0, %v1439
      %v1441 = vpop.f32.mrb[0].mxu0
      %v1442 = vadd.f32 0.0, %v1441
      %v1443 = vpop.f32.mrb[0].mxu0
      %v1444 = vadd.f32 0.0, %v1443
      %1445 = vdwg.mxu0
      %1446 = vmatprep.subr.bf16.mxu0 %v1278
      %1447 = vmatpush1.bf16.msra.mxu0 %v1277
      %1448 = vmatprep.subr.bf16.mxu0 %v1280
      %1449 = vmatpush1.bf16.msra.mxu0 %v1279
      %1450 = vmatprep.subr.bf16.mxu0 %v1282
      %1451 = vmatpush1.bf16.msra.mxu0 %v1281
      %1452 = vmatprep.subr.bf16.mxu0 %v1284
      %1453 = vmatpush1.bf16.msra.mxu0 %v1283
      %1454 = vmatprep.subr.bf16.mxu0 %v1286
      %1455 = vmatpush1.bf16.msra.mxu0 %v1285
      %1456 = vmatprep.subr.bf16.mxu0 %v1288
      %1457 = vmatpush1.bf16.msra.mxu0 %v1287
      %1458 = vmatprep.subr.bf16.mxu0 %v1290
      %1459 = vmatpush1.bf16.msra.mxu0 %v1289
      %1460 = vmatprep.subr.bf16.mxu0 %v1292
      %1461 = vmatpush1.bf16.msra.mxu0 %v1291
      %1462 = vmatprep.subr.bf16.mxu0 %v1294
      %1463 = vmatpush1.bf16.msra.mxu0 %v1293
      %1464 = vmatprep.subr.bf16.mxu0 %v1296
      %1465 = vmatpush1.bf16.msra.mxu0 %v1295
      %1466 = vmatprep.subr.bf16.mxu0 %v1298
      %1467 = vmatpush1.bf16.msra.mxu0 %v1297
      %1468 = vmatprep.subr.bf16.mxu0 %v1300
      %1469 = vmatpush1.bf16.msra.mxu0 %v1299
      %1470 = vmatprep.subr.bf16.mxu0 %v1302
      %1471 = vmatpush1.bf16.msra.mxu0 %v1301
      %1472 = vmatprep.subr.bf16.mxu0 %v1304
      %1473 = vmatpush1.bf16.msra.mxu0 %v1303
      %1474 = vmatprep.subr.bf16.mxu0 %v1306
      %1475 = vmatpush1.bf16.msra.mxu0 %v1305
      %1476 = vmatprep.subr.bf16.mxu0 %v1308
      %1477 = vmatpush1.bf16.msra.mxu0 %v1307
      %1478 = vmatprep.mubr.bf16.mxu0 %v1024
      %1479 = vmatmul.mubr.bf16.gmra.mrb[0].mxu0 %v1023
      %v1480 = vpop.f32.mrb[0].mxu0
      %v1481 = vadd.f32 %v1408, %v1480
      %v1482 = vpop.f32.mrb[0].mxu0
      %v1483 = vadd.f32 %v1410, %v1482
      %v1484 = vpop.f32.mrb[0].mxu0
      %v1485 = vadd.f32 %v1412, %v1484
      %v1486 = vpop.f32.mrb[0].mxu0
      %v1487 = vadd.f32 %v1414, %v1486
      %1488 = vmatprep.mubr.bf16.mxu0 %v1028
      %1489 = vmatmul.mubr.bf16.gmra.mrb[0].mxu0 %v1027
      %v1490 = vpop.f32.mrb[0].mxu0
      %v1491 = vadd.f32 %v1418, %v1490
      %v1492 = vpop.f32.mrb[0].mxu0
      %v1493 = vadd.f32 %v1420, %v1492
      %v1494 = vpop.f32.mrb[0].mxu0
      %v1495 = vadd.f32 %v1422, %v1494
      %v1496 = vpop.f32.mrb[0].mxu0
      %v1497 = vadd.f32 %v1424, %v1496
      %1498 = vmatprep.mubr.bf16.mxu0 %v1032
      %1499 = vmatmul.mubr.bf16.gmra.mrb[0].mxu0 %v1031
      %v1500 = vpop.f32.mrb[0].mxu0
      %v1501 = vadd.f32 %v1428, %v1500
      %v1502 = vpop.f32.mrb[0].mxu0
      %v1503 = vadd.f32 %v1430, %v1502
      %v1504 = vpop.f32.mrb[0].mxu0
      %v1505 = vadd.f32 %v1432, %v1504
      %v1506 = vpop.f32.mrb[0].mxu0
      %v1507 = vadd.f32 %v1434, %v1506
      %1508 = vmatprep.mubr.bf16.mxu0 %v1036
      %1509 = vmatmul.mubr.bf16.gmra.mrb[0].mxu0 %v1035
      %v1510 = vpop.f32.mrb[0].mxu0
      %v1511 = vadd.f32 %v1438, %v1510
      %v1512 = vpop.f32.mrb[0].mxu0
      %v1513 = vadd.f32 %v1440, %v1512
      %v1514 = vpop.f32.mrb[0].mxu0
      %v1515 = vadd.f32 %v1442, %v1514
      %v1516 = vpop.f32.mrb[0].mxu0
      %v1517 = vadd.f32 %v1444, %v1516
      %1518 = vdwg.mxu0
      %v1535 = vunpack.c.l.b16 %v641
      %v1536 = vunpack.c.h.b16 %v641
      %v1537 = vunpack.c.l.b16 %v642
      %v1538 = vunpack.c.h.b16 %v642
      %v1539 = vunpack.c.l.b16 %v643
      %v1540 = vunpack.c.h.b16 %v643
      %v1541 = vunpack.c.l.b16 %v644
      %v1542 = vunpack.c.h.b16 %v644
      %v1543 = vunpack.c.l.b16 %v645
      %v1544 = vunpack.c.h.b16 %v645
      %v1545 = vunpack.c.l.b16 %v646
      %v1546 = vunpack.c.h.b16 %v646
      %v1547 = vunpack.c.l.b16 %v647
      %v1548 = vunpack.c.h.b16 %v647
      %v1549 = vunpack.c.l.b16 %v648
      %v1550 = vunpack.c.h.b16 %v648
      %v1551 = vunpack.c.l.b16 %v649
      %v1552 = vunpack.c.h.b16 %v649
      %v1553 = vunpack.c.l.b16 %v650
      %v1554 = vunpack.c.h.b16 %v650
      %v1555 = vunpack.c.l.b16 %v651
      %v1556 = vunpack.c.h.b16 %v651
      %v1557 = vunpack.c.l.b16 %v652
      %v1558 = vunpack.c.h.b16 %v652
      %v1559 = vunpack.c.l.b16 %v653
      %v1560 = vunpack.c.h.b16 %v653
      %v1561 = vunpack.c.l.b16 %v654
      %v1562 = vunpack.c.h.b16 %v654
      %v1563 = vunpack.c.l.b16 %v655
      %v1564 = vunpack.c.h.b16 %v655
      %v1565 = vunpack.c.l.b16 %v656
      %v1566 = vunpack.c.h.b16 %v656
      %v1567 = vpack.c.b16 %v1539, %v1535
      %v1568 = vpack.c.b16 %v1540, %v1536
      %v1569 = vpack.c.b16 %v1541, %v1537
      %v1570 = vpack.c.b16 %v1542, %v1538
      %v1571 = vpack.c.b16 %v1547, %v1543
      %v1572 = vpack.c.b16 %v1548, %v1544
      %v1573 = vpack.c.b16 %v1549, %v1545
      %v1574 = vpack.c.b16 %v1550, %v1546
      %v1575 = vpack.c.b16 %v1555, %v1551
      %v1576 = vpack.c.b16 %v1556, %v1552
      %v1577 = vpack.c.b16 %v1557, %v1553
      %v1578 = vpack.c.b16 %v1558, %v1554
      %v1579 = vpack.c.b16 %v1563, %v1559
      %v1580 = vpack.c.b16 %v1564, %v1560
      %v1581 = vpack.c.b16 %v1565, %v1561
      %v1582 = vpack.c.b16 %v1566, %v1562
      %v1663 = vunpack.c.l.b16 %v657
      %v1664 = vunpack.c.h.b16 %v657
      %v1665 = vunpack.c.l.b16 %v658
      %v1666 = vunpack.c.h.b16 %v658
      %v1667 = vunpack.c.l.b16 %v659
      %v1668 = vunpack.c.h.b16 %v659
      %v1669 = vunpack.c.l.b16 %v660
      %v1670 = vunpack.c.h.b16 %v660
      %v1671 = vunpack.c.l.b16 %v661
      %v1672 = vunpack.c.h.b16 %v661
      %v1673 = vunpack.c.l.b16 %v662
      %v1674 = vunpack.c.h.b16 %v662
      %v1675 = vunpack.c.l.b16 %v663
      %v1676 = vunpack.c.h.b16 %v663
      %v1677 = vunpack.c.l.b16 %v664
      %v1678 = vunpack.c.h.b16 %v664
      %v1679 = vunpack.c.l.b16 %v665
      %v1680 = vunpack.c.h.b16 %v665
      %v1681 = vunpack.c.l.b16 %v666
      %v1682 = vunpack.c.h.b16 %v666
      %v1683 = vunpack.c.l.b16 %v667
      %v1684 = vunpack.c.h.b16 %v667
      %v1685 = vunpack.c.l.b16 %v668
      %v1686 = vunpack.c.h.b16 %v668
      %v1687 = vunpack.c.l.b16 %v669
      %v1688 = vunpack.c.h.b16 %v669
      %v1689 = vunpack.c.l.b16 %v670
      %v1690 = vunpack.c.h.b16 %v670
      %v1691 = vunpack.c.l.b16 %v671
      %v1692 = vunpack.c.h.b16 %v671
      %v1693 = vunpack.c.l.b16 %v672
      %v1694 = vunpack.c.h.b16 %v672
      %v1695 = vunpack.c.l.b16 %v673
      %v1696 = vunpack.c.h.b16 %v673
      %v1697 = vunpack.c.l.b16 %v674
      %v1698 = vunpack.c.h.b16 %v674
      %v1699 = vunpack.c.l.b16 %v675
      %v1700 = vunpack.c.h.b16 %v675
      %v1701 = vunpack.c.l.b16 %v676
      %v1702 = vunpack.c.h.b16 %v676
      %v1703 = vunpack.c.l.b16 %v677
      %v1704 = vunpack.c.h.b16 %v677
      %v1705 = vunpack.c.l.b16 %v678
      %v1706 = vunpack.c.h.b16 %v678
      %v1707 = vunpack.c.l.b16 %v679
      %v1708 = vunpack.c.h.b16 %v679
      %v1709 = vunpack.c.l.b16 %v680
      %v1710 = vunpack.c.h.b16 %v680
      %v1711 = vunpack.c.l.b16 %v681
      %v1712 = vunpack.c.h.b16 %v681
      %v1713 = vunpack.c.l.b16 %v682
      %v1714 = vunpack.c.h.b16 %v682
      %v1715 = vunpack.c.l.b16 %v683
      %v1716 = vunpack.c.h.b16 %v683
      %v1717 = vunpack.c.l.b16 %v684
      %v1718 = vunpack.c.h.b16 %v684
      %v1719 = vunpack.c.l.b16 %v685
      %v1720 = vunpack.c.h.b16 %v685
      %v1721 = vunpack.c.l.b16 %v686
      %v1722 = vunpack.c.h.b16 %v686
      %v1723 = vunpack.c.l.b16 %v687
      %v1724 = vunpack.c.h.b16 %v687
      %v1725 = vunpack.c.l.b16 %v688
      %v1726 = vunpack.c.h.b16 %v688
      %v1727 = vunpack.c.l.b16 %v689
      %v1728 = vunpack.c.h.b16 %v689
      %v1729 = vunpack.c.l.b16 %v690
      %v1730 = vunpack.c.h.b16 %v690
      %v1731 = vunpack.c.l.b16 %v691
      %v1732 = vunpack.c.h.b16 %v691
      %v1733 = vunpack.c.l.b16 %v692
      %v1734 = vunpack.c.h.b16 %v692
      %v1735 = vunpack.c.l.b16 %v693
      %v1736 = vunpack.c.h.b16 %v693
      %v1737 = vunpack.c.l.b16 %v694
      %v1738 = vunpack.c.h.b16 %v694
      %v1739 = vunpack.c.l.b16 %v695
      %v1740 = vunpack.c.h.b16 %v695
      %v1741 = vunpack.c.l.b16 %v696
      %v1742 = vunpack.c.h.b16 %v696
      %v1743 = vunpack.c.l.b16 %v697
      %v1744 = vunpack.c.h.b16 %v697
      %v1745 = vunpack.c.l.b16 %v698
      %v1746 = vunpack.c.h.b16 %v698
      %v1747 = vunpack.c.l.b16 %v699
      %v1748 = vunpack.c.h.b16 %v699
      %v1749 = vunpack.c.l.b16 %v700
      %v1750 = vunpack.c.h.b16 %v700
      %v1751 = vunpack.c.l.b16 %v701
      %v1752 = vunpack.c.h.b16 %v701
      %v1753 = vunpack.c.l.b16 %v702
      %v1754 = vunpack.c.h.b16 %v702
      %v1755 = vunpack.c.l.b16 %v703
      %v1756 = vunpack.c.h.b16 %v703
      %v1757 = vunpack.c.l.b16 %v704
      %v1758 = vunpack.c.h.b16 %v704
      %v1759 = vunpack.c.l.b16 %v705
      %v1760 = vunpack.c.h.b16 %v705
      %v1761 = vunpack.c.l.b16 %v706
      %v1762 = vunpack.c.h.b16 %v706
      %v1763 = vunpack.c.l.b16 %v707
      %v1764 = vunpack.c.h.b16 %v707
      %v1765 = vunpack.c.l.b16 %v708
      %v1766 = vunpack.c.h.b16 %v708
      %v1767 = vunpack.c.l.b16 %v709
      %v1768 = vunpack.c.h.b16 %v709
      %v1769 = vunpack.c.l.b16 %v710
      %v1770 = vunpack.c.h.b16 %v710
      %v1771 = vunpack.c.l.b16 %v711
      %v1772 = vunpack.c.h.b16 %v711
      %v1773 = vunpack.c.l.b16 %v712
      %v1774 = vunpack.c.h.b16 %v712
      %v1775 = vunpack.c.l.b16 %v713
      %v1776 = vunpack.c.h.b16 %v713
      %v1777 = vunpack.c.l.b16 %v714
      %v1778 = vunpack.c.h.b16 %v714
      %v1779 = vunpack.c.l.b16 %v715
      %v1780 = vunpack.c.h.b16 %v715
      %v1781 = vunpack.c.l.b16 %v716
      %v1782 = vunpack.c.h.b16 %v716
      %v1783 = vunpack.c.l.b16 %v717
      %v1784 = vunpack.c.h.b16 %v717
      %v1785 = vunpack.c.l.b16 %v718
      %v1786 = vunpack.c.h.b16 %v718
      %v1787 = vunpack.c.l.b16 %v719
      %v1788 = vunpack.c.h.b16 %v719
      %v1789 = vunpack.c.l.b16 %v720
      %v1790 = vunpack.c.h.b16 %v720
      %v1791 = vpack.c.b16 %v1665, %v1663
      %v1792 = vpack.c.b16 %v1666, %v1664
      %v1793 = vpack.c.b16 %v1669, %v1667
      %v1794 = vpack.c.b16 %v1670, %v1668
      %v1795 = vpack.c.b16 %v1673, %v1671
      %v1796 = vpack.c.b16 %v1674, %v1672
      %v1797 = vpack.c.b16 %v1677, %v1675
      %v1798 = vpack.c.b16 %v1678, %v1676
      %v1799 = vpack.c.b16 %v1681, %v1679
      %v1800 = vpack.c.b16 %v1682, %v1680
      %v1801 = vpack.c.b16 %v1685, %v1683
      %v1802 = vpack.c.b16 %v1686, %v1684
      %v1803 = vpack.c.b16 %v1689, %v1687
      %v1804 = vpack.c.b16 %v1690, %v1688
      %v1805 = vpack.c.b16 %v1693, %v1691
      %v1806 = vpack.c.b16 %v1694, %v1692
      %v1807 = vpack.c.b16 %v1697, %v1695
      %v1808 = vpack.c.b16 %v1698, %v1696
      %v1809 = vpack.c.b16 %v1701, %v1699
      %v1810 = vpack.c.b16 %v1702, %v1700
      %v1811 = vpack.c.b16 %v1705, %v1703
      %v1812 = vpack.c.b16 %v1706, %v1704
      %v1813 = vpack.c.b16 %v1709, %v1707
      %v1814 = vpack.c.b16 %v1710, %v1708
      %v1815 = vpack.c.b16 %v1713, %v1711
      %v1816 = vpack.c.b16 %v1714, %v1712
      %v1817 = vpack.c.b16 %v1717, %v1715
      %v1818 = vpack.c.b16 %v1718, %v1716
      %v1819 = vpack.c.b16 %v1721, %v1719
      %v1820 = vpack.c.b16 %v1722, %v1720
      %v1821 = vpack.c.b16 %v1725, %v1723
      %v1822 = vpack.c.b16 %v1726, %v1724
      %v1823 = vpack.c.b16 %v1729, %v1727
      %v1824 = vpack.c.b16 %v1730, %v1728
      %v1825 = vpack.c.b16 %v1733, %v1731
      %v1826 = vpack.c.b16 %v1734, %v1732
      %v1827 = vpack.c.b16 %v1737, %v1735
      %v1828 = vpack.c.b16 %v1738, %v1736
      %v1829 = vpack.c.b16 %v1741, %v1739
      %v1830 = vpack.c.b16 %v1742, %v1740
      %v1831 = vpack.c.b16 %v1745, %v1743
      %v1832 = vpack.c.b16 %v1746, %v1744
      %v1833 = vpack.c.b16 %v1749, %v1747
      %v1834 = vpack.c.b16 %v1750, %v1748
      %v1835 = vpack.c.b16 %v1753, %v1751
      %v1836 = vpack.c.b16 %v1754, %v1752
      %v1837 = vpack.c.b16 %v1757, %v1755
      %v1838 = vpack.c.b16 %v1758, %v1756
      %v1839 = vpack.c.b16 %v1761, %v1759
      %v1840 = vpack.c.b16 %v1762, %v1760
      %v1841 = vpack.c.b16 %v1765, %v1763
      %v1842 = vpack.c.b16 %v1766, %v1764
      %v1843 = vpack.c.b16 %v1769, %v1767
      %v1844 = vpack.c.b16 %v1770, %v1768
      %v1845 = vpack.c.b16 %v1773, %v1771
      %v1846 = vpack.c.b16 %v1774, %v1772
      %v1847 = vpack.c.b16 %v1777, %v1775
      %v1848 = vpack.c.b16 %v1778, %v1776
      %v1849 = vpack.c.b16 %v1781, %v1779
      %v1850 = vpack.c.b16 %v1782, %v1780
      %v1851 = vpack.c.b16 %v1785, %v1783
      %v1852 = vpack.c.b16 %v1786, %v1784
      %v1853 = vpack.c.b16 %v1789, %v1787
      %v1854 = vpack.c.b16 %v1790, %v1788
      %1919 = vmatprep.subr.bf16.mxu0 %v1792
      %1920 = vmatpush1.bf16.msra.mxu0 %v1791
      %1921 = vmatprep.subr.bf16.mxu0 %v1794
      %1922 = vmatpush1.bf16.msra.mxu0 %v1793
      %1923 = vmatprep.subr.bf16.mxu0 %v1796
      %1924 = vmatpush1.bf16.msra.mxu0 %v1795
      %1925 = vmatprep.subr.bf16.mxu0 %v1798
      %1926 = vmatpush1.bf16.msra.mxu0 %v1797
      %1927 = vmatprep.subr.bf16.mxu0 %v1800
      %1928 = vmatpush1.bf16.msra.mxu0 %v1799
      %1929 = vmatprep.subr.bf16.mxu0 %v1802
      %1930 = vmatpush1.bf16.msra.mxu0 %v1801
      %1931 = vmatprep.subr.bf16.mxu0 %v1804
      %1932 = vmatpush1.bf16.msra.mxu0 %v1803
      %1933 = vmatprep.subr.bf16.mxu0 %v1806
      %1934 = vmatpush1.bf16.msra.mxu0 %v1805
      %1935 = vmatprep.subr.bf16.mxu0 %v1808
      %1936 = vmatpush1.bf16.msra.mxu0 %v1807
      %1937 = vmatprep.subr.bf16.mxu0 %v1810
      %1938 = vmatpush1.bf16.msra.mxu0 %v1809
      %1939 = vmatprep.subr.bf16.mxu0 %v1812
      %1940 = vmatpush1.bf16.msra.mxu0 %v1811
      %1941 = vmatprep.subr.bf16.mxu0 %v1814
      %1942 = vmatpush1.bf16.msra.mxu0 %v1813
      %1943 = vmatprep.subr.bf16.mxu0 %v1816
      %1944 = vmatpush1.bf16.msra.mxu0 %v1815
      %1945 = vmatprep.subr.bf16.mxu0 %v1818
      %1946 = vmatpush1.bf16.msra.mxu0 %v1817
      %1947 = vmatprep.subr.bf16.mxu0 %v1820
      %1948 = vmatpush1.bf16.msra.mxu0 %v1819
      %1949 = vmatprep.subr.bf16.mxu0 %v1822
      %1950 = vmatpush1.bf16.msra.mxu0 %v1821
      %1951 = vmatprep.mubr.bf16.mxu0 %v1568
      %1952 = vmatmul.mubr.bf16.gmra.mrb[0].mxu0 %v1567
      %v1953 = vpop.f32.mrb[0].mxu0
      %v1954 = vadd.f32 %v1481, %v1953
      %v1955 = vpop.f32.mrb[0].mxu0
      %v1956 = vadd.f32 %v1483, %v1955
      %v1957 = vpop.f32.mrb[0].mxu0
      %v1958 = vadd.f32 %v1485, %v1957
      %v1959 = vpop.f32.mrb[0].mxu0
      %v1960 = vadd.f32 %v1487, %v1959
      %1961 = vmatprep.mubr.bf16.mxu0 %v1572
      %1962 = vmatmul.mubr.bf16.gmra.mrb[0].mxu0 %v1571
      %v1963 = vpop.f32.mrb[0].mxu0
      %v1964 = vadd.f32 %v1491, %v1963
      %v1965 = vpop.f32.mrb[0].mxu0
      %v1966 = vadd.f32 %v1493, %v1965
      %v1967 = vpop.f32.mrb[0].mxu0
      %v1968 = vadd.f32 %v1495, %v1967
      %v1969 = vpop.f32.mrb[0].mxu0
      %v1970 = vadd.f32 %v1497, %v1969
      %1971 = vmatprep.mubr.bf16.mxu0 %v1576
      %1972 = vmatmul.mubr.bf16.gmra.mrb[0].mxu0 %v1575
      %v1973 = vpop.f32.mrb[0].mxu0
      %v1974 = vadd.f32 %v1501, %v1973
      %v1975 = vpop.f32.mrb[0].mxu0
      %v1976 = vadd.f32 %v1503, %v1975
      %v1977 = vpop.f32.mrb[0].mxu0
      %v1978 = vadd.f32 %v1505, %v1977
      %v1979 = vpop.f32.mrb[0].mxu0
      %v1980 = vadd.f32 %v1507, %v1979
      %1981 = vmatprep.mubr.bf16.mxu0 %v1580
      %1982 = vmatmul.mubr.bf16.gmra.mrb[0].mxu0 %v1579
      %v1983 = vpop.f32.mrb[0].mxu0
      %v1984 = vadd.f32 %v1511, %v1983
      %v1985 = vpop.f32.mrb[0].mxu0
      %v1986 = vadd.f32 %v1513, %v1985
      %v1987 = vpop.f32.mrb[0].mxu0
      %v1988 = vadd.f32 %v1515, %v1987
      %v1989 = vpop.f32.mrb[0].mxu0
      %v1990 = vadd.f32 %v1517, %v1989
      %1991 = vdwg.mxu0
      %1992 = vmatprep.subr.bf16.mxu0 %v1824
      %1993 = vmatpush1.bf16.msra.mxu0 %v1823
      %1994 = vmatprep.subr.bf16.mxu0 %v1826
      %1995 = vmatpush1.bf16.msra.mxu0 %v1825
      %1996 = vmatprep.subr.bf16.mxu0 %v1828
      %1997 = vmatpush1.bf16.msra.mxu0 %v1827
      %1998 = vmatprep.subr.bf16.mxu0 %v1830
      %1999 = vmatpush1.bf16.msra.mxu0 %v1829
      %2000 = vmatprep.subr.bf16.mxu0 %v1832
      %2001 = vmatpush1.bf16.msra.mxu0 %v1831
      %2002 = vmatprep.subr.bf16.mxu0 %v1834
      %2003 = vmatpush1.bf16.msra.mxu0 %v1833
      %2004 = vmatprep.subr.bf16.mxu0 %v1836
      %2005 = vmatpush1.bf16.msra.mxu0 %v1835
      %2006 = vmatprep.subr.bf16.mxu0 %v1838
      %2007 = vmatpush1.bf16.msra.mxu0 %v1837
      %2008 = vmatprep.subr.bf16.mxu0 %v1840
      %2009 = vmatpush1.bf16.msra.mxu0 %v1839
      %2010 = vmatprep.subr.bf16.mxu0 %v1842
      %2011 = vmatpush1.bf16.msra.mxu0 %v1841
      %2012 = vmatprep.subr.bf16.mxu0 %v1844
      %2013 = vmatpush1.bf16.msra.mxu0 %v1843
      %2014 = vmatprep.subr.bf16.mxu0 %v1846
      %2015 = vmatpush1.bf16.msra.mxu0 %v1845
      %2016 = vmatprep.subr.bf16.mxu0 %v1848
      %2017 = vmatpush1.bf16.msra.mxu0 %v1847
      %2018 = vmatprep.subr.bf16.mxu0 %v1850
      %2019 = vmatpush1.bf16.msra.mxu0 %v1849
      %2020 = vmatprep.subr.bf16.mxu0 %v1852
      %2021 = vmatpush1.bf16.msra.mxu0 %v1851
      %2022 = vmatprep.subr.bf16.mxu0 %v1854
      %2023 = vmatpush1.bf16.msra.mxu0 %v1853
      %2024 = vmatprep.mubr.bf16.mxu0 %v1570
      %2025 = vmatmul.mubr.bf16.gmra.mrb[0].mxu0 %v1569
      %v2026 = vpop.f32.mrb[0].mxu0
      %v2027 = vadd.f32 %v1954, %v2026
      %v2028 = vpop.f32.mrb[0].mxu0
      %v2029 = vadd.f32 %v1956, %v2028
      %v2030 = vpop.f32.mrb[0].mxu0
      %v2031 = vadd.f32 %v1958, %v2030
      %v2032 = vpop.f32.mrb[0].mxu0
      %v2033 = vadd.f32 %v1960, %v2032
      %2034 = vmatprep.mubr.bf16.mxu0 %v1574
      %2035 = vmatmul.mubr.bf16.gmra.mrb[0].mxu0 %v1573
      %v2036 = vpop.f32.mrb[0].mxu0
      %v2037 = vadd.f32 %v1964, %v2036
      %v2038 = vpop.f32.mrb[0].mxu0
      %v2039 = vadd.f32 %v1966, %v2038
      %v2040 = vpop.f32.mrb[0].mxu0
      %v2041 = vadd.f32 %v1968, %v2040
      %v2042 = vpop.f32.mrb[0].mxu0
      %v2043 = vadd.f32 %v1970, %v2042
      %2044 = vmatprep.mubr.bf16.mxu0 %v1578
      %2045 = vmatmul.mubr.bf16.gmra.mrb[0].mxu0 %v1577
      %v2046 = vpop.f32.mrb[0].mxu0
      %v2047 = vadd.f32 %v1974, %v2046
      %v2048 = vpop.f32.mrb[0].mxu0
      %v2049 = vadd.f32 %v1976, %v2048
      %v2050 = vpop.f32.mrb[0].mxu0
      %v2051 = vadd.f32 %v1978, %v2050
      %v2052 = vpop.f32.mrb[0].mxu0
      %v2053 = vadd.f32 %v1980, %v2052
      %2054 = vmatprep.mubr.bf16.mxu0 %v1582
      %2055 = vmatmul.mubr.bf16.gmra.mrb[0].mxu0 %v1581
      %v2056 = vpop.f32.mrb[0].mxu0
      %v2057 = vadd.f32 %v1984, %v2056
      %v2058 = vpop.f32.mrb[0].mxu0
      %v2059 = vadd.f32 %v1986, %v2058
      %v2060 = vpop.f32.mrb[0].mxu0
      %v2061 = vadd.f32 %v1988, %v2060
      %v2062 = vpop.f32.mrb[0].mxu0
      %v2063 = vadd.f32 %v1990, %v2062
      %2064 = vdwg.mxu0
      %v2065 = vld [vmem:[#allocation2] sm:$0xee]
      %v2066 = vld [vmem:[#allocation2 + $0x8] sm:$0xee]
      %v2067 = vld [vmem:[#allocation2 + $0x30] sm:$0xee]
      %v2068 = vld [vmem:[#allocation2 + $0x38] sm:$0xee]
      %v2069 = vld [vmem:[#allocation2 + $0x60] sm:$0xee]
      %v2070 = vld [vmem:[#allocation2 + $0x68] sm:$0xee]
      %v2071 = vld [vmem:[#allocation2 + $0x90] sm:$0xee]
      %v2072 = vld [vmem:[#allocation2 + $0x98] sm:$0xee]
      %vm2089 = vcmask 1042432
      %vm2090 = vcmask 1046532
      %vm2091 = vmor %vm2089, %vm2090
      %v2092 = vrot.slane %v2065, 5
      %v2093 = vrot.slane %v2092, 4
      %v2094 = vrot.slane %v643, 5
      %v2095 = vsel %vm2091, %v2093, %v2094
      %v2096 = vrot.slane %v2066, 5
      %v2097 = vrot.slane %v2096, 4
      %v2098 = vrot.slane %v644, 5
      %v2099 = vsel %vm2091, %v2097, %v2098
      %v2100 = vrot.slane %v2094, 4
      %v2101 = vrot.slane %v721, 5
      %v2102 = vsel %vm2091, %v2100, %v2101
      %v2103 = vrot.slane %v2098, 4
      %v2104 = vrot.slane %v722, 5
      %v2105 = vsel %vm2091, %v2103, %v2104
      %v2106 = vrot.slane %v2067, 5
      %v2107 = vrot.slane %v2106, 4
      %v2108 = vrot.slane %v647, 5
      %v2109 = vsel %vm2091, %v2107, %v2108
      %v2110 = vrot.slane %v2068, 5
      %v2111 = vrot.slane %v2110, 4
      %v2112 = vrot.slane %v648, 5
      %v2113 = vsel %vm2091, %v2111, %v2112
      %v2114 = vrot.slane %v2108, 4
      %v2115 = vrot.slane %v723, 5
      %v2116 = vsel %vm2091, %v2114, %v2115
      %v2117 = vrot.slane %v2112, 4
      %v2118 = vrot.slane %v724, 5
      %v2119 = vsel %vm2091, %v2117, %v2118
      %v2120 = vrot.slane %v2069, 5
      %v2121 = vrot.slane %v2120, 4
      %v2122 = vrot.slane %v651, 5
      %v2123 = vsel %vm2091, %v2121, %v2122
      %v2124 = vrot.slane %v2070, 5
      %v2125 = vrot.slane %v2124, 4
      %v2126 = vrot.slane %v652, 5
      %v2127 = vsel %vm2091, %v2125, %v2126
      %v2128 = vrot.slane %v2122, 4
      %v2129 = vrot.slane %v725, 5
      %v2130 = vsel %vm2091, %v2128, %v2129
      %v2131 = vrot.slane %v2126, 4
      %v2132 = vrot.slane %v726, 5
      %v2133 = vsel %vm2091, %v2131, %v2132
      %v2134 = vrot.slane %v2071, 5
      %v2135 = vrot.slane %v2134, 4
      %v2136 = vrot.slane %v655, 5
      %v2137 = vsel %vm2091, %v2135, %v2136
      %v2138 = vrot.slane %v2072, 5
      %v2139 = vrot.slane %v2138, 4
      %v2140 = vrot.slane %v656, 5
      %v2141 = vsel %vm2091, %v2139, %v2140
      %v2142 = vrot.slane %v2136, 4
      %v2143 = vrot.slane %v727, 5
      %v2144 = vsel %vm2091, %v2142, %v2143
      %v2145 = vrot.slane %v2140, 4
      %v2146 = vrot.slane %v728, 5
      %v2147 = vsel %vm2091, %v2145, %v2146
      %s2148 = scalar_lea.vmem %s1, 1024
      %v2149 = vld [vmem:[%s2148] sm:$0xff]
      %v2150 = vld [vmem:[%s2148 + $0x8] sm:$0xff]
      %v2151 = vld [vmem:[%s2148 + $0x10] sm:$0xff]
      %v2152 = vld [vmem:[%s2148 + $0x18] sm:$0xff]
      %v2153 = vld [vmem:[%s2148 + $0x20] sm:$0xff]
      %v2154 = vld [vmem:[%s2148 + $0x28] sm:$0xff]
      %v2155 = vld [vmem:[%s2148 + $0x30] sm:$0xff]
      %v2156 = vld [vmem:[%s2148 + $0x38] sm:$0xff]
      %v2157 = vld [vmem:[%s2148 + $0x40] sm:$0xff]
      %v2158 = vld [vmem:[%s2148 + $0x48] sm:$0xff]
      %v2159 = vld [vmem:[%s2148 + $0x50] sm:$0xff]
      %v2160 = vld [vmem:[%s2148 + $0x58] sm:$0xff]
      %v2161 = vld [vmem:[%s2148 + $0x60] sm:$0xff]
      %v2162 = vld [vmem:[%s2148 + $0x68] sm:$0xff]
      %v2163 = vld [vmem:[%s2148 + $0x70] sm:$0xff]
      %v2164 = vld [vmem:[%s2148 + $0x78] sm:$0xff]
      %v2165 = vld [vmem:[%s2148 + $0x80] sm:$0xff]
      %v2166 = vld [vmem:[%s2148 + $0x88] sm:$0xff]
      %v2167 = vld [vmem:[%s2148 + $0x90] sm:$0xff]
      %v2168 = vld [vmem:[%s2148 + $0x98] sm:$0xff]
      %v2169 = vld [vmem:[%s2148 + $0xa0] sm:$0xff]
      %v2170 = vld [vmem:[%s2148 + $0xa8] sm:$0xff]
      %v2171 = vld [vmem:[%s2148 + $0xb0] sm:$0xff]
      %v2172 = vld [vmem:[%s2148 + $0xb8] sm:$0xff]
      %v2173 = vld [vmem:[%s2148 + $0xc0] sm:$0xff]
      %v2174 = vld [vmem:[%s2148 + $0xc8] sm:$0xff]
      %v2175 = vld [vmem:[%s2148 + $0xd0] sm:$0xff]
      %v2176 = vld [vmem:[%s2148 + $0xd8] sm:$0xff]
      %v2177 = vld [vmem:[%s2148 + $0xe0] sm:$0xff]
      %v2178 = vld [vmem:[%s2148 + $0xe8] sm:$0xff]
      %v2179 = vld [vmem:[%s2148 + $0xf0] sm:$0xff]
      %v2180 = vld [vmem:[%s2148 + $0xf8] sm:$0xff]
      %v2181 = vld [vmem:[%s2148 + $0x100] sm:$0xff]
      %v2182 = vld [vmem:[%s2148 + $0x108] sm:$0xff]
      %v2183 = vld [vmem:[%s2148 + $0x110] sm:$0xff]
      %v2184 = vld [vmem:[%s2148 + $0x118] sm:$0xff]
      %v2185 = vld [vmem:[%s2148 + $0x120] sm:$0xff]
      %v2186 = vld [vmem:[%s2148 + $0x128] sm:$0xff]
      %v2187 = vld [vmem:[%s2148 + $0x130] sm:$0xff]
      %v2188 = vld [vmem:[%s2148 + $0x138] sm:$0xff]
      %v2189 = vld [vmem:[%s2148 + $0x140] sm:$0xff]
      %v2190 = vld [vmem:[%s2148 + $0x148] sm:$0xff]
      %v2191 = vld [vmem:[%s2148 + $0x150] sm:$0xff]
      %v2192 = vld [vmem:[%s2148 + $0x158] sm:$0xff]
      %v2193 = vld [vmem:[%s2148 + $0x160] sm:$0xff]
      %v2194 = vld [vmem:[%s2148 + $0x168] sm:$0xff]
      %v2195 = vld [vmem:[%s2148 + $0x170] sm:$0xff]
      %v2196 = vld [vmem:[%s2148 + $0x178] sm:$0xff]
      %v2197 = vld [vmem:[%s2148 + $0x180] sm:$0xff]
      %v2198 = vld [vmem:[%s2148 + $0x188] sm:$0xff]
      %v2199 = vld [vmem:[%s2148 + $0x190] sm:$0xff]
      %v2200 = vld [vmem:[%s2148 + $0x198] sm:$0xff]
      %v2201 = vld [vmem:[%s2148 + $0x1a0] sm:$0xff]
      %v2202 = vld [vmem:[%s2148 + $0x1a8] sm:$0xff]
      %v2203 = vld [vmem:[%s2148 + $0x1b0] sm:$0xff]
      %v2204 = vld [vmem:[%s2148 + $0x1b8] sm:$0xff]
      %v2205 = vld [vmem:[%s2148 + $0x1c0] sm:$0xff]
      %v2206 = vld [vmem:[%s2148 + $0x1c8] sm:$0xff]
      %v2207 = vld [vmem:[%s2148 + $0x1d0] sm:$0xff]
      %v2208 = vld [vmem:[%s2148 + $0x1d8] sm:$0xff]
      %v2209 = vld [vmem:[%s2148 + $0x1e0] sm:$0xff]
      %v2210 = vld [vmem:[%s2148 + $0x1e8] sm:$0xff]
      %v2211 = vld [vmem:[%s2148 + $0x1f0] sm:$0xff]
      %v2212 = vld [vmem:[%s2148 + $0x1f8] sm:$0xff]
      %v2213 = vunpack.c.l.b16 %v2095
      %v2214 = vunpack.c.h.b16 %v2095
      %v2215 = vunpack.c.l.b16 %v2099
      %v2216 = vunpack.c.h.b16 %v2099
      %v2217 = vunpack.c.l.b16 %v2102
      %v2218 = vunpack.c.h.b16 %v2102
      %v2219 = vunpack.c.l.b16 %v2105
      %v2220 = vunpack.c.h.b16 %v2105
      %v2221 = vunpack.c.l.b16 %v2109
      %v2222 = vunpack.c.h.b16 %v2109
      %v2223 = vunpack.c.l.b16 %v2113
      %v2224 = vunpack.c.h.b16 %v2113
      %v2225 = vunpack.c.l.b16 %v2116
      %v2226 = vunpack.c.h.b16 %v2116
      %v2227 = vunpack.c.l.b16 %v2119
      %v2228 = vunpack.c.h.b16 %v2119
      %v2229 = vunpack.c.l.b16 %v2123
      %v2230 = vunpack.c.h.b16 %v2123
      %v2231 = vunpack.c.l.b16 %v2127
      %v2232 = vunpack.c.h.b16 %v2127
      %v2233 = vunpack.c.l.b16 %v2130
      %v2234 = vunpack.c.h.b16 %v2130
      %v2235 = vunpack.c.l.b16 %v2133
      %v2236 = vunpack.c.h.b16 %v2133
      %v2237 = vunpack.c.l.b16 %v2137
      %v2238 = vunpack.c.h.b16 %v2137
      %v2239 = vunpack.c.l.b16 %v2141
      %v2240 = vunpack.c.h.b16 %v2141
      %v2241 = vunpack.c.l.b16 %v2144
      %v2242 = vunpack.c.h.b16 %v2144
      %v2243 = vunpack.c.l.b16 %v2147
      %v2244 = vunpack.c.h.b16 %v2147
      %v2245 = vpack.c.b16 %v2217, %v2213
      %v2246 = vpack.c.b16 %v2218, %v2214
      %v2247 = vpack.c.b16 %v2219, %v2215
      %v2248 = vpack.c.b16 %v2220, %v2216
      %v2249 = vpack.c.b16 %v2225, %v2221
      %v2250 = vpack.c.b16 %v2226, %v2222
      %v2251 = vpack.c.b16 %v2227, %v2223
      %v2252 = vpack.c.b16 %v2228, %v2224
      %v2253 = vpack.c.b16 %v2233, %v2229
      %v2254 = vpack.c.b16 %v2234, %v2230
      %v2255 = vpack.c.b16 %v2235, %v2231
      %v2256 = vpack.c.b16 %v2236, %v2232
      %v2257 = vpack.c.b16 %v2241, %v2237
      %v2258 = vpack.c.b16 %v2242, %v2238
      %v2259 = vpack.c.b16 %v2243, %v2239
      %v2260 = vpack.c.b16 %v2244, %v2240
      %v2341 = vunpack.c.l.b16 %v2149
      %v2342 = vunpack.c.h.b16 %v2149
      %v2343 = vunpack.c.l.b16 %v2150
      %v2344 = vunpack.c.h.b16 %v2150
      %v2345 = vunpack.c.l.b16 %v2151
      %v2346 = vunpack.c.h.b16 %v2151
      %v2347 = vunpack.c.l.b16 %v2152
      %v2348 = vunpack.c.h.b16 %v2152
      %v2349 = vunpack.c.l.b16 %v2153
      %v2350 = vunpack.c.h.b16 %v2153
      %v2351 = vunpack.c.l.b16 %v2154
      %v2352 = vunpack.c.h.b16 %v2154
      %v2353 = vunpack.c.l.b16 %v2155
      %v2354 = vunpack.c.h.b16 %v2155
      %v2355 = vunpack.c.l.b16 %v2156
      %v2356 = vunpack.c.h.b16 %v2156
      %v2357 = vunpack.c.l.b16 %v2157
      %v2358 = vunpack.c.h.b16 %v2157
      %v2359 = vunpack.c.l.b16 %v2158
      %v2360 = vunpack.c.h.b16 %v2158
      %v2361 = vunpack.c.l.b16 %v2159
      %v2362 = vunpack.c.h.b16 %v2159
      %v2363 = vunpack.c.l.b16 %v2160
      %v2364 = vunpack.c.h.b16 %v2160
      %v2365 = vunpack.c.l.b16 %v2161
      %v2366 = vunpack.c.h.b16 %v2161
      %v2367 = vunpack.c.l.b16 %v2162
      %v2368 = vunpack.c.h.b16 %v2162
      %v2369 = vunpack.c.l.b16 %v2163
      %v2370 = vunpack.c.h.b16 %v2163
      %v2371 = vunpack.c.l.b16 %v2164
      %v2372 = vunpack.c.h.b16 %v2164
      %v2373 = vunpack.c.l.b16 %v2165
      %v2374 = vunpack.c.h.b16 %v2165
      %v2375 = vunpack.c.l.b16 %v2166
      %v2376 = vunpack.c.h.b16 %v2166
      %v2377 = vunpack.c.l.b16 %v2167
      %v2378 = vunpack.c.h.b16 %v2167
      %v2379 = vunpack.c.l.b16 %v2168
      %v2380 = vunpack.c.h.b16 %v2168
      %v2381 = vunpack.c.l.b16 %v2169
      %v2382 = vunpack.c.h.b16 %v2169
      %v2383 = vunpack.c.l.b16 %v2170
      %v2384 = vunpack.c.h.b16 %v2170
      %v2385 = vunpack.c.l.b16 %v2171
      %v2386 = vunpack.c.h.b16 %v2171
      %v2387 = vunpack.c.l.b16 %v2172
      %v2388 = vunpack.c.h.b16 %v2172
      %v2389 = vunpack.c.l.b16 %v2173
      %v2390 = vunpack.c.h.b16 %v2173
      %v2391 = vunpack.c.l.b16 %v2174
      %v2392 = vunpack.c.h.b16 %v2174
      %v2393 = vunpack.c.l.b16 %v2175
      %v2394 = vunpack.c.h.b16 %v2175
      %v2395 = vunpack.c.l.b16 %v2176
      %v2396 = vunpack.c.h.b16 %v2176
      %v2397 = vunpack.c.l.b16 %v2177
      %v2398 = vunpack.c.h.b16 %v2177
      %v2399 = vunpack.c.l.b16 %v2178
      %v2400 = vunpack.c.h.b16 %v2178
      %v2401 = vunpack.c.l.b16 %v2179
      %v2402 = vunpack.c.h.b16 %v2179
      %v2403 = vunpack.c.l.b16 %v2180
      %v2404 = vunpack.c.h.b16 %v2180
      %v2405 = vunpack.c.l.b16 %v2181
      %v2406 = vunpack.c.h.b16 %v2181
      %v2407 = vunpack.c.l.b16 %v2182
      %v2408 = vunpack.c.h.b16 %v2182
      %v2409 = vunpack.c.l.b16 %v2183
      %v2410 = vunpack.c.h.b16 %v2183
      %v2411 = vunpack.c.l.b16 %v2184
      %v2412 = vunpack.c.h.b16 %v2184
      %v2413 = vunpack.c.l.b16 %v2185
      %v2414 = vunpack.c.h.b16 %v2185
      %v2415 = vunpack.c.l.b16 %v2186
      %v2416 = vunpack.c.h.b16 %v2186
      %v2417 = vunpack.c.l.b16 %v2187
      %v2418 = vunpack.c.h.b16 %v2187
      %v2419 = vunpack.c.l.b16 %v2188
      %v2420 = vunpack.c.h.b16 %v2188
      %v2421 = vunpack.c.l.b16 %v2189
      %v2422 = vunpack.c.h.b16 %v2189
      %v2423 = vunpack.c.l.b16 %v2190
      %v2424 = vunpack.c.h.b16 %v2190
      %v2425 = vunpack.c.l.b16 %v2191
      %v2426 = vunpack.c.h.b16 %v2191
      %v2427 = vunpack.c.l.b16 %v2192
      %v2428 = vunpack.c.h.b16 %v2192
      %v2429 = vunpack.c.l.b16 %v2193
      %v2430 = vunpack.c.h.b16 %v2193
      %v2431 = vunpack.c.l.b16 %v2194
      %v2432 = vunpack.c.h.b16 %v2194
      %v2433 = vunpack.c.l.b16 %v2195
      %v2434 = vunpack.c.h.b16 %v2195
      %v2435 = vunpack.c.l.b16 %v2196
      %v2436 = vunpack.c.h.b16 %v2196
      %v2437 = vunpack.c.l.b16 %v2197
      %v2438 = vunpack.c.h.b16 %v2197
      %v2439 = vunpack.c.l.b16 %v2198
      %v2440 = vunpack.c.h.b16 %v2198
      %v2441 = vunpack.c.l.b16 %v2199
      %v2442 = vunpack.c.h.b16 %v2199
      %v2443 = vunpack.c.l.b16 %v2200
      %v2444 = vunpack.c.h.b16 %v2200
      %v2445 = vunpack.c.l.b16 %v2201
      %v2446 = vunpack.c.h.b16 %v2201
      %v2447 = vunpack.c.l.b16 %v2202
      %v2448 = vunpack.c.h.b16 %v2202
      %v2449 = vunpack.c.l.b16 %v2203
      %v2450 = vunpack.c.h.b16 %v2203
      %v2451 = vunpack.c.l.b16 %v2204
      %v2452 = vunpack.c.h.b16 %v2204
      %v2453 = vunpack.c.l.b16 %v2205
      %v2454 = vunpack.c.h.b16 %v2205
      %v2455 = vunpack.c.l.b16 %v2206
      %v2456 = vunpack.c.h.b16 %v2206
      %v2457 = vunpack.c.l.b16 %v2207
      %v2458 = vunpack.c.h.b16 %v2207
      %v2459 = vunpack.c.l.b16 %v2208
      %v2460 = vunpack.c.h.b16 %v2208
      %v2461 = vunpack.c.l.b16 %v2209
      %v2462 = vunpack.c.h.b16 %v2209
      %v2463 = vunpack.c.l.b16 %v2210
      %v2464 = vunpack.c.h.b16 %v2210
      %v2465 = vunpack.c.l.b16 %v2211
      %v2466 = vunpack.c.h.b16 %v2211
      %v2467 = vunpack.c.l.b16 %v2212
      %v2468 = vunpack.c.h.b16 %v2212
      %v2469 = vpack.c.b16 %v2343, %v2341
      %v2470 = vpack.c.b16 %v2344, %v2342
      %v2471 = vpack.c.b16 %v2347, %v2345
      %v2472 = vpack.c.b16 %v2348, %v2346
      %v2473 = vpack.c.b16 %v2351, %v2349
      %v2474 = vpack.c.b16 %v2352, %v2350
      %v2475 = vpack.c.b16 %v2355, %v2353
      %v2476 = vpack.c.b16 %v2356, %v2354
      %v2477 = vpack.c.b16 %v2359, %v2357
      %v2478 = vpack.c.b16 %v2360, %v2358
      %v2479 = vpack.c.b16 %v2363, %v2361
      %v2480 = vpack.c.b16 %v2364, %v2362
      %v2481 = vpack.c.b16 %v2367, %v2365
      %v2482 = vpack.c.b16 %v2368, %v2366
      %v2483 = vpack.c.b16 %v2371, %v2369
      %v2484 = vpack.c.b16 %v2372, %v2370
      %v2485 = vpack.c.b16 %v2375, %v2373
      %v2486 = vpack.c.b16 %v2376, %v2374
      %v2487 = vpack.c.b16 %v2379, %v2377
      %v2488 = vpack.c.b16 %v2380, %v2378
      %v2489 = vpack.c.b16 %v2383, %v2381
      %v2490 = vpack.c.b16 %v2384, %v2382
      %v2491 = vpack.c.b16 %v2387, %v2385
      %v2492 = vpack.c.b16 %v2388, %v2386
      %v2493 = vpack.c.b16 %v2391, %v2389
      %v2494 = vpack.c.b16 %v2392, %v2390
      %v2495 = vpack.c.b16 %v2395, %v2393
      %v2496 = vpack.c.b16 %v2396, %v2394
      %v2497 = vpack.c.b16 %v2399, %v2397
      %v2498 = vpack.c.b16 %v2400, %v2398
      %v2499 = vpack.c.b16 %v2403, %v2401
      %v2500 = vpack.c.b16 %v2404, %v2402
      %v2501 = vpack.c.b16 %v2407, %v2405
      %v2502 = vpack.c.b16 %v2408, %v2406
      %v2503 = vpack.c.b16 %v2411, %v2409
      %v2504 = vpack.c.b16 %v2412, %v2410
      %v2505 = vpack.c.b16 %v2415, %v2413
      %v2506 = vpack.c.b16 %v2416, %v2414
      %v2507 = vpack.c.b16 %v2419, %v2417
      %v2508 = vpack.c.b16 %v2420, %v2418
      %v2509 = vpack.c.b16 %v2423, %v2421
      %v2510 = vpack.c.b16 %v2424, %v2422
      %v2511 = vpack.c.b16 %v2427, %v2425
      %v2512 = vpack.c.b16 %v2428, %v2426
      %v2513 = vpack.c.b16 %v2431, %v2429
      %v2514 = vpack.c.b16 %v2432, %v2430
      %v2515 = vpack.c.b16 %v2435, %v2433
      %v2516 = vpack.c.b16 %v2436, %v2434
      %v2517 = vpack.c.b16 %v2439, %v2437
      %v2518 = vpack.c.b16 %v2440, %v2438
      %v2519 = vpack.c.b16 %v2443, %v2441
      %v2520 = vpack.c.b16 %v2444, %v2442
      %v2521 = vpack.c.b16 %v2447, %v2445
      %v2522 = vpack.c.b16 %v2448, %v2446
      %v2523 = vpack.c.b16 %v2451, %v2449
      %v2524 = vpack.c.b16 %v2452, %v2450
      %v2525 = vpack.c.b16 %v2455, %v2453
      %v2526 = vpack.c.b16 %v2456, %v2454
      %v2527 = vpack.c.b16 %v2459, %v2457
      %v2528 = vpack.c.b16 %v2460, %v2458
      %v2529 = vpack.c.b16 %v2463, %v2461
      %v2530 = vpack.c.b16 %v2464, %v2462
      %v2531 = vpack.c.b16 %v2467, %v2465
      %v2532 = vpack.c.b16 %v2468, %v2466
      %2597 = vmatprep.subr.bf16.mxu0 %v2470
      %2598 = vmatpush1.bf16.msra.mxu0 %v2469
      %2599 = vmatprep.subr.bf16.mxu0 %v2472
      %2600 = vmatpush1.bf16.msra.mxu0 %v2471
      %2601 = vmatprep.subr.bf16.mxu0 %v2474
      %2602 = vmatpush1.bf16.msra.mxu0 %v2473
      %2603 = vmatprep.subr.bf16.mxu0 %v2476
      %2604 = vmatpush1.bf16.msra.mxu0 %v2475
      %2605 = vmatprep.subr.bf16.mxu0 %v2478
      %2606 = vmatpush1.bf16.msra.mxu0 %v2477
      %2607 = vmatprep.subr.bf16.mxu0 %v2480
      %2608 = vmatpush1.bf16.msra.mxu0 %v2479
      %2609 = vmatprep.subr.bf16.mxu0 %v2482
      %2610 = vmatpush1.bf16.msra.mxu0 %v2481
      %2611 = vmatprep.subr.bf16.mxu0 %v2484
      %2612 = vmatpush1.bf16.msra.mxu0 %v2483
      %2613 = vmatprep.subr.bf16.mxu0 %v2486
      %2614 = vmatpush1.bf16.msra.mxu0 %v2485
      %2615 = vmatprep.subr.bf16.mxu0 %v2488
      %2616 = vmatpush1.bf16.msra.mxu0 %v2487
      %2617 = vmatprep.subr.bf16.mxu0 %v2490
      %2618 = vmatpush1.bf16.msra.mxu0 %v2489
      %2619 = vmatprep.subr.bf16.mxu0 %v2492
      %2620 = vmatpush1.bf16.msra.mxu0 %v2491
      %2621 = vmatprep.subr.bf16.mxu0 %v2494
      %2622 = vmatpush1.bf16.msra.mxu0 %v2493
      %2623 = vmatprep.subr.bf16.mxu0 %v2496
      %2624 = vmatpush1.bf16.msra.mxu0 %v2495
      %2625 = vmatprep.subr.bf16.mxu0 %v2498
      %2626 = vmatpush1.bf16.msra.mxu0 %v2497
      %2627 = vmatprep.subr.bf16.mxu0 %v2500
      %2628 = vmatpush1.bf16.msra.mxu0 %v2499
      %2629 = vmatprep.mubr.bf16.mxu0 %v2246
      %2630 = vmatmul.mubr.bf16.gmra.mrb[0].mxu0 %v2245
      %v2631 = vpop.f32.mrb[0].mxu0
      %v2632 = vadd.f32 0.0, %v2631
      %v2633 = vpop.f32.mrb[0].mxu0
      %v2634 = vadd.f32 0.0, %v2633
      %v2635 = vpop.f32.mrb[0].mxu0
      %v2636 = vadd.f32 0.0, %v2635
      %v2637 = vpop.f32.mrb[0].mxu0
      %v2638 = vadd.f32 0.0, %v2637
      %2639 = vmatprep.mubr.bf16.mxu0 %v2250
      %2640 = vmatmul.mubr.bf16.gmra.mrb[0].mxu0 %v2249
      %v2641 = vpop.f32.mrb[0].mxu0
      %v2642 = vadd.f32 0.0, %v2641
      %v2643 = vpop.f32.mrb[0].mxu0
      %v2644 = vadd.f32 0.0, %v2643
      %v2645 = vpop.f32.mrb[0].mxu0
      %v2646 = vadd.f32 0.0, %v2645
      %v2647 = vpop.f32.mrb[0].mxu0
      %v2648 = vadd.f32 0.0, %v2647
      %2649 = vmatprep.mubr.bf16.mxu0 %v2254
      %2650 = vmatmul.mubr.bf16.gmra.mrb[0].mxu0 %v2253
      %v2651 = vpop.f32.mrb[0].mxu0
      %v2652 = vadd.f32 0.0, %v2651
      %v2653 = vpop.f32.mrb[0].mxu0
      %v2654 = vadd.f32 0.0, %v2653
      %v2655 = vpop.f32.mrb[0].mxu0
      %v2656 = vadd.f32 0.0, %v2655
      %v2657 = vpop.f32.mrb[0].mxu0
      %v2658 = vadd.f32 0.0, %v2657
      %2659 = vmatprep.mubr.bf16.mxu0 %v2258
      %2660 = vmatmul.mubr.bf16.gmra.mrb[0].mxu0 %v2257
      %v2661 = vpop.f32.mrb[0].mxu0
      %v2662 = vadd.f32 0.0, %v2661
      %v2663 = vpop.f32.mrb[0].mxu0
      %v2664 = vadd.f32 0.0, %v2663
      %v2665 = vpop.f32.mrb[0].mxu0
      %v2666 = vadd.f32 0.0, %v2665
      %v2667 = vpop.f32.mrb[0].mxu0
      %v2668 = vadd.f32 0.0, %v2667
      %2669 = vdwg.mxu0
      %2670 = vmatprep.subr.bf16.mxu0 %v2502
      %2671 = vmatpush1.bf16.msra.mxu0 %v2501
      %2672 = vmatprep.subr.bf16.mxu0 %v2504
      %2673 = vmatpush1.bf16.msra.mxu0 %v2503
      %2674 = vmatprep.subr.bf16.mxu0 %v2506
      %2675 = vmatpush1.bf16.msra.mxu0 %v2505
      %2676 = vmatprep.subr.bf16.mxu0 %v2508
      %2677 = vmatpush1.bf16.msra.mxu0 %v2507
      %2678 = vmatprep.subr.bf16.mxu0 %v2510
      %2679 = vmatpush1.bf16.msra.mxu0 %v2509
      %2680 = vmatprep.subr.bf16.mxu0 %v2512
      %2681 = vmatpush1.bf16.msra.mxu0 %v2511
      %2682 = vmatprep.subr.bf16.mxu0 %v2514
      %2683 = vmatpush1.bf16.msra.mxu0 %v2513
      %2684 = vmatprep.subr.bf16.mxu0 %v2516
      %2685 = vmatpush1.bf16.msra.mxu0 %v2515
      %2686 = vmatprep.subr.bf16.mxu0 %v2518
      %2687 = vmatpush1.bf16.msra.mxu0 %v2517
      %2688 = vmatprep.subr.bf16.mxu0 %v2520
      %2689 = vmatpush1.bf16.msra.mxu0 %v2519
      %2690 = vmatprep.subr.bf16.mxu0 %v2522
      %2691 = vmatpush1.bf16.msra.mxu0 %v2521
      %2692 = vmatprep.subr.bf16.mxu0 %v2524
      %2693 = vmatpush1.bf16.msra.mxu0 %v2523
      %2694 = vmatprep.subr.bf16.mxu0 %v2526
      %2695 = vmatpush1.bf16.msra.mxu0 %v2525
      %2696 = vmatprep.subr.bf16.mxu0 %v2528
      %2697 = vmatpush1.bf16.msra.mxu0 %v2527
      %2698 = vmatprep.subr.bf16.mxu0 %v2530
      %2699 = vmatpush1.bf16.msra.mxu0 %v2529
      %2700 = vmatprep.subr.bf16.mxu0 %v2532
      %2701 = vmatpush1.bf16.msra.mxu0 %v2531
      %2702 = vmatprep.mubr.bf16.mxu0 %v2248
      %2703 = vmatmul.mubr.bf16.gmra.mrb[0].mxu0 %v2247
      %v2704 = vpop.f32.mrb[0].mxu0
      %v2705 = vadd.f32 %v2632, %v2704
      %v2706 = vpop.f32.mrb[0].mxu0
      %v2707 = vadd.f32 %v2634, %v2706
      %v2708 = vpop.f32.mrb[0].mxu0
      %v2709 = vadd.f32 %v2636, %v2708
      %v2710 = vpop.f32.mrb[0].mxu0
      %v2711 = vadd.f32 %v2638, %v2710
      %2712 = vmatprep.mubr.bf16.mxu0 %v2252
      %2713 = vmatmul.mubr.bf16.gmra.mrb[0].mxu0 %v2251
      %v2714 = vpop.f32.mrb[0].mxu0
      %v2715 = vadd.f32 %v2642, %v2714
      %v2716 = vpop.f32.mrb[0].mxu0
      %v2717 = vadd.f32 %v2644, %v2716
      %v2718 = vpop.f32.mrb[0].mxu0
      %v2719 = vadd.f32 %v2646, %v2718
      %v2720 = vpop.f32.mrb[0].mxu0
      %v2721 = vadd.f32 %v2648, %v2720
      %2722 = vmatprep.mubr.bf16.mxu0 %v2256
      %2723 = vmatmul.mubr.bf16.gmra.mrb[0].mxu0 %v2255
      %v2724 = vpop.f32.mrb[0].mxu0
      %v2725 = vadd.f32 %v2652, %v2724
      %v2726 = vpop.f32.mrb[0].mxu0
      %v2727 = vadd.f32 %v2654, %v2726
      %v2728 = vpop.f32.mrb[0].mxu0
      %v2729 = vadd.f32 %v2656, %v2728
      %v2730 = vpop.f32.mrb[0].mxu0
      %v2731 = vadd.f32 %v2658, %v2730
      %2732 = vmatprep.mubr.bf16.mxu0 %v2260
      %2733 = vmatmul.mubr.bf16.gmra.mrb[0].mxu0 %v2259
      %v2734 = vpop.f32.mrb[0].mxu0
      %v2735 = vadd.f32 %v2662, %v2734
      %v2736 = vpop.f32.mrb[0].mxu0
      %v2737 = vadd.f32 %v2664, %v2736
      %v2738 = vpop.f32.mrb[0].mxu0
      %v2739 = vadd.f32 %v2666, %v2738
      %v2740 = vpop.f32.mrb[0].mxu0
      %v2741 = vadd.f32 %v2668, %v2740
      %2742 = vdwg.mxu0
      %v2743 = vadd.f32 %v2027, %v2705
      %v2744 = vadd.f32 %v2029, %v2707
      %v2745 = vadd.f32 %v2031, %v2709
      %v2746 = vadd.f32 %v2033, %v2711
      %v2747 = vadd.f32 %v2037, %v2715
      %v2748 = vadd.f32 %v2039, %v2717
      %v2749 = vadd.f32 %v2041, %v2719
      %v2750 = vadd.f32 %v2043, %v2721
      %v2751 = vadd.f32 %v2047, %v2725
      %v2752 = vadd.f32 %v2049, %v2727
      %v2753 = vadd.f32 %v2051, %v2729
      %v2754 = vadd.f32 %v2053, %v2731
      %v2755 = vadd.f32 %v2057, %v2735
      %v2756 = vadd.f32 %v2059, %v2737
      %v2757 = vadd.f32 %v2061, %v2739
      %v2758 = vadd.f32 %v2063, %v2741
      %v2759 = vld [vmem:[%s2] sm:$0x3]
      %v2761 = vlaneseq
      %v2762 = vshrl.u32 %v2761, 7
      %v2763 = vsub.s32 0, %v2762
      %v2764 = vrot.slane %v2759, %v2763
      %v2765 = vlaneseq
      %v2766 = vshrl.u32 %v2765, 7
      %v2767 = vsub.s32 1, %v2766
      %v2768 = vrot.slane %v2759, %v2767
      %v2771 = vadd.f32 %v2743, %v2764
      %v2772 = vadd.f32 %v2744, %v2768
      %v2773 = vadd.f32 %v2745, %v2764
      %v2774 = vadd.f32 %v2746, %v2768
      %v2775 = vadd.f32 %v2747, %v2764
      %v2776 = vadd.f32 %v2748, %v2768
      %v2777 = vadd.f32 %v2749, %v2764
      %v2778 = vadd.f32 %v2750, %v2768
      %v2779 = vadd.f32 %v2751, %v2764
      %v2780 = vadd.f32 %v2752, %v2768
      %v2781 = vadd.f32 %v2753, %v2764
      %v2782 = vadd.f32 %v2754, %v2768
      %v2783 = vadd.f32 %v2755, %v2764
      %v2784 = vadd.f32 %v2756, %v2768
      %v2785 = vadd.f32 %v2757, %v2764
      %v2786 = vadd.f32 %v2758, %v2768
      %v2787 = vmax.f32 %v2771, 0.0
      %v2788 = vmax.f32 %v2772, 0.0
      %v2789 = vmax.f32 %v2773, 0.0
      %v2790 = vmax.f32 %v2774, 0.0
      %v2791 = vmax.f32 %v2775, 0.0
      %v2792 = vmax.f32 %v2776, 0.0
      %v2793 = vmax.f32 %v2777, 0.0
      %v2794 = vmax.f32 %v2778, 0.0
      %v2795 = vmax.f32 %v2779, 0.0
      %v2796 = vmax.f32 %v2780, 0.0
      %v2797 = vmax.f32 %v2781, 0.0
      %v2798 = vmax.f32 %v2782, 0.0
      %v2799 = vmax.f32 %v2783, 0.0
      %v2800 = vmax.f32 %v2784, 0.0
      %v2801 = vmax.f32 %v2785, 0.0
      %v2802 = vmax.f32 %v2786, 0.0
      %v2803 = vld [vmem:[#allocation3] sm:$0x11]
      %v2804 = vsel %vm364, 0, %v2803
      %2805 = vst [vmem:[#allocation3] sm:$0x11] %v2804
      %v2806 = vld [vmem:[#allocation3 + $0x18] sm:$0x11]
      %v2807 = vsel %vm364, 0, %v2806
      %2808 = vst [vmem:[#allocation3 + $0x18] sm:$0x11] %v2807
      %v2809 = vld [vmem:[#allocation3 + $0x30] sm:$0x11]
      %v2810 = vsel %vm364, 0, %v2809
      %2811 = vst [vmem:[#allocation3 + $0x30] sm:$0x11] %v2810
      %v2812 = vld [vmem:[#allocation3 + $0x48] sm:$0x11]
      %v2813 = vsel %vm364, 0, %v2812
      %2814 = vst [vmem:[#allocation3 + $0x48] sm:$0x11] %v2813
      %v2815 = vld [vmem:[#allocation3 + $0x10] sm:$0x11]
      %v2816 = vsel %vm393, 0, %v2815
      %2817 = vst [vmem:[#allocation3 + $0x10] sm:$0x11] %v2816
      %v2818 = vld [vmem:[#allocation3 + $0x28] sm:$0x11]
      %v2819 = vsel %vm393, 0, %v2818
      %2820 = vst [vmem:[#allocation3 + $0x28] sm:$0x11] %v2819
      %v2821 = vld [vmem:[#allocation3 + $0x40] sm:$0x11]
      %v2822 = vsel %vm393, 0, %v2821
      %2823 = vst [vmem:[#allocation3 + $0x40] sm:$0x11] %v2822
      %v2824 = vld [vmem:[#allocation3 + $0x58] sm:$0x11]
      %v2825 = vsel %vm393, 0, %v2824
      %2826 = vst [vmem:[#allocation3 + $0x58] sm:$0x11] %v2825
      %v2827 = vpack.c.bf16 %v2789, %v2787
      %v2828 = vpack.c.bf16 %v2790, %v2788
      %v2829 = vpack.c.bf16 %v2793, %v2791
      %v2830 = vpack.c.bf16 %v2794, %v2792
      %v2831 = vpack.c.bf16 %v2797, %v2795
      %v2832 = vpack.c.bf16 %v2798, %v2796
      %v2833 = vpack.c.bf16 %v2801, %v2799
      %v2834 = vpack.c.bf16 %v2802, %v2800
      %v2843 = vunpack.c.l.b16 %v2827
      %v2844 = vunpack.c.l.b16 %v2828
      %v2845 = vunpack.c.h.b16 %v2827
      %v2846 = vunpack.c.h.b16 %v2828
      %v2847 = vunpack.c.l.b16 %v2829
      %v2848 = vunpack.c.l.b16 %v2830
      %v2849 = vunpack.c.h.b16 %v2829
      %v2850 = vunpack.c.h.b16 %v2830
      %v2851 = vunpack.c.l.b16 %v2831
      %v2852 = vunpack.c.l.b16 %v2832
      %v2853 = vunpack.c.h.b16 %v2831
      %v2854 = vunpack.c.h.b16 %v2832
      %v2855 = vunpack.c.l.b16 %v2833
      %v2856 = vunpack.c.l.b16 %v2834
      %v2857 = vunpack.c.h.b16 %v2833
      %v2858 = vunpack.c.h.b16 %v2834
      %v2859 = vpack.c.b16 %v2844, %v2843
      %v2860 = vpack.c.b16 %v2846, %v2845
      %v2861 = vpack.c.b16 %v2848, %v2847
      %v2862 = vpack.c.b16 %v2850, %v2849
      %v2863 = vpack.c.b16 %v2852, %v2851
      %v2864 = vpack.c.b16 %v2854, %v2853
      %v2865 = vpack.c.b16 %v2856, %v2855
      %v2866 = vpack.c.b16 %v2858, %v2857
      %v2868 = vshrl.u32 %v2859, 16
      %v2870 = vrot.slane %v2868, 7
      %v2871 = vshll.u32 %v2859, 16
      %v2873 = vor.u32 %v2870, %v2871
      %v2874 = vrot.slane %v2870, 4
      %v2876 = vshrl.u32 %v2860, 16
      %v2878 = vrot.slane %v2876, 7
      %v2879 = vshll.u32 %v2860, 16
      %v2881 = vor.u32 %v2878, %v2879
      %v2882 = vsel %vm419, %v2874, %v2881
      %v2883 = vrot.slane %v2878, 4
      %v2885 = vshrl.u32 %v2861, 16
      %v2887 = vrot.slane %v2885, 7
      %v2888 = vshll.u32 %v2861, 16
      %v2890 = vor.u32 %v2887, %v2888
      %v2891 = vrot.slane %v2887, 4
      %v2893 = vshrl.u32 %v2862, 16
      %v2895 = vrot.slane %v2893, 7
      %v2896 = vshll.u32 %v2862, 16
      %v2898 = vor.u32 %v2895, %v2896
      %v2899 = vsel %vm419, %v2891, %v2898
      %v2900 = vrot.slane %v2895, 4
      %v2902 = vshrl.u32 %v2863, 16
      %v2904 = vrot.slane %v2902, 7
      %v2905 = vshll.u32 %v2863, 16
      %v2907 = vor.u32 %v2904, %v2905
      %v2908 = vrot.slane %v2904, 4
      %v2910 = vshrl.u32 %v2864, 16
      %v2912 = vrot.slane %v2910, 7
      %v2913 = vshll.u32 %v2864, 16
      %v2915 = vor.u32 %v2912, %v2913
      %v2916 = vsel %vm419, %v2908, %v2915
      %v2917 = vrot.slane %v2912, 4
      %v2919 = vshrl.u32 %v2865, 16
      %v2921 = vrot.slane %v2919, 7
      %v2922 = vshll.u32 %v2865, 16
      %v2924 = vor.u32 %v2921, %v2922
      %v2925 = vrot.slane %v2921, 4
      %v2927 = vshrl.u32 %v2866, 16
      %v2929 = vrot.slane %v2927, 7
      %v2930 = vshll.u32 %v2866, 16
      %v2932 = vor.u32 %v2929, %v2930
      %v2933 = vsel %vm419, %v2925, %v2932
      %v2934 = vrot.slane %v2929, 4
      %v2947 = vld [vmem:[#allocation3] sm:$0xff]
      %v2948 = vsel %vm584, %v2873, %v2947
      %2949 = vst [vmem:[#allocation3] sm:$0xff] %v2948
      %2950 = vst [vmem:[#allocation3 + $0x8] sm:$0xff] %v2882
      %v2951 = vld [vmem:[#allocation3 + $0x10] sm:$0x11]
      %v2952 = vsel %vm364, %v2883, %v2951
      %2953 = vst [vmem:[#allocation3 + $0x10] sm:$0x11] %v2952
      %v2954 = vld [vmem:[#allocation3 + $0x18] sm:$0xff]
      %v2955 = vsel %vm584, %v2890, %v2954
      %2956 = vst [vmem:[#allocation3 + $0x18] sm:$0xff] %v2955
      %2957 = vst [vmem:[#allocation3 + $0x20] sm:$0xff] %v2899
      %v2958 = vld [vmem:[#allocation3 + $0x28] sm:$0x11]
      %v2959 = vsel %vm364, %v2900, %v2958
      %2960 = vst [vmem:[#allocation3 + $0x28] sm:$0x11] %v2959
      %v2961 = vld [vmem:[#allocation3 + $0x30] sm:$0xff]
      %v2962 = vsel %vm584, %v2907, %v2961
      %2963 = vst [vmem:[#allocation3 + $0x30] sm:$0xff] %v2962
      %2964 = vst [vmem:[#allocation3 + $0x38] sm:$0xff] %v2916
      %v2965 = vld [vmem:[#allocation3 + $0x40] sm:$0x11]
      %v2966 = vsel %vm364, %v2917, %v2965
      %2967 = vst [vmem:[#allocation3 + $0x40] sm:$0x11] %v2966
      %v2968 = vld [vmem:[#allocation3 + $0x48] sm:$0xff]
      %v2969 = vsel %vm584, %v2924, %v2968
      %2970 = vst [vmem:[#allocation3 + $0x48] sm:$0xff] %v2969
      %2971 = vst [vmem:[#allocation3 + $0x50] sm:$0xff] %v2933
      %v2972 = vld [vmem:[#allocation3 + $0x58] sm:$0x11]
      %v2973 = vsel %vm364, %v2934, %v2972
      %2974 = vst [vmem:[#allocation3 + $0x58] sm:$0x11] %v2973
      %v2975 = vld [vmem:[#allocation3] sm:$0xff]
      %v2976 = vld [vmem:[#allocation3 + $0x8] sm:$0xff]
      %v2977 = vld [vmem:[#allocation3 + $0x18] sm:$0xff]
      %v2978 = vld [vmem:[#allocation3 + $0x20] sm:$0xff]
      %v2979 = vld [vmem:[#allocation3 + $0x30] sm:$0xff]
      %v2980 = vld [vmem:[#allocation3 + $0x38] sm:$0xff]
      %v2981 = vld [vmem:[#allocation3 + $0x48] sm:$0xff]
      %v2982 = vld [vmem:[#allocation3 + $0x50] sm:$0xff]
      %v2983 = vld [vmem:[%s3] sm:$0xf]
      %v2984 = vld [vmem:[%s3 + $0x4] sm:$0xf]
      %v2985 = vld [vmem:[%s3 + $0x8] sm:$0xf]
      %v2986 = vld [vmem:[%s3 + $0xc] sm:$0xf]
      %v2987 = vld [vmem:[%s3 + $0x10] sm:$0xf]
      %v2988 = vld [vmem:[%s3 + $0x14] sm:$0xf]
      %v2989 = vld [vmem:[%s3 + $0x18] sm:$0xf]
      %v2990 = vld [vmem:[%s3 + $0x1c] sm:$0xf]
      %v2991 = vld [vmem:[%s3 + $0x20] sm:$0xf]
      %v2992 = vld [vmem:[%s3 + $0x24] sm:$0xf]
      %v2993 = vld [vmem:[%s3 + $0x28] sm:$0xf]
      %v2994 = vld [vmem:[%s3 + $0x2c] sm:$0xf]
      %v2995 = vld [vmem:[%s3 + $0x30] sm:$0xf]
      %v2996 = vld [vmem:[%s3 + $0x34] sm:$0xf]
      %v2997 = vld [vmem:[%s3 + $0x38] sm:$0xf]
      %v2998 = vld [vmem:[%s3 + $0x3c] sm:$0xf]
      %v2999 = vld [vmem:[%s3 + $0x40] sm:$0xf]
      %v3000 = vld [vmem:[%s3 + $0x44] sm:$0xf]
      %v3001 = vld [vmem:[%s3 + $0x48] sm:$0xf]
      %v3002 = vld [vmem:[%s3 + $0x4c] sm:$0xf]
      %v3003 = vld [vmem:[%s3 + $0x50] sm:$0xf]
      %v3004 = vld [vmem:[%s3 + $0x54] sm:$0xf]
      %v3005 = vld [vmem:[%s3 + $0x58] sm:$0xf]
      %v3006 = vld [vmem:[%s3 + $0x5c] sm:$0xf]
      %v3007 = vld [vmem:[%s3 + $0x60] sm:$0xf]
      %v3008 = vld [vmem:[%s3 + $0x64] sm:$0xf]
      %v3009 = vld [vmem:[%s3 + $0x68] sm:$0xf]
      %v3010 = vld [vmem:[%s3 + $0x6c] sm:$0xf]
      %v3011 = vld [vmem:[%s3 + $0x70] sm:$0xf]
      %v3012 = vld [vmem:[%s3 + $0x74] sm:$0xf]
      %v3013 = vld [vmem:[%s3 + $0x78] sm:$0xf]
      %v3014 = vld [vmem:[%s3 + $0x7c] sm:$0xf]
      %v3015 = vld [vmem:[#allocation3 + $0x10] sm:$0x11]
      %v3016 = vld [vmem:[#allocation3 + $0x28] sm:$0x11]
      %v3017 = vld [vmem:[#allocation3 + $0x40] sm:$0x11]
      %v3018 = vld [vmem:[#allocation3 + $0x58] sm:$0x11]
      %v3020 = vshrl.u32 %v2975, 16
      %v3022 = vrot.slane %v3020, 4
      %v3023 = vshll.u32 %v2975, 16
      %v3025 = vrot.slane %v3023, 5
      %v3026 = vor.u32 %v3022, %v3025
      %v3027 = vrot.slane %v3026, 4
      %v3029 = vshll.u32 %v2976, 16
      %v3031 = vrot.slane %v3029, 5
      %v3032 = vsel %vm731, %v3027, %v3031
      %v3033 = vshrl.u32 %v2976, 16
      %v3035 = vrot.slane %v3033, 4
      %v3036 = vor.u32 %v3035, %v3031
      %v3037 = vrot.slane %v3036, 4
      %v3039 = vshll.u32 %v3015, 16
      %v3041 = vrot.slane %v3039, 5
      %v3042 = vsel %vm731, %v3037, %v3041
      %v3044 = vshrl.u32 %v2977, 16
      %v3046 = vrot.slane %v3044, 4
      %v3047 = vshll.u32 %v2977, 16
      %v3049 = vrot.slane %v3047, 5
      %v3050 = vor.u32 %v3046, %v3049
      %v3051 = vrot.slane %v3050, 4
      %v3053 = vshll.u32 %v2978, 16
      %v3055 = vrot.slane %v3053, 5
      %v3056 = vsel %vm731, %v3051, %v3055
      %v3057 = vshrl.u32 %v2978, 16
      %v3059 = vrot.slane %v3057, 4
      %v3060 = vor.u32 %v3059, %v3055
      %v3061 = vrot.slane %v3060, 4
      %v3063 = vshll.u32 %v3016, 16
      %v3065 = vrot.slane %v3063, 5
      %v3066 = vsel %vm731, %v3061, %v3065
      %v3068 = vshrl.u32 %v2979, 16
      %v3070 = vrot.slane %v3068, 4
      %v3071 = vshll.u32 %v2979, 16
      %v3073 = vrot.slane %v3071, 5
      %v3074 = vor.u32 %v3070, %v3073
      %v3075 = vrot.slane %v3074, 4
      %v3077 = vshll.u32 %v2980, 16
      %v3079 = vrot.slane %v3077, 5
      %v3080 = vsel %vm731, %v3075, %v3079
      %v3081 = vshrl.u32 %v2980, 16
      %v3083 = vrot.slane %v3081, 4
      %v3084 = vor.u32 %v3083, %v3079
      %v3085 = vrot.slane %v3084, 4
      %v3087 = vshll.u32 %v3017, 16
      %v3089 = vrot.slane %v3087, 5
      %v3090 = vsel %vm731, %v3085, %v3089
      %v3092 = vshrl.u32 %v2981, 16
      %v3094 = vrot.slane %v3092, 4
      %v3095 = vshll.u32 %v2981, 16
      %v3097 = vrot.slane %v3095, 5
      %v3098 = vor.u32 %v3094, %v3097
      %v3099 = vrot.slane %v3098, 4
      %v3101 = vshll.u32 %v2982, 16
      %v3103 = vrot.slane %v3101, 5
      %v3104 = vsel %vm731, %v3099, %v3103
      %v3105 = vshrl.u32 %v2982, 16
      %v3107 = vrot.slane %v3105, 4
      %v3108 = vor.u32 %v3107, %v3103
      %v3109 = vrot.slane %v3108, 4
      %v3111 = vshll.u32 %v3018, 16
      %v3113 = vrot.slane %v3111, 5
      %v3114 = vsel %vm731, %v3109, %v3113
      %s3115 = scalar_lea.vmem %s3, 128
      %v3116 = vld [vmem:[%s3115] sm:$0xf]
      %v3117 = vld [vmem:[%s3115 + $0x4] sm:$0xf]
      %v3118 = vld [vmem:[%s3115 + $0x8] sm:$0xf]
      %v3119 = vld [vmem:[%s3115 + $0xc] sm:$0xf]
      %v3120 = vld [vmem:[%s3115 + $0x10] sm:$0xf]
      %v3121 = vld [vmem:[%s3115 + $0x14] sm:$0xf]
      %v3122 = vld [vmem:[%s3115 + $0x18] sm:$0xf]
      %v3123 = vld [vmem:[%s3115 + $0x1c] sm:$0xf]
      %v3124 = vld [vmem:[%s3115 + $0x20] sm:$0xf]
      %v3125 = vld [vmem:[%s3115 + $0x24] sm:$0xf]
      %v3126 = vld [vmem:[%s3115 + $0x28] sm:$0xf]
      %v3127 = vld [vmem:[%s3115 + $0x2c] sm:$0xf]
      %v3128 = vld [vmem:[%s3115 + $0x30] sm:$0xf]
      %v3129 = vld [vmem:[%s3115 + $0x34] sm:$0xf]
      %v3130 = vld [vmem:[%s3115 + $0x38] sm:$0xf]
      %v3131 = vld [vmem:[%s3115 + $0x3c] sm:$0xf]
      %v3132 = vld [vmem:[%s3115 + $0x40] sm:$0xf]
      %v3133 = vld [vmem:[%s3115 + $0x44] sm:$0xf]
      %v3134 = vld [vmem:[%s3115 + $0x48] sm:$0xf]
      %v3135 = vld [vmem:[%s3115 + $0x4c] sm:$0xf]
      %v3136 = vld [vmem:[%s3115 + $0x50] sm:$0xf]
      %v3137 = vld [vmem:[%s3115 + $0x54] sm:$0xf]
      %v3138 = vld [vmem:[%s3115 + $0x58] sm:$0xf]
      %v3139 = vld [vmem:[%s3115 + $0x5c] sm:$0xf]
      %v3140 = vld [vmem:[%s3115 + $0x60] sm:$0xf]
      %v3141 = vld [vmem:[%s3115 + $0x64] sm:$0xf]
      %v3142 = vld [vmem:[%s3115 + $0x68] sm:$0xf]
      %v3143 = vld [vmem:[%s3115 + $0x6c] sm:$0xf]
      %v3144 = vld [vmem:[%s3115 + $0x70] sm:$0xf]
      %v3145 = vld [vmem:[%s3115 + $0x74] sm:$0xf]
      %v3146 = vld [vmem:[%s3115 + $0x78] sm:$0xf]
      %v3147 = vld [vmem:[%s3115 + $0x7c] sm:$0xf]
      %v3148 = vunpack.c.l.b16 %v3032
      %v3149 = vunpack.c.h.b16 %v3032
      %v3150 = vunpack.c.l.b16 %v3042
      %v3151 = vunpack.c.h.b16 %v3042
      %v3152 = vunpack.c.l.b16 %v3056
      %v3153 = vunpack.c.h.b16 %v3056
      %v3154 = vunpack.c.l.b16 %v3066
      %v3155 = vunpack.c.h.b16 %v3066
      %v3156 = vunpack.c.l.b16 %v3080
      %v3157 = vunpack.c.h.b16 %v3080
      %v3158 = vunpack.c.l.b16 %v3090
      %v3159 = vunpack.c.h.b16 %v3090
      %v3160 = vunpack.c.l.b16 %v3104
      %v3161 = vunpack.c.h.b16 %v3104
      %v3162 = vunpack.c.l.b16 %v3114
      %v3163 = vunpack.c.h.b16 %v3114
      %v3164 = vpack.c.b16 %v3150, %v3148
      %v3165 = vpack.c.b16 %v3151, %v3149
      %v3166 = vpack.c.b16 %v3154, %v3152
      %v3167 = vpack.c.b16 %v3155, %v3153
      %v3168 = vpack.c.b16 %v3158, %v3156
      %v3169 = vpack.c.b16 %v3159, %v3157
      %v3170 = vpack.c.b16 %v3162, %v3160
      %v3171 = vpack.c.b16 %v3163, %v3161
      %v3212 = vunpack.c.l.b16 %v3116
      %v3213 = vunpack.c.l.b16 %v3117
      %v3214 = vunpack.c.l.b16 %v3118
      %v3215 = vunpack.c.l.b16 %v3119
      %v3216 = vunpack.c.l.b16 %v3120
      %v3217 = vunpack.c.l.b16 %v3121
      %v3218 = vunpack.c.l.b16 %v3122
      %v3219 = vunpack.c.l.b16 %v3123
      %v3220 = vunpack.c.l.b16 %v3124
      %v3221 = vunpack.c.l.b16 %v3125
      %v3222 = vunpack.c.l.b16 %v3126
      %v3223 = vunpack.c.l.b16 %v3127
      %v3224 = vunpack.c.l.b16 %v3128
      %v3225 = vunpack.c.l.b16 %v3129
      %v3226 = vunpack.c.l.b16 %v3130
      %v3227 = vunpack.c.l.b16 %v3131
      %v3228 = vunpack.c.l.b16 %v3132
      %v3229 = vunpack.c.l.b16 %v3133
      %v3230 = vunpack.c.l.b16 %v3134
      %v3231 = vunpack.c.l.b16 %v3135
      %v3232 = vunpack.c.l.b16 %v3136
      %v3233 = vunpack.c.l.b16 %v3137
      %v3234 = vunpack.c.l.b16 %v3138
      %v3235 = vunpack.c.l.b16 %v3139
      %v3236 = vunpack.c.l.b16 %v3140
      %v3237 = vunpack.c.l.b16 %v3141
      %v3238 = vunpack.c.l.b16 %v3142
      %v3239 = vunpack.c.l.b16 %v3143
      %v3240 = vunpack.c.l.b16 %v3144
      %v3241 = vunpack.c.l.b16 %v3145
      %v3242 = vunpack.c.l.b16 %v3146
      %v3243 = vunpack.c.l.b16 %v3147
      %v3244 = vpack.c.b16 %v3213, %v3212
      %v3245 = vpack.c.b16 %v3215, %v3214
      %v3246 = vpack.c.b16 %v3217, %v3216
      %v3247 = vpack.c.b16 %v3219, %v3218
      %v3248 = vpack.c.b16 %v3221, %v3220
      %v3249 = vpack.c.b16 %v3223, %v3222
      %v3250 = vpack.c.b16 %v3225, %v3224
      %v3251 = vpack.c.b16 %v3227, %v3226
      %v3252 = vpack.c.b16 %v3229, %v3228
      %v3253 = vpack.c.b16 %v3231, %v3230
      %v3254 = vpack.c.b16 %v3233, %v3232
      %v3255 = vpack.c.b16 %v3235, %v3234
      %v3256 = vpack.c.b16 %v3237, %v3236
      %v3257 = vpack.c.b16 %v3239, %v3238
      %v3258 = vpack.c.b16 %v3241, %v3240
      %v3259 = vpack.c.b16 %v3243, %v3242
      %3276 = vmatprep.subr.bf16.mxu0 0
      %3277 = vmatpush1.bf16.msra.mxu0 %v3244
      %3278 = vmatprep.subr.bf16.mxu0 0
      %3279 = vmatpush1.bf16.msra.mxu0 %v3245
      %3280 = vmatprep.subr.bf16.mxu0 0
      %3281 = vmatpush1.bf16.msra.mxu0 %v3246
      %3282 = vmatprep.subr.bf16.mxu0 0
      %3283 = vmatpush1.bf16.msra.mxu0 %v3247
      %3284 = vmatprep.subr.bf16.mxu0 0
      %3285 = vmatpush1.bf16.msra.mxu0 %v3248
      %3286 = vmatprep.subr.bf16.mxu0 0
      %3287 = vmatpush1.bf16.msra.mxu0 %v3249
      %3288 = vmatprep.subr.bf16.mxu0 0
      %3289 = vmatpush1.bf16.msra.mxu0 %v3250
      %3290 = vmatprep.subr.bf16.mxu0 0
      %3291 = vmatpush1.bf16.msra.mxu0 %v3251
      %3292 = vmatprep.subr.bf16.mxu0 0
      %3293 = vmatpush1.bf16.msra.mxu0 %v3252
      %3294 = vmatprep.subr.bf16.mxu0 0
      %3295 = vmatpush1.bf16.msra.mxu0 %v3253
      %3296 = vmatprep.subr.bf16.mxu0 0
      %3297 = vmatpush1.bf16.msra.mxu0 %v3254
      %3298 = vmatprep.subr.bf16.mxu0 0
      %3299 = vmatpush1.bf16.msra.mxu0 %v3255
      %3300 = vmatprep.subr.bf16.mxu0 0
      %3301 = vmatpush1.bf16.msra.mxu0 %v3256
      %3302 = vmatprep.subr.bf16.mxu0 0
      %3303 = vmatpush1.bf16.msra.mxu0 %v3257
      %3304 = vmatprep.subr.bf16.mxu0 0
      %3305 = vmatpush1.bf16.msra.mxu0 %v3258
      %3306 = vmatprep.subr.bf16.mxu0 0
      %3307 = vmatpush1.bf16.msra.mxu0 %v3259
      %3308 = vmatprep.mubr.bf16.mxu0 %v3165
      %3309 = vmatmul.mubr.bf16.gmra.mrb[0].mxu0 %v3164
      %v3310 = vpop.f32.mrb[0].mxu0
      %v3311 = vadd.f32 0.0, %v3310
      %v3312 = vpop.f32.mrb[0].mxu0
      %v3313 = vpop.f32.mrb[0].mxu0
      %v3314 = vadd.f32 0.0, %v3313
      %v3315 = vpop.f32.mrb[0].mxu0
      %3316 = vmatprep.mubr.bf16.mxu0 %v3167
      %3317 = vmatmul.mubr.bf16.gmra.mrb[0].mxu0 %v3166
      %v3318 = vpop.f32.mrb[0].mxu0
      %v3319 = vadd.f32 0.0, %v3318
      %v3320 = vpop.f32.mrb[0].mxu0
      %v3321 = vpop.f32.mrb[0].mxu0
      %v3322 = vadd.f32 0.0, %v3321
      %v3323 = vpop.f32.mrb[0].mxu0
      %3324 = vmatprep.mubr.bf16.mxu0 %v3169
      %3325 = vmatmul.mubr.bf16.gmra.mrb[0].mxu0 %v3168
      %v3326 = vpop.f32.mrb[0].mxu0
      %v3327 = vadd.f32 0.0, %v3326
      %v3328 = vpop.f32.mrb[0].mxu0
      %v3329 = vpop.f32.mrb[0].mxu0
      %v3330 = vadd.f32 0.0, %v3329
      %v3331 = vpop.f32.mrb[0].mxu0
      %3332 = vmatprep.mubr.bf16.mxu0 %v3171
      %3333 = vmatmul.mubr.bf16.gmra.mrb[0].mxu0 %v3170
      %v3334 = vpop.f32.mrb[0].mxu0
      %v3335 = vadd.f32 0.0, %v3334
      %v3336 = vpop.f32.mrb[0].mxu0
      %v3337 = vpop.f32.mrb[0].mxu0
      %v3338 = vadd.f32 0.0, %v3337
      %v3339 = vpop.f32.mrb[0].mxu0
      %3340 = vdwg.mxu0
      %v3349 = vunpack.c.l.b16 %v2975
      %v3350 = vunpack.c.h.b16 %v2975
      %v3351 = vunpack.c.l.b16 %v2976
      %v3352 = vunpack.c.h.b16 %v2976
      %v3353 = vunpack.c.l.b16 %v2977
      %v3354 = vunpack.c.h.b16 %v2977
      %v3355 = vunpack.c.l.b16 %v2978
      %v3356 = vunpack.c.h.b16 %v2978
      %v3357 = vunpack.c.l.b16 %v2979
      %v3358 = vunpack.c.h.b16 %v2979
      %v3359 = vunpack.c.l.b16 %v2980
      %v3360 = vunpack.c.h.b16 %v2980
      %v3361 = vunpack.c.l.b16 %v2981
      %v3362 = vunpack.c.h.b16 %v2981
      %v3363 = vunpack.c.l.b16 %v2982
      %v3364 = vunpack.c.h.b16 %v2982
      %v3365 = vpack.c.b16 %v3351, %v3349
      %v3366 = vpack.c.b16 %v3352, %v3350
      %v3367 = vpack.c.b16 %v3355, %v3353
      %v3368 = vpack.c.b16 %v3356, %v3354
      %v3369 = vpack.c.b16 %v3359, %v3357
      %v3370 = vpack.c.b16 %v3360, %v3358
      %v3371 = vpack.c.b16 %v3363, %v3361
      %v3372 = vpack.c.b16 %v3364, %v3362
      %v3413 = vunpack.c.l.b16 %v2983
      %v3414 = vunpack.c.l.b16 %v2984
      %v3415 = vunpack.c.l.b16 %v2985
      %v3416 = vunpack.c.l.b16 %v2986
      %v3417 = vunpack.c.l.b16 %v2987
      %v3418 = vunpack.c.l.b16 %v2988
      %v3419 = vunpack.c.l.b16 %v2989
      %v3420 = vunpack.c.l.b16 %v2990
      %v3421 = vunpack.c.l.b16 %v2991
      %v3422 = vunpack.c.l.b16 %v2992
      %v3423 = vunpack.c.l.b16 %v2993
      %v3424 = vunpack.c.l.b16 %v2994
      %v3425 = vunpack.c.l.b16 %v2995
      %v3426 = vunpack.c.l.b16 %v2996
      %v3427 = vunpack.c.l.b16 %v2997
      %v3428 = vunpack.c.l.b16 %v2998
      %v3429 = vunpack.c.l.b16 %v2999
      %v3430 = vunpack.c.l.b16 %v3000
      %v3431 = vunpack.c.l.b16 %v3001
      %v3432 = vunpack.c.l.b16 %v3002
      %v3433 = vunpack.c.l.b16 %v3003
      %v3434 = vunpack.c.l.b16 %v3004
      %v3435 = vunpack.c.l.b16 %v3005
      %v3436 = vunpack.c.l.b16 %v3006
      %v3437 = vunpack.c.l.b16 %v3007
      %v3438 = vunpack.c.l.b16 %v3008
      %v3439 = vunpack.c.l.b16 %v3009
      %v3440 = vunpack.c.l.b16 %v3010
      %v3441 = vunpack.c.l.b16 %v3011
      %v3442 = vunpack.c.l.b16 %v3012
      %v3443 = vunpack.c.l.b16 %v3013
      %v3444 = vunpack.c.l.b16 %v3014
      %v3445 = vpack.c.b16 %v3414, %v3413
      %v3446 = vpack.c.b16 %v3416, %v3415
      %v3447 = vpack.c.b16 %v3418, %v3417
      %v3448 = vpack.c.b16 %v3420, %v3419
      %v3449 = vpack.c.b16 %v3422, %v3421
      %v3450 = vpack.c.b16 %v3424, %v3423
      %v3451 = vpack.c.b16 %v3426, %v3425
      %v3452 = vpack.c.b16 %v3428, %v3427
      %v3453 = vpack.c.b16 %v3430, %v3429
      %v3454 = vpack.c.b16 %v3432, %v3431
      %v3455 = vpack.c.b16 %v3434, %v3433
      %v3456 = vpack.c.b16 %v3436, %v3435
      %v3457 = vpack.c.b16 %v3438, %v3437
      %v3458 = vpack.c.b16 %v3440, %v3439
      %v3459 = vpack.c.b16 %v3442, %v3441
      %v3460 = vpack.c.b16 %v3444, %v3443
      %3477 = vmatprep.subr.bf16.mxu0 0
      %3478 = vmatpush1.bf16.msra.mxu0 %v3445
      %3479 = vmatprep.subr.bf16.mxu0 0
      %3480 = vmatpush1.bf16.msra.mxu0 %v3446
      %3481 = vmatprep.subr.bf16.mxu0 0
      %3482 = vmatpush1.bf16.msra.mxu0 %v3447
      %3483 = vmatprep.subr.bf16.mxu0 0
      %3484 = vmatpush1.bf16.msra.mxu0 %v3448
      %3485 = vmatprep.subr.bf16.mxu0 0
      %3486 = vmatpush1.bf16.msra.mxu0 %v3449
      %3487 = vmatprep.subr.bf16.mxu0 0
      %3488 = vmatpush1.bf16.msra.mxu0 %v3450
      %3489 = vmatprep.subr.bf16.mxu0 0
      %3490 = vmatpush1.bf16.msra.mxu0 %v3451
      %3491 = vmatprep.subr.bf16.mxu0 0
      %3492 = vmatpush1.bf16.msra.mxu0 %v3452
      %3493 = vmatprep.subr.bf16.mxu0 0
      %3494 = vmatpush1.bf16.msra.mxu0 %v3453
      %3495 = vmatprep.subr.bf16.mxu0 0
      %3496 = vmatpush1.bf16.msra.mxu0 %v3454
      %3497 = vmatprep.subr.bf16.mxu0 0
      %3498 = vmatpush1.bf16.msra.mxu0 %v3455
      %3499 = vmatprep.subr.bf16.mxu0 0
      %3500 = vmatpush1.bf16.msra.mxu0 %v3456
      %3501 = vmatprep.subr.bf16.mxu0 0
      %3502 = vmatpush1.bf16.msra.mxu0 %v3457
      %3503 = vmatprep.subr.bf16.mxu0 0
      %3504 = vmatpush1.bf16.msra.mxu0 %v3458
      %3505 = vmatprep.subr.bf16.mxu0 0
      %3506 = vmatpush1.bf16.msra.mxu0 %v3459
      %3507 = vmatprep.subr.bf16.mxu0 0
      %3508 = vmatpush1.bf16.msra.mxu0 %v3460
      %3509 = vmatprep.mubr.bf16.mxu0 %v3366
      %3510 = vmatmul.mubr.bf16.gmra.mrb[0].mxu0 %v3365
      %v3511 = vpop.f32.mrb[0].mxu0
      %v3512 = vadd.f32 %v3311, %v3511
      %v3513 = vpop.f32.mrb[0].mxu0
      %v3514 = vpop.f32.mrb[0].mxu0
      %v3515 = vadd.f32 %v3314, %v3514
      %v3516 = vpop.f32.mrb[0].mxu0
      %3517 = vmatprep.mubr.bf16.mxu0 %v3368
      %3518 = vmatmul.mubr.bf16.gmra.mrb[0].mxu0 %v3367
      %v3519 = vpop.f32.mrb[0].mxu0
      %v3520 = vadd.f32 %v3319, %v3519
      %v3521 = vpop.f32.mrb[0].mxu0
      %v3522 = vpop.f32.mrb[0].mxu0
      %v3523 = vadd.f32 %v3322, %v3522
      %v3524 = vpop.f32.mrb[0].mxu0
      %3525 = vmatprep.mubr.bf16.mxu0 %v3370
      %3526 = vmatmul.mubr.bf16.gmra.mrb[0].mxu0 %v3369
      %v3527 = vpop.f32.mrb[0].mxu0
      %v3528 = vadd.f32 %v3327, %v3527
      %v3529 = vpop.f32.mrb[0].mxu0
      %v3530 = vpop.f32.mrb[0].mxu0
      %v3531 = vadd.f32 %v3330, %v3530
      %v3532 = vpop.f32.mrb[0].mxu0
      %3533 = vmatprep.mubr.bf16.mxu0 %v3372
      %3534 = vmatmul.mubr.bf16.gmra.mrb[0].mxu0 %v3371
      %v3535 = vpop.f32.mrb[0].mxu0
      %v3536 = vadd.f32 %v3335, %v3535
      %v3537 = vpop.f32.mrb[0].mxu0
      %v3538 = vpop.f32.mrb[0].mxu0
      %v3539 = vadd.f32 %v3338, %v3538
      %v3540 = vpop.f32.mrb[0].mxu0
      %3541 = vdwg.mxu0
      %v3542 = vld [vmem:[#allocation3] sm:$0xee]
      %v3543 = vld [vmem:[#allocation3 + $0x18] sm:$0xee]
      %v3544 = vld [vmem:[#allocation3 + $0x30] sm:$0xee]
      %v3545 = vld [vmem:[#allocation3 + $0x48] sm:$0xee]
      %v3554 = vrot.slane %v3542, 5
      %v3555 = vrot.slane %v3554, 4
      %v3556 = vrot.slane %v2976, 5
      %v3557 = vsel %vm2091, %v3555, %v3556
      %v3558 = vrot.slane %v3556, 4
      %v3559 = vrot.slane %v3015, 5
      %v3560 = vsel %vm2091, %v3558, %v3559
      %v3561 = vrot.slane %v3543, 5
      %v3562 = vrot.slane %v3561, 4
      %v3563 = vrot.slane %v2978, 5
      %v3564 = vsel %vm2091, %v3562, %v3563
      %v3565 = vrot.slane %v3563, 4
      %v3566 = vrot.slane %v3016, 5
      %v3567 = vsel %vm2091, %v3565, %v3566
      %v3568 = vrot.slane %v3544, 5
      %v3569 = vrot.slane %v3568, 4
      %v3570 = vrot.slane %v2980, 5
      %v3571 = vsel %vm2091, %v3569, %v3570
      %v3572 = vrot.slane %v3570, 4
      %v3573 = vrot.slane %v3017, 5
      %v3574 = vsel %vm2091, %v3572, %v3573
      %v3575 = vrot.slane %v3545, 5
      %v3576 = vrot.slane %v3575, 4
      %v3577 = vrot.slane %v2982, 5
      %v3578 = vsel %vm2091, %v3576, %v3577
      %v3579 = vrot.slane %v3577, 4
      %v3580 = vrot.slane %v3018, 5
      %v3581 = vsel %vm2091, %v3579, %v3580
      %s3582 = scalar_lea.vmem %s3, 256
      %v3583 = vld [vmem:[%s3582] sm:$0xf]
      %v3584 = vld [vmem:[%s3582 + $0x4] sm:$0xf]
      %v3585 = vld [vmem:[%s3582 + $0x8] sm:$0xf]
      %v3586 = vld [vmem:[%s3582 + $0xc] sm:$0xf]
      %v3587 = vld [vmem:[%s3582 + $0x10] sm:$0xf]
      %v3588 = vld [vmem:[%s3582 + $0x14] sm:$0xf]
      %v3589 = vld [vmem:[%s3582 + $0x18] sm:$0xf]
      %v3590 = vld [vmem:[%s3582 + $0x1c] sm:$0xf]
      %v3591 = vld [vmem:[%s3582 + $0x20] sm:$0xf]
      %v3592 = vld [vmem:[%s3582 + $0x24] sm:$0xf]
      %v3593 = vld [vmem:[%s3582 + $0x28] sm:$0xf]
      %v3594 = vld [vmem:[%s3582 + $0x2c] sm:$0xf]
      %v3595 = vld [vmem:[%s3582 + $0x30] sm:$0xf]
      %v3596 = vld [vmem:[%s3582 + $0x34] sm:$0xf]
      %v3597 = vld [vmem:[%s3582 + $0x38] sm:$0xf]
      %v3598 = vld [vmem:[%s3582 + $0x3c] sm:$0xf]
      %v3599 = vld [vmem:[%s3582 + $0x40] sm:$0xf]
      %v3600 = vld [vmem:[%s3582 + $0x44] sm:$0xf]
      %v3601 = vld [vmem:[%s3582 + $0x48] sm:$0xf]
      %v3602 = vld [vmem:[%s3582 + $0x4c] sm:$0xf]
      %v3603 = vld [vmem:[%s3582 + $0x50] sm:$0xf]
      %v3604 = vld [vmem:[%s3582 + $0x54] sm:$0xf]
      %v3605 = vld [vmem:[%s3582 + $0x58] sm:$0xf]
      %v3606 = vld [vmem:[%s3582 + $0x5c] sm:$0xf]
      %v3607 = vld [vmem:[%s3582 + $0x60] sm:$0xf]
      %v3608 = vld [vmem:[%s3582 + $0x64] sm:$0xf]
      %v3609 = vld [vmem:[%s3582 + $0x68] sm:$0xf]
      %v3610 = vld [vmem:[%s3582 + $0x6c] sm:$0xf]
      %v3611 = vld [vmem:[%s3582 + $0x70] sm:$0xf]
      %v3612 = vld [vmem:[%s3582 + $0x74] sm:$0xf]
      %v3613 = vld [vmem:[%s3582 + $0x78] sm:$0xf]
      %v3614 = vld [vmem:[%s3582 + $0x7c] sm:$0xf]
      %v3615 = vunpack.c.l.b16 %v3557
      %v3616 = vunpack.c.h.b16 %v3557
      %v3617 = vunpack.c.l.b16 %v3560
      %v3618 = vunpack.c.h.b16 %v3560
      %v3619 = vunpack.c.l.b16 %v3564
      %v3620 = vunpack.c.h.b16 %v3564
      %v3621 = vunpack.c.l.b16 %v3567
      %v3622 = vunpack.c.h.b16 %v3567
      %v3623 = vunpack.c.l.b16 %v3571
      %v3624 = vunpack.c.h.b16 %v3571
      %v3625 = vunpack.c.l.b16 %v3574
      %v3626 = vunpack.c.h.b16 %v3574
      %v3627 = vunpack.c.l.b16 %v3578
      %v3628 = vunpack.c.h.b16 %v3578
      %v3629 = vunpack.c.l.b16 %v3581
      %v3630 = vunpack.c.h.b16 %v3581
      %v3631 = vpack.c.b16 %v3617, %v3615
      %v3632 = vpack.c.b16 %v3618, %v3616
      %v3633 = vpack.c.b16 %v3621, %v3619
      %v3634 = vpack.c.b16 %v3622, %v3620
      %v3635 = vpack.c.b16 %v3625, %v3623
      %v3636 = vpack.c.b16 %v3626, %v3624
      %v3637 = vpack.c.b16 %v3629, %v3627
      %v3638 = vpack.c.b16 %v3630, %v3628
      %v3679 = vunpack.c.l.b16 %v3583
      %v3680 = vunpack.c.l.b16 %v3584
      %v3681 = vunpack.c.l.b16 %v3585
      %v3682 = vunpack.c.l.b16 %v3586
      %v3683 = vunpack.c.l.b16 %v3587
      %v3684 = vunpack.c.l.b16 %v3588
      %v3685 = vunpack.c.l.b16 %v3589
      %v3686 = vunpack.c.l.b16 %v3590
      %v3687 = vunpack.c.l.b16 %v3591
      %v3688 = vunpack.c.l.b16 %v3592
      %v3689 = vunpack.c.l.b16 %v3593
      %v3690 = vunpack.c.l.b16 %v3594
      %v3691 = vunpack.c.l.b16 %v3595
      %v3692 = vunpack.c.l.b16 %v3596
      %v3693 = vunpack.c.l.b16 %v3597
      %v3694 = vunpack.c.l.b16 %v3598
      %v3695 = vunpack.c.l.b16 %v3599
      %v3696 = vunpack.c.l.b16 %v3600
      %v3697 = vunpack.c.l.b16 %v3601
      %v3698 = vunpack.c.l.b16 %v3602
      %v3699 = vunpack.c.l.b16 %v3603
      %v3700 = vunpack.c.l.b16 %v3604
      %v3701 = vunpack.c.l.b16 %v3605
      %v3702 = vunpack.c.l.b16 %v3606
      %v3703 = vunpack.c.l.b16 %v3607
      %v3704 = vunpack.c.l.b16 %v3608
      %v3705 = vunpack.c.l.b16 %v3609
      %v3706 = vunpack.c.l.b16 %v3610
      %v3707 = vunpack.c.l.b16 %v3611
      %v3708 = vunpack.c.l.b16 %v3612
      %v3709 = vunpack.c.l.b16 %v3613
      %v3710 = vunpack.c.l.b16 %v3614
      %v3711 = vpack.c.b16 %v3680, %v3679
      %v3712 = vpack.c.b16 %v3682, %v3681
      %v3713 = vpack.c.b16 %v3684, %v3683
      %v3714 = vpack.c.b16 %v3686, %v3685
      %v3715 = vpack.c.b16 %v3688, %v3687
      %v3716 = vpack.c.b16 %v3690, %v3689
      %v3717 = vpack.c.b16 %v3692, %v3691
      %v3718 = vpack.c.b16 %v3694, %v3693
      %v3719 = vpack.c.b16 %v3696, %v3695
      %v3720 = vpack.c.b16 %v3698, %v3697
      %v3721 = vpack.c.b16 %v3700, %v3699
      %v3722 = vpack.c.b16 %v3702, %v3701
      %v3723 = vpack.c.b16 %v3704, %v3703
      %v3724 = vpack.c.b16 %v3706, %v3705
      %v3725 = vpack.c.b16 %v3708, %v3707
      %v3726 = vpack.c.b16 %v3710, %v3709
      %3743 = vmatprep.subr.bf16.mxu0 0
      %3744 = vmatpush1.bf16.msra.mxu0 %v3711
      %3745 = vmatprep.subr.bf16.mxu0 0
      %3746 = vmatpush1.bf16.msra.mxu0 %v3712
      %3747 = vmatprep.subr.bf16.mxu0 0
      %3748 = vmatpush1.bf16.msra.mxu0 %v3713
      %3749 = vmatprep.subr.bf16.mxu0 0
      %3750 = vmatpush1.bf16.msra.mxu0 %v3714
      %3751 = vmatprep.subr.bf16.mxu0 0
      %3752 = vmatpush1.bf16.msra.mxu0 %v3715
      %3753 = vmatprep.subr.bf16.mxu0 0
      %3754 = vmatpush1.bf16.msra.mxu0 %v3716
      %3755 = vmatprep.subr.bf16.mxu0 0
      %3756 = vmatpush1.bf16.msra.mxu0 %v3717
      %3757 = vmatprep.subr.bf16.mxu0 0
      %3758 = vmatpush1.bf16.msra.mxu0 %v3718
      %3759 = vmatprep.subr.bf16.mxu0 0
      %3760 = vmatpush1.bf16.msra.mxu0 %v3719
      %3761 = vmatprep.subr.bf16.mxu0 0
      %3762 = vmatpush1.bf16.msra.mxu0 %v3720
      %3763 = vmatprep.subr.bf16.mxu0 0
      %3764 = vmatpush1.bf16.msra.mxu0 %v3721
      %3765 = vmatprep.subr.bf16.mxu0 0
      %3766 = vmatpush1.bf16.msra.mxu0 %v3722
      %3767 = vmatprep.subr.bf16.mxu0 0
      %3768 = vmatpush1.bf16.msra.mxu0 %v3723
      %3769 = vmatprep.subr.bf16.mxu0 0
      %3770 = vmatpush1.bf16.msra.mxu0 %v3724
      %3771 = vmatprep.subr.bf16.mxu0 0
      %3772 = vmatpush1.bf16.msra.mxu0 %v3725
      %3773 = vmatprep.subr.bf16.mxu0 0
      %3774 = vmatpush1.bf16.msra.mxu0 %v3726
      %3775 = vmatprep.mubr.bf16.mxu0 %v3632
      %3776 = vmatmul.mubr.bf16.gmra.mrb[0].mxu0 %v3631
      %v3777 = vpop.f32.mrb[0].mxu0
      %v3778 = vadd.f32 0.0, %v3777
      %v3779 = vpop.f32.mrb[0].mxu0
      %v3780 = vpop.f32.mrb[0].mxu0
      %v3781 = vadd.f32 0.0, %v3780
      %v3782 = vpop.f32.mrb[0].mxu0
      %3783 = vmatprep.mubr.bf16.mxu0 %v3634
      %3784 = vmatmul.mubr.bf16.gmra.mrb[0].mxu0 %v3633
      %v3785 = vpop.f32.mrb[0].mxu0
      %v3786 = vadd.f32 0.0, %v3785
      %v3787 = vpop.f32.mrb[0].mxu0
      %v3788 = vpop.f32.mrb[0].mxu0
      %v3789 = vadd.f32 0.0, %v3788
      %v3790 = vpop.f32.mrb[0].mxu0
      %3791 = vmatprep.mubr.bf16.mxu0 %v3636
      %3792 = vmatmul.mubr.bf16.gmra.mrb[0].mxu0 %v3635
      %v3793 = vpop.f32.mrb[0].mxu0
      %v3794 = vadd.f32 0.0, %v3793
      %v3795 = vpop.f32.mrb[0].mxu0
      %v3796 = vpop.f32.mrb[0].mxu0
      %v3797 = vadd.f32 0.0, %v3796
      %v3798 = vpop.f32.mrb[0].mxu0
      %3799 = vmatprep.mubr.bf16.mxu0 %v3638
      %3800 = vmatmul.mubr.bf16.gmra.mrb[0].mxu0 %v3637
      %v3801 = vpop.f32.mrb[0].mxu0
      %v3802 = vadd.f32 0.0, %v3801
      %v3803 = vpop.f32.mrb[0].mxu0
      %v3804 = vpop.f32.mrb[0].mxu0
      %v3805 = vadd.f32 0.0, %v3804
      %v3806 = vpop.f32.mrb[0].mxu0
      %3807 = vdwg.mxu0
      %v3808 = vadd.f32 %v3512, %v3778
      %v3809 = vadd.f32 %v3515, %v3781
      %v3810 = vadd.f32 %v3520, %v3786
      %v3811 = vadd.f32 %v3523, %v3789
      %v3812 = vadd.f32 %v3528, %v3794
      %v3813 = vadd.f32 %v3531, %v3797
      %v3814 = vadd.f32 %v3536, %v3802
      %v3815 = vadd.f32 %v3539, %v3805
      %v3816 = vld [vmem:[%s4] sm:$0x1]
      %v3818 = vlaneseq
      %v3819 = vshrl.u32 %v3818, 7
      %v3820 = vsub.s32 0, %v3819
      %v3821 = vrot.slane %v3816, %v3820
      %v3823 = vadd.f32 %v3808, %v3821
      %v3824 = vadd.f32 %v3809, %v3821
      %v3825 = vadd.f32 %v3810, %v3821
      %v3826 = vadd.f32 %v3811, %v3821
      %v3827 = vadd.f32 %v3812, %v3821
      %v3828 = vadd.f32 %v3813, %v3821
      %v3829 = vadd.f32 %v3814, %v3821
      %v3830 = vadd.f32 %v3815, %v3821
      %v3831 = vmax.f32 %v3823, 0.0
      %v3832 = vmax.f32 %v3824, 0.0
      %v3833 = vmax.f32 %v3825, 0.0
      %v3834 = vmax.f32 %v3826, 0.0
      %v3835 = vmax.f32 %v3827, 0.0
      %v3836 = vmax.f32 %v3828, 0.0
      %v3837 = vmax.f32 %v3829, 0.0
      %v3838 = vmax.f32 %v3830, 0.0
      %v3839 = vld [vmem:[#allocation4] sm:$0x1]
      %v3840 = vsel %vm360, 0, %v3839
      %3841 = vst [vmem:[#allocation4] sm:$0x1] %v3840
      %v3842 = vld [vmem:[#allocation4 + $0xc] sm:$0x1]
      %v3843 = vsel %vm360, 0, %v3842
      %3844 = vst [vmem:[#allocation4 + $0xc] sm:$0x1] %v3843
      %v3845 = vld [vmem:[#allocation4 + $0x18] sm:$0x1]
      %v3846 = vsel %vm360, 0, %v3845
      %3847 = vst [vmem:[#allocation4 + $0x18] sm:$0x1] %v3846
      %v3848 = vld [vmem:[#allocation4 + $0x24] sm:$0x1]
      %v3849 = vsel %vm360, 0, %v3848
      %3850 = vst [vmem:[#allocation4 + $0x24] sm:$0x1] %v3849
      %v3851 = vld [vmem:[#allocation4 + $0x8] sm:$0x1]
      %v3852 = vsel %vm390, 0, %v3851
      %3853 = vst [vmem:[#allocation4 + $0x8] sm:$0x1] %v3852
      %v3854 = vld [vmem:[#allocation4 + $0x14] sm:$0x1]
      %v3855 = vsel %vm390, 0, %v3854
      %3856 = vst [vmem:[#allocation4 + $0x14] sm:$0x1] %v3855
      %v3857 = vld [vmem:[#allocation4 + $0x20] sm:$0x1]
      %v3858 = vsel %vm390, 0, %v3857
      %3859 = vst [vmem:[#allocation4 + $0x20] sm:$0x1] %v3858
      %v3860 = vld [vmem:[#allocation4 + $0x2c] sm:$0x1]
      %v3861 = vsel %vm390, 0, %v3860
      %3862 = vst [vmem:[#allocation4 + $0x2c] sm:$0x1] %v3861
      %v3863 = vpack.c.bf16 %v3832, %v3831
      %v3864 = vpack.c.bf16 %v3834, %v3833
      %v3865 = vpack.c.bf16 %v3836, %v3835
      %v3866 = vpack.c.bf16 %v3838, %v3837
      %v3871 = vunpack.c.l.b16 %v3863
      %v3872 = vunpack.c.h.b16 %v3863
      %v3873 = vunpack.c.l.b16 %v3864
      %v3874 = vunpack.c.h.b16 %v3864
      %v3875 = vunpack.c.l.b16 %v3865
      %v3876 = vunpack.c.h.b16 %v3865
      %v3877 = vunpack.c.l.b16 %v3866
      %v3878 = vunpack.c.h.b16 %v3866
      %v3879 = vpack.c.b16 %v3871, %v3871
      %v3880 = vpack.c.b16 %v3872, %v3872
      %v3881 = vpack.c.b16 %v3873, %v3873
      %v3882 = vpack.c.b16 %v3874, %v3874
      %v3883 = vpack.c.b16 %v3875, %v3875
      %v3884 = vpack.c.b16 %v3876, %v3876
      %v3885 = vpack.c.b16 %v3877, %v3877
      %v3886 = vpack.c.b16 %v3878, %v3878
      %v3888 = vshrl.u32 %v3879, 16
      %v3890 = vrot.slane %v3888, 7
      %v3891 = vshll.u32 %v3879, 16
      %v3893 = vor.u32 %v3890, %v3891
      %v3894 = vrot.slane %v3890, 4
      %v3896 = vshrl.u32 %v3880, 16
      %v3898 = vrot.slane %v3896, 7
      %v3899 = vshll.u32 %v3880, 16
      %v3901 = vor.u32 %v3898, %v3899
      %v3902 = vsel %vm419, %v3894, %v3901
      %v3903 = vrot.slane %v3898, 4
      %v3905 = vshrl.u32 %v3881, 16
      %v3907 = vrot.slane %v3905, 7
      %v3908 = vshll.u32 %v3881, 16
      %v3910 = vor.u32 %v3907, %v3908
      %v3911 = vrot.slane %v3907, 4
      %v3913 = vshrl.u32 %v3882, 16
      %v3915 = vrot.slane %v3913, 7
      %v3916 = vshll.u32 %v3882, 16
      %v3918 = vor.u32 %v3915, %v3916
      %v3919 = vsel %vm419, %v3911, %v3918
      %v3920 = vrot.slane %v3915, 4
      %v3922 = vshrl.u32 %v3883, 16
      %v3924 = vrot.slane %v3922, 7
      %v3925 = vshll.u32 %v3883, 16
      %v3927 = vor.u32 %v3924, %v3925
      %v3928 = vrot.slane %v3924, 4
      %v3930 = vshrl.u32 %v3884, 16
      %v3932 = vrot.slane %v3930, 7
      %v3933 = vshll.u32 %v3884, 16
      %v3935 = vor.u32 %v3932, %v3933
      %v3936 = vsel %vm419, %v3928, %v3935
      %v3937 = vrot.slane %v3932, 4
      %v3939 = vshrl.u32 %v3885, 16
      %v3941 = vrot.slane %v3939, 7
      %v3942 = vshll.u32 %v3885, 16
      %v3944 = vor.u32 %v3941, %v3942
      %v3945 = vrot.slane %v3941, 4
      %v3947 = vshrl.u32 %v3886, 16
      %v3949 = vrot.slane %v3947, 7
      %v3950 = vshll.u32 %v3886, 16
      %v3952 = vor.u32 %v3949, %v3950
      %v3953 = vsel %vm419, %v3945, %v3952
      %v3954 = vrot.slane %v3949, 4
      %v3967 = vld [vmem:[#allocation4] sm:$0xf]
      %v3968 = vsel %vm581, %v3893, %v3967
      %3969 = vst [vmem:[#allocation4] sm:$0xf] %v3968
      %3970 = vst [vmem:[#allocation4 + $0x4] sm:$0xf] %v3902
      %v3971 = vld [vmem:[#allocation4 + $0x8] sm:$0x1]
      %v3972 = vsel %vm360, %v3903, %v3971
      %3973 = vst [vmem:[#allocation4 + $0x8] sm:$0x1] %v3972
      %v3974 = vld [vmem:[#allocation4 + $0xc] sm:$0xf]
      %v3975 = vsel %vm581, %v3910, %v3974
      %3976 = vst [vmem:[#allocation4 + $0xc] sm:$0xf] %v3975
      %3977 = vst [vmem:[#allocation4 + $0x10] sm:$0xf] %v3919
      %v3978 = vld [vmem:[#allocation4 + $0x14] sm:$0x1]
      %v3979 = vsel %vm360, %v3920, %v3978
      %3980 = vst [vmem:[#allocation4 + $0x14] sm:$0x1] %v3979
      %v3981 = vld [vmem:[#allocation4 + $0x18] sm:$0xf]
      %v3982 = vsel %vm581, %v3927, %v3981
      %3983 = vst [vmem:[#allocation4 + $0x18] sm:$0xf] %v3982
      %3984 = vst [vmem:[#allocation4 + $0x1c] sm:$0xf] %v3936
      %v3985 = vld [vmem:[#allocation4 + $0x20] sm:$0x1]
      %v3986 = vsel %vm360, %v3937, %v3985
      %3987 = vst [vmem:[#allocation4 + $0x20] sm:$0x1] %v3986
      %v3988 = vld [vmem:[#allocation4 + $0x24] sm:$0xf]
      %v3989 = vsel %vm581, %v3944, %v3988
      %3990 = vst [vmem:[#allocation4 + $0x24] sm:$0xf] %v3989
      %3991 = vst [vmem:[#allocation4 + $0x28] sm:$0xf] %v3953
      %v3992 = vld [vmem:[#allocation4 + $0x2c] sm:$0x1]
      %v3993 = vsel %vm360, %v3954, %v3992
      %3994 = vst [vmem:[#allocation4 + $0x2c] sm:$0x1] %v3993
      %v3995 = vld [vmem:[#allocation4] sm:$0xf]
      %v3996 = vld [vmem:[#allocation4 + $0x4] sm:$0xf]
      %v3997 = vld [vmem:[#allocation4 + $0xc] sm:$0xf]
      %v3998 = vld [vmem:[#allocation4 + $0x10] sm:$0xf]
      %v3999 = vld [vmem:[#allocation4 + $0x18] sm:$0xf]
      %v4000 = vld [vmem:[#allocation4 + $0x1c] sm:$0xf]
      %v4001 = vld [vmem:[#allocation4 + $0x24] sm:$0xf]
      %v4002 = vld [vmem:[#allocation4 + $0x28] sm:$0xf]
      %v4003 = vld [vmem:[%s5] sm:$0xff]
      %v4004 = vld [vmem:[%s5 + $0x8] sm:$0xff]
      %v4005 = vld [vmem:[%s5 + $0x10] sm:$0xff]
      %v4006 = vld [vmem:[%s5 + $0x18] sm:$0xff]
      %v4007 = vld [vmem:[%s5 + $0x20] sm:$0xff]
      %v4008 = vld [vmem:[%s5 + $0x28] sm:$0xff]
      %v4009 = vld [vmem:[%s5 + $0x30] sm:$0xff]
      %v4010 = vld [vmem:[%s5 + $0x38] sm:$0xff]
      %v4011 = vld [vmem:[%s5 + $0x40] sm:$0xff]
      %v4012 = vld [vmem:[%s5 + $0x48] sm:$0xff]
      %v4013 = vld [vmem:[%s5 + $0x50] sm:$0xff]
      %v4014 = vld [vmem:[%s5 + $0x58] sm:$0xff]
      %v4015 = vld [vmem:[%s5 + $0x60] sm:$0xff]
      %v4016 = vld [vmem:[%s5 + $0x68] sm:$0xff]
      %v4017 = vld [vmem:[%s5 + $0x70] sm:$0xff]
      %v4018 = vld [vmem:[%s5 + $0x78] sm:$0xff]
      %v4019 = vld [vmem:[#allocation4 + $0x8] sm:$0x1]
      %v4020 = vld [vmem:[#allocation4 + $0x14] sm:$0x1]
      %v4021 = vld [vmem:[#allocation4 + $0x20] sm:$0x1]
      %v4022 = vld [vmem:[#allocation4 + $0x2c] sm:$0x1]
      %v4024 = vshrl.u32 %v3995, 16
      %v4026 = vrot.slane %v4024, 4
      %v4027 = vshll.u32 %v3995, 16
      %v4029 = vrot.slane %v4027, 5
      %v4030 = vor.u32 %v4026, %v4029
      %v4031 = vrot.slane %v4030, 4
      %v4033 = vshll.u32 %v3996, 16
      %v4035 = vrot.slane %v4033, 5
      %v4036 = vsel %vm731, %v4031, %v4035
      %v4037 = vshrl.u32 %v3996, 16
      %v4039 = vrot.slane %v4037, 4
      %v4040 = vor.u32 %v4039, %v4035
      %v4041 = vrot.slane %v4040, 4
      %v4043 = vshll.u32 %v4019, 16
      %v4045 = vrot.slane %v4043, 5
      %v4046 = vsel %vm731, %v4041, %v4045
      %v4048 = vshrl.u32 %v3997, 16
      %v4050 = vrot.slane %v4048, 4
      %v4051 = vshll.u32 %v3997, 16
      %v4053 = vrot.slane %v4051, 5
      %v4054 = vor.u32 %v4050, %v4053
      %v4055 = vrot.slane %v4054, 4
      %v4057 = vshll.u32 %v3998, 16
      %v4059 = vrot.slane %v4057, 5
      %v4060 = vsel %vm731, %v4055, %v4059
      %v4061 = vshrl.u32 %v3998, 16
      %v4063 = vrot.slane %v4061, 4
      %v4064 = vor.u32 %v4063, %v4059
      %v4065 = vrot.slane %v4064, 4
      %v4067 = vshll.u32 %v4020, 16
      %v4069 = vrot.slane %v4067, 5
      %v4070 = vsel %vm731, %v4065, %v4069
      %v4072 = vshrl.u32 %v3999, 16
      %v4074 = vrot.slane %v4072, 4
      %v4075 = vshll.u32 %v3999, 16
      %v4077 = vrot.slane %v4075, 5
      %v4078 = vor.u32 %v4074, %v4077
      %v4079 = vrot.slane %v4078, 4
      %v4081 = vshll.u32 %v4000, 16
      %v4083 = vrot.slane %v4081, 5
      %v4084 = vsel %vm731, %v4079, %v4083
      %v4085 = vshrl.u32 %v4000, 16
      %v4087 = vrot.slane %v4085, 4
      %v4088 = vor.u32 %v4087, %v4083
      %v4089 = vrot.slane %v4088, 4
      %v4091 = vshll.u32 %v4021, 16
      %v4093 = vrot.slane %v4091, 5
      %v4094 = vsel %vm731, %v4089, %v4093
      %v4096 = vshrl.u32 %v4001, 16
      %v4098 = vrot.slane %v4096, 4
      %v4099 = vshll.u32 %v4001, 16
      %v4101 = vrot.slane %v4099, 5
      %v4102 = vor.u32 %v4098, %v4101
      %v4103 = vrot.slane %v4102, 4
      %v4105 = vshll.u32 %v4002, 16
      %v4107 = vrot.slane %v4105, 5
      %v4108 = vsel %vm731, %v4103, %v4107
      %v4109 = vshrl.u32 %v4002, 16
      %v4111 = vrot.slane %v4109, 4
      %v4112 = vor.u32 %v4111, %v4107
      %v4113 = vrot.slane %v4112, 4
      %v4115 = vshll.u32 %v4022, 16
      %v4117 = vrot.slane %v4115, 5
      %v4118 = vsel %vm731, %v4113, %v4117
      %s4119 = scalar_lea.vmem %s5, 128
      %v4120 = vld [vmem:[%s4119] sm:$0xff]
      %v4121 = vld [vmem:[%s4119 + $0x8] sm:$0xff]
      %v4122 = vld [vmem:[%s4119 + $0x10] sm:$0xff]
      %v4123 = vld [vmem:[%s4119 + $0x18] sm:$0xff]
      %v4124 = vld [vmem:[%s4119 + $0x20] sm:$0xff]
      %v4125 = vld [vmem:[%s4119 + $0x28] sm:$0xff]
      %v4126 = vld [vmem:[%s4119 + $0x30] sm:$0xff]
      %v4127 = vld [vmem:[%s4119 + $0x38] sm:$0xff]
      %v4128 = vld [vmem:[%s4119 + $0x40] sm:$0xff]
      %v4129 = vld [vmem:[%s4119 + $0x48] sm:$0xff]
      %v4130 = vld [vmem:[%s4119 + $0x50] sm:$0xff]
      %v4131 = vld [vmem:[%s4119 + $0x58] sm:$0xff]
      %v4132 = vld [vmem:[%s4119 + $0x60] sm:$0xff]
      %v4133 = vld [vmem:[%s4119 + $0x68] sm:$0xff]
      %v4134 = vld [vmem:[%s4119 + $0x70] sm:$0xff]
      %v4135 = vld [vmem:[%s4119 + $0x78] sm:$0xff]
      %v4136 = vunpack.c.l.b16 %v4036
      %v4137 = vunpack.c.l.b16 %v4046
      %v4138 = vunpack.c.l.b16 %v4060
      %v4139 = vunpack.c.l.b16 %v4070
      %v4140 = vunpack.c.l.b16 %v4084
      %v4141 = vunpack.c.l.b16 %v4094
      %v4142 = vunpack.c.l.b16 %v4108
      %v4143 = vunpack.c.l.b16 %v4118
      %v4144 = vpack.c.b16 %v4137, %v4136
      %v4145 = vpack.c.b16 %v4139, %v4138
      %v4146 = vpack.c.b16 %v4141, %v4140
      %v4147 = vpack.c.b16 %v4143, %v4142
      %v4168 = vunpack.c.l.b16 %v4120
      %v4169 = vunpack.c.h.b16 %v4120
      %v4170 = vunpack.c.l.b16 %v4121
      %v4171 = vunpack.c.h.b16 %v4121
      %v4172 = vunpack.c.l.b16 %v4122
      %v4173 = vunpack.c.h.b16 %v4122
      %v4174 = vunpack.c.l.b16 %v4123
      %v4175 = vunpack.c.h.b16 %v4123
      %v4176 = vunpack.c.l.b16 %v4124
      %v4177 = vunpack.c.h.b16 %v4124
      %v4178 = vunpack.c.l.b16 %v4125
      %v4179 = vunpack.c.h.b16 %v4125
      %v4180 = vunpack.c.l.b16 %v4126
      %v4181 = vunpack.c.h.b16 %v4126
      %v4182 = vunpack.c.l.b16 %v4127
      %v4183 = vunpack.c.h.b16 %v4127
      %v4184 = vunpack.c.l.b16 %v4128
      %v4185 = vunpack.c.h.b16 %v4128
      %v4186 = vunpack.c.l.b16 %v4129
      %v4187 = vunpack.c.h.b16 %v4129
      %v4188 = vunpack.c.l.b16 %v4130
      %v4189 = vunpack.c.h.b16 %v4130
      %v4190 = vunpack.c.l.b16 %v4131
      %v4191 = vunpack.c.h.b16 %v4131
      %v4192 = vunpack.c.l.b16 %v4132
      %v4193 = vunpack.c.h.b16 %v4132
      %v4194 = vunpack.c.l.b16 %v4133
      %v4195 = vunpack.c.h.b16 %v4133
      %v4196 = vunpack.c.l.b16 %v4134
      %v4197 = vunpack.c.h.b16 %v4134
      %v4198 = vunpack.c.l.b16 %v4135
      %v4199 = vunpack.c.h.b16 %v4135
      %v4200 = vpack.c.b16 %v4170, %v4168
      %v4201 = vpack.c.b16 %v4171, %v4169
      %v4202 = vpack.c.b16 %v4174, %v4172
      %v4203 = vpack.c.b16 %v4175, %v4173
      %v4204 = vpack.c.b16 %v4178, %v4176
      %v4205 = vpack.c.b16 %v4179, %v4177
      %v4206 = vpack.c.b16 %v4182, %v4180
      %v4207 = vpack.c.b16 %v4183, %v4181
      %v4208 = vpack.c.b16 %v4186, %v4184
      %v4209 = vpack.c.b16 %v4187, %v4185
      %v4210 = vpack.c.b16 %v4190, %v4188
      %v4211 = vpack.c.b16 %v4191, %v4189
      %v4212 = vpack.c.b16 %v4194, %v4192
      %v4213 = vpack.c.b16 %v4195, %v4193
      %v4214 = vpack.c.b16 %v4198, %v4196
      %v4215 = vpack.c.b16 %v4199, %v4197
      %4232 = vmatprep.subr.bf16.mxu0 %v4201
      %4233 = vmatpush1.bf16.msra.mxu0 %v4200
      %4234 = vmatprep.subr.bf16.mxu0 %v4203
      %4235 = vmatpush1.bf16.msra.mxu0 %v4202
      %4236 = vmatprep.subr.bf16.mxu0 %v4205
      %4237 = vmatpush1.bf16.msra.mxu0 %v4204
      %4238 = vmatprep.subr.bf16.mxu0 %v4207
      %4239 = vmatpush1.bf16.msra.mxu0 %v4206
      %4240 = vmatprep.subr.bf16.mxu0 %v4209
      %4241 = vmatpush1.bf16.msra.mxu0 %v4208
      %4242 = vmatprep.subr.bf16.mxu0 %v4211
      %4243 = vmatpush1.bf16.msra.mxu0 %v4210
      %4244 = vmatprep.subr.bf16.mxu0 %v4213
      %4245 = vmatpush1.bf16.msra.mxu0 %v4212
      %4246 = vmatprep.subr.bf16.mxu0 %v4215
      %4247 = vmatpush1.bf16.msra.mxu0 %v4214
      %4248 = vmatprep.subr.bf16.mxu0 0
      %4249 = vmatpush1.bf16.msra.mxu0 0
      %4250 = vmatprep.subr.bf16.mxu0 0
      %4251 = vmatpush1.bf16.msra.mxu0 0
      %4252 = vmatprep.subr.bf16.mxu0 0
      %4253 = vmatpush1.bf16.msra.mxu0 0
      %4254 = vmatprep.subr.bf16.mxu0 0
      %4255 = vmatpush1.bf16.msra.mxu0 0
      %4256 = vmatprep.subr.bf16.mxu0 0
      %4257 = vmatpush1.bf16.msra.mxu0 0
      %4258 = vmatprep.subr.bf16.mxu0 0
      %4259 = vmatpush1.bf16.msra.mxu0 0
      %4260 = vmatprep.subr.bf16.mxu0 0
      %4261 = vmatpush1.bf16.msra.mxu0 0
      %4262 = vmatprep.subr.bf16.mxu0 0
      %4263 = vmatpush1.bf16.msra.mxu0 0
      %4264 = vmatprep.mubr.bf16.mxu0 0
      %4265 = vmatmul.mubr.bf16.gmra.mrb[0].mxu0 %v4144
      %v4266 = vpop.f32.mrb[0].mxu0
      %v4267 = vadd.f32 0.0, %v4266
      %v4268 = vpop.f32.mrb[0].mxu0
      %v4269 = vadd.f32 0.0, %v4268
      %v4270 = vpop.f32.mrb[0].mxu0
      %v4271 = vadd.f32 0.0, %v4270
      %v4272 = vpop.f32.mrb[0].mxu0
      %v4273 = vadd.f32 0.0, %v4272
      %4274 = vmatprep.mubr.bf16.mxu0 0
      %4275 = vmatmul.mubr.bf16.gmra.mrb[0].mxu0 %v4145
      %v4276 = vpop.f32.mrb[0].mxu0
      %v4277 = vadd.f32 0.0, %v4276
      %v4278 = vpop.f32.mrb[0].mxu0
      %v4279 = vadd.f32 0.0, %v4278
      %v4280 = vpop.f32.mrb[0].mxu0
      %v4281 = vadd.f32 0.0, %v4280
      %v4282 = vpop.f32.mrb[0].mxu0
      %v4283 = vadd.f32 0.0, %v4282
      %4284 = vmatprep.mubr.bf16.mxu0 0
      %4285 = vmatmul.mubr.bf16.gmra.mrb[0].mxu0 %v4146
      %v4286 = vpop.f32.mrb[0].mxu0
      %v4287 = vadd.f32 0.0, %v4286
      %v4288 = vpop.f32.mrb[0].mxu0
      %v4289 = vadd.f32 0.0, %v4288
      %v4290 = vpop.f32.mrb[0].mxu0
      %v4291 = vadd.f32 0.0, %v4290
      %v4292 = vpop.f32.mrb[0].mxu0
      %v4293 = vadd.f32 0.0, %v4292
      %4294 = vmatprep.mubr.bf16.mxu0 0
      %4295 = vmatmul.mubr.bf16.gmra.mrb[0].mxu0 %v4147
      %v4296 = vpop.f32.mrb[0].mxu0
      %v4297 = vadd.f32 0.0, %v4296
      %v4298 = vpop.f32.mrb[0].mxu0
      %v4299 = vadd.f32 0.0, %v4298
      %v4300 = vpop.f32.mrb[0].mxu0
      %v4301 = vadd.f32 0.0, %v4300
      %v4302 = vpop.f32.mrb[0].mxu0
      %v4303 = vadd.f32 0.0, %v4302
      %4304 = vdwg.mxu0
      %v4313 = vunpack.c.l.b16 %v3995
      %v4314 = vunpack.c.l.b16 %v3996
      %v4315 = vunpack.c.l.b16 %v3997
      %v4316 = vunpack.c.l.b16 %v3998
      %v4317 = vunpack.c.l.b16 %v3999
      %v4318 = vunpack.c.l.b16 %v4000
      %v4319 = vunpack.c.l.b16 %v4001
      %v4320 = vunpack.c.l.b16 %v4002
      %v4321 = vpack.c.b16 %v4314, %v4313
      %v4322 = vpack.c.b16 %v4316, %v4315
      %v4323 = vpack.c.b16 %v4318, %v4317
      %v4324 = vpack.c.b16 %v4320, %v4319
      %v4345 = vunpack.c.l.b16 %v4003
      %v4346 = vunpack.c.h.b16 %v4003
      %v4347 = vunpack.c.l.b16 %v4004
      %v4348 = vunpack.c.h.b16 %v4004
      %v4349 = vunpack.c.l.b16 %v4005
      %v4350 = vunpack.c.h.b16 %v4005
      %v4351 = vunpack.c.l.b16 %v4006
      %v4352 = vunpack.c.h.b16 %v4006
      %v4353 = vunpack.c.l.b16 %v4007
      %v4354 = vunpack.c.h.b16 %v4007
      %v4355 = vunpack.c.l.b16 %v4008
      %v4356 = vunpack.c.h.b16 %v4008
      %v4357 = vunpack.c.l.b16 %v4009
      %v4358 = vunpack.c.h.b16 %v4009
      %v4359 = vunpack.c.l.b16 %v4010
      %v4360 = vunpack.c.h.b16 %v4010
      %v4361 = vunpack.c.l.b16 %v4011
      %v4362 = vunpack.c.h.b16 %v4011
      %v4363 = vunpack.c.l.b16 %v4012
      %v4364 = vunpack.c.h.b16 %v4012
      %v4365 = vunpack.c.l.b16 %v4013
      %v4366 = vunpack.c.h.b16 %v4013
      %v4367 = vunpack.c.l.b16 %v4014
      %v4368 = vunpack.c.h.b16 %v4014
      %v4369 = vunpack.c.l.b16 %v4015
      %v4370 = vunpack.c.h.b16 %v4015
      %v4371 = vunpack.c.l.b16 %v4016
      %v4372 = vunpack.c.h.b16 %v4016
      %v4373 = vunpack.c.l.b16 %v4017
      %v4374 = vunpack.c.h.b16 %v4017
      %v4375 = vunpack.c.l.b16 %v4018
      %v4376 = vunpack.c.h.b16 %v4018
      %v4377 = vpack.c.b16 %v4347, %v4345
      %v4378 = vpack.c.b16 %v4348, %v4346
      %v4379 = vpack.c.b16 %v4351, %v4349
      %v4380 = vpack.c.b16 %v4352, %v4350
      %v4381 = vpack.c.b16 %v4355, %v4353
      %v4382 = vpack.c.b16 %v4356, %v4354
      %v4383 = vpack.c.b16 %v4359, %v4357
      %v4384 = vpack.c.b16 %v4360, %v4358
      %v4385 = vpack.c.b16 %v4363, %v4361
      %v4386 = vpack.c.b16 %v4364, %v4362
      %v4387 = vpack.c.b16 %v4367, %v4365
      %v4388 = vpack.c.b16 %v4368, %v4366
      %v4389 = vpack.c.b16 %v4371, %v4369
      %v4390 = vpack.c.b16 %v4372, %v4370
      %v4391 = vpack.c.b16 %v4375, %v4373
      %v4392 = vpack.c.b16 %v4376, %v4374
      %4409 = vmatprep.subr.bf16.mxu0 %v4378
      %4410 = vmatpush1.bf16.msra.mxu0 %v4377
      %4411 = vmatprep.subr.bf16.mxu0 %v4380
      %4412 = vmatpush1.bf16.msra.mxu0 %v4379
      %4413 = vmatprep.subr.bf16.mxu0 %v4382
      %4414 = vmatpush1.bf16.msra.mxu0 %v4381
      %4415 = vmatprep.subr.bf16.mxu0 %v4384
      %4416 = vmatpush1.bf16.msra.mxu0 %v4383
      %4417 = vmatprep.subr.bf16.mxu0 %v4386
      %4418 = vmatpush1.bf16.msra.mxu0 %v4385
      %4419 = vmatprep.subr.bf16.mxu0 %v4388
      %4420 = vmatpush1.bf16.msra.mxu0 %v4387
      %4421 = vmatprep.subr.bf16.mxu0 %v4390
      %4422 = vmatpush1.bf16.msra.mxu0 %v4389
      %4423 = vmatprep.subr.bf16.mxu0 %v4392
      %4424 = vmatpush1.bf16.msra.mxu0 %v4391
      %4425 = vmatprep.subr.bf16.mxu0 0
      %4426 = vmatpush1.bf16.msra.mxu0 0
      %4427 = vmatprep.subr.bf16.mxu0 0
      %4428 = vmatpush1.bf16.msra.mxu0 0
      %4429 = vmatprep.subr.bf16.mxu0 0
      %4430 = vmatpush1.bf16.msra.mxu0 0
      %4431 = vmatprep.subr.bf16.mxu0 0
      %4432 = vmatpush1.bf16.msra.mxu0 0
      %4433 = vmatprep.subr.bf16.mxu0 0
      %4434 = vmatpush1.bf16.msra.mxu0 0
      %4435 = vmatprep.subr.bf16.mxu0 0
      %4436 = vmatpush1.bf16.msra.mxu0 0
      %4437 = vmatprep.subr.bf16.mxu0 0
      %4438 = vmatpush1.bf16.msra.mxu0 0
      %4439 = vmatprep.subr.bf16.mxu0 0
      %4440 = vmatpush1.bf16.msra.mxu0 0
      %4441 = vmatprep.mubr.bf16.mxu0 0
      %4442 = vmatmul.mubr.bf16.gmra.mrb[0].mxu0 %v4321
      %v4443 = vpop.f32.mrb[0].mxu0
      %v4444 = vadd.f32 %v4267, %v4443
      %v4445 = vpop.f32.mrb[0].mxu0
      %v4446 = vadd.f32 %v4269, %v4445
      %v4447 = vpop.f32.mrb[0].mxu0
      %v4448 = vadd.f32 %v4271, %v4447
      %v4449 = vpop.f32.mrb[0].mxu0
      %v4450 = vadd.f32 %v4273, %v4449
      %4451 = vmatprep.mubr.bf16.mxu0 0
      %4452 = vmatmul.mubr.bf16.gmra.mrb[0].mxu0 %v4322
      %v4453 = vpop.f32.mrb[0].mxu0
      %v4454 = vadd.f32 %v4277, %v4453
      %v4455 = vpop.f32.mrb[0].mxu0
      %v4456 = vadd.f32 %v4279, %v4455
      %v4457 = vpop.f32.mrb[0].mxu0
      %v4458 = vadd.f32 %v4281, %v4457
      %v4459 = vpop.f32.mrb[0].mxu0
      %v4460 = vadd.f32 %v4283, %v4459
      %4461 = vmatprep.mubr.bf16.mxu0 0
      %4462 = vmatmul.mubr.bf16.gmra.mrb[0].mxu0 %v4323
      %v4463 = vpop.f32.mrb[0].mxu0
      %v4464 = vadd.f32 %v4287, %v4463
      %v4465 = vpop.f32.mrb[0].mxu0
      %v4466 = vadd.f32 %v4289, %v4465
      %v4467 = vpop.f32.mrb[0].mxu0
      %v4468 = vadd.f32 %v4291, %v4467
      %v4469 = vpop.f32.mrb[0].mxu0
      %v4470 = vadd.f32 %v4293, %v4469
      %4471 = vmatprep.mubr.bf16.mxu0 0
      %4472 = vmatmul.mubr.bf16.gmra.mrb[0].mxu0 %v4324
      %v4473 = vpop.f32.mrb[0].mxu0
      %v4474 = vadd.f32 %v4297, %v4473
      %v4475 = vpop.f32.mrb[0].mxu0
      %v4476 = vadd.f32 %v4299, %v4475
      %v4477 = vpop.f32.mrb[0].mxu0
      %v4478 = vadd.f32 %v4301, %v4477
      %v4479 = vpop.f32.mrb[0].mxu0
      %v4480 = vadd.f32 %v4303, %v4479
      %4481 = vdwg.mxu0
      %v4482 = vld [vmem:[#allocation4] sm:$0xe]
      %v4483 = vld [vmem:[#allocation4 + $0xc] sm:$0xe]
      %v4484 = vld [vmem:[#allocation4 + $0x18] sm:$0xe]
      %v4485 = vld [vmem:[#allocation4 + $0x24] sm:$0xe]
      %v4494 = vrot.slane %v4482, 5
      %v4495 = vrot.slane %v4494, 4
      %v4496 = vrot.slane %v3996, 5
      %v4497 = vsel %vm2091, %v4495, %v4496
      %v4498 = vrot.slane %v4496, 4
      %v4499 = vrot.slane %v4019, 5
      %v4500 = vsel %vm2091, %v4498, %v4499
      %v4501 = vrot.slane %v4483, 5
      %v4502 = vrot.slane %v4501, 4
      %v4503 = vrot.slane %v3998, 5
      %v4504 = vsel %vm2091, %v4502, %v4503
      %v4505 = vrot.slane %v4503, 4
      %v4506 = vrot.slane %v4020, 5
      %v4507 = vsel %vm2091, %v4505, %v4506
      %v4508 = vrot.slane %v4484, 5
      %v4509 = vrot.slane %v4508, 4
      %v4510 = vrot.slane %v4000, 5
      %v4511 = vsel %vm2091, %v4509, %v4510
      %v4512 = vrot.slane %v4510, 4
      %v4513 = vrot.slane %v4021, 5
      %v4514 = vsel %vm2091, %v4512, %v4513
      %v4515 = vrot.slane %v4485, 5
      %v4516 = vrot.slane %v4515, 4
      %v4517 = vrot.slane %v4002, 5
      %v4518 = vsel %vm2091, %v4516, %v4517
      %v4519 = vrot.slane %v4517, 4
      %v4520 = vrot.slane %v4022, 5
      %v4521 = vsel %vm2091, %v4519, %v4520
      %s4522 = scalar_lea.vmem %s5, 256
      %v4523 = vld [vmem:[%s4522] sm:$0xff]
      %v4524 = vld [vmem:[%s4522 + $0x8] sm:$0xff]
      %v4525 = vld [vmem:[%s4522 + $0x10] sm:$0xff]
      %v4526 = vld [vmem:[%s4522 + $0x18] sm:$0xff]
      %v4527 = vld [vmem:[%s4522 + $0x20] sm:$0xff]
      %v4528 = vld [vmem:[%s4522 + $0x28] sm:$0xff]
      %v4529 = vld [vmem:[%s4522 + $0x30] sm:$0xff]
      %v4530 = vld [vmem:[%s4522 + $0x38] sm:$0xff]
      %v4531 = vld [vmem:[%s4522 + $0x40] sm:$0xff]
      %v4532 = vld [vmem:[%s4522 + $0x48] sm:$0xff]
      %v4533 = vld [vmem:[%s4522 + $0x50] sm:$0xff]
      %v4534 = vld [vmem:[%s4522 + $0x58] sm:$0xff]
      %v4535 = vld [vmem:[%s4522 + $0x60] sm:$0xff]
      %v4536 = vld [vmem:[%s4522 + $0x68] sm:$0xff]
      %v4537 = vld [vmem:[%s4522 + $0x70] sm:$0xff]
      %v4538 = vld [vmem:[%s4522 + $0x78] sm:$0xff]
      %v4539 = vunpack.c.l.b16 %v4497
      %v4540 = vunpack.c.l.b16 %v4500
      %v4541 = vunpack.c.l.b16 %v4504
      %v4542 = vunpack.c.l.b16 %v4507
      %v4543 = vunpack.c.l.b16 %v4511
      %v4544 = vunpack.c.l.b16 %v4514
      %v4545 = vunpack.c.l.b16 %v4518
      %v4546 = vunpack.c.l.b16 %v4521
      %v4547 = vpack.c.b16 %v4540, %v4539
      %v4548 = vpack.c.b16 %v4542, %v4541
      %v4549 = vpack.c.b16 %v4544, %v4543
      %v4550 = vpack.c.b16 %v4546, %v4545
      %v4571 = vunpack.c.l.b16 %v4523
      %v4572 = vunpack.c.h.b16 %v4523
      %v4573 = vunpack.c.l.b16 %v4524
      %v4574 = vunpack.c.h.b16 %v4524
      %v4575 = vunpack.c.l.b16 %v4525
      %v4576 = vunpack.c.h.b16 %v4525
      %v4577 = vunpack.c.l.b16 %v4526
      %v4578 = vunpack.c.h.b16 %v4526
      %v4579 = vunpack.c.l.b16 %v4527
      %v4580 = vunpack.c.h.b16 %v4527
      %v4581 = vunpack.c.l.b16 %v4528
      %v4582 = vunpack.c.h.b16 %v4528
      %v4583 = vunpack.c.l.b16 %v4529
      %v4584 = vunpack.c.h.b16 %v4529
      %v4585 = vunpack.c.l.b16 %v4530
      %v4586 = vunpack.c.h.b16 %v4530
      %v4587 = vunpack.c.l.b16 %v4531
      %v4588 = vunpack.c.h.b16 %v4531
      %v4589 = vunpack.c.l.b16 %v4532
      %v4590 = vunpack.c.h.b16 %v4532
      %v4591 = vunpack.c.l.b16 %v4533
      %v4592 = vunpack.c.h.b16 %v4533
      %v4593 = vunpack.c.l.b16 %v4534
      %v4594 = vunpack.c.h.b16 %v4534
      %v4595 = vunpack.c.l.b16 %v4535
      %v4596 = vunpack.c.h.b16 %v4535
      %v4597 = vunpack.c.l.b16 %v4536
      %v4598 = vunpack.c.h.b16 %v4536
      %v4599 = vunpack.c.l.b16 %v4537
      %v4600 = vunpack.c.h.b16 %v4537
      %v4601 = vunpack.c.l.b16 %v4538
      %v4602 = vunpack.c.h.b16 %v4538
      %v4603 = vpack.c.b16 %v4573, %v4571
      %v4604 = vpack.c.b16 %v4574, %v4572
      %v4605 = vpack.c.b16 %v4577, %v4575
      %v4606 = vpack.c.b16 %v4578, %v4576
      %v4607 = vpack.c.b16 %v4581, %v4579
      %v4608 = vpack.c.b16 %v4582, %v4580
      %v4609 = vpack.c.b16 %v4585, %v4583
      %v4610 = vpack.c.b16 %v4586, %v4584
      %v4611 = vpack.c.b16 %v4589, %v4587
      %v4612 = vpack.c.b16 %v4590, %v4588
      %v4613 = vpack.c.b16 %v4593, %v4591
      %v4614 = vpack.c.b16 %v4594, %v4592
      %v4615 = vpack.c.b16 %v4597, %v4595
      %v4616 = vpack.c.b16 %v4598, %v4596
      %v4617 = vpack.c.b16 %v4601, %v4599
      %v4618 = vpack.c.b16 %v4602, %v4600
      %4635 = vmatprep.subr.bf16.mxu0 %v4604
      %4636 = vmatpush1.bf16.msra.mxu0 %v4603
      %4637 = vmatprep.subr.bf16.mxu0 %v4606
      %4638 = vmatpush1.bf16.msra.mxu0 %v4605
      %4639 = vmatprep.subr.bf16.mxu0 %v4608
      %4640 = vmatpush1.bf16.msra.mxu0 %v4607
      %4641 = vmatprep.subr.bf16.mxu0 %v4610
      %4642 = vmatpush1.bf16.msra.mxu0 %v4609
      %4643 = vmatprep.subr.bf16.mxu0 %v4612
      %4644 = vmatpush1.bf16.msra.mxu0 %v4611
      %4645 = vmatprep.subr.bf16.mxu0 %v4614
      %4646 = vmatpush1.bf16.msra.mxu0 %v4613
      %4647 = vmatprep.subr.bf16.mxu0 %v4616
      %4648 = vmatpush1.bf16.msra.mxu0 %v4615
      %4649 = vmatprep.subr.bf16.mxu0 %v4618
      %4650 = vmatpush1.bf16.msra.mxu0 %v4617
      %4651 = vmatprep.subr.bf16.mxu0 0
      %4652 = vmatpush1.bf16.msra.mxu0 0
      %4653 = vmatprep.subr.bf16.mxu0 0
      %4654 = vmatpush1.bf16.msra.mxu0 0
      %4655 = vmatprep.subr.bf16.mxu0 0
      %4656 = vmatpush1.bf16.msra.mxu0 0
      %4657 = vmatprep.subr.bf16.mxu0 0
      %4658 = vmatpush1.bf16.msra.mxu0 0
      %4659 = vmatprep.subr.bf16.mxu0 0
      %4660 = vmatpush1.bf16.msra.mxu0 0
      %4661 = vmatprep.subr.bf16.mxu0 0
      %4662 = vmatpush1.bf16.msra.mxu0 0
      %4663 = vmatprep.subr.bf16.mxu0 0
      %4664 = vmatpush1.bf16.msra.mxu0 0
      %4665 = vmatprep.subr.bf16.mxu0 0
      %4666 = vmatpush1.bf16.msra.mxu0 0
      %4667 = vmatprep.mubr.bf16.mxu0 0
      %4668 = vmatmul.mubr.bf16.gmra.mrb[0].mxu0 %v4547
      %v4669 = vpop.f32.mrb[0].mxu0
      %v4670 = vadd.f32 0.0, %v4669
      %v4671 = vpop.f32.mrb[0].mxu0
      %v4672 = vadd.f32 0.0, %v4671
      %v4673 = vpop.f32.mrb[0].mxu0
      %v4674 = vadd.f32 0.0, %v4673
      %v4675 = vpop.f32.mrb[0].mxu0
      %v4676 = vadd.f32 0.0, %v4675
      %4677 = vmatprep.mubr.bf16.mxu0 0
      %4678 = vmatmul.mubr.bf16.gmra.mrb[0].mxu0 %v4548
      %v4679 = vpop.f32.mrb[0].mxu0
      %v4680 = vadd.f32 0.0, %v4679
      %v4681 = vpop.f32.mrb[0].mxu0
      %v4682 = vadd.f32 0.0, %v4681
      %v4683 = vpop.f32.mrb[0].mxu0
      %v4684 = vadd.f32 0.0, %v4683
      %v4685 = vpop.f32.mrb[0].mxu0
      %v4686 = vadd.f32 0.0, %v4685
      %4687 = vmatprep.mubr.bf16.mxu0 0
      %4688 = vmatmul.mubr.bf16.gmra.mrb[0].mxu0 %v4549
      %v4689 = vpop.f32.mrb[0].mxu0
      %v4690 = vadd.f32 0.0, %v4689
      %v4691 = vpop.f32.mrb[0].mxu0
      %v4692 = vadd.f32 0.0, %v4691
      %v4693 = vpop.f32.mrb[0].mxu0
      %v4694 = vadd.f32 0.0, %v4693
      %v4695 = vpop.f32.mrb[0].mxu0
      %v4696 = vadd.f32 0.0, %v4695
      %4697 = vmatprep.mubr.bf16.mxu0 0
      %4698 = vmatmul.mubr.bf16.gmra.mrb[0].mxu0 %v4550
      %v4699 = vpop.f32.mrb[0].mxu0
      %v4700 = vadd.f32 0.0, %v4699
      %v4701 = vpop.f32.mrb[0].mxu0
      %v4702 = vadd.f32 0.0, %v4701
      %v4703 = vpop.f32.mrb[0].mxu0
      %v4704 = vadd.f32 0.0, %v4703
      %v4705 = vpop.f32.mrb[0].mxu0
      %v4706 = vadd.f32 0.0, %v4705
      %4707 = vdwg.mxu0
      %v4708 = vadd.f32 %v4444, %v4670
      %v4709 = vadd.f32 %v4446, %v4672
      %v4710 = vadd.f32 %v4448, %v4674
      %v4711 = vadd.f32 %v4450, %v4676
      %v4712 = vadd.f32 %v4454, %v4680
      %v4713 = vadd.f32 %v4456, %v4682
      %v4714 = vadd.f32 %v4458, %v4684
      %v4715 = vadd.f32 %v4460, %v4686
      %v4716 = vadd.f32 %v4464, %v4690
      %v4717 = vadd.f32 %v4466, %v4692
      %v4718 = vadd.f32 %v4468, %v4694
      %v4719 = vadd.f32 %v4470, %v4696
      %v4720 = vadd.f32 %v4474, %v4700
      %v4721 = vadd.f32 %v4476, %v4702
      %v4722 = vadd.f32 %v4478, %v4704
      %v4723 = vadd.f32 %v4480, %v4706
      %v4724 = vld [vmem:[%s6] sm:$0x3]
      %v4726 = vlaneseq
      %v4727 = vshrl.u32 %v4726, 7
      %v4728 = vsub.s32 0, %v4727
      %v4729 = vrot.slane %v4724, %v4728
      %v4730 = vlaneseq
      %v4731 = vshrl.u32 %v4730, 7
      %v4732 = vsub.s32 1, %v4731
      %v4733 = vrot.slane %v4724, %v4732
      %v4736 = vadd.f32 %v4708, %v4729
      %v4737 = vadd.f32 %v4709, %v4733
      %v4738 = vadd.f32 %v4710, %v4729
      %v4739 = vadd.f32 %v4711, %v4733
      %v4740 = vadd.f32 %v4712, %v4729
      %v4741 = vadd.f32 %v4713, %v4733
      %v4742 = vadd.f32 %v4714, %v4729
      %v4743 = vadd.f32 %v4715, %v4733
      %v4744 = vadd.f32 %v4716, %v4729
      %v4745 = vadd.f32 %v4717, %v4733
      %v4746 = vadd.f32 %v4718, %v4729
      %v4747 = vadd.f32 %v4719, %v4733
      %v4748 = vadd.f32 %v4720, %v4729
      %v4749 = vadd.f32 %v4721, %v4733
      %v4750 = vadd.f32 %v4722, %v4729
      %v4751 = vadd.f32 %v4723, %v4733
      %v4752 = vmax.f32 %v4736, 0.0
      %v4753 = vmax.f32 %v4737, 0.0
      %v4754 = vmax.f32 %v4738, 0.0
      %v4755 = vmax.f32 %v4739, 0.0
      %v4756 = vmax.f32 %v4740, 0.0
      %v4757 = vmax.f32 %v4741, 0.0
      %v4758 = vmax.f32 %v4742, 0.0
      %v4759 = vmax.f32 %v4743, 0.0
      %v4760 = vmax.f32 %v4744, 0.0
      %v4761 = vmax.f32 %v4745, 0.0
      %v4762 = vmax.f32 %v4746, 0.0
      %v4763 = vmax.f32 %v4747, 0.0
      %v4764 = vmax.f32 %v4748, 0.0
      %v4765 = vmax.f32 %v4749, 0.0
      %v4766 = vmax.f32 %v4750, 0.0
      %v4767 = vmax.f32 %v4751, 0.0
      %v4768 = vld [vmem:[#allocation5] sm:$0x11]
      %v4769 = vsel %vm364, 0, %v4768
      %4770 = vst [vmem:[#allocation5] sm:$0x11] %v4769
      %v4771 = vld [vmem:[#allocation5 + $0x18] sm:$0x11]
      %v4772 = vsel %vm364, 0, %v4771
      %4773 = vst [vmem:[#allocation5 + $0x18] sm:$0x11] %v4772
      %v4774 = vld [vmem:[#allocation5 + $0x30] sm:$0x11]
      %v4775 = vsel %vm364, 0, %v4774
      %4776 = vst [vmem:[#allocation5 + $0x30] sm:$0x11] %v4775
      %v4777 = vld [vmem:[#allocation5 + $0x48] sm:$0x11]
      %v4778 = vsel %vm364, 0, %v4777
      %4779 = vst [vmem:[#allocation5 + $0x48] sm:$0x11] %v4778
      %v4780 = vld [vmem:[#allocation5 + $0x10] sm:$0x11]
      %v4781 = vsel %vm393, 0, %v4780
      %4782 = vst [vmem:[#allocation5 + $0x10] sm:$0x11] %v4781
      %v4783 = vld [vmem:[#allocation5 + $0x28] sm:$0x11]
      %v4784 = vsel %vm393, 0, %v4783
      %4785 = vst [vmem:[#allocation5 + $0x28] sm:$0x11] %v4784
      %v4786 = vld [vmem:[#allocation5 + $0x40] sm:$0x11]
      %v4787 = vsel %vm393, 0, %v4786
      %4788 = vst [vmem:[#allocation5 + $0x40] sm:$0x11] %v4787
      %v4789 = vld [vmem:[#allocation5 + $0x58] sm:$0x11]
      %v4790 = vsel %vm393, 0, %v4789
      %4791 = vst [vmem:[#allocation5 + $0x58] sm:$0x11] %v4790
      %v4792 = vpack.c.bf16 %v4754, %v4752
      %v4793 = vpack.c.bf16 %v4755, %v4753
      %v4794 = vpack.c.bf16 %v4758, %v4756
      %v4795 = vpack.c.bf16 %v4759, %v4757
      %v4796 = vpack.c.bf16 %v4762, %v4760
      %v4797 = vpack.c.bf16 %v4763, %v4761
      %v4798 = vpack.c.bf16 %v4766, %v4764
      %v4799 = vpack.c.bf16 %v4767, %v4765
      %v4808 = vunpack.c.l.b16 %v4792
      %v4809 = vunpack.c.l.b16 %v4793
      %v4810 = vunpack.c.h.b16 %v4792
      %v4811 = vunpack.c.h.b16 %v4793
      %v4812 = vunpack.c.l.b16 %v4794
      %v4813 = vunpack.c.l.b16 %v4795
      %v4814 = vunpack.c.h.b16 %v4794
      %v4815 = vunpack.c.h.b16 %v4795
      %v4816 = vunpack.c.l.b16 %v4796
      %v4817 = vunpack.c.l.b16 %v4797
      %v4818 = vunpack.c.h.b16 %v4796
      %v4819 = vunpack.c.h.b16 %v4797
      %v4820 = vunpack.c.l.b16 %v4798
      %v4821 = vunpack.c.l.b16 %v4799
      %v4822 = vunpack.c.h.b16 %v4798
      %v4823 = vunpack.c.h.b16 %v4799
      %v4824 = vpack.c.b16 %v4809, %v4808
      %v4825 = vpack.c.b16 %v4811, %v4810
      %v4826 = vpack.c.b16 %v4813, %v4812
      %v4827 = vpack.c.b16 %v4815, %v4814
      %v4828 = vpack.c.b16 %v4817, %v4816
      %v4829 = vpack.c.b16 %v4819, %v4818
      %v4830 = vpack.c.b16 %v4821, %v4820
      %v4831 = vpack.c.b16 %v4823, %v4822
      %v4833 = vshrl.u32 %v4824, 16
      %v4835 = vrot.slane %v4833, 7
      %v4836 = vshll.u32 %v4824, 16
      %v4838 = vor.u32 %v4835, %v4836
      %v4839 = vrot.slane %v4835, 4
      %v4841 = vshrl.u32 %v4825, 16
      %v4843 = vrot.slane %v4841, 7
      %v4844 = vshll.u32 %v4825, 16
      %v4846 = vor.u32 %v4843, %v4844
      %v4847 = vsel %vm419, %v4839, %v4846
      %v4848 = vrot.slane %v4843, 4
      %v4850 = vshrl.u32 %v4826, 16
      %v4852 = vrot.slane %v4850, 7
      %v4853 = vshll.u32 %v4826, 16
      %v4855 = vor.u32 %v4852, %v4853
      %v4856 = vrot.slane %v4852, 4
      %v4858 = vshrl.u32 %v4827, 16
      %v4860 = vrot.slane %v4858, 7
      %v4861 = vshll.u32 %v4827, 16
      %v4863 = vor.u32 %v4860, %v4861
      %v4864 = vsel %vm419, %v4856, %v4863
      %v4865 = vrot.slane %v4860, 4
      %v4867 = vshrl.u32 %v4828, 16
      %v4869 = vrot.slane %v4867, 7
      %v4870 = vshll.u32 %v4828, 16
      %v4872 = vor.u32 %v4869, %v4870
      %v4873 = vrot.slane %v4869, 4
      %v4875 = vshrl.u32 %v4829, 16
      %v4877 = vrot.slane %v4875, 7
      %v4878 = vshll.u32 %v4829, 16
      %v4880 = vor.u32 %v4877, %v4878
      %v4881 = vsel %vm419, %v4873, %v4880
      %v4882 = vrot.slane %v4877, 4
      %v4884 = vshrl.u32 %v4830, 16
      %v4886 = vrot.slane %v4884, 7
      %v4887 = vshll.u32 %v4830, 16
      %v4889 = vor.u32 %v4886, %v4887
      %v4890 = vrot.slane %v4886, 4
      %v4892 = vshrl.u32 %v4831, 16
      %v4894 = vrot.slane %v4892, 7
      %v4895 = vshll.u32 %v4831, 16
      %v4897 = vor.u32 %v4894, %v4895
      %v4898 = vsel %vm419, %v4890, %v4897
      %v4899 = vrot.slane %v4894, 4
      %v4912 = vld [vmem:[#allocation5] sm:$0xff]
      %v4913 = vsel %vm584, %v4838, %v4912
      %4914 = vst [vmem:[#allocation5] sm:$0xff] %v4913
      %4915 = vst [vmem:[#allocation5 + $0x8] sm:$0xff] %v4847
      %v4916 = vld [vmem:[#allocation5 + $0x10] sm:$0x11]
      %v4917 = vsel %vm364, %v4848, %v4916
      %4918 = vst [vmem:[#allocation5 + $0x10] sm:$0x11] %v4917
      %v4919 = vld [vmem:[#allocation5 + $0x18] sm:$0xff]
      %v4920 = vsel %vm584, %v4855, %v4919
      %4921 = vst [vmem:[#allocation5 + $0x18] sm:$0xff] %v4920
      %4922 = vst [vmem:[#allocation5 + $0x20] sm:$0xff] %v4864
      %v4923 = vld [vmem:[#allocation5 + $0x28] sm:$0x11]
      %v4924 = vsel %vm364, %v4865, %v4923
      %4925 = vst [vmem:[#allocation5 + $0x28] sm:$0x11] %v4924
      %v4926 = vld [vmem:[#allocation5 + $0x30] sm:$0xff]
      %v4927 = vsel %vm584, %v4872, %v4926
      %4928 = vst [vmem:[#allocation5 + $0x30] sm:$0xff] %v4927
      %4929 = vst [vmem:[#allocation5 + $0x38] sm:$0xff] %v4881
      %v4930 = vld [vmem:[#allocation5 + $0x40] sm:$0x11]
      %v4931 = vsel %vm364, %v4882, %v4930
      %4932 = vst [vmem:[#allocation5 + $0x40] sm:$0x11] %v4931
      %v4933 = vld [vmem:[#allocation5 + $0x48] sm:$0xff]
      %v4934 = vsel %vm584, %v4889, %v4933
      %4935 = vst [vmem:[#allocation5 + $0x48] sm:$0xff] %v4934
      %4936 = vst [vmem:[#allocation5 + $0x50] sm:$0xff] %v4898
      %v4937 = vld [vmem:[#allocation5 + $0x58] sm:$0x11]
      %v4938 = vsel %vm364, %v4899, %v4937
      %4939 = vst [vmem:[#allocation5 + $0x58] sm:$0x11] %v4938
      %v4940 = vld [vmem:[#allocation5] sm:$0xff]
      %v4941 = vld [vmem:[#allocation5 + $0x8] sm:$0xff]
      %v4942 = vld [vmem:[#allocation5 + $0x18] sm:$0xff]
      %v4943 = vld [vmem:[#allocation5 + $0x20] sm:$0xff]
      %v4944 = vld [vmem:[#allocation5 + $0x30] sm:$0xff]
      %v4945 = vld [vmem:[#allocation5 + $0x38] sm:$0xff]
      %v4946 = vld [vmem:[#allocation5 + $0x48] sm:$0xff]
      %v4947 = vld [vmem:[#allocation5 + $0x50] sm:$0xff]
      %v4948 = vld [vmem:[%s7] sm:$0xff]
      %v4949 = vld [vmem:[%s7 + $0x8] sm:$0xff]
      %v4950 = vld [vmem:[%s7 + $0x10] sm:$0xff]
      %v4951 = vld [vmem:[%s7 + $0x18] sm:$0xff]
      %v4952 = vld [vmem:[%s7 + $0x20] sm:$0xff]
      %v4953 = vld [vmem:[%s7 + $0x28] sm:$0xff]
      %v4954 = vld [vmem:[%s7 + $0x30] sm:$0xff]
      %v4955 = vld [vmem:[%s7 + $0x38] sm:$0xff]
      %v4956 = vld [vmem:[%s7 + $0x40] sm:$0xff]
      %v4957 = vld [vmem:[%s7 + $0x48] sm:$0xff]
      %v4958 = vld [vmem:[%s7 + $0x50] sm:$0xff]
      %v4959 = vld [vmem:[%s7 + $0x58] sm:$0xff]
      %v4960 = vld [vmem:[%s7 + $0x60] sm:$0xff]
      %v4961 = vld [vmem:[%s7 + $0x68] sm:$0xff]
      %v4962 = vld [vmem:[%s7 + $0x70] sm:$0xff]
      %v4963 = vld [vmem:[%s7 + $0x78] sm:$0xff]
      %v4964 = vld [vmem:[%s7 + $0x80] sm:$0xff]
      %v4965 = vld [vmem:[%s7 + $0x88] sm:$0xff]
      %v4966 = vld [vmem:[%s7 + $0x90] sm:$0xff]
      %v4967 = vld [vmem:[%s7 + $0x98] sm:$0xff]
      %v4968 = vld [vmem:[%s7 + $0xa0] sm:$0xff]
      %v4969 = vld [vmem:[%s7 + $0xa8] sm:$0xff]
      %v4970 = vld [vmem:[%s7 + $0xb0] sm:$0xff]
      %v4971 = vld [vmem:[%s7 + $0xb8] sm:$0xff]
      %v4972 = vld [vmem:[%s7 + $0xc0] sm:$0xff]
      %v4973 = vld [vmem:[%s7 + $0xc8] sm:$0xff]
      %v4974 = vld [vmem:[%s7 + $0xd0] sm:$0xff]
      %v4975 = vld [vmem:[%s7 + $0xd8] sm:$0xff]
      %v4976 = vld [vmem:[%s7 + $0xe0] sm:$0xff]
      %v4977 = vld [vmem:[%s7 + $0xe8] sm:$0xff]
      %v4978 = vld [vmem:[%s7 + $0xf0] sm:$0xff]
      %v4979 = vld [vmem:[%s7 + $0xf8] sm:$0xff]
      %v4980 = vld [vmem:[%s7 + $0x100] sm:$0xff]
      %v4981 = vld [vmem:[%s7 + $0x108] sm:$0xff]
      %v4982 = vld [vmem:[%s7 + $0x110] sm:$0xff]
      %v4983 = vld [vmem:[%s7 + $0x118] sm:$0xff]
      %v4984 = vld [vmem:[%s7 + $0x120] sm:$0xff]
      %v4985 = vld [vmem:[%s7 + $0x128] sm:$0xff]
      %v4986 = vld [vmem:[%s7 + $0x130] sm:$0xff]
      %v4987 = vld [vmem:[%s7 + $0x138] sm:$0xff]
      %v4988 = vld [vmem:[%s7 + $0x140] sm:$0xff]
      %v4989 = vld [vmem:[%s7 + $0x148] sm:$0xff]
      %v4990 = vld [vmem:[%s7 + $0x150] sm:$0xff]
      %v4991 = vld [vmem:[%s7 + $0x158] sm:$0xff]
      %v4992 = vld [vmem:[%s7 + $0x160] sm:$0xff]
      %v4993 = vld [vmem:[%s7 + $0x168] sm:$0xff]
      %v4994 = vld [vmem:[%s7 + $0x170] sm:$0xff]
      %v4995 = vld [vmem:[%s7 + $0x178] sm:$0xff]
      %v4996 = vld [vmem:[%s7 + $0x180] sm:$0xff]
      %v4997 = vld [vmem:[%s7 + $0x188] sm:$0xff]
      %v4998 = vld [vmem:[%s7 + $0x190] sm:$0xff]
      %v4999 = vld [vmem:[%s7 + $0x198] sm:$0xff]
      %v5000 = vld [vmem:[%s7 + $0x1a0] sm:$0xff]
      %v5001 = vld [vmem:[%s7 + $0x1a8] sm:$0xff]
      %v5002 = vld [vmem:[%s7 + $0x1b0] sm:$0xff]
      %v5003 = vld [vmem:[%s7 + $0x1b8] sm:$0xff]
      %v5004 = vld [vmem:[%s7 + $0x1c0] sm:$0xff]
      %v5005 = vld [vmem:[%s7 + $0x1c8] sm:$0xff]
      %v5006 = vld [vmem:[%s7 + $0x1d0] sm:$0xff]
      %v5007 = vld [vmem:[%s7 + $0x1d8] sm:$0xff]
      %v5008 = vld [vmem:[%s7 + $0x1e0] sm:$0xff]
      %v5009 = vld [vmem:[%s7 + $0x1e8] sm:$0xff]
      %v5010 = vld [vmem:[%s7 + $0x1f0] sm:$0xff]
      %v5011 = vld [vmem:[%s7 + $0x1f8] sm:$0xff]
      %v5012 = vld [vmem:[#allocation5 + $0x10] sm:$0x11]
      %v5013 = vld [vmem:[#allocation5 + $0x28] sm:$0x11]
      %v5014 = vld [vmem:[#allocation5 + $0x40] sm:$0x11]
      %v5015 = vld [vmem:[#allocation5 + $0x58] sm:$0x11]
      %v5017 = vshrl.u32 %v4940, 16
      %v5019 = vrot.slane %v5017, 4
      %v5020 = vshll.u32 %v4940, 16
      %v5022 = vrot.slane %v5020, 5
      %v5023 = vor.u32 %v5019, %v5022
      %v5024 = vrot.slane %v5023, 4
      %v5026 = vshll.u32 %v4941, 16
      %v5028 = vrot.slane %v5026, 5
      %v5029 = vsel %vm731, %v5024, %v5028
      %v5030 = vshrl.u32 %v4941, 16
      %v5032 = vrot.slane %v5030, 4
      %v5033 = vor.u32 %v5032, %v5028
      %v5034 = vrot.slane %v5033, 4
      %v5036 = vshll.u32 %v5012, 16
      %v5038 = vrot.slane %v5036, 5
      %v5039 = vsel %vm731, %v5034, %v5038
      %v5041 = vshrl.u32 %v4942, 16
      %v5043 = vrot.slane %v5041, 4
      %v5044 = vshll.u32 %v4942, 16
      %v5046 = vrot.slane %v5044, 5
      %v5047 = vor.u32 %v5043, %v5046
      %v5048 = vrot.slane %v5047, 4
      %v5050 = vshll.u32 %v4943, 16
      %v5052 = vrot.slane %v5050, 5
      %v5053 = vsel %vm731, %v5048, %v5052
      %v5054 = vshrl.u32 %v4943, 16
      %v5056 = vrot.slane %v5054, 4
      %v5057 = vor.u32 %v5056, %v5052
      %v5058 = vrot.slane %v5057, 4
      %v5060 = vshll.u32 %v5013, 16
      %v5062 = vrot.slane %v5060, 5
      %v5063 = vsel %vm731, %v5058, %v5062
      %v5065 = vshrl.u32 %v4944, 16
      %v5067 = vrot.slane %v5065, 4
      %v5068 = vshll.u32 %v4944, 16
      %v5070 = vrot.slane %v5068, 5
      %v5071 = vor.u32 %v5067, %v5070
      %v5072 = vrot.slane %v5071, 4
      %v5074 = vshll.u32 %v4945, 16
      %v5076 = vrot.slane %v5074, 5
      %v5077 = vsel %vm731, %v5072, %v5076
      %v5078 = vshrl.u32 %v4945, 16
      %v5080 = vrot.slane %v5078, 4
      %v5081 = vor.u32 %v5080, %v5076
      %v5082 = vrot.slane %v5081, 4
      %v5084 = vshll.u32 %v5014, 16
      %v5086 = vrot.slane %v5084, 5
      %v5087 = vsel %vm731, %v5082, %v5086
      %v5089 = vshrl.u32 %v4946, 16
      %v5091 = vrot.slane %v5089, 4
      %v5092 = vshll.u32 %v4946, 16
      %v5094 = vrot.slane %v5092, 5
      %v5095 = vor.u32 %v5091, %v5094
      %v5096 = vrot.slane %v5095, 4
      %v5098 = vshll.u32 %v4947, 16
      %v5100 = vrot.slane %v5098, 5
      %v5101 = vsel %vm731, %v5096, %v5100
      %v5102 = vshrl.u32 %v4947, 16
      %v5104 = vrot.slane %v5102, 4
      %v5105 = vor.u32 %v5104, %v5100
      %v5106 = vrot.slane %v5105, 4
      %v5108 = vshll.u32 %v5015, 16
      %v5110 = vrot.slane %v5108, 5
      %v5111 = vsel %vm731, %v5106, %v5110
      %s5112 = scalar_lea.vmem %s7, 512
      %v5113 = vld [vmem:[%s5112] sm:$0xff]
      %v5114 = vld [vmem:[%s5112 + $0x8] sm:$0xff]
      %v5115 = vld [vmem:[%s5112 + $0x10] sm:$0xff]
      %v5116 = vld [vmem:[%s5112 + $0x18] sm:$0xff]
      %v5117 = vld [vmem:[%s5112 + $0x20] sm:$0xff]
      %v5118 = vld [vmem:[%s5112 + $0x28] sm:$0xff]
      %v5119 = vld [vmem:[%s5112 + $0x30] sm:$0xff]
      %v5120 = vld [vmem:[%s5112 + $0x38] sm:$0xff]
      %v5121 = vld [vmem:[%s5112 + $0x40] sm:$0xff]
      %v5122 = vld [vmem:[%s5112 + $0x48] sm:$0xff]
      %v5123 = vld [vmem:[%s5112 + $0x50] sm:$0xff]
      %v5124 = vld [vmem:[%s5112 + $0x58] sm:$0xff]
      %v5125 = vld [vmem:[%s5112 + $0x60] sm:$0xff]
      %v5126 = vld [vmem:[%s5112 + $0x68] sm:$0xff]
      %v5127 = vld [vmem:[%s5112 + $0x70] sm:$0xff]
      %v5128 = vld [vmem:[%s5112 + $0x78] sm:$0xff]
      %v5129 = vld [vmem:[%s5112 + $0x80] sm:$0xff]
      %v5130 = vld [vmem:[%s5112 + $0x88] sm:$0xff]
      %v5131 = vld [vmem:[%s5112 + $0x90] sm:$0xff]
      %v5132 = vld [vmem:[%s5112 + $0x98] sm:$0xff]
      %v5133 = vld [vmem:[%s5112 + $0xa0] sm:$0xff]
      %v5134 = vld [vmem:[%s5112 + $0xa8] sm:$0xff]
      %v5135 = vld [vmem:[%s5112 + $0xb0] sm:$0xff]
      %v5136 = vld [vmem:[%s5112 + $0xb8] sm:$0xff]
      %v5137 = vld [vmem:[%s5112 + $0xc0] sm:$0xff]
      %v5138 = vld [vmem:[%s5112 + $0xc8] sm:$0xff]
      %v5139 = vld [vmem:[%s5112 + $0xd0] sm:$0xff]
      %v5140 = vld [vmem:[%s5112 + $0xd8] sm:$0xff]
      %v5141 = vld [vmem:[%s5112 + $0xe0] sm:$0xff]
      %v5142 = vld [vmem:[%s5112 + $0xe8] sm:$0xff]
      %v5143 = vld [vmem:[%s5112 + $0xf0] sm:$0xff]
      %v5144 = vld [vmem:[%s5112 + $0xf8] sm:$0xff]
      %v5145 = vld [vmem:[%s5112 + $0x100] sm:$0xff]
      %v5146 = vld [vmem:[%s5112 + $0x108] sm:$0xff]
      %v5147 = vld [vmem:[%s5112 + $0x110] sm:$0xff]
      %v5148 = vld [vmem:[%s5112 + $0x118] sm:$0xff]
      %v5149 = vld [vmem:[%s5112 + $0x120] sm:$0xff]
      %v5150 = vld [vmem:[%s5112 + $0x128] sm:$0xff]
      %v5151 = vld [vmem:[%s5112 + $0x130] sm:$0xff]
      %v5152 = vld [vmem:[%s5112 + $0x138] sm:$0xff]
      %v5153 = vld [vmem:[%s5112 + $0x140] sm:$0xff]
      %v5154 = vld [vmem:[%s5112 + $0x148] sm:$0xff]
      %v5155 = vld [vmem:[%s5112 + $0x150] sm:$0xff]
      %v5156 = vld [vmem:[%s5112 + $0x158] sm:$0xff]
      %v5157 = vld [vmem:[%s5112 + $0x160] sm:$0xff]
      %v5158 = vld [vmem:[%s5112 + $0x168] sm:$0xff]
      %v5159 = vld [vmem:[%s5112 + $0x170] sm:$0xff]
      %v5160 = vld [vmem:[%s5112 + $0x178] sm:$0xff]
      %v5161 = vld [vmem:[%s5112 + $0x180] sm:$0xff]
      %v5162 = vld [vmem:[%s5112 + $0x188] sm:$0xff]
      %v5163 = vld [vmem:[%s5112 + $0x190] sm:$0xff]
      %v5164 = vld [vmem:[%s5112 + $0x198] sm:$0xff]
      %v5165 = vld [vmem:[%s5112 + $0x1a0] sm:$0xff]
      %v5166 = vld [vmem:[%s5112 + $0x1a8] sm:$0xff]
      %v5167 = vld [vmem:[%s5112 + $0x1b0] sm:$0xff]
      %v5168 = vld [vmem:[%s5112 + $0x1b8] sm:$0xff]
      %v5169 = vld [vmem:[%s5112 + $0x1c0] sm:$0xff]
      %v5170 = vld [vmem:[%s5112 + $0x1c8] sm:$0xff]
      %v5171 = vld [vmem:[%s5112 + $0x1d0] sm:$0xff]
      %v5172 = vld [vmem:[%s5112 + $0x1d8] sm:$0xff]
      %v5173 = vld [vmem:[%s5112 + $0x1e0] sm:$0xff]
      %v5174 = vld [vmem:[%s5112 + $0x1e8] sm:$0xff]
      %v5175 = vld [vmem:[%s5112 + $0x1f0] sm:$0xff]
      %v5176 = vld [vmem:[%s5112 + $0x1f8] sm:$0xff]
      %v5177 = vunpack.c.l.b16 %v5029
      %v5178 = vunpack.c.h.b16 %v5029
      %v5179 = vunpack.c.l.b16 %v5039
      %v5180 = vunpack.c.h.b16 %v5039
      %v5181 = vunpack.c.l.b16 %v5053
      %v5182 = vunpack.c.h.b16 %v5053
      %v5183 = vunpack.c.l.b16 %v5063
      %v5184 = vunpack.c.h.b16 %v5063
      %v5185 = vunpack.c.l.b16 %v5077
      %v5186 = vunpack.c.h.b16 %v5077
      %v5187 = vunpack.c.l.b16 %v5087
      %v5188 = vunpack.c.h.b16 %v5087
      %v5189 = vunpack.c.l.b16 %v5101
      %v5190 = vunpack.c.h.b16 %v5101
      %v5191 = vunpack.c.l.b16 %v5111
      %v5192 = vunpack.c.h.b16 %v5111
      %v5193 = vpack.c.b16 %v5179, %v5177
      %v5194 = vpack.c.b16 %v5180, %v5178
      %v5195 = vpack.c.b16 %v5183, %v5181
      %v5196 = vpack.c.b16 %v5184, %v5182
      %v5197 = vpack.c.b16 %v5187, %v5185
      %v5198 = vpack.c.b16 %v5188, %v5186
      %v5199 = vpack.c.b16 %v5191, %v5189
      %v5200 = vpack.c.b16 %v5192, %v5190
      %v5273 = vunpack.c.l.b16 %v5113
      %v5274 = vunpack.c.h.b16 %v5113
      %v5275 = vunpack.c.l.b16 %v5114
      %v5276 = vunpack.c.h.b16 %v5114
      %v5277 = vunpack.c.l.b16 %v5115
      %v5278 = vunpack.c.h.b16 %v5115
      %v5279 = vunpack.c.l.b16 %v5116
      %v5280 = vunpack.c.h.b16 %v5116
      %v5281 = vunpack.c.l.b16 %v5117
      %v5282 = vunpack.c.h.b16 %v5117
      %v5283 = vunpack.c.l.b16 %v5118
      %v5284 = vunpack.c.h.b16 %v5118
      %v5285 = vunpack.c.l.b16 %v5119
      %v5286 = vunpack.c.h.b16 %v5119
      %v5287 = vunpack.c.l.b16 %v5120
      %v5288 = vunpack.c.h.b16 %v5120
      %v5289 = vunpack.c.l.b16 %v5121
      %v5290 = vunpack.c.h.b16 %v5121
      %v5291 = vunpack.c.l.b16 %v5122
      %v5292 = vunpack.c.h.b16 %v5122
      %v5293 = vunpack.c.l.b16 %v5123
      %v5294 = vunpack.c.h.b16 %v5123
      %v5295 = vunpack.c.l.b16 %v5124
      %v5296 = vunpack.c.h.b16 %v5124
      %v5297 = vunpack.c.l.b16 %v5125
      %v5298 = vunpack.c.h.b16 %v5125
      %v5299 = vunpack.c.l.b16 %v5126
      %v5300 = vunpack.c.h.b16 %v5126
      %v5301 = vunpack.c.l.b16 %v5127
      %v5302 = vunpack.c.h.b16 %v5127
      %v5303 = vunpack.c.l.b16 %v5128
      %v5304 = vunpack.c.h.b16 %v5128
      %v5305 = vunpack.c.l.b16 %v5129
      %v5306 = vunpack.c.h.b16 %v5129
      %v5307 = vunpack.c.l.b16 %v5130
      %v5308 = vunpack.c.h.b16 %v5130
      %v5309 = vunpack.c.l.b16 %v5131
      %v5310 = vunpack.c.h.b16 %v5131
      %v5311 = vunpack.c.l.b16 %v5132
      %v5312 = vunpack.c.h.b16 %v5132
      %v5313 = vunpack.c.l.b16 %v5133
      %v5314 = vunpack.c.h.b16 %v5133
      %v5315 = vunpack.c.l.b16 %v5134
      %v5316 = vunpack.c.h.b16 %v5134
      %v5317 = vunpack.c.l.b16 %v5135
      %v5318 = vunpack.c.h.b16 %v5135
      %v5319 = vunpack.c.l.b16 %v5136
      %v5320 = vunpack.c.h.b16 %v5136
      %v5321 = vunpack.c.l.b16 %v5137
      %v5322 = vunpack.c.h.b16 %v5137
      %v5323 = vunpack.c.l.b16 %v5138
      %v5324 = vunpack.c.h.b16 %v5138
      %v5325 = vunpack.c.l.b16 %v5139
      %v5326 = vunpack.c.h.b16 %v5139
      %v5327 = vunpack.c.l.b16 %v5140
      %v5328 = vunpack.c.h.b16 %v5140
      %v5329 = vunpack.c.l.b16 %v5141
      %v5330 = vunpack.c.h.b16 %v5141
      %v5331 = vunpack.c.l.b16 %v5142
      %v5332 = vunpack.c.h.b16 %v5142
      %v5333 = vunpack.c.l.b16 %v5143
      %v5334 = vunpack.c.h.b16 %v5143
      %v5335 = vunpack.c.l.b16 %v5144
      %v5336 = vunpack.c.h.b16 %v5144
      %v5337 = vunpack.c.l.b16 %v5145
      %v5338 = vunpack.c.h.b16 %v5145
      %v5339 = vunpack.c.l.b16 %v5146
      %v5340 = vunpack.c.h.b16 %v5146
      %v5341 = vunpack.c.l.b16 %v5147
      %v5342 = vunpack.c.h.b16 %v5147
      %v5343 = vunpack.c.l.b16 %v5148
      %v5344 = vunpack.c.h.b16 %v5148
      %v5345 = vunpack.c.l.b16 %v5149
      %v5346 = vunpack.c.h.b16 %v5149
      %v5347 = vunpack.c.l.b16 %v5150
      %v5348 = vunpack.c.h.b16 %v5150
      %v5349 = vunpack.c.l.b16 %v5151
      %v5350 = vunpack.c.h.b16 %v5151
      %v5351 = vunpack.c.l.b16 %v5152
      %v5352 = vunpack.c.h.b16 %v5152
      %v5353 = vunpack.c.l.b16 %v5153
      %v5354 = vunpack.c.h.b16 %v5153
      %v5355 = vunpack.c.l.b16 %v5154
      %v5356 = vunpack.c.h.b16 %v5154
      %v5357 = vunpack.c.l.b16 %v5155
      %v5358 = vunpack.c.h.b16 %v5155
      %v5359 = vunpack.c.l.b16 %v5156
      %v5360 = vunpack.c.h.b16 %v5156
      %v5361 = vunpack.c.l.b16 %v5157
      %v5362 = vunpack.c.h.b16 %v5157
      %v5363 = vunpack.c.l.b16 %v5158
      %v5364 = vunpack.c.h.b16 %v5158
      %v5365 = vunpack.c.l.b16 %v5159
      %v5366 = vunpack.c.h.b16 %v5159
      %v5367 = vunpack.c.l.b16 %v5160
      %v5368 = vunpack.c.h.b16 %v5160
      %v5369 = vunpack.c.l.b16 %v5161
      %v5370 = vunpack.c.h.b16 %v5161
      %v5371 = vunpack.c.l.b16 %v5162
      %v5372 = vunpack.c.h.b16 %v5162
      %v5373 = vunpack.c.l.b16 %v5163
      %v5374 = vunpack.c.h.b16 %v5163
      %v5375 = vunpack.c.l.b16 %v5164
      %v5376 = vunpack.c.h.b16 %v5164
      %v5377 = vunpack.c.l.b16 %v5165
      %v5378 = vunpack.c.h.b16 %v5165
      %v5379 = vunpack.c.l.b16 %v5166
      %v5380 = vunpack.c.h.b16 %v5166
      %v5381 = vunpack.c.l.b16 %v5167
      %v5382 = vunpack.c.h.b16 %v5167
      %v5383 = vunpack.c.l.b16 %v5168
      %v5384 = vunpack.c.h.b16 %v5168
      %v5385 = vunpack.c.l.b16 %v5169
      %v5386 = vunpack.c.h.b16 %v5169
      %v5387 = vunpack.c.l.b16 %v5170
      %v5388 = vunpack.c.h.b16 %v5170
      %v5389 = vunpack.c.l.b16 %v5171
      %v5390 = vunpack.c.h.b16 %v5171
      %v5391 = vunpack.c.l.b16 %v5172
      %v5392 = vunpack.c.h.b16 %v5172
      %v5393 = vunpack.c.l.b16 %v5173
      %v5394 = vunpack.c.h.b16 %v5173
      %v5395 = vunpack.c.l.b16 %v5174
      %v5396 = vunpack.c.h.b16 %v5174
      %v5397 = vunpack.c.l.b16 %v5175
      %v5398 = vunpack.c.h.b16 %v5175
      %v5399 = vunpack.c.l.b16 %v5176
      %v5400 = vunpack.c.h.b16 %v5176
      %v5401 = vpack.c.b16 %v5277, %v5273
      %v5402 = vpack.c.b16 %v5278, %v5274
      %v5403 = vpack.c.b16 %v5279, %v5275
      %v5404 = vpack.c.b16 %v5280, %v5276
      %v5405 = vpack.c.b16 %v5285, %v5281
      %v5406 = vpack.c.b16 %v5286, %v5282
      %v5407 = vpack.c.b16 %v5287, %v5283
      %v5408 = vpack.c.b16 %v5288, %v5284
      %v5409 = vpack.c.b16 %v5293, %v5289
      %v5410 = vpack.c.b16 %v5294, %v5290
      %v5411 = vpack.c.b16 %v5295, %v5291
      %v5412 = vpack.c.b16 %v5296, %v5292
      %v5413 = vpack.c.b16 %v5301, %v5297
      %v5414 = vpack.c.b16 %v5302, %v5298
      %v5415 = vpack.c.b16 %v5303, %v5299
      %v5416 = vpack.c.b16 %v5304, %v5300
      %v5417 = vpack.c.b16 %v5309, %v5305
      %v5418 = vpack.c.b16 %v5310, %v5306
      %v5419 = vpack.c.b16 %v5311, %v5307
      %v5420 = vpack.c.b16 %v5312, %v5308
      %v5421 = vpack.c.b16 %v5317, %v5313
      %v5422 = vpack.c.b16 %v5318, %v5314
      %v5423 = vpack.c.b16 %v5319, %v5315
      %v5424 = vpack.c.b16 %v5320, %v5316
      %v5425 = vpack.c.b16 %v5325, %v5321
      %v5426 = vpack.c.b16 %v5326, %v5322
      %v5427 = vpack.c.b16 %v5327, %v5323
      %v5428 = vpack.c.b16 %v5328, %v5324
      %v5429 = vpack.c.b16 %v5333, %v5329
      %v5430 = vpack.c.b16 %v5334, %v5330
      %v5431 = vpack.c.b16 %v5335, %v5331
      %v5432 = vpack.c.b16 %v5336, %v5332
      %v5433 = vpack.c.b16 %v5341, %v5337
      %v5434 = vpack.c.b16 %v5342, %v5338
      %v5435 = vpack.c.b16 %v5343, %v5339
      %v5436 = vpack.c.b16 %v5344, %v5340
      %v5437 = vpack.c.b16 %v5349, %v5345
      %v5438 = vpack.c.b16 %v5350, %v5346
      %v5439 = vpack.c.b16 %v5351, %v5347
      %v5440 = vpack.c.b16 %v5352, %v5348
      %v5441 = vpack.c.b16 %v5357, %v5353
      %v5442 = vpack.c.b16 %v5358, %v5354
      %v5443 = vpack.c.b16 %v5359, %v5355
      %v5444 = vpack.c.b16 %v5360, %v5356
      %v5445 = vpack.c.b16 %v5365, %v5361
      %v5446 = vpack.c.b16 %v5366, %v5362
      %v5447 = vpack.c.b16 %v5367, %v5363
      %v5448 = vpack.c.b16 %v5368, %v5364
      %v5449 = vpack.c.b16 %v5373, %v5369
      %v5450 = vpack.c.b16 %v5374, %v5370
      %v5451 = vpack.c.b16 %v5375, %v5371
      %v5452 = vpack.c.b16 %v5376, %v5372
      %v5453 = vpack.c.b16 %v5381, %v5377
      %v5454 = vpack.c.b16 %v5382, %v5378
      %v5455 = vpack.c.b16 %v5383, %v5379
      %v5456 = vpack.c.b16 %v5384, %v5380
      %v5457 = vpack.c.b16 %v5389, %v5385
      %v5458 = vpack.c.b16 %v5390, %v5386
      %v5459 = vpack.c.b16 %v5391, %v5387
      %v5460 = vpack.c.b16 %v5392, %v5388
      %v5461 = vpack.c.b16 %v5397, %v5393
      %v5462 = vpack.c.b16 %v5398, %v5394
      %v5463 = vpack.c.b16 %v5399, %v5395
      %v5464 = vpack.c.b16 %v5400, %v5396
      %5529 = vmatprep.subr.bf16.mxu0 %v5402
      %5530 = vmatpush1.bf16.msra.mxu0 %v5401
      %5531 = vmatprep.subr.bf16.mxu0 %v5406
      %5532 = vmatpush1.bf16.msra.mxu0 %v5405
      %5533 = vmatprep.subr.bf16.mxu0 %v5410
      %5534 = vmatpush1.bf16.msra.mxu0 %v5409
      %5535 = vmatprep.subr.bf16.mxu0 %v5414
      %5536 = vmatpush1.bf16.msra.mxu0 %v5413
      %5537 = vmatprep.subr.bf16.mxu0 %v5418
      %5538 = vmatpush1.bf16.msra.mxu0 %v5417
      %5539 = vmatprep.subr.bf16.mxu0 %v5422
      %5540 = vmatpush1.bf16.msra.mxu0 %v5421
      %5541 = vmatprep.subr.bf16.mxu0 %v5426
      %5542 = vmatpush1.bf16.msra.mxu0 %v5425
      %5543 = vmatprep.subr.bf16.mxu0 %v5430
      %5544 = vmatpush1.bf16.msra.mxu0 %v5429
      %5545 = vmatprep.subr.bf16.mxu0 %v5434
      %5546 = vmatpush1.bf16.msra.mxu0 %v5433
      %5547 = vmatprep.subr.bf16.mxu0 %v5438
      %5548 = vmatpush1.bf16.msra.mxu0 %v5437
      %5549 = vmatprep.subr.bf16.mxu0 %v5442
      %5550 = vmatpush1.bf16.msra.mxu0 %v5441
      %5551 = vmatprep.subr.bf16.mxu0 %v5446
      %5552 = vmatpush1.bf16.msra.mxu0 %v5445
      %5553 = vmatprep.subr.bf16.mxu0 %v5450
      %5554 = vmatpush1.bf16.msra.mxu0 %v5449
      %5555 = vmatprep.subr.bf16.mxu0 %v5454
      %5556 = vmatpush1.bf16.msra.mxu0 %v5453
      %5557 = vmatprep.subr.bf16.mxu0 %v5458
      %5558 = vmatpush1.bf16.msra.mxu0 %v5457
      %5559 = vmatprep.subr.bf16.mxu0 %v5462
      %5560 = vmatpush1.bf16.msra.mxu0 %v5461
      %5561 = vmatprep.mubr.bf16.mxu0 %v5194
      %5562 = vmatmul.mubr.bf16.gmra.mrb[0].mxu0 %v5193
      %v5563 = vpop.f32.mrb[0].mxu0
      %v5564 = vadd.f32 0.0, %v5563
      %v5565 = vpop.f32.mrb[0].mxu0
      %v5566 = vadd.f32 0.0, %v5565
      %v5567 = vpop.f32.mrb[0].mxu0
      %v5568 = vadd.f32 0.0, %v5567
      %v5569 = vpop.f32.mrb[0].mxu0
      %v5570 = vadd.f32 0.0, %v5569
      %5571 = vmatprep.mubr.bf16.mxu0 %v5196
      %5572 = vmatmul.mubr.bf16.gmra.mrb[0].mxu0 %v5195
      %v5573 = vpop.f32.mrb[0].mxu0
      %v5574 = vadd.f32 0.0, %v5573
      %v5575 = vpop.f32.mrb[0].mxu0
      %v5576 = vadd.f32 0.0, %v5575
      %v5577 = vpop.f32.mrb[0].mxu0
      %v5578 = vadd.f32 0.0, %v5577
      %v5579 = vpop.f32.mrb[0].mxu0
      %v5580 = vadd.f32 0.0, %v5579
      %5581 = vmatprep.mubr.bf16.mxu0 %v5198
      %5582 = vmatmul.mubr.bf16.gmra.mrb[0].mxu0 %v5197
      %v5583 = vpop.f32.mrb[0].mxu0
      %v5584 = vadd.f32 0.0, %v5583
      %v5585 = vpop.f32.mrb[0].mxu0
      %v5586 = vadd.f32 0.0, %v5585
      %v5587 = vpop.f32.mrb[0].mxu0
      %v5588 = vadd.f32 0.0, %v5587
      %v5589 = vpop.f32.mrb[0].mxu0
      %v5590 = vadd.f32 0.0, %v5589
      %5591 = vmatprep.mubr.bf16.mxu0 %v5200
      %5592 = vmatmul.mubr.bf16.gmra.mrb[0].mxu0 %v5199
      %v5593 = vpop.f32.mrb[0].mxu0
      %v5594 = vadd.f32 0.0, %v5593
      %v5595 = vpop.f32.mrb[0].mxu0
      %v5596 = vadd.f32 0.0, %v5595
      %v5597 = vpop.f32.mrb[0].mxu0
      %v5598 = vadd.f32 0.0, %v5597
      %v5599 = vpop.f32.mrb[0].mxu0
      %v5600 = vadd.f32 0.0, %v5599
      %5601 = vdwg.mxu0
      %5602 = vmatprep.subr.bf16.mxu0 %v5404
      %5603 = vmatpush1.bf16.msra.mxu0 %v5403
      %5604 = vmatprep.subr.bf16.mxu0 %v5408
      %5605 = vmatpush1.bf16.msra.mxu0 %v5407
      %5606 = vmatprep.subr.bf16.mxu0 %v5412
      %5607 = vmatpush1.bf16.msra.mxu0 %v5411
      %5608 = vmatprep.subr.bf16.mxu0 %v5416
      %5609 = vmatpush1.bf16.msra.mxu0 %v5415
      %5610 = vmatprep.subr.bf16.mxu0 %v5420
      %5611 = vmatpush1.bf16.msra.mxu0 %v5419
      %5612 = vmatprep.subr.bf16.mxu0 %v5424
      %5613 = vmatpush1.bf16.msra.mxu0 %v5423
      %5614 = vmatprep.subr.bf16.mxu0 %v5428
      %5615 = vmatpush1.bf16.msra.mxu0 %v5427
      %5616 = vmatprep.subr.bf16.mxu0 %v5432
      %5617 = vmatpush1.bf16.msra.mxu0 %v5431
      %5618 = vmatprep.subr.bf16.mxu0 %v5436
      %5619 = vmatpush1.bf16.msra.mxu0 %v5435
      %5620 = vmatprep.subr.bf16.mxu0 %v5440
      %5621 = vmatpush1.bf16.msra.mxu0 %v5439
      %5622 = vmatprep.subr.bf16.mxu0 %v5444
      %5623 = vmatpush1.bf16.msra.mxu0 %v5443
      %5624 = vmatprep.subr.bf16.mxu0 %v5448
      %5625 = vmatpush1.bf16.msra.mxu0 %v5447
      %5626 = vmatprep.subr.bf16.mxu0 %v5452
      %5627 = vmatpush1.bf16.msra.mxu0 %v5451
      %5628 = vmatprep.subr.bf16.mxu0 %v5456
      %5629 = vmatpush1.bf16.msra.mxu0 %v5455
      %5630 = vmatprep.subr.bf16.mxu0 %v5460
      %5631 = vmatpush1.bf16.msra.mxu0 %v5459
      %5632 = vmatprep.subr.bf16.mxu0 %v5464
      %5633 = vmatpush1.bf16.msra.mxu0 %v5463
      %5634 = vmatprep.mubr.bf16.mxu0 %v5194
      %5635 = vmatmul.mubr.bf16.gmra.mrb[0].mxu0 %v5193
      %v5636 = vpop.f32.mrb[0].mxu0
      %v5637 = vadd.f32 0.0, %v5636
      %v5638 = vpop.f32.mrb[0].mxu0
      %v5639 = vadd.f32 0.0, %v5638
      %v5640 = vpop.f32.mrb[0].mxu0
      %v5641 = vadd.f32 0.0, %v5640
      %v5642 = vpop.f32.mrb[0].mxu0
      %v5643 = vadd.f32 0.0, %v5642
      %5644 = vmatprep.mubr.bf16.mxu0 %v5196
      %5645 = vmatmul.mubr.bf16.gmra.mrb[0].mxu0 %v5195
      %v5646 = vpop.f32.mrb[0].mxu0
      %v5647 = vadd.f32 0.0, %v5646
      %v5648 = vpop.f32.mrb[0].mxu0
      %v5649 = vadd.f32 0.0, %v5648
      %v5650 = vpop.f32.mrb[0].mxu0
      %v5651 = vadd.f32 0.0, %v5650
      %v5652 = vpop.f32.mrb[0].mxu0
      %v5653 = vadd.f32 0.0, %v5652
      %5654 = vmatprep.mubr.bf16.mxu0 %v5198
      %5655 = vmatmul.mubr.bf16.gmra.mrb[0].mxu0 %v5197
      %v5656 = vpop.f32.mrb[0].mxu0
      %v5657 = vadd.f32 0.0, %v5656
      %v5658 = vpop.f32.mrb[0].mxu0
      %v5659 = vadd.f32 0.0, %v5658
      %v5660 = vpop.f32.mrb[0].mxu0
      %v5661 = vadd.f32 0.0, %v5660
      %v5662 = vpop.f32.mrb[0].mxu0
      %v5663 = vadd.f32 0.0, %v5662
      %5664 = vmatprep.mubr.bf16.mxu0 %v5200
      %5665 = vmatmul.mubr.bf16.gmra.mrb[0].mxu0 %v5199
      %v5666 = vpop.f32.mrb[0].mxu0
      %v5667 = vadd.f32 0.0, %v5666
      %v5668 = vpop.f32.mrb[0].mxu0
      %v5669 = vadd.f32 0.0, %v5668
      %v5670 = vpop.f32.mrb[0].mxu0
      %v5671 = vadd.f32 0.0, %v5670
      %v5672 = vpop.f32.mrb[0].mxu0
      %v5673 = vadd.f32 0.0, %v5672
      %5674 = vdwg.mxu0
      %v5683 = vunpack.c.l.b16 %v4940
      %v5684 = vunpack.c.h.b16 %v4940
      %v5685 = vunpack.c.l.b16 %v4941
      %v5686 = vunpack.c.h.b16 %v4941
      %v5687 = vunpack.c.l.b16 %v4942
      %v5688 = vunpack.c.h.b16 %v4942
      %v5689 = vunpack.c.l.b16 %v4943
      %v5690 = vunpack.c.h.b16 %v4943
      %v5691 = vunpack.c.l.b16 %v4944
      %v5692 = vunpack.c.h.b16 %v4944
      %v5693 = vunpack.c.l.b16 %v4945
      %v5694 = vunpack.c.h.b16 %v4945
      %v5695 = vunpack.c.l.b16 %v4946
      %v5696 = vunpack.c.h.b16 %v4946
      %v5697 = vunpack.c.l.b16 %v4947
      %v5698 = vunpack.c.h.b16 %v4947
      %v5699 = vpack.c.b16 %v5685, %v5683
      %v5700 = vpack.c.b16 %v5686, %v5684
      %v5701 = vpack.c.b16 %v5689, %v5687
      %v5702 = vpack.c.b16 %v5690, %v5688
      %v5703 = vpack.c.b16 %v5693, %v5691
      %v5704 = vpack.c.b16 %v5694, %v5692
      %v5705 = vpack.c.b16 %v5697, %v5695
      %v5706 = vpack.c.b16 %v5698, %v5696
      %v5779 = vunpack.c.l.b16 %v4948
      %v5780 = vunpack.c.h.b16 %v4948
      %v5781 = vunpack.c.l.b16 %v4949
      %v5782 = vunpack.c.h.b16 %v4949
      %v5783 = vunpack.c.l.b16 %v4950
      %v5784 = vunpack.c.h.b16 %v4950
      %v5785 = vunpack.c.l.b16 %v4951
      %v5786 = vunpack.c.h.b16 %v4951
      %v5787 = vunpack.c.l.b16 %v4952
      %v5788 = vunpack.c.h.b16 %v4952
      %v5789 = vunpack.c.l.b16 %v4953
      %v5790 = vunpack.c.h.b16 %v4953
      %v5791 = vunpack.c.l.b16 %v4954
      %v5792 = vunpack.c.h.b16 %v4954
      %v5793 = vunpack.c.l.b16 %v4955
      %v5794 = vunpack.c.h.b16 %v4955
      %v5795 = vunpack.c.l.b16 %v4956
      %v5796 = vunpack.c.h.b16 %v4956
      %v5797 = vunpack.c.l.b16 %v4957
      %v5798 = vunpack.c.h.b16 %v4957
      %v5799 = vunpack.c.l.b16 %v4958
      %v5800 = vunpack.c.h.b16 %v4958
      %v5801 = vunpack.c.l.b16 %v4959
      %v5802 = vunpack.c.h.b16 %v4959
      %v5803 = vunpack.c.l.b16 %v4960
      %v5804 = vunpack.c.h.b16 %v4960
      %v5805 = vunpack.c.l.b16 %v4961
      %v5806 = vunpack.c.h.b16 %v4961
      %v5807 = vunpack.c.l.b16 %v4962
      %v5808 = vunpack.c.h.b16 %v4962
      %v5809 = vunpack.c.l.b16 %v4963
      %v5810 = vunpack.c.h.b16 %v4963
      %v5811 = vunpack.c.l.b16 %v4964
      %v5812 = vunpack.c.h.b16 %v4964
      %v5813 = vunpack.c.l.b16 %v4965
      %v5814 = vunpack.c.h.b16 %v4965
      %v5815 = vunpack.c.l.b16 %v4966
      %v5816 = vunpack.c.h.b16 %v4966
      %v5817 = vunpack.c.l.b16 %v4967
      %v5818 = vunpack.c.h.b16 %v4967
      %v5819 = vunpack.c.l.b16 %v4968
      %v5820 = vunpack.c.h.b16 %v4968
      %v5821 = vunpack.c.l.b16 %v4969
      %v5822 = vunpack.c.h.b16 %v4969
      %v5823 = vunpack.c.l.b16 %v4970
      %v5824 = vunpack.c.h.b16 %v4970
      %v5825 = vunpack.c.l.b16 %v4971
      %v5826 = vunpack.c.h.b16 %v4971
      %v5827 = vunpack.c.l.b16 %v4972
      %v5828 = vunpack.c.h.b16 %v4972
      %v5829 = vunpack.c.l.b16 %v4973
      %v5830 = vunpack.c.h.b16 %v4973
      %v5831 = vunpack.c.l.b16 %v4974
      %v5832 = vunpack.c.h.b16 %v4974
      %v5833 = vunpack.c.l.b16 %v4975
      %v5834 = vunpack.c.h.b16 %v4975
      %v5835 = vunpack.c.l.b16 %v4976
      %v5836 = vunpack.c.h.b16 %v4976
      %v5837 = vunpack.c.l.b16 %v4977
      %v5838 = vunpack.c.h.b16 %v4977
      %v5839 = vunpack.c.l.b16 %v4978
      %v5840 = vunpack.c.h.b16 %v4978
      %v5841 = vunpack.c.l.b16 %v4979
      %v5842 = vunpack.c.h.b16 %v4979
      %v5843 = vunpack.c.l.b16 %v4980
      %v5844 = vunpack.c.h.b16 %v4980
      %v5845 = vunpack.c.l.b16 %v4981
      %v5846 = vunpack.c.h.b16 %v4981
      %v5847 = vunpack.c.l.b16 %v4982
      %v5848 = vunpack.c.h.b16 %v4982
      %v5849 = vunpack.c.l.b16 %v4983
      %v5850 = vunpack.c.h.b16 %v4983
      %v5851 = vunpack.c.l.b16 %v4984
      %v5852 = vunpack.c.h.b16 %v4984
      %v5853 = vunpack.c.l.b16 %v4985
      %v5854 = vunpack.c.h.b16 %v4985
      %v5855 = vunpack.c.l.b16 %v4986
      %v5856 = vunpack.c.h.b16 %v4986
      %v5857 = vunpack.c.l.b16 %v4987
      %v5858 = vunpack.c.h.b16 %v4987
      %v5859 = vunpack.c.l.b16 %v4988
      %v5860 = vunpack.c.h.b16 %v4988
      %v5861 = vunpack.c.l.b16 %v4989
      %v5862 = vunpack.c.h.b16 %v4989
      %v5863 = vunpack.c.l.b16 %v4990
      %v5864 = vunpack.c.h.b16 %v4990
      %v5865 = vunpack.c.l.b16 %v4991
      %v5866 = vunpack.c.h.b16 %v4991
      %v5867 = vunpack.c.l.b16 %v4992
      %v5868 = vunpack.c.h.b16 %v4992
      %v5869 = vunpack.c.l.b16 %v4993
      %v5870 = vunpack.c.h.b16 %v4993
      %v5871 = vunpack.c.l.b16 %v4994
      %v5872 = vunpack.c.h.b16 %v4994
      %v5873 = vunpack.c.l.b16 %v4995
      %v5874 = vunpack.c.h.b16 %v4995
      %v5875 = vunpack.c.l.b16 %v4996
      %v5876 = vunpack.c.h.b16 %v4996
      %v5877 = vunpack.c.l.b16 %v4997
      %v5878 = vunpack.c.h.b16 %v4997
      %v5879 = vunpack.c.l.b16 %v4998
      %v5880 = vunpack.c.h.b16 %v4998
      %v5881 = vunpack.c.l.b16 %v4999
      %v5882 = vunpack.c.h.b16 %v4999
      %v5883 = vunpack.c.l.b16 %v5000
      %v5884 = vunpack.c.h.b16 %v5000
      %v5885 = vunpack.c.l.b16 %v5001
      %v5886 = vunpack.c.h.b16 %v5001
      %v5887 = vunpack.c.l.b16 %v5002
      %v5888 = vunpack.c.h.b16 %v5002
      %v5889 = vunpack.c.l.b16 %v5003
      %v5890 = vunpack.c.h.b16 %v5003
      %v5891 = vunpack.c.l.b16 %v5004
      %v5892 = vunpack.c.h.b16 %v5004
      %v5893 = vunpack.c.l.b16 %v5005
      %v5894 = vunpack.c.h.b16 %v5005
      %v5895 = vunpack.c.l.b16 %v5006
      %v5896 = vunpack.c.h.b16 %v5006
      %v5897 = vunpack.c.l.b16 %v5007
      %v5898 = vunpack.c.h.b16 %v5007
      %v5899 = vunpack.c.l.b16 %v5008
      %v5900 = vunpack.c.h.b16 %v5008
      %v5901 = vunpack.c.l.b16 %v5009
      %v5902 = vunpack.c.h.b16 %v5009
      %v5903 = vunpack.c.l.b16 %v5010
      %v5904 = vunpack.c.h.b16 %v5010
      %v5905 = vunpack.c.l.b16 %v5011
      %v5906 = vunpack.c.h.b16 %v5011
      %v5907 = vpack.c.b16 %v5783, %v5779
      %v5908 = vpack.c.b16 %v5784, %v5780
      %v5909 = vpack.c.b16 %v5785, %v5781
      %v5910 = vpack.c.b16 %v5786, %v5782
      %v5911 = vpack.c.b16 %v5791, %v5787
      %v5912 = vpack.c.b16 %v5792, %v5788
      %v5913 = vpack.c.b16 %v5793, %v5789
      %v5914 = vpack.c.b16 %v5794, %v5790
      %v5915 = vpack.c.b16 %v5799, %v5795
      %v5916 = vpack.c.b16 %v5800, %v5796
      %v5917 = vpack.c.b16 %v5801, %v5797
      %v5918 = vpack.c.b16 %v5802, %v5798
      %v5919 = vpack.c.b16 %v5807, %v5803
      %v5920 = vpack.c.b16 %v5808, %v5804
      %v5921 = vpack.c.b16 %v5809, %v5805
      %v5922 = vpack.c.b16 %v5810, %v5806
      %v5923 = vpack.c.b16 %v5815, %v5811
      %v5924 = vpack.c.b16 %v5816, %v5812
      %v5925 = vpack.c.b16 %v5817, %v5813
      %v5926 = vpack.c.b16 %v5818, %v5814
      %v5927 = vpack.c.b16 %v5823, %v5819
      %v5928 = vpack.c.b16 %v5824, %v5820
      %v5929 = vpack.c.b16 %v5825, %v5821
      %v5930 = vpack.c.b16 %v5826, %v5822
      %v5931 = vpack.c.b16 %v5831, %v5827
      %v5932 = vpack.c.b16 %v5832, %v5828
      %v5933 = vpack.c.b16 %v5833, %v5829
      %v5934 = vpack.c.b16 %v5834, %v5830
      %v5935 = vpack.c.b16 %v5839, %v5835
      %v5936 = vpack.c.b16 %v5840, %v5836
      %v5937 = vpack.c.b16 %v5841, %v5837
      %v5938 = vpack.c.b16 %v5842, %v5838
      %v5939 = vpack.c.b16 %v5847, %v5843
      %v5940 = vpack.c.b16 %v5848, %v5844
      %v5941 = vpack.c.b16 %v5849, %v5845
      %v5942 = vpack.c.b16 %v5850, %v5846
      %v5943 = vpack.c.b16 %v5855, %v5851
      %v5944 = vpack.c.b16 %v5856, %v5852
      %v5945 = vpack.c.b16 %v5857, %v5853
      %v5946 = vpack.c.b16 %v5858, %v5854
      %v5947 = vpack.c.b16 %v5863, %v5859
      %v5948 = vpack.c.b16 %v5864, %v5860
      %v5949 = vpack.c.b16 %v5865, %v5861
      %v5950 = vpack.c.b16 %v5866, %v5862
      %v5951 = vpack.c.b16 %v5871, %v5867
      %v5952 = vpack.c.b16 %v5872, %v5868
      %v5953 = vpack.c.b16 %v5873, %v5869
      %v5954 = vpack.c.b16 %v5874, %v5870
      %v5955 = vpack.c.b16 %v5879, %v5875
      %v5956 = vpack.c.b16 %v5880, %v5876
      %v5957 = vpack.c.b16 %v5881, %v5877
      %v5958 = vpack.c.b16 %v5882, %v5878
      %v5959 = vpack.c.b16 %v5887, %v5883
      %v5960 = vpack.c.b16 %v5888, %v5884
      %v5961 = vpack.c.b16 %v5889, %v5885
      %v5962 = vpack.c.b16 %v5890, %v5886
      %v5963 = vpack.c.b16 %v5895, %v5891
      %v5964 = vpack.c.b16 %v5896, %v5892
      %v5965 = vpack.c.b16 %v5897, %v5893
      %v5966 = vpack.c.b16 %v5898, %v5894
      %v5967 = vpack.c.b16 %v5903, %v5899
      %v5968 = vpack.c.b16 %v5904, %v5900
      %v5969 = vpack.c.b16 %v5905, %v5901
      %v5970 = vpack.c.b16 %v5906, %v5902
      %6035 = vmatprep.subr.bf16.mxu0 %v5908
      %6036 = vmatpush1.bf16.msra.mxu0 %v5907
      %6037 = vmatprep.subr.bf16.mxu0 %v5912
      %6038 = vmatpush1.bf16.msra.mxu0 %v5911
      %6039 = vmatprep.subr.bf16.mxu0 %v5916
      %6040 = vmatpush1.bf16.msra.mxu0 %v5915
      %6041 = vmatprep.subr.bf16.mxu0 %v5920
      %6042 = vmatpush1.bf16.msra.mxu0 %v5919
      %6043 = vmatprep.subr.bf16.mxu0 %v5924
      %6044 = vmatpush1.bf16.msra.mxu0 %v5923
      %6045 = vmatprep.subr.bf16.mxu0 %v5928
      %6046 = vmatpush1.bf16.msra.mxu0 %v5927
      %6047 = vmatprep.subr.bf16.mxu0 %v5932
      %6048 = vmatpush1.bf16.msra.mxu0 %v5931
      %6049 = vmatprep.subr.bf16.mxu0 %v5936
      %6050 = vmatpush1.bf16.msra.mxu0 %v5935
      %6051 = vmatprep.subr.bf16.mxu0 %v5940
      %6052 = vmatpush1.bf16.msra.mxu0 %v5939
      %6053 = vmatprep.subr.bf16.mxu0 %v5944
      %6054 = vmatpush1.bf16.msra.mxu0 %v5943
      %6055 = vmatprep.subr.bf16.mxu0 %v5948
      %6056 = vmatpush1.bf16.msra.mxu0 %v5947
      %6057 = vmatprep.subr.bf16.mxu0 %v5952
      %6058 = vmatpush1.bf16.msra.mxu0 %v5951
      %6059 = vmatprep.subr.bf16.mxu0 %v5956
      %6060 = vmatpush1.bf16.msra.mxu0 %v5955
      %6061 = vmatprep.subr.bf16.mxu0 %v5960
      %6062 = vmatpush1.bf16.msra.mxu0 %v5959
      %6063 = vmatprep.subr.bf16.mxu0 %v5964
      %6064 = vmatpush1.bf16.msra.mxu0 %v5963
      %6065 = vmatprep.subr.bf16.mxu0 %v5968
      %6066 = vmatpush1.bf16.msra.mxu0 %v5967
      %6067 = vmatprep.mubr.bf16.mxu0 %v5700
      %6068 = vmatmul.mubr.bf16.gmra.mrb[0].mxu0 %v5699
      %v6069 = vpop.f32.mrb[0].mxu0
      %v6070 = vadd.f32 %v5564, %v6069
      %v6071 = vpop.f32.mrb[0].mxu0
      %v6072 = vadd.f32 %v5566, %v6071
      %v6073 = vpop.f32.mrb[0].mxu0
      %v6074 = vadd.f32 %v5568, %v6073
      %v6075 = vpop.f32.mrb[0].mxu0
      %v6076 = vadd.f32 %v5570, %v6075
      %6077 = vmatprep.mubr.bf16.mxu0 %v5702
      %6078 = vmatmul.mubr.bf16.gmra.mrb[0].mxu0 %v5701
      %v6079 = vpop.f32.mrb[0].mxu0
      %v6080 = vadd.f32 %v5574, %v6079
      %v6081 = vpop.f32.mrb[0].mxu0
      %v6082 = vadd.f32 %v5576, %v6081
      %v6083 = vpop.f32.mrb[0].mxu0
      %v6084 = vadd.f32 %v5578, %v6083
      %v6085 = vpop.f32.mrb[0].mxu0
      %v6086 = vadd.f32 %v5580, %v6085
      %6087 = vmatprep.mubr.bf16.mxu0 %v5704
      %6088 = vmatmul.mubr.bf16.gmra.mrb[0].mxu0 %v5703
      %v6089 = vpop.f32.mrb[0].mxu0
      %v6090 = vadd.f32 %v5584, %v6089
      %v6091 = vpop.f32.mrb[0].mxu0
      %v6092 = vadd.f32 %v5586, %v6091
      %v6093 = vpop.f32.mrb[0].mxu0
      %v6094 = vadd.f32 %v5588, %v6093
      %v6095 = vpop.f32.mrb[0].mxu0
      %v6096 = vadd.f32 %v5590, %v6095
      %6097 = vmatprep.mubr.bf16.mxu0 %v5706
      %6098 = vmatmul.mubr.bf16.gmra.mrb[0].mxu0 %v5705
      %v6099 = vpop.f32.mrb[0].mxu0
      %v6100 = vadd.f32 %v5594, %v6099
      %v6101 = vpop.f32.mrb[0].mxu0
      %v6102 = vadd.f32 %v5596, %v6101
      %v6103 = vpop.f32.mrb[0].mxu0
      %v6104 = vadd.f32 %v5598, %v6103
      %v6105 = vpop.f32.mrb[0].mxu0
      %v6106 = vadd.f32 %v5600, %v6105
      %6107 = vdwg.mxu0
      %6108 = vmatprep.subr.bf16.mxu0 %v5910
      %6109 = vmatpush1.bf16.msra.mxu0 %v5909
      %6110 = vmatprep.subr.bf16.mxu0 %v5914
      %6111 = vmatpush1.bf16.msra.mxu0 %v5913
      %6112 = vmatprep.subr.bf16.mxu0 %v5918
      %6113 = vmatpush1.bf16.msra.mxu0 %v5917
      %6114 = vmatprep.subr.bf16.mxu0 %v5922
      %6115 = vmatpush1.bf16.msra.mxu0 %v5921
      %6116 = vmatprep.subr.bf16.mxu0 %v5926
      %6117 = vmatpush1.bf16.msra.mxu0 %v5925
      %6118 = vmatprep.subr.bf16.mxu0 %v5930
      %6119 = vmatpush1.bf16.msra.mxu0 %v5929
      %6120 = vmatprep.subr.bf16.mxu0 %v5934
      %6121 = vmatpush1.bf16.msra.mxu0 %v5933
      %6122 = vmatprep.subr.bf16.mxu0 %v5938
      %6123 = vmatpush1.bf16.msra.mxu0 %v5937
      %6124 = vmatprep.subr.bf16.mxu0 %v5942
      %6125 = vmatpush1.bf16.msra.mxu0 %v5941
      %6126 = vmatprep.subr.bf16.mxu0 %v5946
      %6127 = vmatpush1.bf16.msra.mxu0 %v5945
      %6128 = vmatprep.subr.bf16.mxu0 %v5950
      %6129 = vmatpush1.bf16.msra.mxu0 %v5949
      %6130 = vmatprep.subr.bf16.mxu0 %v5954
      %6131 = vmatpush1.bf16.msra.mxu0 %v5953
      %6132 = vmatprep.subr.bf16.mxu0 %v5958
      %6133 = vmatpush1.bf16.msra.mxu0 %v5957
      %6134 = vmatprep.subr.bf16.mxu0 %v5962
      %6135 = vmatpush1.bf16.msra.mxu0 %v5961
      %6136 = vmatprep.subr.bf16.mxu0 %v5966
      %6137 = vmatpush1.bf16.msra.mxu0 %v5965
      %6138 = vmatprep.subr.bf16.mxu0 %v5970
      %6139 = vmatpush1.bf16.msra.mxu0 %v5969
      %6140 = vmatprep.mubr.bf16.mxu0 %v5700
      %6141 = vmatmul.mubr.bf16.gmra.mrb[0].mxu0 %v5699
      %v6142 = vpop.f32.mrb[0].mxu0
      %v6143 = vadd.f32 %v5637, %v6142
      %v6144 = vpop.f32.mrb[0].mxu0
      %v6145 = vadd.f32 %v5639, %v6144
      %v6146 = vpop.f32.mrb[0].mxu0
      %v6147 = vadd.f32 %v5641, %v6146
      %v6148 = vpop.f32.mrb[0].mxu0
      %v6149 = vadd.f32 %v5643, %v6148
      %6150 = vmatprep.mubr.bf16.mxu0 %v5702
      %6151 = vmatmul.mubr.bf16.gmra.mrb[0].mxu0 %v5701
      %v6152 = vpop.f32.mrb[0].mxu0
      %v6153 = vadd.f32 %v5647, %v6152
      %v6154 = vpop.f32.mrb[0].mxu0
      %v6155 = vadd.f32 %v5649, %v6154
      %v6156 = vpop.f32.mrb[0].mxu0
      %v6157 = vadd.f32 %v5651, %v6156
      %v6158 = vpop.f32.mrb[0].mxu0
      %v6159 = vadd.f32 %v5653, %v6158
      %6160 = vmatprep.mubr.bf16.mxu0 %v5704
      %6161 = vmatmul.mubr.bf16.gmra.mrb[0].mxu0 %v5703
      %v6162 = vpop.f32.mrb[0].mxu0
      %v6163 = vadd.f32 %v5657, %v6162
      %v6164 = vpop.f32.mrb[0].mxu0
      %v6165 = vadd.f32 %v5659, %v6164
      %v6166 = vpop.f32.mrb[0].mxu0
      %v6167 = vadd.f32 %v5661, %v6166
      %v6168 = vpop.f32.mrb[0].mxu0
      %v6169 = vadd.f32 %v5663, %v6168
      %6170 = vmatprep.mubr.bf16.mxu0 %v5706
      %6171 = vmatmul.mubr.bf16.gmra.mrb[0].mxu0 %v5705
      %v6172 = vpop.f32.mrb[0].mxu0
      %v6173 = vadd.f32 %v5667, %v6172
      %v6174 = vpop.f32.mrb[0].mxu0
      %v6175 = vadd.f32 %v5669, %v6174
      %v6176 = vpop.f32.mrb[0].mxu0
      %v6177 = vadd.f32 %v5671, %v6176
      %v6178 = vpop.f32.mrb[0].mxu0
      %v6179 = vadd.f32 %v5673, %v6178
      %6180 = vdwg.mxu0
      %v6181 = vld [vmem:[#allocation5] sm:$0xee]
      %v6182 = vld [vmem:[#allocation5 + $0x18] sm:$0xee]
      %v6183 = vld [vmem:[#allocation5 + $0x30] sm:$0xee]
      %v6184 = vld [vmem:[#allocation5 + $0x48] sm:$0xee]
      %v6193 = vrot.slane %v6181, 5
      %v6194 = vrot.slane %v6193, 4
      %v6195 = vrot.slane %v4941, 5
      %v6196 = vsel %vm2091, %v6194, %v6195
      %v6197 = vrot.slane %v6195, 4
      %v6198 = vrot.slane %v5012, 5
      %v6199 = vsel %vm2091, %v6197, %v6198
      %v6200 = vrot.slane %v6182, 5
      %v6201 = vrot.slane %v6200, 4
      %v6202 = vrot.slane %v4943, 5
      %v6203 = vsel %vm2091, %v6201, %v6202
      %v6204 = vrot.slane %v6202, 4
      %v6205 = vrot.slane %v5013, 5
      %v6206 = vsel %vm2091, %v6204, %v6205
      %v6207 = vrot.slane %v6183, 5
      %v6208 = vrot.slane %v6207, 4
      %v6209 = vrot.slane %v4945, 5
      %v6210 = vsel %vm2091, %v6208, %v6209
      %v6211 = vrot.slane %v6209, 4
      %v6212 = vrot.slane %v5014, 5
      %v6213 = vsel %vm2091, %v6211, %v6212
      %v6214 = vrot.slane %v6184, 5
      %v6215 = vrot.slane %v6214, 4
      %v6216 = vrot.slane %v4947, 5
      %v6217 = vsel %vm2091, %v6215, %v6216
      %v6218 = vrot.slane %v6216, 4
      %v6219 = vrot.slane %v5015, 5
      %v6220 = vsel %vm2091, %v6218, %v6219
      %s6221 = scalar_lea.vmem %s7, 1024
      %v6222 = vld [vmem:[%s6221] sm:$0xff]
      %v6223 = vld [vmem:[%s6221 + $0x8] sm:$0xff]
      %v6224 = vld [vmem:[%s6221 + $0x10] sm:$0xff]
      %v6225 = vld [vmem:[%s6221 + $0x18] sm:$0xff]
      %v6226 = vld [vmem:[%s6221 + $0x20] sm:$0xff]
      %v6227 = vld [vmem:[%s6221 + $0x28] sm:$0xff]
      %v6228 = vld [vmem:[%s6221 + $0x30] sm:$0xff]
      %v6229 = vld [vmem:[%s6221 + $0x38] sm:$0xff]
      %v6230 = vld [vmem:[%s6221 + $0x40] sm:$0xff]
      %v6231 = vld [vmem:[%s6221 + $0x48] sm:$0xff]
      %v6232 = vld [vmem:[%s6221 + $0x50] sm:$0xff]
      %v6233 = vld [vmem:[%s6221 + $0x58] sm:$0xff]
      %v6234 = vld [vmem:[%s6221 + $0x60] sm:$0xff]
      %v6235 = vld [vmem:[%s6221 + $0x68] sm:$0xff]
      %v6236 = vld [vmem:[%s6221 + $0x70] sm:$0xff]
      %v6237 = vld [vmem:[%s6221 + $0x78] sm:$0xff]
      %v6238 = vld [vmem:[%s6221 + $0x80] sm:$0xff]
      %v6239 = vld [vmem:[%s6221 + $0x88] sm:$0xff]
      %v6240 = vld [vmem:[%s6221 + $0x90] sm:$0xff]
      %v6241 = vld [vmem:[%s6221 + $0x98] sm:$0xff]
      %v6242 = vld [vmem:[%s6221 + $0xa0] sm:$0xff]
      %v6243 = vld [vmem:[%s6221 + $0xa8] sm:$0xff]
      %v6244 = vld [vmem:[%s6221 + $0xb0] sm:$0xff]
      %v6245 = vld [vmem:[%s6221 + $0xb8] sm:$0xff]
      %v6246 = vld [vmem:[%s6221 + $0xc0] sm:$0xff]
      %v6247 = vld [vmem:[%s6221 + $0xc8] sm:$0xff]
      %v6248 = vld [vmem:[%s6221 + $0xd0] sm:$0xff]
      %v6249 = vld [vmem:[%s6221 + $0xd8] sm:$0xff]
      %v6250 = vld [vmem:[%s6221 + $0xe0] sm:$0xff]
      %v6251 = vld [vmem:[%s6221 + $0xe8] sm:$0xff]
      %v6252 = vld [vmem:[%s6221 + $0xf0] sm:$0xff]
      %v6253 = vld [vmem:[%s6221 + $0xf8] sm:$0xff]
      %v6254 = vld [vmem:[%s6221 + $0x100] sm:$0xff]
      %v6255 = vld [vmem:[%s6221 + $0x108] sm:$0xff]
      %v6256 = vld [vmem:[%s6221 + $0x110] sm:$0xff]
      %v6257 = vld [vmem:[%s6221 + $0x118] sm:$0xff]
      %v6258 = vld [vmem:[%s6221 + $0x120] sm:$0xff]
      %v6259 = vld [vmem:[%s6221 + $0x128] sm:$0xff]
      %v6260 = vld [vmem:[%s6221 + $0x130] sm:$0xff]
      %v6261 = vld [vmem:[%s6221 + $0x138] sm:$0xff]
      %v6262 = vld [vmem:[%s6221 + $0x140] sm:$0xff]
      %v6263 = vld [vmem:[%s6221 + $0x148] sm:$0xff]
      %v6264 = vld [vmem:[%s6221 + $0x150] sm:$0xff]
      %v6265 = vld [vmem:[%s6221 + $0x158] sm:$0xff]
      %v6266 = vld [vmem:[%s6221 + $0x160] sm:$0xff]
      %v6267 = vld [vmem:[%s6221 + $0x168] sm:$0xff]
      %v6268 = vld [vmem:[%s6221 + $0x170] sm:$0xff]
      %v6269 = vld [vmem:[%s6221 + $0x178] sm:$0xff]
      %v6270 = vld [vmem:[%s6221 + $0x180] sm:$0xff]
      %v6271 = vld [vmem:[%s6221 + $0x188] sm:$0xff]
      %v6272 = vld [vmem:[%s6221 + $0x190] sm:$0xff]
      %v6273 = vld [vmem:[%s6221 + $0x198] sm:$0xff]
      %v6274 = vld [vmem:[%s6221 + $0x1a0] sm:$0xff]
      %v6275 = vld [vmem:[%s6221 + $0x1a8] sm:$0xff]
      %v6276 = vld [vmem:[%s6221 + $0x1b0] sm:$0xff]
      %v6277 = vld [vmem:[%s6221 + $0x1b8] sm:$0xff]
      %v6278 = vld [vmem:[%s6221 + $0x1c0] sm:$0xff]
      %v6279 = vld [vmem:[%s6221 + $0x1c8] sm:$0xff]
      %v6280 = vld [vmem:[%s6221 + $0x1d0] sm:$0xff]
      %v6281 = vld [vmem:[%s6221 + $0x1d8] sm:$0xff]
      %v6282 = vld [vmem:[%s6221 + $0x1e0] sm:$0xff]
      %v6283 = vld [vmem:[%s6221 + $0x1e8] sm:$0xff]
      %v6284 = vld [vmem:[%s6221 + $0x1f0] sm:$0xff]
      %v6285 = vld [vmem:[%s6221 + $0x1f8] sm:$0xff]
      %v6286 = vunpack.c.l.b16 %v6196
      %v6287 = vunpack.c.h.b16 %v6196
      %v6288 = vunpack.c.l.b16 %v6199
      %v6289 = vunpack.c.h.b16 %v6199
      %v6290 = vunpack.c.l.b16 %v6203
      %v6291 = vunpack.c.h.b16 %v6203
      %v6292 = vunpack.c.l.b16 %v6206
      %v6293 = vunpack.c.h.b16 %v6206
      %v6294 = vunpack.c.l.b16 %v6210
      %v6295 = vunpack.c.h.b16 %v6210
      %v6296 = vunpack.c.l.b16 %v6213
      %v6297 = vunpack.c.h.b16 %v6213
      %v6298 = vunpack.c.l.b16 %v6217
      %v6299 = vunpack.c.h.b16 %v6217
      %v6300 = vunpack.c.l.b16 %v6220
      %v6301 = vunpack.c.h.b16 %v6220
      %v6302 = vpack.c.b16 %v6288, %v6286
      %v6303 = vpack.c.b16 %v6289, %v6287
      %v6304 = vpack.c.b16 %v6292, %v6290
      %v6305 = vpack.c.b16 %v6293, %v6291
      %v6306 = vpack.c.b16 %v6296, %v6294
      %v6307 = vpack.c.b16 %v6297, %v6295
      %v6308 = vpack.c.b16 %v6300, %v6298
      %v6309 = vpack.c.b16 %v6301, %v6299
      %v6382 = vunpack.c.l.b16 %v6222
      %v6383 = vunpack.c.h.b16 %v6222
      %v6384 = vunpack.c.l.b16 %v6223
      %v6385 = vunpack.c.h.b16 %v6223
      %v6386 = vunpack.c.l.b16 %v6224
      %v6387 = vunpack.c.h.b16 %v6224
      %v6388 = vunpack.c.l.b16 %v6225
      %v6389 = vunpack.c.h.b16 %v6225
      %v6390 = vunpack.c.l.b16 %v6226
      %v6391 = vunpack.c.h.b16 %v6226
      %v6392 = vunpack.c.l.b16 %v6227
      %v6393 = vunpack.c.h.b16 %v6227
      %v6394 = vunpack.c.l.b16 %v6228
      %v6395 = vunpack.c.h.b16 %v6228
      %v6396 = vunpack.c.l.b16 %v6229
      %v6397 = vunpack.c.h.b16 %v6229
      %v6398 = vunpack.c.l.b16 %v6230
      %v6399 = vunpack.c.h.b16 %v6230
      %v6400 = vunpack.c.l.b16 %v6231
      %v6401 = vunpack.c.h.b16 %v6231
      %v6402 = vunpack.c.l.b16 %v6232
      %v6403 = vunpack.c.h.b16 %v6232
      %v6404 = vunpack.c.l.b16 %v6233
      %v6405 = vunpack.c.h.b16 %v6233
      %v6406 = vunpack.c.l.b16 %v6234
      %v6407 = vunpack.c.h.b16 %v6234
      %v6408 = vunpack.c.l.b16 %v6235
      %v6409 = vunpack.c.h.b16 %v6235
      %v6410 = vunpack.c.l.b16 %v6236
      %v6411 = vunpack.c.h.b16 %v6236
      %v6412 = vunpack.c.l.b16 %v6237
      %v6413 = vunpack.c.h.b16 %v6237
      %v6414 = vunpack.c.l.b16 %v6238
      %v6415 = vunpack.c.h.b16 %v6238
      %v6416 = vunpack.c.l.b16 %v6239
      %v6417 = vunpack.c.h.b16 %v6239
      %v6418 = vunpack.c.l.b16 %v6240
      %v6419 = vunpack.c.h.b16 %v6240
      %v6420 = vunpack.c.l.b16 %v6241
      %v6421 = vunpack.c.h.b16 %v6241
      %v6422 = vunpack.c.l.b16 %v6242
      %v6423 = vunpack.c.h.b16 %v6242
      %v6424 = vunpack.c.l.b16 %v6243
      %v6425 = vunpack.c.h.b16 %v6243
      %v6426 = vunpack.c.l.b16 %v6244
      %v6427 = vunpack.c.h.b16 %v6244
      %v6428 = vunpack.c.l.b16 %v6245
      %v6429 = vunpack.c.h.b16 %v6245
      %v6430 = vunpack.c.l.b16 %v6246
      %v6431 = vunpack.c.h.b16 %v6246
      %v6432 = vunpack.c.l.b16 %v6247
      %v6433 = vunpack.c.h.b16 %v6247
      %v6434 = vunpack.c.l.b16 %v6248
      %v6435 = vunpack.c.h.b16 %v6248
      %v6436 = vunpack.c.l.b16 %v6249
      %v6437 = vunpack.c.h.b16 %v6249
      %v6438 = vunpack.c.l.b16 %v6250
      %v6439 = vunpack.c.h.b16 %v6250
      %v6440 = vunpack.c.l.b16 %v6251
      %v6441 = vunpack.c.h.b16 %v6251
      %v6442 = vunpack.c.l.b16 %v6252
      %v6443 = vunpack.c.h.b16 %v6252
      %v6444 = vunpack.c.l.b16 %v6253
      %v6445 = vunpack.c.h.b16 %v6253
      %v6446 = vunpack.c.l.b16 %v6254
      %v6447 = vunpack.c.h.b16 %v6254
      %v6448 = vunpack.c.l.b16 %v6255
      %v6449 = vunpack.c.h.b16 %v6255
      %v6450 = vunpack.c.l.b16 %v6256
      %v6451 = vunpack.c.h.b16 %v6256
      %v6452 = vunpack.c.l.b16 %v6257
      %v6453 = vunpack.c.h.b16 %v6257
      %v6454 = vunpack.c.l.b16 %v6258
      %v6455 = vunpack.c.h.b16 %v6258
      %v6456 = vunpack.c.l.b16 %v6259
      %v6457 = vunpack.c.h.b16 %v6259
      %v6458 = vunpack.c.l.b16 %v6260
      %v6459 = vunpack.c.h.b16 %v6260
      %v6460 = vunpack.c.l.b16 %v6261
      %v6461 = vunpack.c.h.b16 %v6261
      %v6462 = vunpack.c.l.b16 %v6262
      %v6463 = vunpack.c.h.b16 %v6262
      %v6464 = vunpack.c.l.b16 %v6263
      %v6465 = vunpack.c.h.b16 %v6263
      %v6466 = vunpack.c.l.b16 %v6264
      %v6467 = vunpack.c.h.b16 %v6264
      %v6468 = vunpack.c.l.b16 %v6265
      %v6469 = vunpack.c.h.b16 %v6265
      %v6470 = vunpack.c.l.b16 %v6266
      %v6471 = vunpack.c.h.b16 %v6266
      %v6472 = vunpack.c.l.b16 %v6267
      %v6473 = vunpack.c.h.b16 %v6267
      %v6474 = vunpack.c.l.b16 %v6268
      %v6475 = vunpack.c.h.b16 %v6268
      %v6476 = vunpack.c.l.b16 %v6269
      %v6477 = vunpack.c.h.b16 %v6269
      %v6478 = vunpack.c.l.b16 %v6270
      %v6479 = vunpack.c.h.b16 %v6270
      %v6480 = vunpack.c.l.b16 %v6271
      %v6481 = vunpack.c.h.b16 %v6271
      %v6482 = vunpack.c.l.b16 %v6272
      %v6483 = vunpack.c.h.b16 %v6272
      %v6484 = vunpack.c.l.b16 %v6273
      %v6485 = vunpack.c.h.b16 %v6273
      %v6486 = vunpack.c.l.b16 %v6274
      %v6487 = vunpack.c.h.b16 %v6274
      %v6488 = vunpack.c.l.b16 %v6275
      %v6489 = vunpack.c.h.b16 %v6275
      %v6490 = vunpack.c.l.b16 %v6276
      %v6491 = vunpack.c.h.b16 %v6276
      %v6492 = vunpack.c.l.b16 %v6277
      %v6493 = vunpack.c.h.b16 %v6277
      %v6494 = vunpack.c.l.b16 %v6278
      %v6495 = vunpack.c.h.b16 %v6278
      %v6496 = vunpack.c.l.b16 %v6279
      %v6497 = vunpack.c.h.b16 %v6279
      %v6498 = vunpack.c.l.b16 %v6280
      %v6499 = vunpack.c.h.b16 %v6280
      %v6500 = vunpack.c.l.b16 %v6281
      %v6501 = vunpack.c.h.b16 %v6281
      %v6502 = vunpack.c.l.b16 %v6282
      %v6503 = vunpack.c.h.b16 %v6282
      %v6504 = vunpack.c.l.b16 %v6283
      %v6505 = vunpack.c.h.b16 %v6283
      %v6506 = vunpack.c.l.b16 %v6284
      %v6507 = vunpack.c.h.b16 %v6284
      %v6508 = vunpack.c.l.b16 %v6285
      %v6509 = vunpack.c.h.b16 %v6285
      %v6510 = vpack.c.b16 %v6386, %v6382
      %v6511 = vpack.c.b16 %v6387, %v6383
      %v6512 = vpack.c.b16 %v6388, %v6384
      %v6513 = vpack.c.b16 %v6389, %v6385
      %v6514 = vpack.c.b16 %v6394, %v6390
      %v6515 = vpack.c.b16 %v6395, %v6391
      %v6516 = vpack.c.b16 %v6396, %v6392
      %v6517 = vpack.c.b16 %v6397, %v6393
      %v6518 = vpack.c.b16 %v6402, %v6398
      %v6519 = vpack.c.b16 %v6403, %v6399
      %v6520 = vpack.c.b16 %v6404, %v6400
      %v6521 = vpack.c.b16 %v6405, %v6401
      %v6522 = vpack.c.b16 %v6410, %v6406
      %v6523 = vpack.c.b16 %v6411, %v6407
      %v6524 = vpack.c.b16 %v6412, %v6408
      %v6525 = vpack.c.b16 %v6413, %v6409
      %v6526 = vpack.c.b16 %v6418, %v6414
      %v6527 = vpack.c.b16 %v6419, %v6415
      %v6528 = vpack.c.b16 %v6420, %v6416
      %v6529 = vpack.c.b16 %v6421, %v6417
      %v6530 = vpack.c.b16 %v6426, %v6422
      %v6531 = vpack.c.b16 %v6427, %v6423
      %v6532 = vpack.c.b16 %v6428, %v6424
      %v6533 = vpack.c.b16 %v6429, %v6425
      %v6534 = vpack.c.b16 %v6434, %v6430
      %v6535 = vpack.c.b16 %v6435, %v6431
      %v6536 = vpack.c.b16 %v6436, %v6432
      %v6537 = vpack.c.b16 %v6437, %v6433
      %v6538 = vpack.c.b16 %v6442, %v6438
      %v6539 = vpack.c.b16 %v6443, %v6439
      %v6540 = vpack.c.b16 %v6444, %v6440
      %v6541 = vpack.c.b16 %v6445, %v6441
      %v6542 = vpack.c.b16 %v6450, %v6446
      %v6543 = vpack.c.b16 %v6451, %v6447
      %v6544 = vpack.c.b16 %v6452, %v6448
      %v6545 = vpack.c.b16 %v6453, %v6449
      %v6546 = vpack.c.b16 %v6458, %v6454
      %v6547 = vpack.c.b16 %v6459, %v6455
      %v6548 = vpack.c.b16 %v6460, %v6456
      %v6549 = vpack.c.b16 %v6461, %v6457
      %v6550 = vpack.c.b16 %v6466, %v6462
      %v6551 = vpack.c.b16 %v6467, %v6463
      %v6552 = vpack.c.b16 %v6468, %v6464
      %v6553 = vpack.c.b16 %v6469, %v6465
      %v6554 = vpack.c.b16 %v6474, %v6470
      %v6555 = vpack.c.b16 %v6475, %v6471
      %v6556 = vpack.c.b16 %v6476, %v6472
      %v6557 = vpack.c.b16 %v6477, %v6473
      %v6558 = vpack.c.b16 %v6482, %v6478
      %v6559 = vpack.c.b16 %v6483, %v6479
      %v6560 = vpack.c.b16 %v6484, %v6480
      %v6561 = vpack.c.b16 %v6485, %v6481
      %v6562 = vpack.c.b16 %v6490, %v6486
      %v6563 = vpack.c.b16 %v6491, %v6487
      %v6564 = vpack.c.b16 %v6492, %v6488
      %v6565 = vpack.c.b16 %v6493, %v6489
      %v6566 = vpack.c.b16 %v6498, %v6494
      %v6567 = vpack.c.b16 %v6499, %v6495
      %v6568 = vpack.c.b16 %v6500, %v6496
      %v6569 = vpack.c.b16 %v6501, %v6497
      %v6570 = vpack.c.b16 %v6506, %v6502
      %v6571 = vpack.c.b16 %v6507, %v6503
      %v6572 = vpack.c.b16 %v6508, %v6504
      %v6573 = vpack.c.b16 %v6509, %v6505
      %6638 = vmatprep.subr.bf16.mxu0 %v6511
      %6639 = vmatpush1.bf16.msra.mxu0 %v6510
      %6640 = vmatprep.subr.bf16.mxu0 %v6515
      %6641 = vmatpush1.bf16.msra.mxu0 %v6514
      %6642 = vmatprep.subr.bf16.mxu0 %v6519
      %6643 = vmatpush1.bf16.msra.mxu0 %v6518
      %6644 = vmatprep.subr.bf16.mxu0 %v6523
      %6645 = vmatpush1.bf16.msra.mxu0 %v6522
      %6646 = vmatprep.subr.bf16.mxu0 %v6527
      %6647 = vmatpush1.bf16.msra.mxu0 %v6526
      %6648 = vmatprep.subr.bf16.mxu0 %v6531
      %6649 = vmatpush1.bf16.msra.mxu0 %v6530
      %6650 = vmatprep.subr.bf16.mxu0 %v6535
      %6651 = vmatpush1.bf16.msra.mxu0 %v6534
      %6652 = vmatprep.subr.bf16.mxu0 %v6539
      %6653 = vmatpush1.bf16.msra.mxu0 %v6538
      %6654 = vmatprep.subr.bf16.mxu0 %v6543
      %6655 = vmatpush1.bf16.msra.mxu0 %v6542
      %6656 = vmatprep.subr.bf16.mxu0 %v6547
      %6657 = vmatpush1.bf16.msra.mxu0 %v6546
      %6658 = vmatprep.subr.bf16.mxu0 %v6551
      %6659 = vmatpush1.bf16.msra.mxu0 %v6550
      %6660 = vmatprep.subr.bf16.mxu0 %v6555
      %6661 = vmatpush1.bf16.msra.mxu0 %v6554
      %6662 = vmatprep.subr.bf16.mxu0 %v6559
      %6663 = vmatpush1.bf16.msra.mxu0 %v6558
      %6664 = vmatprep.subr.bf16.mxu0 %v6563
      %6665 = vmatpush1.bf16.msra.mxu0 %v6562
      %6666 = vmatprep.subr.bf16.mxu0 %v6567
      %6667 = vmatpush1.bf16.msra.mxu0 %v6566
      %6668 = vmatprep.subr.bf16.mxu0 %v6571
      %6669 = vmatpush1.bf16.msra.mxu0 %v6570
      %6670 = vmatprep.mubr.bf16.mxu0 %v6303
      %6671 = vmatmul.mubr.bf16.gmra.mrb[0].mxu0 %v6302
      %v6672 = vpop.f32.mrb[0].mxu0
      %v6673 = vadd.f32 0.0, %v6672
      %v6674 = vpop.f32.mrb[0].mxu0
      %v6675 = vadd.f32 0.0, %v6674
      %v6676 = vpop.f32.mrb[0].mxu0
      %v6677 = vadd.f32 0.0, %v6676
      %v6678 = vpop.f32.mrb[0].mxu0
      %v6679 = vadd.f32 0.0, %v6678
      %6680 = vmatprep.mubr.bf16.mxu0 %v6305
      %6681 = vmatmul.mubr.bf16.gmra.mrb[0].mxu0 %v6304
      %v6682 = vpop.f32.mrb[0].mxu0
      %v6683 = vadd.f32 0.0, %v6682
      %v6684 = vpop.f32.mrb[0].mxu0
      %v6685 = vadd.f32 0.0, %v6684
      %v6686 = vpop.f32.mrb[0].mxu0
      %v6687 = vadd.f32 0.0, %v6686
      %v6688 = vpop.f32.mrb[0].mxu0
      %v6689 = vadd.f32 0.0, %v6688
      %6690 = vmatprep.mubr.bf16.mxu0 %v6307
      %6691 = vmatmul.mubr.bf16.gmra.mrb[0].mxu0 %v6306
      %v6692 = vpop.f32.mrb[0].mxu0
      %v6693 = vadd.f32 0.0, %v6692
      %v6694 = vpop.f32.mrb[0].mxu0
      %v6695 = vadd.f32 0.0, %v6694
      %v6696 = vpop.f32.mrb[0].mxu0
      %v6697 = vadd.f32 0.0, %v6696
      %v6698 = vpop.f32.mrb[0].mxu0
      %v6699 = vadd.f32 0.0, %v6698
      %6700 = vmatprep.mubr.bf16.mxu0 %v6309
      %6701 = vmatmul.mubr.bf16.gmra.mrb[0].mxu0 %v6308
      %v6702 = vpop.f32.mrb[0].mxu0
      %v6703 = vadd.f32 0.0, %v6702
      %v6704 = vpop.f32.mrb[0].mxu0
      %v6705 = vadd.f32 0.0, %v6704
      %v6706 = vpop.f32.mrb[0].mxu0
      %v6707 = vadd.f32 0.0, %v6706
      %v6708 = vpop.f32.mrb[0].mxu0
      %v6709 = vadd.f32 0.0, %v6708
      %6710 = vdwg.mxu0
      %6711 = vmatprep.subr.bf16.mxu0 %v6513
      %6712 = vmatpush1.bf16.msra.mxu0 %v6512
      %6713 = vmatprep.subr.bf16.mxu0 %v6517
      %6714 = vmatpush1.bf16.msra.mxu0 %v6516
      %6715 = vmatprep.subr.bf16.mxu0 %v6521
      %6716 = vmatpush1.bf16.msra.mxu0 %v6520
      %6717 = vmatprep.subr.bf16.mxu0 %v6525
      %6718 = vmatpush1.bf16.msra.mxu0 %v6524
      %6719 = vmatprep.subr.bf16.mxu0 %v6529
      %6720 = vmatpush1.bf16.msra.mxu0 %v6528
      %6721 = vmatprep.subr.bf16.mxu0 %v6533
      %6722 = vmatpush1.bf16.msra.mxu0 %v6532
      %6723 = vmatprep.subr.bf16.mxu0 %v6537
      %6724 = vmatpush1.bf16.msra.mxu0 %v6536
      %6725 = vmatprep.subr.bf16.mxu0 %v6541
      %6726 = vmatpush1.bf16.msra.mxu0 %v6540
      %6727 = vmatprep.subr.bf16.mxu0 %v6545
      %6728 = vmatpush1.bf16.msra.mxu0 %v6544
      %6729 = vmatprep.subr.bf16.mxu0 %v6549
      %6730 = vmatpush1.bf16.msra.mxu0 %v6548
      %6731 = vmatprep.subr.bf16.mxu0 %v6553
      %6732 = vmatpush1.bf16.msra.mxu0 %v6552
      %6733 = vmatprep.subr.bf16.mxu0 %v6557
      %6734 = vmatpush1.bf16.msra.mxu0 %v6556
      %6735 = vmatprep.subr.bf16.mxu0 %v6561
      %6736 = vmatpush1.bf16.msra.mxu0 %v6560
      %6737 = vmatprep.subr.bf16.mxu0 %v6565
      %6738 = vmatpush1.bf16.msra.mxu0 %v6564
      %6739 = vmatprep.subr.bf16.mxu0 %v6569
      %6740 = vmatpush1.bf16.msra.mxu0 %v6568
      %6741 = vmatprep.subr.bf16.mxu0 %v6573
      %6742 = vmatpush1.bf16.msra.mxu0 %v6572
      %6743 = vmatprep.mubr.bf16.mxu0 %v6303
      %6744 = vmatmul.mubr.bf16.gmra.mrb[0].mxu0 %v6302
      %v6745 = vpop.f32.mrb[0].mxu0
      %v6746 = vadd.f32 0.0, %v6745
      %v6747 = vpop.f32.mrb[0].mxu0
      %v6748 = vadd.f32 0.0, %v6747
      %v6749 = vpop.f32.mrb[0].mxu0
      %v6750 = vadd.f32 0.0, %v6749
      %v6751 = vpop.f32.mrb[0].mxu0
      %v6752 = vadd.f32 0.0, %v6751
      %6753 = vmatprep.mubr.bf16.mxu0 %v6305
      %6754 = vmatmul.mubr.bf16.gmra.mrb[0].mxu0 %v6304
      %v6755 = vpop.f32.mrb[0].mxu0
      %v6756 = vadd.f32 0.0, %v6755
      %v6757 = vpop.f32.mrb[0].mxu0
      %v6758 = vadd.f32 0.0, %v6757
      %v6759 = vpop.f32.mrb[0].mxu0
      %v6760 = vadd.f32 0.0, %v6759
      %v6761 = vpop.f32.mrb[0].mxu0
      %v6762 = vadd.f32 0.0, %v6761
      %6763 = vmatprep.mubr.bf16.mxu0 %v6307
      %6764 = vmatmul.mubr.bf16.gmra.mrb[0].mxu0 %v6306
      %v6765 = vpop.f32.mrb[0].mxu0
      %v6766 = vadd.f32 0.0, %v6765
      %v6767 = vpop.f32.mrb[0].mxu0
      %v6768 = vadd.f32 0.0, %v6767
      %v6769 = vpop.f32.mrb[0].mxu0
      %v6770 = vadd.f32 0.0, %v6769
      %v6771 = vpop.f32.mrb[0].mxu0
      %v6772 = vadd.f32 0.0, %v6771
      %6773 = vmatprep.mubr.bf16.mxu0 %v6309
      %6774 = vmatmul.mubr.bf16.gmra.mrb[0].mxu0 %v6308
      %v6775 = vpop.f32.mrb[0].mxu0
      %v6776 = vadd.f32 0.0, %v6775
      %v6777 = vpop.f32.mrb[0].mxu0
      %v6778 = vadd.f32 0.0, %v6777
      %v6779 = vpop.f32.mrb[0].mxu0
      %v6780 = vadd.f32 0.0, %v6779
      %v6781 = vpop.f32.mrb[0].mxu0
      %v6782 = vadd.f32 0.0, %v6781
      %6783 = vdwg.mxu0
      %v6784 = vadd.f32 %v6070, %v6673
      %v6785 = vadd.f32 %v6072, %v6675
      %v6786 = vadd.f32 %v6143, %v6746
      %v6787 = vadd.f32 %v6145, %v6748
      %v6788 = vadd.f32 %v6074, %v6677
      %v6789 = vadd.f32 %v6076, %v6679
      %v6790 = vadd.f32 %v6147, %v6750
      %v6791 = vadd.f32 %v6149, %v6752
      %v6792 = vadd.f32 %v6080, %v6683
      %v6793 = vadd.f32 %v6082, %v6685
      %v6794 = vadd.f32 %v6153, %v6756
      %v6795 = vadd.f32 %v6155, %v6758
      %v6796 = vadd.f32 %v6084, %v6687
      %v6797 = vadd.f32 %v6086, %v6689
      %v6798 = vadd.f32 %v6157, %v6760
      %v6799 = vadd.f32 %v6159, %v6762
      %v6800 = vadd.f32 %v6090, %v6693
      %v6801 = vadd.f32 %v6092, %v6695
      %v6802 = vadd.f32 %v6163, %v6766
      %v6803 = vadd.f32 %v6165, %v6768
      %v6804 = vadd.f32 %v6094, %v6697
      %v6805 = vadd.f32 %v6096, %v6699
      %v6806 = vadd.f32 %v6167, %v6770
      %v6807 = vadd.f32 %v6169, %v6772
      %v6808 = vadd.f32 %v6100, %v6703
      %v6809 = vadd.f32 %v6102, %v6705
      %v6810 = vadd.f32 %v6173, %v6776
      %v6811 = vadd.f32 %v6175, %v6778
      %v6812 = vadd.f32 %v6104, %v6707
      %v6813 = vadd.f32 %v6106, %v6709
      %v6814 = vadd.f32 %v6177, %v6780
      %v6815 = vadd.f32 %v6179, %v6782
      %v6816 = vld [vmem:[%s8] sm:$0xf]
      %v6818 = vlaneseq
      %v6819 = vshrl.u32 %v6818, 7
      %v6820 = vsub.s32 0, %v6819
      %v6821 = vrot.slane %v6816, %v6820
      %v6822 = vlaneseq
      %v6823 = vshrl.u32 %v6822, 7
      %v6824 = vsub.s32 1, %v6823
      %v6825 = vrot.slane %v6816, %v6824
      %v6826 = vlaneseq
      %v6827 = vshrl.u32 %v6826, 7
      %v6828 = vsub.s32 2, %v6827
      %v6829 = vrot.slane %v6816, %v6828
      %v6830 = vlaneseq
      %v6831 = vshrl.u32 %v6830, 7
      %v6832 = vsub.s32 3, %v6831
      %v6833 = vrot.slane %v6816, %v6832
      %v6838 = vadd.f32 %v6784, %v6821
      %v6839 = vadd.f32 %v6785, %v6825
      %v6840 = vadd.f32 %v6786, %v6829
      %v6841 = vadd.f32 %v6787, %v6833
      %v6842 = vadd.f32 %v6788, %v6821
      %v6843 = vadd.f32 %v6789, %v6825
      %v6844 = vadd.f32 %v6790, %v6829
      %v6845 = vadd.f32 %v6791, %v6833
      %v6846 = vadd.f32 %v6792, %v6821
      %v6847 = vadd.f32 %v6793, %v6825
      %v6848 = vadd.f32 %v6794, %v6829
      %v6849 = vadd.f32 %v6795, %v6833
      %v6850 = vadd.f32 %v6796, %v6821
      %v6851 = vadd.f32 %v6797, %v6825
      %v6852 = vadd.f32 %v6798, %v6829
      %v6853 = vadd.f32 %v6799, %v6833
      %v6854 = vadd.f32 %v6800, %v6821
      %v6855 = vadd.f32 %v6801, %v6825
      %v6856 = vadd.f32 %v6802, %v6829
      %v6857 = vadd.f32 %v6803, %v6833
      %v6858 = vadd.f32 %v6804, %v6821
      %v6859 = vadd.f32 %v6805, %v6825
      %v6860 = vadd.f32 %v6806, %v6829
      %v6861 = vadd.f32 %v6807, %v6833
      %v6862 = vadd.f32 %v6808, %v6821
      %v6863 = vadd.f32 %v6809, %v6825
      %v6864 = vadd.f32 %v6810, %v6829
      %v6865 = vadd.f32 %v6811, %v6833
      %v6866 = vadd.f32 %v6812, %v6821
      %v6867 = vadd.f32 %v6813, %v6825
      %v6868 = vadd.f32 %v6814, %v6829
      %v6869 = vadd.f32 %v6815, %v6833
      %v6870 = vxor.u32 %v6838, 2147483648
      %v6871 = vxor.u32 %v6839, 2147483648
      %v6872 = vxor.u32 %v6840, 2147483648
      %v6873 = vxor.u32 %v6841, 2147483648
      %v6874 = vxor.u32 %v6842, 2147483648
      %v6875 = vxor.u32 %v6843, 2147483648
      %v6876 = vxor.u32 %v6844, 2147483648
      %v6877 = vxor.u32 %v6845, 2147483648
      %v6878 = vxor.u32 %v6846, 2147483648
      %v6879 = vxor.u32 %v6847, 2147483648
      %v6880 = vxor.u32 %v6848, 2147483648
      %v6881 = vxor.u32 %v6849, 2147483648
      %v6882 = vxor.u32 %v6850, 2147483648
      %v6883 = vxor.u32 %v6851, 2147483648
      %v6884 = vxor.u32 %v6852, 2147483648
      %v6885 = vxor.u32 %v6853, 2147483648
      %v6886 = vxor.u32 %v6854, 2147483648
      %v6887 = vxor.u32 %v6855, 2147483648
      %v6888 = vxor.u32 %v6856, 2147483648
      %v6889 = vxor.u32 %v6857, 2147483648
      %v6890 = vxor.u32 %v6858, 2147483648
      %v6891 = vxor.u32 %v6859, 2147483648
      %v6892 = vxor.u32 %v6860, 2147483648
      %v6893 = vxor.u32 %v6861, 2147483648
      %v6894 = vxor.u32 %v6862, 2147483648
      %v6895 = vxor.u32 %v6863, 2147483648
      %v6896 = vxor.u32 %v6864, 2147483648
      %v6897 = vxor.u32 %v6865, 2147483648
      %v6898 = vxor.u32 %v6866, 2147483648
      %v6899 = vxor.u32 %v6867, 2147483648
      %v6900 = vxor.u32 %v6868, 2147483648
      %v6901 = vxor.u32 %v6869, 2147483648
      %v6902 = vmul.f32 %v6870, 1.442695
      %v6903 = vpow.pop %v6902
      %v6904 = vmul.f32 %v6871, 1.442695
      %v6905 = vpow.pop %v6904
      %v6906 = vmul.f32 %v6872, 1.442695
      %v6907 = vpow.pop %v6906
      %v6908 = vmul.f32 %v6873, 1.442695
      %v6909 = vpow.pop %v6908
      %v6910 = vmul.f32 %v6874, 1.442695
      %v6911 = vpow.pop %v6910
      %v6912 = vmul.f32 %v6875, 1.442695
      %v6913 = vpow.pop %v6912
      %v6914 = vmul.f32 %v6876, 1.442695
      %v6915 = vpow.pop %v6914
      %v6916 = vmul.f32 %v6877, 1.442695
      %v6917 = vpow.pop %v6916
      %v6918 = vmul.f32 %v6878, 1.442695
      %v6919 = vpow.pop %v6918
      %v6920 = vmul.f32 %v6879, 1.442695
      %v6921 = vpow.pop %v6920
      %v6922 = vmul.f32 %v6880, 1.442695
      %v6923 = vpow.pop %v6922
      %v6924 = vmul.f32 %v6881, 1.442695
      %v6925 = vpow.pop %v6924
      %v6926 = vmul.f32 %v6882, 1.442695
      %v6927 = vpow.pop %v6926
      %v6928 = vmul.f32 %v6883, 1.442695
      %v6929 = vpow.pop %v6928
      %v6930 = vmul.f32 %v6884, 1.442695
      %v6931 = vpow.pop %v6930
      %v6932 = vmul.f32 %v6885, 1.442695
      %v6933 = vpow.pop %v6932
      %v6934 = vmul.f32 %v6886, 1.442695
      %v6935 = vpow.pop %v6934
      %v6936 = vmul.f32 %v6887, 1.442695
      %v6937 = vpow.pop %v6936
      %v6938 = vmul.f32 %v6888, 1.442695
      %v6939 = vpow.pop %v6938
      %v6940 = vmul.f32 %v6889, 1.442695
      %v6941 = vpow.pop %v6940
      %v6942 = vmul.f32 %v6890, 1.442695
      %v6943 = vpow.pop %v6942
      %v6944 = vmul.f32 %v6891, 1.442695
      %v6945 = vpow.pop %v6944
      %v6946 = vmul.f32 %v6892, 1.442695
      %v6947 = vpow.pop %v6946
      %v6948 = vmul.f32 %v6893, 1.442695
      %v6949 = vpow.pop %v6948
      %v6950 = vmul.f32 %v6894, 1.442695
      %v6951 = vpow.pop %v6950
      %v6952 = vmul.f32 %v6895, 1.442695
      %v6953 = vpow.pop %v6952
      %v6954 = vmul.f32 %v6896, 1.442695
      %v6955 = vpow.pop %v6954
      %v6956 = vmul.f32 %v6897, 1.442695
      %v6957 = vpow.pop %v6956
      %v6958 = vmul.f32 %v6898, 1.442695
      %v6959 = vpow.pop %v6958
      %v6960 = vmul.f32 %v6899, 1.442695
      %v6961 = vpow.pop %v6960
      %v6962 = vmul.f32 %v6900, 1.442695
      %v6963 = vpow.pop %v6962
      %v6964 = vmul.f32 %v6901, 1.442695
      %v6965 = vpow.pop %v6964
      %v6966 = vadd.f32 %v6903, 1.0
      %v6967 = vadd.f32 %v6905, 1.0
      %v6968 = vadd.f32 %v6907, 1.0
      %v6969 = vadd.f32 %v6909, 1.0
      %v6970 = vadd.f32 %v6911, 1.0
      %v6971 = vadd.f32 %v6913, 1.0
      %v6972 = vadd.f32 %v6915, 1.0
      %v6973 = vadd.f32 %v6917, 1.0
      %v6974 = vadd.f32 %v6919, 1.0
      %v6975 = vadd.f32 %v6921, 1.0
      %v6976 = vadd.f32 %v6923, 1.0
      %v6977 = vadd.f32 %v6925, 1.0
      %v6978 = vadd.f32 %v6927, 1.0
      %v6979 = vadd.f32 %v6929, 1.0
      %v6980 = vadd.f32 %v6931, 1.0
      %v6981 = vadd.f32 %v6933, 1.0
      %v6982 = vadd.f32 %v6935, 1.0
      %v6983 = vadd.f32 %v6937, 1.0
      %v6984 = vadd.f32 %v6939, 1.0
      %v6985 = vadd.f32 %v6941, 1.0
      %v6986 = vadd.f32 %v6943, 1.0
      %v6987 = vadd.f32 %v6945, 1.0
      %v6988 = vadd.f32 %v6947, 1.0
      %v6989 = vadd.f32 %v6949, 1.0
      %v6990 = vadd.f32 %v6951, 1.0
      %v6991 = vadd.f32 %v6953, 1.0
      %v6992 = vadd.f32 %v6955, 1.0
      %v6993 = vadd.f32 %v6957, 1.0
      %v6994 = vadd.f32 %v6959, 1.0
      %v6995 = vadd.f32 %v6961, 1.0
      %v6996 = vadd.f32 %v6963, 1.0
      %v6997 = vadd.f32 %v6965, 1.0
      %v6998 = vrcp.pop %v6966
      %v6999 = vmul.f32 1.0, %v6998
      %v7000 = vrcp.pop %v6967
      %v7001 = vmul.f32 1.0, %v7000
      %v7002 = vrcp.pop %v6968
      %v7003 = vmul.f32 1.0, %v7002
      %v7004 = vrcp.pop %v6969
      %v7005 = vmul.f32 1.0, %v7004
      %v7006 = vrcp.pop %v6970
      %v7007 = vmul.f32 1.0, %v7006
      %v7008 = vrcp.pop %v6971
      %v7009 = vmul.f32 1.0, %v7008
      %v7010 = vrcp.pop %v6972
      %v7011 = vmul.f32 1.0, %v7010
      %v7012 = vrcp.pop %v6973
      %v7013 = vmul.f32 1.0, %v7012
      %v7014 = vrcp.pop %v6974
      %v7015 = vmul.f32 1.0, %v7014
      %v7016 = vrcp.pop %v6975
      %v7017 = vmul.f32 1.0, %v7016
      %v7018 = vrcp.pop %v6976
      %v7019 = vmul.f32 1.0, %v7018
      %v7020 = vrcp.pop %v6977
      %v7021 = vmul.f32 1.0, %v7020
      %v7022 = vrcp.pop %v6978
      %v7023 = vmul.f32 1.0, %v7022
      %v7024 = vrcp.pop %v6979
      %v7025 = vmul.f32 1.0, %v7024
      %v7026 = vrcp.pop %v6980
      %v7027 = vmul.f32 1.0, %v7026
      %v7028 = vrcp.pop %v6981
      %v7029 = vmul.f32 1.0, %v7028
      %v7030 = vrcp.pop %v6982
      %v7031 = vmul.f32 1.0, %v7030
      %v7032 = vrcp.pop %v6983
      %v7033 = vmul.f32 1.0, %v7032
      %v7034 = vrcp.pop %v6984
      %v7035 = vmul.f32 1.0, %v7034
      %v7036 = vrcp.pop %v6985
      %v7037 = vmul.f32 1.0, %v7036
      %v7038 = vrcp.pop %v6986
      %v7039 = vmul.f32 1.0, %v7038
      %v7040 = vrcp.pop %v6987
      %v7041 = vmul.f32 1.0, %v7040
      %v7042 = vrcp.pop %v6988
      %v7043 = vmul.f32 1.0, %v7042
      %v7044 = vrcp.pop %v6989
      %v7045 = vmul.f32 1.0, %v7044
      %v7046 = vrcp.pop %v6990
      %v7047 = vmul.f32 1.0, %v7046
      %v7048 = vrcp.pop %v6991
      %v7049 = vmul.f32 1.0, %v7048
      %v7050 = vrcp.pop %v6992
      %v7051 = vmul.f32 1.0, %v7050
      %v7052 = vrcp.pop %v6993
      %v7053 = vmul.f32 1.0, %v7052
      %v7054 = vrcp.pop %v6994
      %v7055 = vmul.f32 1.0, %v7054
      %v7056 = vrcp.pop %v6995
      %v7057 = vmul.f32 1.0, %v7056
      %v7058 = vrcp.pop %v6996
      %v7059 = vmul.f32 1.0, %v7058
      %v7060 = vrcp.pop %v6997
      %v7061 = vmul.f32 1.0, %v7060
      %7062 = vst [vmem:[%s339] sm:$0xff] %v6999
      %7063 = vst [vmem:[%s339 + $0x8] sm:$0xff] %v7001
      %7064 = vst [vmem:[%s339 + $0x10] sm:$0xff] %v7003
      %7065 = vst [vmem:[%s339 + $0x18] sm:$0xff] %v7005
      %7066 = vst [vmem:[%s339 + $0x20] sm:$0xff] %v7007
      %7067 = vst [vmem:[%s339 + $0x28] sm:$0xff] %v7009
      %7068 = vst [vmem:[%s339 + $0x30] sm:$0xff] %v7011
      %7069 = vst [vmem:[%s339 + $0x38] sm:$0xff] %v7013
      %7070 = vst [vmem:[%s339 + $0x40] sm:$0xff] %v7015
      %7071 = vst [vmem:[%s339 + $0x48] sm:$0xff] %v7017
      %7072 = vst [vmem:[%s339 + $0x50] sm:$0xff] %v7019
      %7073 = vst [vmem:[%s339 + $0x58] sm:$0xff] %v7021
      %7074 = vst [vmem:[%s339 + $0x60] sm:$0xff] %v7023
      %7075 = vst [vmem:[%s339 + $0x68] sm:$0xff] %v7025
      %7076 = vst [vmem:[%s339 + $0x70] sm:$0xff] %v7027
      %7077 = vst [vmem:[%s339 + $0x78] sm:$0xff] %v7029
      %7078 = vst [vmem:[%s339 + $0x80] sm:$0xff] %v7031
      %7079 = vst [vmem:[%s339 + $0x88] sm:$0xff] %v7033
      %7080 = vst [vmem:[%s339 + $0x90] sm:$0xff] %v7035
      %7081 = vst [vmem:[%s339 + $0x98] sm:$0xff] %v7037
      %7082 = vst [vmem:[%s339 + $0xa0] sm:$0xff] %v7039
      %7083 = vst [vmem:[%s339 + $0xa8] sm:$0xff] %v7041
      %7084 = vst [vmem:[%s339 + $0xb0] sm:$0xff] %v7043
      %7085 = vst [vmem:[%s339 + $0xb8] sm:$0xff] %v7045
      %7086 = vst [vmem:[%s339 + $0xc0] sm:$0xff] %v7047
      %7087 = vst [vmem:[%s339 + $0xc8] sm:$0xff] %v7049
      %7088 = vst [vmem:[%s339 + $0xd0] sm:$0xff] %v7051
      %7089 = vst [vmem:[%s339 + $0xd8] sm:$0xff] %v7053
      %7090 = vst [vmem:[%s339 + $0xe0] sm:$0xff] %v7055
      %7091 = vst [vmem:[%s339 + $0xe8] sm:$0xff] %v7057
      %7092 = vst [vmem:[%s339 + $0xf0] sm:$0xff] %v7059
      %7093 = vst [vmem:[%s339 + $0xf8] sm:$0xff] %v7061
      %s7094 = smul.u32 4, %s20
      %p7095 = scmp.lt.s32.totalorder %s7094, 7
      %s7096 = scalar_select %p7095, %s7094, 7
      %s7097 = smul.addr %s7096, 8
      %s7098 = smul.addr %s7097, 8
      %s7099 = scalar_lea.vmem %s9, %s7098
      // Predicated region
      $region57: #{denoising_autoencoder_forward_impl.1} parent=55 // pred_check
        %p7100 = pneg %p232
      $region58: #{denoising_autoencoder_forward_impl.1} parent=55 // pred_check_branch
        %7102 = sbr.rel (%p7100) target = $region60
      $region59: #{denoising_autoencoder_forward_impl.1} parent=55 // pred_region
        %s7103 = smul.u32 4, %s20
      $region60: #{denoising_autoencoder_forward_impl.1} parent=55 // pred_fallthru
        _
    $region56: #{denoising_autoencoder_forward_impl.1} parent=5 // pred_fallthru
      _
    %p7104 = scmp.le.s32.totalorder 2, %s15
    // Predicated region
    $region61: #{denoising_autoencoder_forward_impl.1} parent=5 // pred_check
      %p7105 = pneg %p7104
    $region62: #{denoising_autoencoder_forward_impl.1} parent=5 // pred_check_branch
      %7107 = sbr.rel (%p7105) target = $region64
    $region63: #{denoising_autoencoder_forward_impl.1} parent=5 // pred_region
      %s7108 = ssub.s32 %s15, 2
      // Predicated region
      $region65: #{denoising_autoencoder_forward_impl.1} parent=63 // pred_check
        %p7109 = pneg %p238
      $region66: #{denoising_autoencoder_forward_impl.1} parent=63 // pred_check_branch
        %7111 = sbr.rel (%p7109) target = $region68
      $region67: #{denoising_autoencoder_forward_impl.1} parent=63 // pred_region
        %s7112 = smul.u32 4, %s21
        %p7113 = scmp.lt.s32.totalorder %s7112, 7
        %s7114 = scalar_select %p7113, %s7112, 7
        %s7115 = smul.addr %s7114, 8
        %s7116 = smul.addr %s7115, 8
        %s7117 = scalar_lea.vmem %s9, %s7116
      $region68: #{denoising_autoencoder_forward_impl.1} parent=63 // pred_fallthru
        _
    $region64: #{denoising_autoencoder_forward_impl.1} parent=5 // pred_fallthru
      _
  $region6: #{denoising_autoencoder_forward_impl.1} parent=0 // loop_footer
    %s19 = sadd.s32 1, %s15
  $region7: #{denoising_autoencoder_forward_impl.1} parent=0 // loop_footer_branch
    %14 = sbr.rel target = $region3
  $region8: #{denoising_autoencoder_forward_impl.1} parent=0 // loop_exit
    _

</llo_original>
